<compile_context>
chip_gen: v5e
topology: v5e:2x2
jax: 0.10.0
libtpu: 0.0.40
codegen_flags: <defaults>
</compile_context>

<pallas_src>
import functools
import math

import jax
import jax.numpy as jnp
from jax.experimental import pallas as pl
from jax.experimental.pallas import tpu as pltpu

DTYPE = jnp.float32               # torch.float16 -> f32 on TPU (robust elementwise)
SCALING_FACTOR = 0.18215          # vae.config.scaling_factor
NUM_TRAIN_TIMESTEPS = 1000        # noise_scheduler.config.num_train_timesteps
SEQ_LEN = 77                      # tokenize_caption max_length
SEQ_PAD = 80                      # 77 -> 80 sublane-aligned key length (masked)
D_MODEL = 32                      # text-encoder hidden size (scaled down)
VOCAB = 1000
LATENT_C = 4                      # SD latent channels
IMG = 16                          # image spatial size
LAT = IMG // 2                    # latent spatial size
SLAB_W = 64                       # lane width of the packed weight/bias slabs
CPAD = 16                         # lane width of the shared conv scratch (max Cin)


def _pick_mxu_dtype():
    # v5e/v5p: no bf16 VPU path and the tiny matmuls are MXU-latency bound, so the
    # f32->bf16 casts are pure VALU overhead -> feed f32 to the MXU.
    # v6e/v7x: keep bf16 MXU inputs (single-pass), accumulation stays f32.
    try:
        kind = jax.devices()[0].device_kind.lower()
    except Exception:
        return jnp.bfloat16
    return jnp.float32 if "v5" in kind else jnp.bfloat16


MXU_DTYPE = _pick_mxu_dtype()


# ------------------------- packed-parameter layout --------------------------- #
# Every weight lives at a static (row_offset, rows, cols) in one (W_ROWS, 64) f32
# slab; every bias is one row of a (B_ROWS, 64) slab.  Static slices of a VMEM ref
# are free, and two DMAs replace ~25 tiny operand transfers per launch.

_W_LAYOUT = (
    ("vae_c1", 27, 16), ("vae_c2", 144, 8), ("cn_cond", 27, 4),
    ("cn_in", 36, 4), ("cn_d0", 36, 4), ("cn_d1", 36, 4), ("cn_mid", 36, 4),
    ("un_in", 36, 4), ("un_out", 36, 4),
    ("time_w1", 32, 32), ("time_proj", 32, 8),
    ("txt_w1", 32, 32), ("txt_w2", 32, 32),
    ("un_q", 4, 32), ("un_kv", 32, 64), ("un_o", 32, 4),
)
_B_LAYOUT = (
    ("vae_c1", 16), ("vae_c2", 8), ("cn_cond", 4),
    ("cn_in", 4), ("cn_d0", 4), ("cn_d1", 4), ("cn_mid", 4),
    ("un_in", 4), ("un_out", 4),
    ("time_b1", 32), ("time_proj", 8),
    ("txt_b1", 32), ("txt_b2", 32),
    ("un_q", 32), ("un_kv", 64), ("un_o", 4),
)


def _round8(n):
    return (n + 7) & ~7


W_OFF = {}
_off = 0
for _name, _r, _c in _W_LAYOUT:
    W_OFF[_name] = (_off, _r, _c)
    _off += _round8(_r)            # 8-aligned row offsets -> aligned sublane slices
W_ROWS = _off
B_ROW = {name: (i, c) for i, (name, c) in enumerate(_B_LAYOUT)}
B_ROWS = len(_B_LAYOUT)


# --------------------------- in-kernel helpers ------------------------------- #

def _silu(x):
    return x * jax.nn.sigmoid(x)


def _mdot(a, b):
    """MXU matmul with f32 accumulation (bf16 inputs on v6e/v7x, f32 on v5)."""
    return jnp.dot(a.astype(MXU_DTYPE), b.astype(MXU_DTYPE),
                   preferred_element_type=jnp.float32)


def _mdot_nt(a, b):
    """a @ b.T without materializing the transpose (contract dim 1 of both)."""
    return jax.lax.dot_general(a.astype(MXU_DTYPE), b.astype(MXU_DTYPE),
                               (((1,), (1,)), ((), ())),
                               preferred_element_type=jnp.float32)


_TAPS = tuple((i, j) for i in range(3) for j in range(3))


def _conv3x3_same(pad_ref, x2d, w9, b_row, H, W, Cin, Cout):
    """3x3 / stride-1 / pad-1 conv on a (H*W, Cin) VMEM-resident activation.

    Implemented as 9 accumulated (H*W, Cin) @ (Cin, Cout) MXU matmuls (one per
    kernel tap) over shifted windows of the shared zero-bordered
    (H+2, W+2, CPAD) scratch; only the first Cin lanes are used.  This replaces
    the old 9-way lane concat (masked selects / cross-lane shifts at Cin=4) with
    work on the otherwise idle MXU.  w9 row order is (ki, kj, cin), i.e. a
    (3, 3, Cin, Cout) kernel reshaped to (9*Cin, Cout).
    """
    pad_ref[1:H + 1, 1:W + 1, :Cin] = x2d.reshape(H, W, Cin)
    acc = None
    for t, (i, j) in enumerate(_TAPS):
        win = pad_ref[i:i + H, j:j + W, :Cin].reshape(H * W, Cin)
        part = _mdot(win, w9[t * Cin:(t + 1) * Cin, :])
        acc = part if acc is None else acc + part
    return acc + b_row


# ------------------------------ fused kernel --------------------------------- #

def _fused_kernel(img_col_ref, cond_col_ref, eps_ref, noise_ref, sasb_ref,
                  sin_ref, txt_ref, w_ref, b_ref, out_ref, pad_ref,
                  *, H, W, L, Lvalid):
    """Entire training forward for one batch element (grid axis = batch):
    VAE encoder -> latent sample * scale -> scheduler.add_noise -> ControlNet
    trunk (residual sum) -> UNet (text encoder, time proj, conv-in, masked
    cross-attention, residual injection, conv-out).  All intermediates stay in
    VMEM; the timestep MLP is computed exactly once.
    """
    C = LATENT_C
    D = D_MODEL

    def Wm(name):
        off, r, c = W_OFF[name]
        return w_ref[off:off + r, :c]

    def Bv(name):
        row, c = B_ROW[name]
        return b_ref[row:row + 1, :c]

    # Zero only the 1-pixel border of the shared conv scratch (interior is fully
    # overwritten by every conv).  Re-done each grid step so each TensorCore's
    # private scratch is initialized under the parallel batch split.
    zr = jnp.zeros((1, W + 2, CPAD), jnp.float32)
    zc = jnp.zeros((H + 2, 1, CPAD), jnp.float32)
    pad_ref[0:1, :, :] = zr
    pad_ref[H + 1:H + 2, :, :] = zr
    pad_ref[:, 0:1, :] = zc
    pad_ref[:, W + 1:W + 2, :] = zc

    # ---- VAE encoder + latent_dist.sample()*scaling_factor + add_noise ----
    h16 = _silu(_mdot(img_col_ref[0], Wm("vae_c1")) + Bv("vae_c1"))          # (HW,16)
    moments = _conv3x3_same(pad_ref, h16, Wm("vae_c2"), Bv("vae_c2"), H, W, 16, 2 * C)
    mean = moments[:, :C]
    logvar = jnp.clip(moments[:, C:], -30.0, 20.0)
    latents = (mean + jnp.exp(0.5 * logvar) * eps_ref[0]) * SCALING_FACTOR
    sa = sasb_ref[0, :, 0:1]                                                 # (1,1)
    sb = sasb_ref[0, :, 1:2]
    noisy = sa * latents + sb * noise_ref[0]                                 # (HW, C)

    # ---- shared timestep MLP (once) + fused ControlNet|UNet time projection ----
    temb = _silu(_mdot(sin_ref[0], Wm("time_w1")) + Bv("time_b1"))           # (1, D)
    tproj = _mdot(temb, Wm("time_proj")) + Bv("time_proj")                   # (1, 2C)
    t_cn = tproj[:, :C]
    t_un = tproj[:, C:]

    # ---- text encoder (sole consumer is the UNet cross-attention) ----
    t1 = _silu(_mdot(txt_ref[0], Wm("txt_w1")) + Bv("txt_b1"))
    text = _mdot(t1, Wm("txt_w2")) + Bv("txt_b2")                            # (L, D)

    # ---- ControlNet trunk ----
    # TODO(synk): real ControlNet also cross-attends to the text embeddings inside
    # its blocks; here text conditioning is applied only in the UNet block.
    cond = _silu(_mdot(cond_col_ref[0], Wm("cn_cond")) + Bv("cn_cond"))      # (HW, C)
    h = _conv3x3_same(pad_ref, noisy, Wm("cn_in"), Bv("cn_in"), H, W, C, C)
    h = _silu(h + cond + t_cn)
    d0 = _conv3x3_same(pad_ref, h, Wm("cn_d0"), Bv("cn_d0"), H, W, C, C)
    d1 = _conv3x3_same(pad_ref, _silu(d0), Wm("cn_d1"), Bv("cn_d1"), H, W, C, C)
    mid = _conv3x3_same(pad_ref, _silu(d1), Wm("cn_mid"), Bv("cn_mid"), H, W, C, C)
    res = d0 + d1 + mid            # UNet only consumes the residual sum

    # ---- UNet: conv-in + time shift ----
    h = _conv3x3_same(pad_ref, noisy, Wm("un_in"), Bv("un_in"), H, W, C, C) + t_un

    # fused cross-attention: q/k/v projections + masked f32 softmax + out-proj
    q = _mdot(h, Wm("un_q")) + Bv("un_q")                                    # (HW, D)
    kv = _mdot(text, Wm("un_kv")) + Bv("un_kv")                              # (L, 2D)
    k = kv[:, :D]
    v = kv[:, D:]
    s = _mdot_nt(q, k) * (1.0 / math.sqrt(D))                                # (HW, L)
    kmask = jax.lax.broadcasted_iota(jnp.int32, s.shape, 1) < Lvalid         # pad mask
    s = jnp.where(kmask, s, -1e30)
    s = s - jnp.max(s, axis=-1, keepdims=True)
    p = jnp.exp(s)
    p = p * pl.reciprocal(jnp.sum(p, axis=-1, keepdims=True), approx=True)
    a = _mdot(p, v)                                                          # (HW, D)
    h = h + _mdot(a, Wm("un_o")) + Bv("un_o")

    # ControlNet residual injection + conv-out
    h = _silu(h + res)
    out_ref[0] = _conv3x3_same(pad_ref, h, Wm("un_out"), Bv("un_out"),
                               H, W, C, C).astype(out_ref.dtype)


# ----------------------------- pallas_call wrapper ---------------------------- #

def pallas_controlnet_forward(w_slab, b_slab, img_col, cond_col, eps, noise,
                              sasb, sin_emb, txt_emb, Bn, Hl, Wl):
    HW = Hl * Wl
    per_batch = lambda b: (b, 0, 0)
    resident = lambda b: (0, 0)          # constant block index -> DMA'd once
    return pl.pallas_call(
        functools.partial(_fused_kernel, H=Hl, W=Wl, L=SEQ_PAD, Lvalid=SEQ_LEN),
        grid=(Bn,),
        in_specs=[
            pl.BlockSpec((1, HW, 27), per_batch),              # im2col'd image
            pl.BlockSpec((1, HW, 27), per_batch),              # im2col'd condition
            pl.BlockSpec((1, HW, LATENT_C), per_batch),        # VAE sampling eps
            pl.BlockSpec((1, HW, LATENT_C), per_batch),        # scheduler noise
            pl.BlockSpec((1, 1, 2), per_batch),                # sqrt(acp), sqrt(1-acp)
            pl.BlockSpec((1, 1, D_MODEL), per_batch),          # sinusoidal t-emb
            pl.BlockSpec((1, SEQ_PAD, D_MODEL), per_batch),    # token embeddings
            pl.BlockSpec((W_ROWS, SLAB_W), resident),          # packed weights
            pl.BlockSpec((B_ROWS, SLAB_W), resident),          # packed biases
        ],
        out_specs=pl.BlockSpec((1, HW, LATENT_C), per_batch),
        out_shape=jax.ShapeDtypeStruct((Bn, HW, LATENT_C), DTYPE),
        scratch_shapes=[pltpu.VMEM((Hl + 2, Wl + 2, CPAD), jnp.float32)],
        compiler_params=pltpu.CompilerParams(
            dimension_semantics=("parallel",)),   # v7x: both TensorCores split batch
    )(img_col, cond_col, eps, noise, sasb, sin_emb, txt_emb, w_slab, b_slab)


# ------------------------------- wrapper glue --------------------------------- #

def im2col(x, kh, kw, stride, pad):
    """NHWC im2col (XLA glue) for the stride-2 entry convs; column order (i,j,cin)."""
    Bn, H, W, C = x.shape
    xp = jnp.pad(x, ((0, 0), (pad, pad), (pad, pad), (0, 0)))
    Ho = (H + 2 * pad - kh) // stride + 1
    Wo = (W + 2 * pad - kw) // stride + 1
    cols = [xp[:, i:i + stride * Ho:stride, j:j + stride * Wo:stride, :]
            for i in range(kh) for j in range(kw)]
    return jnp.concatenate(cols, axis=-1).reshape(Bn, Ho * Wo, kh * kw * C)


def sinusoidal_timestep_embedding(t, dim):
    half = dim // 2
    freqs = jnp.exp(-math.log(10000.0) * jnp.arange(half, dtype=jnp.float32) / half)
    args = t.astype(jnp.float32)[:, None] * freqs[None, :]
    return jnp.concatenate([jnp.sin(args), jnp.cos(args)], axis=-1).astype(DTYPE)


# -------------------------------- parameters ---------------------------------- #

def init_params(key):
    ks = iter(jax.random.split(key, 32))

    def w(shape, scale=0.05):
        return (jax.random.normal(next(ks), shape, dtype=jnp.float32) * scale).astype(DTYPE)

    z = lambda n: jnp.zeros((n,), DTYPE)
    p = {}
    # synthetic VAE encoder (downsample x2, output 2*LATENT_C = mean|logvar)
    p["vae_c1_w"], p["vae_c1_b"] = w((3, 3, 3, 16)), z(16)
    p["vae_c2_w"], p["vae_c2_b"] = w((3, 3, 16, 2 * LATENT_C)), z(2 * LATENT_C)
    # synthetic text encoder (tokenizer replaced by synthetic int ids)
    p["tok_emb"] = w((VOCAB, D_MODEL), 0.02)
    p["txt_w1"], p["txt_b1"] = w((D_MODEL, D_MODEL)), z(D_MODEL)
    p["txt_w2"], p["txt_b2"] = w((D_MODEL, D_MODEL)), z(D_MODEL)
    # time embedding MLP + per-module projections
    p["time_w1"], p["time_b1"] = w((D_MODEL, D_MODEL)), z(D_MODEL)
    p["cn_time_w"], p["cn_time_b"] = w((D_MODEL, LATENT_C)), z(LATENT_C)
    p["un_time_w"], p["un_time_b"] = w((D_MODEL, LATENT_C)), z(LATENT_C)
    # synthetic ControlNet (zero-convs replaced by small random for a live signal)
    p["cn_cond_w"], p["cn_cond_b"] = w((3, 3, 3, LATENT_C)), z(LATENT_C)
    p["cn_in_w"], p["cn_in_b"] = w((3, 3, LATENT_C, LATENT_C)), z(LATENT_C)
    p["cn_d0_w"], p["cn_d0_b"] = w((3, 3, LATENT_C, LATENT_C)), z(LATENT_C)
    p["cn_d1_w"], p["cn_d1_b"] = w((3, 3, LATENT_C, LATENT_C)), z(LATENT_C)
    p["cn_mid_w"], p["cn_mid_b"] = w((3, 3, LATENT_C, LATENT_C)), z(LATENT_C)
    # synthetic UNet (conv-in, one cross-attn block, conv-out)
    p["un_in_w"], p["un_in_b"] = w((3, 3, LATENT_C, LATENT_C)), z(LATENT_C)
    p["un_q_w"], p["un_q_b"] = w((LATENT_C, D_MODEL)), z(D_MODEL)
    p["un_k_w"], p["un_k_b"] = w((D_MODEL, D_MODEL)), z(D_MODEL)
    p["un_v_w"], p["un_v_b"] = w((D_MODEL, D_MODEL)), z(D_MODEL)
    p["un_o_w"], p["un_o_b"] = w((D_MODEL, LATENT_C)), z(LATENT_C)
    p["un_out_w"], p["un_out_b"] = w((3, 3, LATENT_C, LATENT_C)), z(LATENT_C)
    return p


def _pack_params(p):
    """Pack all weights/biases into two flat f32 slabs (2 DMAs instead of ~25);
    conv kernels flattened to (9*Cin, Cout), same-LHS projections concatenated
    (cn_time|un_time -> (D, 2C); k|v -> (D, 2D))."""
    c = LATENT_C
    mats = {
        "vae_c1": p["vae_c1_w"].reshape(27, 16),
        "vae_c2": p["vae_c2_w"].reshape(9 * 16, 2 * c),
        "cn_cond": p["cn_cond_w"].reshape(27, c),
        "cn_in": p["cn_in_w"].reshape(9 * c, c),
        "cn_d0": p["cn_d0_w"].reshape(9 * c, c),
        "cn_d1": p["cn_d1_w"].reshape(9 * c, c),
        "cn_mid": p["cn_mid_w"].reshape(9 * c, c),
        "un_in": p["un_in_w"].reshape(9 * c, c),
        "un_out": p["un_out_w"].reshape(9 * c, c),
        "time_w1": p["time_w1"],
        "time_proj": jnp.concatenate([p["cn_time_w"], p["un_time_w"]], axis=1),
        "txt_w1": p["txt_w1"],
        "txt_w2": p["txt_w2"],
        "un_q": p["un_q_w"],
        "un_kv": jnp.concatenate([p["un_k_w"], p["un_v_w"]], axis=1),
        "un_o": p["un_o_w"],
    }
    bias = {
        "vae_c1": p["vae_c1_b"], "vae_c2": p["vae_c2_b"], "cn_cond": p["cn_cond_b"],
        "cn_in": p["cn_in_b"], "cn_d0": p["cn_d0_b"], "cn_d1": p["cn_d1_b"],
        "cn_mid": p["cn_mid_b"], "un_in": p["un_in_b"], "un_out": p["un_out_b"],
        "time_b1": p["time_b1"],
        "time_proj": jnp.concatenate([p["cn_time_b"], p["un_time_b"]]),
        "txt_b1": p["txt_b1"], "txt_b2": p["txt_b2"],
        "un_q": p["un_q_b"],
        "un_kv": jnp.concatenate([p["un_k_b"], p["un_v_b"]]),
        "un_o": p["un_o_b"],
    }
    w_slab = jnp.zeros((W_ROWS, SLAB_W), jnp.float32)
    for name, r, cc in _W_LAYOUT:
        off = W_OFF[name][0]
        w_slab = w_slab.at[off:off + r, :cc].set(mats[name].astype(jnp.float32))
    b_slab = jnp.zeros((B_ROWS, SLAB_W), jnp.float32)
    for name, cc in _B_LAYOUT:
        row = B_ROW[name][0]
        b_slab = b_slab.at[row, :cc].set(bias[name].astype(jnp.float32))
    return w_slab, b_slab


# ---------------------------------- forward ----------------------------------- #

def controlnet_forward(p, images_nchw, caption_ids, conditions_nchw, rng):
    """Mirrors ControlNet.forward(images, captions, conditions) -> (noise_pred, noise)."""
    w_slab, b_slab = _pack_params(p)
    images = jnp.transpose(images_nchw, (0, 2, 3, 1)).astype(DTYPE)       # NCHW -> NHWC
    conditions = jnp.transpose(conditions_nchw, (0, 2, 3, 1)).astype(DTYPE)
    Bn, H, W, _ = images.shape
    Hl, Wl = H // 2, W // 2
    HW = Hl * Wl
    k_eps, k_noise, k_t = jax.random.split(rng, 3)

    # wrapper-side im2col only for the two stride-2 *entry* convs (tiny XLA glue);
    # every downstream stride-1 conv builds its taps inside the fused kernel.
    img_col = im2col(images, 3, 3, 2, 1)                                  # (B, HW, 27)
    cond_col = im2col(conditions, 3, 3, 2, 1)                             # (B, HW, 27)

    # scheduler tables + per-batch noise scales (glue)
    eps = jax.random.normal(k_eps, (Bn, HW, LATENT_C), dtype=DTYPE)
    noise = jax.random.normal(k_noise, (Bn, HW, LATENT_C), dtype=DTYPE)
    timesteps = jax.random.randint(k_t, (Bn,), 0, NUM_TRAIN_TIMESTEPS)
    betas = jnp.linspace(1e-4, 0.02, NUM_TRAIN_TIMESTEPS, dtype=jnp.float32)
    acp = jnp.cumprod(1.0 - betas)
    sasb = jnp.stack([jnp.sqrt(acp[timesteps]),
                      jnp.sqrt(1.0 - acp[timesteps])], axis=-1)
    sasb = sasb.astype(DTYPE).reshape(Bn, 1, 2)

    # timestep sinusoidal embedding + token-embedding lookup (keys padded 77 -> 80)
    sin_emb = sinusoidal_timestep_embedding(timesteps, D_MODEL).reshape(Bn, 1, D_MODEL)
    emb = jnp.take(p["tok_emb"], caption_ids, axis=0)                      # (B, 77, D)
    emb = jnp.pad(emb, ((0, 0), (0, SEQ_PAD - SEQ_LEN), (0, 0))).astype(DTYPE)

    # single fused kernel: VAE+noise -> ControlNet -> UNet
    noise_pred = pallas_controlnet_forward(w_slab, b_slab, img_col, cond_col,
                                           eps, noise, sasb, sin_emb, emb,
                                           Bn, Hl, Wl)                     # (B, HW, C)

    # return in NCHW to match the torch module
    noise_pred = noise_pred.reshape(Bn, Hl, Wl, LATENT_C)
    noise = noise.reshape(Bn, Hl, Wl, LATENT_C)
    return (jnp.transpose(noise_pred, (0, 3, 1, 2)),
            jnp.transpose(noise, (0, 3, 1, 2)))


if __name__ == "__main__":
    key = jax.random.PRNGKey(0)
    k_param, k_img, k_cond, k_ids, k_fwd = jax.random.split(key, 5)
    params = init_params(k_param)

    B = 2
    images = jax.random.normal(k_img, (B, 3, IMG, IMG), dtype=jnp.float32)      # NCHW
    conditions = jax.random.uniform(k_cond, (B, 3, IMG, IMG), dtype=jnp.float32)
    # tokenize_caption(captions, tokenizer) -> (B, 77) int ids (synthetic)
    caption_ids = jax.random.randint(k_ids, (B, SEQ_LEN), 0, VOCAB)

    fwd = jax.jit(controlnet_forward)
    noise_pred, noise = fwd(params, images, caption_ids, conditions, k_fwd)
    jax.block_until_ready((noise_pred, noise))
    assert noise_pred.shape == (B, LATENT_C, IMG // 2, IMG // 2)
    assert noise.shape == (B, LATENT_C, IMG // 2, IMG // 2)
    assert bool(jnp.all(jnp.isfinite(noise_pred)))
    print("KERNEL_OK")
</pallas_src>

<mosaic_0001>
module attributes {stable_mosaic.version = 11 : i64} {
  func.func @_fused_kernel(%arg0: i32, %arg1: memref<1x64x27xf32, #tpu.memory_space<vmem>>, %arg2: memref<1x64x27xf32, #tpu.memory_space<vmem>>, %arg3: memref<1x64x4xf32, #tpu.memory_space<vmem>>, %arg4: memref<1x64x4xf32, #tpu.memory_space<vmem>>, %arg5: memref<1x1x2xf32, #tpu.memory_space<vmem>>, %arg6: memref<1x1x32xf32, #tpu.memory_space<vmem>>, %arg7: memref<1x80x32xf32, #tpu.memory_space<vmem>>, %arg8: memref<648x64xf32, #tpu.memory_space<vmem>>, %arg9: memref<16x64xf32, #tpu.memory_space<vmem>>, %arg10: memref<1x64x4xf32, #tpu.memory_space<vmem>>, %arg11: memref<10x10x16xf32, #tpu.memory_space<vmem>>) attributes {dimension_semantics = [#tpu.dimension_semantics<parallel>], iteration_bounds = array<i64: 2>, scalar_prefetch = 0 : i64, scratch_operands = 1 : i64, tpu.core_type = #tpu.core_type<tc>, window_params = [{transform_indices = @transform_0, window_bounds = array<i64: 1, 64, 27>}, {transform_indices = @transform_1, window_bounds = array<i64: 1, 64, 27>}, {transform_indices = @transform_2, window_bounds = array<i64: 1, 64, 4>}, {transform_indices = @transform_3, window_bounds = array<i64: 1, 64, 4>}, {transform_indices = @transform_4, window_bounds = array<i64: 1, 1, 2>}, {transform_indices = @transform_5, window_bounds = array<i64: 1, 1, 32>}, {transform_indices = @transform_6, window_bounds = array<i64: 1, 80, 32>}, {pipeline_mode = #tpu.pipeline_mode<synchronous>, transform_indices = @transform_7, window_bounds = array<i64: 648, 64>}, {pipeline_mode = #tpu.pipeline_mode<synchronous>, transform_indices = @transform_8, window_bounds = array<i64: 16, 64>}, {transform_indices = @transform_9, window_bounds = array<i64: 1, 64, 4>}]} {
    %cst = arith.constant 0.000000e+00 : f32
    %0 = vector.broadcast %cst : f32 to vector<1x10x16xf32>
    %cst_0 = arith.constant 0.000000e+00 : f32
    %1 = vector.broadcast %cst_0 : f32 to vector<10x1x16xf32>
    %c0 = arith.constant 0 : index
    %c0_1 = arith.constant 0 : index
    %c0_2 = arith.constant 0 : index
    %2 = vector.load %arg11[%c0, %c0_1, %c0_2] : memref<10x10x16xf32, #tpu.memory_space<vmem>>, vector<1x10x16xf32>
    tpu.vector_store %arg11[%c0, %c0_1, %c0_2], %0 {strides = array<i32>} : memref<10x10x16xf32, #tpu.memory_space<vmem>>, vector<1x10x16xf32>,
    %c9 = arith.constant 9 : index
    %c0_3 = arith.constant 0 : index
    %c0_4 = arith.constant 0 : index
    %3 = vector.load %arg11[%c9, %c0_3, %c0_4] : memref<10x10x16xf32, #tpu.memory_space<vmem>>, vector<1x10x16xf32>
    tpu.vector_store %arg11[%c9, %c0_3, %c0_4], %0 {strides = array<i32>} : memref<10x10x16xf32, #tpu.memory_space<vmem>>, vector<1x10x16xf32>,
    %c0_5 = arith.constant 0 : index
    %c0_6 = arith.constant 0 : index
    %c0_7 = arith.constant 0 : index
    %4 = vector.load %arg11[%c0_5, %c0_6, %c0_7] : memref<10x10x16xf32, #tpu.memory_space<vmem>>, vector<10x1x16xf32>
    tpu.vector_store %arg11[%c0_5, %c0_6, %c0_7], %1 {strides = array<i32>} : memref<10x10x16xf32, #tpu.memory_space<vmem>>, vector<10x1x16xf32>,
    %c0_8 = arith.constant 0 : index
    %c9_9 = arith.constant 9 : index
    %c0_10 = arith.constant 0 : index
    %5 = vector.load %arg11[%c0_8, %c9_9, %c0_10] : memref<10x10x16xf32, #tpu.memory_space<vmem>>, vector<10x1x16xf32>
    tpu.vector_store %arg11[%c0_8, %c9_9, %c0_10], %1 {strides = array<i32>} : memref<10x10x16xf32, #tpu.memory_space<vmem>>, vector<10x1x16xf32>,
    %c0_11 = arith.constant 0 : index
    %c0_12 = arith.constant 0 : index
    %c0_13 = arith.constant 0 : index
    %6 = vector.load %arg1[%c0_11, %c0_12, %c0_13] : memref<1x64x27xf32, #tpu.memory_space<vmem>>, vector<1x64x27xf32>
    %7 = vector.shape_cast %6 : vector<1x64x27xf32> to vector<64x27xf32>
    %c0_14 = arith.constant 0 : index
    %c0_15 = arith.constant 0 : index
    %8 = vector.load %arg8[%c0_14, %c0_15] : memref<648x64xf32, #tpu.memory_space<vmem>>, vector<27x16xf32>
    %9 = arith.truncf %7 : vector<64x27xf32> to vector<64x27xbf16>
    %10 = arith.truncf %8 : vector<27x16xf32> to vector<27x16xbf16>
    %cst_16 = arith.constant dense<0.000000e+00> : vector<64x16xf32>
    %11 = tpu.matmul %9, %10, %cst_16 {dimension_numbers = #tpu.dot_dimension_numbers<[1], [0], [0], [1], [0, 0, 1, 1], [], []>} : vector<64x27xbf16>, vector<27x16xbf16>, vector<64x16xf32> -> vector<64x16xf32>
    %c0_17 = arith.constant 0 : index
    %c0_18 = arith.constant 0 : index
    %12 = vector.load %arg9[%c0_17, %c0_18] : memref<16x64xf32, #tpu.memory_space<vmem>>, vector<1x16xf32>
    %13 = vector.broadcast %12 : vector<1x16xf32> to vector<64x16xf32>
    %14 = arith.addf %11, %13 : vector<64x16xf32>
    %15 = arith.negf %14 : vector<64x16xf32>
    %16 = math.exp %15 : vector<64x16xf32>
    %cst_19 = arith.constant 1.000000e+00 : f32
    %17 = vector.broadcast %cst_19 : f32 to vector<64x16xf32>
    %18 = arith.addf %17, %16 : vector<64x16xf32>
    %19 = arith.divf %17, %18 : vector<64x16xf32>
    %20 = arith.mulf %14, %19 : vector<64x16xf32>
    %c32 = arith.constant 32 : index
    %c0_20 = arith.constant 0 : index
    %21 = vector.load %arg8[%c32, %c0_20] : memref<648x64xf32, #tpu.memory_space<vmem>>, vector<144x8xf32>
    %c1 = arith.constant 1 : index
    %c0_21 = arith.constant 0 : index
    %22 = vector.load %arg9[%c1, %c0_21] : memref<16x64xf32, #tpu.memory_space<vmem>>, vector<1x8xf32>
    %23 = vector.shape_cast %20 : vector<64x16xf32> to vector<8x8x16xf32>
    %c1_22 = arith.constant 1 : index
    %c1_23 = arith.constant 1 : index
    %c0_24 = arith.constant 0 : index
    %24 = vector.load %arg11[%c1_22, %c1_23, %c0_24] : memref<10x10x16xf32, #tpu.memory_space<vmem>>, vector<8x8x16xf32>
    tpu.vector_store %arg11[%c1_22, %c1_23, %c0_24], %23 {strides = array<i32>} : memref<10x10x16xf32, #tpu.memory_space<vmem>>, vector<8x8x16xf32>,
    %c0_25 = arith.constant 0 : index
    %c0_26 = arith.constant 0 : index
    %c0_27 = arith.constant 0 : index
    %25 = vector.load %arg11[%c0_25, %c0_26, %c0_27] : memref<10x10x16xf32, #tpu.memory_space<vmem>>, vector<8x8x16xf32>
    %26 = vector.shape_cast %25 : vector<8x8x16xf32> to vector<64x16xf32>
    %27 = vector.extract_strided_slice %21 {offsets = [0, 0], sizes = [16, 8], strides = [1, 1]} : vector<144x8xf32> to vector<16x8xf32>
    %28 = arith.truncf %26 : vector<64x16xf32> to vector<64x16xbf16>
    %29 = arith.truncf %27 : vector<16x8xf32> to vector<16x8xbf16>
    %cst_28 = arith.constant dense<0.000000e+00> : vector<64x8xf32>
    %30 = tpu.matmul %28, %29, %cst_28 {dimension_numbers = #tpu.dot_dimension_numbers<[1], [0], [0], [1], [0, 0, 1, 1], [], []>} : vector<64x16xbf16>, vector<16x8xbf16>, vector<64x8xf32> -> vector<64x8xf32>
    %c0_29 = arith.constant 0 : index
    %c1_30 = arith.constant 1 : index
    %c0_31 = arith.constant 0 : index
    %31 = vector.load %arg11[%c0_29, %c1_30, %c0_31] : memref<10x10x16xf32, #tpu.memory_space<vmem>>, vector<8x8x16xf32>
    %32 = vector.shape_cast %31 : vector<8x8x16xf32> to vector<64x16xf32>
    %33 = vector.extract_strided_slice %21 {offsets = [16, 0], sizes = [16, 8], strides = [1, 1]} : vector<144x8xf32> to vector<16x8xf32>
    %34 = arith.truncf %32 : vector<64x16xf32> to vector<64x16xbf16>
    %35 = arith.truncf %33 : vector<16x8xf32> to vector<16x8xbf16>
    %cst_32 = arith.constant dense<0.000000e+00> : vector<64x8xf32>
    %36 = tpu.matmul %34, %35, %cst_32 {dimension_numbers = #tpu.dot_dimension_numbers<[1], [0], [0], [1], [0, 0, 1, 1], [], []>} : vector<64x16xbf16>, vector<16x8xbf16>, vector<64x8xf32> -> vector<64x8xf32>
    %37 = arith.addf %30, %36 : vector<64x8xf32>
    %c0_33 = arith.constant 0 : index
    %c2 = arith.constant 2 : index
    %c0_34 = arith.constant 0 : index
    %38 = vector.load %arg11[%c0_33, %c2, %c0_34] : memref<10x10x16xf32, #tpu.memory_space<vmem>>, vector<8x8x16xf32>
    %39 = vector.shape_cast %38 : vector<8x8x16xf32> to vector<64x16xf32>
    %40 = vector.extract_strided_slice %21 {offsets = [32, 0], sizes = [16, 8], strides = [1, 1]} : vector<144x8xf32> to vector<16x8xf32>
    %41 = arith.truncf %39 : vector<64x16xf32> to vector<64x16xbf16>
    %42 = arith.truncf %40 : vector<16x8xf32> to vector<16x8xbf16>
    %cst_35 = arith.constant dense<0.000000e+00> : vector<64x8xf32>
    %43 = tpu.matmul %41, %42, %cst_35 {dimension_numbers = #tpu.dot_dimension_numbers<[1], [0], [0], [1], [0, 0, 1, 1], [], []>} : vector<64x16xbf16>, vector<16x8xbf16>, vector<64x8xf32> -> vector<64x8xf32>
    %44 = arith.addf %37, %43 : vector<64x8xf32>
    %c1_36 = arith.constant 1 : index
    %c0_37 = arith.constant 0 : index
    %c0_38 = arith.constant 0 : index
    %45 = vector.load %arg11[%c1_36, %c0_37, %c0_38] : memref<10x10x16xf32, #tpu.memory_space<vmem>>, vector<8x8x16xf32>
    %46 = vector.shape_cast %45 : vector<8x8x16xf32> to vector<64x16xf32>
    %47 = vector.extract_strided_slice %21 {offsets = [48, 0], sizes = [16, 8], strides = [1, 1]} : vector<144x8xf32> to vector<16x8xf32>
    %48 = arith.truncf %46 : vector<64x16xf32> to vector<64x16xbf16>
    %49 = arith.truncf %47 : vector<16x8xf32> to vector<16x8xbf16>
    %cst_39 = arith.constant dense<0.000000e+00> : vector<64x8xf32>
    %50 = tpu.matmul %48, %49, %cst_39 {dimension_numbers = #tpu.dot_dimension_numbers<[1], [0], [0], [1], [0, 0, 1, 1], [], []>} : vector<64x16xbf16>, vector<16x8xbf16>, vector<64x8xf32> -> vector<64x8xf32>
    %51 = arith.addf %44, %50 : vector<64x8xf32>
    %c1_40 = arith.constant 1 : index
    %c1_41 = arith.constant 1 : index
    %c0_42 = arith.constant 0 : index
    %52 = vector.load %arg11[%c1_40, %c1_41, %c0_42] : memref<10x10x16xf32, #tpu.memory_space<vmem>>, vector<8x8x16xf32>
    %53 = vector.shape_cast %52 : vector<8x8x16xf32> to vector<64x16xf32>
    %54 = vector.extract_strided_slice %21 {offsets = [64, 0], sizes = [16, 8], strides = [1, 1]} : vector<144x8xf32> to vector<16x8xf32>
    %55 = arith.truncf %53 : vector<64x16xf32> to vector<64x16xbf16>
    %56 = arith.truncf %54 : vector<16x8xf32> to vector<16x8xbf16>
    %cst_43 = arith.constant dense<0.000000e+00> : vector<64x8xf32>
    %57 = tpu.matmul %55, %56, %cst_43 {dimension_numbers = #tpu.dot_dimension_numbers<[1], [0], [0], [1], [0, 0, 1, 1], [], []>} : vector<64x16xbf16>, vector<16x8xbf16>, vector<64x8xf32> -> vector<64x8xf32>
    %58 = arith.addf %51, %57 : vector<64x8xf32>
    %c1_44 = arith.constant 1 : index
    %c2_45 = arith.constant 2 : index
    %c0_46 = arith.constant 0 : index
    %59 = vector.load %arg11[%c1_44, %c2_45, %c0_46] : memref<10x10x16xf32, #tpu.memory_space<vmem>>, vector<8x8x16xf32>
    %60 = vector.shape_cast %59 : vector<8x8x16xf32> to vector<64x16xf32>
    %61 = vector.extract_strided_slice %21 {offsets = [80, 0], sizes = [16, 8], strides = [1, 1]} : vector<144x8xf32> to vector<16x8xf32>
    %62 = arith.truncf %60 : vector<64x16xf32> to vector<64x16xbf16>
    %63 = arith.truncf %61 : vector<16x8xf32> to vector<16x8xbf16>
    %cst_47 = arith.constant dense<0.000000e+00> : vector<64x8xf32>
    %64 = tpu.matmul %62, %63, %cst_47 {dimension_numbers = #tpu.dot_dimension_numbers<[1], [0], [0], [1], [0, 0, 1, 1], [], []>} : vector<64x16xbf16>, vector<16x8xbf16>, vector<64x8xf32> -> vector<64x8xf32>
    %65 = arith.addf %58, %64 : vector<64x8xf32>
    %c2_48 = arith.constant 2 : index
    %c0_49 = arith.constant 0 : index
    %c0_50 = arith.constant 0 : index
    %66 = vector.load %arg11[%c2_48, %c0_49, %c0_50] : memref<10x10x16xf32, #tpu.memory_space<vmem>>, vector<8x8x16xf32>
    %67 = vector.shape_cast %66 : vector<8x8x16xf32> to vector<64x16xf32>
    %68 = vector.extract_strided_slice %21 {offsets = [96, 0], sizes = [16, 8], strides = [1, 1]} : vector<144x8xf32> to vector<16x8xf32>
    %69 = arith.truncf %67 : vector<64x16xf32> to vector<64x16xbf16>
    %70 = arith.truncf %68 : vector<16x8xf32> to vector<16x8xbf16>
    %cst_51 = arith.constant dense<0.000000e+00> : vector<64x8xf32>
    %71 = tpu.matmul %69, %70, %cst_51 {dimension_numbers = #tpu.dot_dimension_numbers<[1], [0], [0], [1], [0, 0, 1, 1], [], []>} : vector<64x16xbf16>, vector<16x8xbf16>, vector<64x8xf32> -> vector<64x8xf32>
    %72 = arith.addf %65, %71 : vector<64x8xf32>
    %c2_52 = arith.constant 2 : index
    %c1_53 = arith.constant 1 : index
    %c0_54 = arith.constant 0 : index
    %73 = vector.load %arg11[%c2_52, %c1_53, %c0_54] : memref<10x10x16xf32, #tpu.memory_space<vmem>>, vector<8x8x16xf32>
    %74 = vector.shape_cast %73 : vector<8x8x16xf32> to vector<64x16xf32>
    %75 = vector.extract_strided_slice %21 {offsets = [112, 0], sizes = [16, 8], strides = [1, 1]} : vector<144x8xf32> to vector<16x8xf32>
    %76 = arith.truncf %74 : vector<64x16xf32> to vector<64x16xbf16>
    %77 = arith.truncf %75 : vector<16x8xf32> to vector<16x8xbf16>
    %cst_55 = arith.constant dense<0.000000e+00> : vector<64x8xf32>
    %78 = tpu.matmul %76, %77, %cst_55 {dimension_numbers = #tpu.dot_dimension_numbers<[1], [0], [0], [1], [0, 0, 1, 1], [], []>} : vector<64x16xbf16>, vector<16x8xbf16>, vector<64x8xf32> -> vector<64x8xf32>
    %79 = arith.addf %72, %78 : vector<64x8xf32>
    %c2_56 = arith.constant 2 : index
    %c2_57 = arith.constant 2 : index
    %c0_58 = arith.constant 0 : index
    %80 = vector.load %arg11[%c2_56, %c2_57, %c0_58] : memref<10x10x16xf32, #tpu.memory_space<vmem>>, vector<8x8x16xf32>
    %81 = vector.shape_cast %80 : vector<8x8x16xf32> to vector<64x16xf32>
    %82 = vector.extract_strided_slice %21 {offsets = [128, 0], sizes = [16, 8], strides = [1, 1]} : vector<144x8xf32> to vector<16x8xf32>
    %83 = arith.truncf %81 : vector<64x16xf32> to vector<64x16xbf16>
    %84 = arith.truncf %82 : vector<16x8xf32> to vector<16x8xbf16>
    %cst_59 = arith.constant dense<0.000000e+00> : vector<64x8xf32>
    %85 = tpu.matmul %83, %84, %cst_59 {dimension_numbers = #tpu.dot_dimension_numbers<[1], [0], [0], [1], [0, 0, 1, 1], [], []>} : vector<64x16xbf16>, vector<16x8xbf16>, vector<64x8xf32> -> vector<64x8xf32>
    %86 = arith.addf %79, %85 : vector<64x8xf32>
    %87 = vector.broadcast %22 : vector<1x8xf32> to vector<64x8xf32>
    %88 = arith.addf %86, %87 : vector<64x8xf32>
    %89 = vector.extract_strided_slice %88 {offsets = [0, 0], sizes = [64, 4], strides = [1, 1]} : vector<64x8xf32> to vector<64x4xf32>
    %90 = vector.extract_strided_slice %88 {offsets = [0, 4], sizes = [64, 4], strides = [1, 1]} : vector<64x8xf32> to vector<64x4xf32>
    %cst_60 = arith.constant -3.000000e+01 : f32
    %cst_61 = arith.constant 2.000000e+01 : f32
    %91 = vector.broadcast %cst_60 : f32 to vector<64x4xf32>
    %92 = arith.maximumf %91, %90 : vector<64x4xf32>
    %93 = vector.broadcast %cst_61 : f32 to vector<64x4xf32>
    %94 = arith.minimumf %93, %92 : vector<64x4xf32>
    %cst_62 = arith.constant 5.000000e-01 : f32
    %95 = vector.broadcast %cst_62 : f32 to vector<64x4xf32>
    %96 = arith.mulf %95, %94 : vector<64x4xf32>
    %97 = math.exp %96 : vector<64x4xf32>
    %c0_63 = arith.constant 0 : index
    %c0_64 = arith.constant 0 : index
    %c0_65 = arith.constant 0 : index
    %98 = vector.load %arg3[%c0_63, %c0_64, %c0_65] : memref<1x64x4xf32, #tpu.memory_space<vmem>>, vector<1x64x4xf32>
    %99 = vector.shape_cast %98 : vector<1x64x4xf32> to vector<64x4xf32>
    %100 = arith.mulf %97, %99 : vector<64x4xf32>
    %101 = arith.addf %89, %100 : vector<64x4xf32>
    %cst_66 = arith.constant 1.821500e-01 : f32
    %102 = vector.broadcast %cst_66 : f32 to vector<64x4xf32>
    %103 = arith.mulf %101, %102 : vector<64x4xf32>
    %c0_67 = arith.constant 0 : index
    %c0_68 = arith.constant 0 : index
    %c0_69 = arith.constant 0 : index
    %104 = vector.load %arg5[%c0_67, %c0_68, %c0_69] : memref<1x1x2xf32, #tpu.memory_space<vmem>>, vector<1x1x1xf32>
    %105 = vector.shape_cast %104 : vector<1x1x1xf32> to vector<1x1xf32>
    %c0_70 = arith.constant 0 : index
    %c0_71 = arith.constant 0 : index
    %c1_72 = arith.constant 1 : index
    %106 = vector.load %arg5[%c0_70, %c0_71, %c1_72] : memref<1x1x2xf32, #tpu.memory_space<vmem>>, vector<1x1x1xf32>
    %107 = vector.shape_cast %106 : vector<1x1x1xf32> to vector<1x1xf32>
    %108 = vector.broadcast %105 : vector<1x1xf32> to vector<64x4xf32>
    %109 = arith.mulf %108, %103 : vector<64x4xf32>
    %c0_73 = arith.constant 0 : index
    %c0_74 = arith.constant 0 : index
    %c0_75 = arith.constant 0 : index
    %110 = vector.load %arg4[%c0_73, %c0_74, %c0_75] : memref<1x64x4xf32, #tpu.memory_space<vmem>>, vector<1x64x4xf32>
    %111 = vector.shape_cast %110 : vector<1x64x4xf32> to vector<64x4xf32>
    %112 = vector.broadcast %107 : vector<1x1xf32> to vector<64x4xf32>
    %113 = arith.mulf %112, %111 : vector<64x4xf32>
    %114 = arith.addf %109, %113 : vector<64x4xf32>
    %c0_76 = arith.constant 0 : index
    %c0_77 = arith.constant 0 : index
    %c0_78 = arith.constant 0 : index
    %115 = vector.load %arg6[%c0_76, %c0_77, %c0_78] : memref<1x1x32xf32, #tpu.memory_space<vmem>>, vector<1x1x32xf32>
    %116 = vector.shape_cast %115 : vector<1x1x32xf32> to vector<1x32xf32>
    %c448 = arith.constant 448 : index
    %c0_79 = arith.constant 0 : index
    %117 = vector.load %arg8[%c448, %c0_79] : memref<648x64xf32, #tpu.memory_space<vmem>>, vector<32x32xf32>
    %118 = arith.truncf %116 : vector<1x32xf32> to vector<1x32xbf16>
    %119 = arith.truncf %117 : vector<32x32xf32> to vector<32x32xbf16>
    %cst_80 = arith.constant dense<0.000000e+00> : vector<1x32xf32>
    %120 = tpu.matmul %118, %119, %cst_80 {dimension_numbers = #tpu.dot_dimension_numbers<[1], [0], [0], [1], [0, 0, 1, 1], [], []>} : vector<1x32xbf16>, vector<32x32xbf16>, vector<1x32xf32> -> vector<1x32xf32>
    %c9_81 = arith.constant 9 : index
    %c0_82 = arith.constant 0 : index
    %121 = vector.load %arg9[%c9_81, %c0_82] : memref<16x64xf32, #tpu.memory_space<vmem>>, vector<1x32xf32>
    %122 = arith.addf %120, %121 : vector<1x32xf32>
    %123 = arith.negf %122 : vector<1x32xf32>
    %124 = math.exp %123 : vector<1x32xf32>
    %cst_83 = arith.constant 1.000000e+00 : f32
    %125 = vector.broadcast %cst_83 : f32 to vector<1x32xf32>
    %126 = arith.addf %125, %124 : vector<1x32xf32>
    %127 = arith.divf %125, %126 : vector<1x32xf32>
    %128 = arith.mulf %122, %127 : vector<1x32xf32>
    %c480 = arith.constant 480 : index
    %c0_84 = arith.constant 0 : index
    %129 = vector.load %arg8[%c480, %c0_84] : memref<648x64xf32, #tpu.memory_space<vmem>>, vector<32x8xf32>
    %130 = arith.truncf %128 : vector<1x32xf32> to vector<1x32xbf16>
    %131 = arith.truncf %129 : vector<32x8xf32> to vector<32x8xbf16>
    %cst_85 = arith.constant dense<0.000000e+00> : vector<1x8xf32>
    %132 = tpu.matmul %130, %131, %cst_85 {dimension_numbers = #tpu.dot_dimension_numbers<[1], [0], [0], [1], [0, 0, 1, 1], [], []>} : vector<1x32xbf16>, vector<32x8xbf16>, vector<1x8xf32> -> vector<1x8xf32>
    %c10 = arith.constant 10 : index
    %c0_86 = arith.constant 0 : index
    %133 = vector.load %arg9[%c10, %c0_86] : memref<16x64xf32, #tpu.memory_space<vmem>>, vector<1x8xf32>
    %134 = arith.addf %132, %133 : vector<1x8xf32>
    %135 = vector.extract_strided_slice %134 {offsets = [0, 0], sizes = [1, 4], strides = [1, 1]} : vector<1x8xf32> to vector<1x4xf32>
    %136 = vector.extract_strided_slice %134 {offsets = [0, 4], sizes = [1, 4], strides = [1, 1]} : vector<1x8xf32> to vector<1x4xf32>
    %c0_87 = arith.constant 0 : index
    %c0_88 = arith.constant 0 : index
    %c0_89 = arith.constant 0 : index
    %137 = vector.load %arg7[%c0_87, %c0_88, %c0_89] : memref<1x80x32xf32, #tpu.memory_space<vmem>>, vector<1x80x32xf32>
    %138 = vector.shape_cast %137 : vector<1x80x32xf32> to vector<80x32xf32>
    %c512 = arith.constant 512 : index
    %c0_90 = arith.constant 0 : index
    %139 = vector.load %arg8[%c512, %c0_90] : memref<648x64xf32, #tpu.memory_space<vmem>>, vector<32x32xf32>
    %140 = arith.truncf %138 : vector<80x32xf32> to vector<80x32xbf16>
    %141 = arith.truncf %139 : vector<32x32xf32> to vector<32x32xbf16>
    %cst_91 = arith.constant dense<0.000000e+00> : vector<80x32xf32>
    %142 = tpu.matmul %140, %141, %cst_91 {dimension_numbers = #tpu.dot_dimension_numbers<[1], [0], [0], [1], [0, 0, 1, 1], [], []>} : vector<80x32xbf16>, vector<32x32xbf16>, vector<80x32xf32> -> vector<80x32xf32>
    %c11 = arith.constant 11 : index
    %c0_92 = arith.constant 0 : index
    %143 = vector.load %arg9[%c11, %c0_92] : memref<16x64xf32, #tpu.memory_space<vmem>>, vector<1x32xf32>
    %144 = vector.broadcast %143 : vector<1x32xf32> to vector<80x32xf32>
    %145 = arith.addf %142, %144 : vector<80x32xf32>
    %146 = arith.negf %145 : vector<80x32xf32>
    %147 = math.exp %146 : vector<80x32xf32>
    %cst_93 = arith.constant 1.000000e+00 : f32
    %148 = vector.broadcast %cst_93 : f32 to vector<80x32xf32>
    %149 = arith.addf %148, %147 : vector<80x32xf32>
    %150 = arith.divf %148, %149 : vector<80x32xf32>
    %151 = arith.mulf %145, %150 : vector<80x32xf32>
    %c544 = arith.constant 544 : index
    %c0_94 = arith.constant 0 : index
    %152 = vector.load %arg8[%c544, %c0_94] : memref<648x64xf32, #tpu.memory_space<vmem>>, vector<32x32xf32>
    %153 = arith.truncf %151 : vector<80x32xf32> to vector<80x32xbf16>
    %154 = arith.truncf %152 : vector<32x32xf32> to vector<32x32xbf16>
    %cst_95 = arith.constant dense<0.000000e+00> : vector<80x32xf32>
    %155 = tpu.matmul %153, %154, %cst_95 {dimension_numbers = #tpu.dot_dimension_numbers<[1], [0], [0], [1], [0, 0, 1, 1], [], []>} : vector<80x32xbf16>, vector<32x32xbf16>, vector<80x32xf32> -> vector<80x32xf32>
    %c12 = arith.constant 12 : index
    %c0_96 = arith.constant 0 : index
    %156 = vector.load %arg9[%c12, %c0_96] : memref<16x64xf32, #tpu.memory_space<vmem>>, vector<1x32xf32>
    %157 = vector.broadcast %156 : vector<1x32xf32> to vector<80x32xf32>
    %158 = arith.addf %155, %157 : vector<80x32xf32>
    %c0_97 = arith.constant 0 : index
    %c0_98 = arith.constant 0 : index
    %c0_99 = arith.constant 0 : index
    %159 = vector.load %arg2[%c0_97, %c0_98, %c0_99] : memref<1x64x27xf32, #tpu.memory_space<vmem>>, vector<1x64x27xf32>
    %160 = vector.shape_cast %159 : vector<1x64x27xf32> to vector<64x27xf32>
    %c176 = arith.constant 176 : index
    %c0_100 = arith.constant 0 : index
    %161 = vector.load %arg8[%c176, %c0_100] : memref<648x64xf32, #tpu.memory_space<vmem>>, vector<27x4xf32>
    %162 = arith.truncf %160 : vector<64x27xf32> to vector<64x27xbf16>
    %163 = arith.truncf %161 : vector<27x4xf32> to vector<27x4xbf16>
    %cst_101 = arith.constant dense<0.000000e+00> : vector<64x4xf32>
    %164 = tpu.matmul %162, %163, %cst_101 {dimension_numbers = #tpu.dot_dimension_numbers<[1], [0], [0], [1], [0, 0, 1, 1], [], []>} : vector<64x27xbf16>, vector<27x4xbf16>, vector<64x4xf32> -> vector<64x4xf32>
    %c2_102 = arith.constant 2 : index
    %c0_103 = arith.constant 0 : index
    %165 = vector.load %arg9[%c2_102, %c0_103] : memref<16x64xf32, #tpu.memory_space<vmem>>, vector<1x4xf32>
    %166 = vector.broadcast %165 : vector<1x4xf32> to vector<64x4xf32>
    %167 = arith.addf %164, %166 : vector<64x4xf32>
    %168 = arith.negf %167 : vector<64x4xf32>
    %169 = math.exp %168 : vector<64x4xf32>
    %cst_104 = arith.constant 1.000000e+00 : f32
    %170 = vector.broadcast %cst_104 : f32 to vector<64x4xf32>
    %171 = arith.addf %170, %169 : vector<64x4xf32>
    %172 = arith.divf %170, %171 : vector<64x4xf32>
    %173 = arith.mulf %167, %172 : vector<64x4xf32>
    %c208 = arith.constant 208 : index
    %c0_105 = arith.constant 0 : index
    %174 = vector.load %arg8[%c208, %c0_105] : memref<648x64xf32, #tpu.memory_space<vmem>>, vector<36x4xf32>
    %c3 = arith.constant 3 : index
    %c0_106 = arith.constant 0 : index
    %175 = vector.load %arg9[%c3, %c0_106] : memref<16x64xf32, #tpu.memory_space<vmem>>, vector<1x4xf32>
    %176 = vector.shape_cast %114 : vector<64x4xf32> to vector<8x8x4xf32>
    %c1_107 = arith.constant 1 : index
    %c1_108 = arith.constant 1 : index
    %c0_109 = arith.constant 0 : index
    %177 = vector.load %arg11[%c1_107, %c1_108, %c0_109] : memref<10x10x16xf32, #tpu.memory_space<vmem>>, vector<8x8x4xf32>
    tpu.vector_store %arg11[%c1_107, %c1_108, %c0_109], %176 {strides = array<i32>} : memref<10x10x16xf32, #tpu.memory_space<vmem>>, vector<8x8x4xf32>,
    %c0_110 = arith.constant 0 : index
    %c0_111 = arith.constant 0 : index
    %c0_112 = arith.constant 0 : index
    %178 = vector.load %arg11[%c0_110, %c0_111, %c0_112] : memref<10x10x16xf32, #tpu.memory_space<vmem>>, vector<8x8x4xf32>
    %179 = vector.shape_cast %178 : vector<8x8x4xf32> to vector<64x4xf32>
    %180 = vector.extract_strided_slice %174 {offsets = [0, 0], sizes = [4, 4], strides = [1, 1]} : vector<36x4xf32> to vector<4x4xf32>
    %181 = arith.truncf %179 : vector<64x4xf32> to vector<64x4xbf16>
    %182 = arith.truncf %180 : vector<4x4xf32> to vector<4x4xbf16>
    %cst_113 = arith.constant dense<0.000000e+00> : vector<64x4xf32>
    %183 = tpu.matmul %181, %182, %cst_113 {dimension_numbers = #tpu.dot_dimension_numbers<[1], [0], [0], [1], [0, 0, 1, 1], [], []>} : vector<64x4xbf16>, vector<4x4xbf16>, vector<64x4xf32> -> vector<64x4xf32>
    %c0_114 = arith.constant 0 : index
    %c1_115 = arith.constant 1 : index
    %c0_116 = arith.constant 0 : index
    %184 = vector.load %arg11[%c0_114, %c1_115, %c0_116] : memref<10x10x16xf32, #tpu.memory_space<vmem>>, vector<8x8x4xf32>
    %185 = vector.shape_cast %184 : vector<8x8x4xf32> to vector<64x4xf32>
    %186 = vector.extract_strided_slice %174 {offsets = [4, 0], sizes = [4, 4], strides = [1, 1]} : vector<36x4xf32> to vector<4x4xf32>
    %187 = arith.truncf %185 : vector<64x4xf32> to vector<64x4xbf16>
    %188 = arith.truncf %186 : vector<4x4xf32> to vector<4x4xbf16>
    %cst_117 = arith.constant dense<0.000000e+00> : vector<64x4xf32>
    %189 = tpu.matmul %187, %188, %cst_117 {dimension_numbers = #tpu.dot_dimension_numbers<[1], [0], [0], [1], [0, 0, 1, 1], [], []>} : vector<64x4xbf16>, vector<4x4xbf16>, vector<64x4xf32> -> vector<64x4xf32>
    %190 = arith.addf %183, %189 : vector<64x4xf32>
    %c0_118 = arith.constant 0 : index
    %c2_119 = arith.constant 2 : index
    %c0_120 = arith.constant 0 : index
    %191 = vector.load %arg11[%c0_118, %c2_119, %c0_120] : memref<10x10x16xf32, #tpu.memory_space<vmem>>, vector<8x8x4xf32>
    %192 = vector.shape_cast %191 : vector<8x8x4xf32> to vector<64x4xf32>
    %193 = vector.extract_strided_slice %174 {offsets = [8, 0], sizes = [4, 4], strides = [1, 1]} : vector<36x4xf32> to vector<4x4xf32>
    %194 = arith.truncf %192 : vector<64x4xf32> to vector<64x4xbf16>
    %195 = arith.truncf %193 : vector<4x4xf32> to vector<4x4xbf16>
    %cst_121 = arith.constant dense<0.000000e+00> : vector<64x4xf32>
    %196 = tpu.matmul %194, %195, %cst_121 {dimension_numbers = #tpu.dot_dimension_numbers<[1], [0], [0], [1], [0, 0, 1, 1], [], []>} : vector<64x4xbf16>, vector<4x4xbf16>, vector<64x4xf32> -> vector<64x4xf32>
    %197 = arith.addf %190, %196 : vector<64x4xf32>
    %c1_122 = arith.constant 1 : index
    %c0_123 = arith.constant 0 : index
    %c0_124 = arith.constant 0 : index
    %198 = vector.load %arg11[%c1_122, %c0_123, %c0_124] : memref<10x10x16xf32, #tpu.memory_space<vmem>>, vector<8x8x4xf32>
    %199 = vector.shape_cast %198 : vector<8x8x4xf32> to vector<64x4xf32>
    %200 = vector.extract_strided_slice %174 {offsets = [12, 0], sizes = [4, 4], strides = [1, 1]} : vector<36x4xf32> to vector<4x4xf32>
    %201 = arith.truncf %199 : vector<64x4xf32> to vector<64x4xbf16>
    %202 = arith.truncf %200 : vector<4x4xf32> to vector<4x4xbf16>
    %cst_125 = arith.constant dense<0.000000e+00> : vector<64x4xf32>
    %203 = tpu.matmul %201, %202, %cst_125 {dimension_numbers = #tpu.dot_dimension_numbers<[1], [0], [0], [1], [0, 0, 1, 1], [], []>} : vector<64x4xbf16>, vector<4x4xbf16>, vector<64x4xf32> -> vector<64x4xf32>
    %204 = arith.addf %197, %203 : vector<64x4xf32>
    %c1_126 = arith.constant 1 : index
    %c1_127 = arith.constant 1 : index
    %c0_128 = arith.constant 0 : index
    %205 = vector.load %arg11[%c1_126, %c1_127, %c0_128] : memref<10x10x16xf32, #tpu.memory_space<vmem>>, vector<8x8x4xf32>
    %206 = vector.shape_cast %205 : vector<8x8x4xf32> to vector<64x4xf32>
    %207 = vector.extract_strided_slice %174 {offsets = [16, 0], sizes = [4, 4], strides = [1, 1]} : vector<36x4xf32> to vector<4x4xf32>
    %208 = arith.truncf %206 : vector<64x4xf32> to vector<64x4xbf16>
    %209 = arith.truncf %207 : vector<4x4xf32> to vector<4x4xbf16>
    %cst_129 = arith.constant dense<0.000000e+00> : vector<64x4xf32>
    %210 = tpu.matmul %208, %209, %cst_129 {dimension_numbers = #tpu.dot_dimension_numbers<[1], [0], [0], [1], [0, 0, 1, 1], [], []>} : vector<64x4xbf16>, vector<4x4xbf16>, vector<64x4xf32> -> vector<64x4xf32>
    %211 = arith.addf %204, %210 : vector<64x4xf32>
    %c1_130 = arith.constant 1 : index
    %c2_131 = arith.constant 2 : index
    %c0_132 = arith.constant 0 : index
    %212 = vector.load %arg11[%c1_130, %c2_131, %c0_132] : memref<10x10x16xf32, #tpu.memory_space<vmem>>, vector<8x8x4xf32>
    %213 = vector.shape_cast %212 : vector<8x8x4xf32> to vector<64x4xf32>
    %214 = vector.extract_strided_slice %174 {offsets = [20, 0], sizes = [4, 4], strides = [1, 1]} : vector<36x4xf32> to vector<4x4xf32>
    %215 = arith.truncf %213 : vector<64x4xf32> to vector<64x4xbf16>
    %216 = arith.truncf %214 : vector<4x4xf32> to vector<4x4xbf16>
    %cst_133 = arith.constant dense<0.000000e+00> : vector<64x4xf32>
    %217 = tpu.matmul %215, %216, %cst_133 {dimension_numbers = #tpu.dot_dimension_numbers<[1], [0], [0], [1], [0, 0, 1, 1], [], []>} : vector<64x4xbf16>, vector<4x4xbf16>, vector<64x4xf32> -> vector<64x4xf32>
    %218 = arith.addf %211, %217 : vector<64x4xf32>
    %c2_134 = arith.constant 2 : index
    %c0_135 = arith.constant 0 : index
    %c0_136 = arith.constant 0 : index
    %219 = vector.load %arg11[%c2_134, %c0_135, %c0_136] : memref<10x10x16xf32, #tpu.memory_space<vmem>>, vector<8x8x4xf32>
    %220 = vector.shape_cast %219 : vector<8x8x4xf32> to vector<64x4xf32>
    %221 = vector.extract_strided_slice %174 {offsets = [24, 0], sizes = [4, 4], strides = [1, 1]} : vector<36x4xf32> to vector<4x4xf32>
    %222 = arith.truncf %220 : vector<64x4xf32> to vector<64x4xbf16>
    %223 = arith.truncf %221 : vector<4x4xf32> to vector<4x4xbf16>
    %cst_137 = arith.constant dense<0.000000e+00> : vector<64x4xf32>
    %224 = tpu.matmul %222, %223, %cst_137 {dimension_numbers = #tpu.dot_dimension_numbers<[1], [0], [0], [1], [0, 0, 1, 1], [], []>} : vector<64x4xbf16>, vector<4x4xbf16>, vector<64x4xf32> -> vector<64x4xf32>
    %225 = arith.addf %218, %224 : vector<64x4xf32>
    %c2_138 = arith.constant 2 : index
    %c1_139 = arith.constant 1 : index
    %c0_140 = arith.constant 0 : index
    %226 = vector.load %arg11[%c2_138, %c1_139, %c0_140] : memref<10x10x16xf32, #tpu.memory_space<vmem>>, vector<8x8x4xf32>
    %227 = vector.shape_cast %226 : vector<8x8x4xf32> to vector<64x4xf32>
    %228 = vector.extract_strided_slice %174 {offsets = [28, 0], sizes = [4, 4], strides = [1, 1]} : vector<36x4xf32> to vector<4x4xf32>
    %229 = arith.truncf %227 : vector<64x4xf32> to vector<64x4xbf16>
    %230 = arith.truncf %228 : vector<4x4xf32> to vector<4x4xbf16>
    %cst_141 = arith.constant dense<0.000000e+00> : vector<64x4xf32>
    %231 = tpu.matmul %229, %230, %cst_141 {dimension_numbers = #tpu.dot_dimension_numbers<[1], [0], [0], [1], [0, 0, 1, 1], [], []>} : vector<64x4xbf16>, vector<4x4xbf16>, vector<64x4xf32> -> vector<64x4xf32>
    %232 = arith.addf %225, %231 : vector<64x4xf32>
    %c2_142 = arith.constant 2 : index
    %c2_143 = arith.constant 2 : index
    %c0_144 = arith.constant 0 : index
    %233 = vector.load %arg11[%c2_142, %c2_143, %c0_144] : memref<10x10x16xf32, #tpu.memory_space<vmem>>, vector<8x8x4xf32>
    %234 = vector.shape_cast %233 : vector<8x8x4xf32> to vector<64x4xf32>
    %235 = vector.extract_strided_slice %174 {offsets = [32, 0], sizes = [4, 4], strides = [1, 1]} : vector<36x4xf32> to vector<4x4xf32>
    %236 = arith.truncf %234 : vector<64x4xf32> to vector<64x4xbf16>
    %237 = arith.truncf %235 : vector<4x4xf32> to vector<4x4xbf16>
    %cst_145 = arith.constant dense<0.000000e+00> : vector<64x4xf32>
    %238 = tpu.matmul %236, %237, %cst_145 {dimension_numbers = #tpu.dot_dimension_numbers<[1], [0], [0], [1], [0, 0, 1, 1], [], []>} : vector<64x4xbf16>, vector<4x4xbf16>, vector<64x4xf32> -> vector<64x4xf32>
    %239 = arith.addf %232, %238 : vector<64x4xf32>
    %240 = vector.broadcast %175 : vector<1x4xf32> to vector<64x4xf32>
    %241 = arith.addf %239, %240 : vector<64x4xf32>
    %242 = arith.addf %241, %173 : vector<64x4xf32>
    %243 = vector.broadcast %135 : vector<1x4xf32> to vector<64x4xf32>
    %244 = arith.addf %242, %243 : vector<64x4xf32>
    %245 = arith.negf %244 : vector<64x4xf32>
    %246 = math.exp %245 : vector<64x4xf32>
    %cst_146 = arith.constant 1.000000e+00 : f32
    %247 = vector.broadcast %cst_146 : f32 to vector<64x4xf32>
    %248 = arith.addf %247, %246 : vector<64x4xf32>
    %249 = arith.divf %247, %248 : vector<64x4xf32>
    %250 = arith.mulf %244, %249 : vector<64x4xf32>
    %c248 = arith.constant 248 : index
    %c0_147 = arith.constant 0 : index
    %251 = vector.load %arg8[%c248, %c0_147] : memref<648x64xf32, #tpu.memory_space<vmem>>, vector<36x4xf32>
    %c4 = arith.constant 4 : index
    %c0_148 = arith.constant 0 : index
    %252 = vector.load %arg9[%c4, %c0_148] : memref<16x64xf32, #tpu.memory_space<vmem>>, vector<1x4xf32>
    %253 = vector.shape_cast %250 : vector<64x4xf32> to vector<8x8x4xf32>
    %c1_149 = arith.constant 1 : index
    %c1_150 = arith.constant 1 : index
    %c0_151 = arith.constant 0 : index
    %254 = vector.load %arg11[%c1_149, %c1_150, %c0_151] : memref<10x10x16xf32, #tpu.memory_space<vmem>>, vector<8x8x4xf32>
    tpu.vector_store %arg11[%c1_149, %c1_150, %c0_151], %253 {strides = array<i32>} : memref<10x10x16xf32, #tpu.memory_space<vmem>>, vector<8x8x4xf32>,
    %c0_152 = arith.constant 0 : index
    %c0_153 = arith.constant 0 : index
    %c0_154 = arith.constant 0 : index
    %255 = vector.load %arg11[%c0_152, %c0_153, %c0_154] : memref<10x10x16xf32, #tpu.memory_space<vmem>>, vector<8x8x4xf32>
    %256 = vector.shape_cast %255 : vector<8x8x4xf32> to vector<64x4xf32>
    %257 = vector.extract_strided_slice %251 {offsets = [0, 0], sizes = [4, 4], strides = [1, 1]} : vector<36x4xf32> to vector<4x4xf32>
    %258 = arith.truncf %256 : vector<64x4xf32> to vector<64x4xbf16>
    %259 = arith.truncf %257 : vector<4x4xf32> to vector<4x4xbf16>
    %cst_155 = arith.constant dense<0.000000e+00> : vector<64x4xf32>
    %260 = tpu.matmul %258, %259, %cst_155 {dimension_numbers = #tpu.dot_dimension_numbers<[1], [0], [0], [1], [0, 0, 1, 1], [], []>} : vector<64x4xbf16>, vector<4x4xbf16>, vector<64x4xf32> -> vector<64x4xf32>
    %c0_156 = arith.constant 0 : index
    %c1_157 = arith.constant 1 : index
    %c0_158 = arith.constant 0 : index
    %261 = vector.load %arg11[%c0_156, %c1_157, %c0_158] : memref<10x10x16xf32, #tpu.memory_space<vmem>>, vector<8x8x4xf32>
    %262 = vector.shape_cast %261 : vector<8x8x4xf32> to vector<64x4xf32>
    %263 = vector.extract_strided_slice %251 {offsets = [4, 0], sizes = [4, 4], strides = [1, 1]} : vector<36x4xf32> to vector<4x4xf32>
    %264 = arith.truncf %262 : vector<64x4xf32> to vector<64x4xbf16>
    %265 = arith.truncf %263 : vector<4x4xf32> to vector<4x4xbf16>
    %cst_159 = arith.constant dense<0.000000e+00> : vector<64x4xf32>
    %266 = tpu.matmul %264, %265, %cst_159 {dimension_numbers = #tpu.dot_dimension_numbers<[1], [0], [0], [1], [0, 0, 1, 1], [], []>} : vector<64x4xbf16>, vector<4x4xbf16>, vector<64x4xf32> -> vector<64x4xf32>
    %267 = arith.addf %260, %266 : vector<64x4xf32>
    %c0_160 = arith.constant 0 : index
    %c2_161 = arith.constant 2 : index
    %c0_162 = arith.constant 0 : index
    %268 = vector.load %arg11[%c0_160, %c2_161, %c0_162] : memref<10x10x16xf32, #tpu.memory_space<vmem>>, vector<8x8x4xf32>
    %269 = vector.shape_cast %268 : vector<8x8x4xf32> to vector<64x4xf32>
    %270 = vector.extract_strided_slice %251 {offsets = [8, 0], sizes = [4, 4], strides = [1, 1]} : vector<36x4xf32> to vector<4x4xf32>
    %271 = arith.truncf %269 : vector<64x4xf32> to vector<64x4xbf16>
    %272 = arith.truncf %270 : vector<4x4xf32> to vector<4x4xbf16>
    %cst_163 = arith.constant dense<0.000000e+00> : vector<64x4xf32>
    %273 = tpu.matmul %271, %272, %cst_163 {dimension_numbers = #tpu.dot_dimension_numbers<[1], [0], [0], [1], [0, 0, 1, 1], [], []>} : vector<64x4xbf16>, vector<4x4xbf16>, vector<64x4xf32> -> vector<64x4xf32>
    %274 = arith.addf %267, %273 : vector<64x4xf32>
    %c1_164 = arith.constant 1 : index
    %c0_165 = arith.constant 0 : index
    %c0_166 = arith.constant 0 : index
    %275 = vector.load %arg11[%c1_164, %c0_165, %c0_166] : memref<10x10x16xf32, #tpu.memory_space<vmem>>, vector<8x8x4xf32>
    %276 = vector.shape_cast %275 : vector<8x8x4xf32> to vector<64x4xf32>
    %277 = vector.extract_strided_slice %251 {offsets = [12, 0], sizes = [4, 4], strides = [1, 1]} : vector<36x4xf32> to vector<4x4xf32>
    %278 = arith.truncf %276 : vector<64x4xf32> to vector<64x4xbf16>
    %279 = arith.truncf %277 : vector<4x4xf32> to vector<4x4xbf16>
    %cst_167 = arith.constant dense<0.000000e+00> : vector<64x4xf32>
    %280 = tpu.matmul %278, %279, %cst_167 {dimension_numbers = #tpu.dot_dimension_numbers<[1], [0], [0], [1], [0, 0, 1, 1], [], []>} : vector<64x4xbf16>, vector<4x4xbf16>, vector<64x4xf32> -> vector<64x4xf32>
    %281 = arith.addf %274, %280 : vector<64x4xf32>
    %c1_168 = arith.constant 1 : index
    %c1_169 = arith.constant 1 : index
    %c0_170 = arith.constant 0 : index
    %282 = vector.load %arg11[%c1_168, %c1_169, %c0_170] : memref<10x10x16xf32, #tpu.memory_space<vmem>>, vector<8x8x4xf32>
    %283 = vector.shape_cast %282 : vector<8x8x4xf32> to vector<64x4xf32>
    %284 = vector.extract_strided_slice %251 {offsets = [16, 0], sizes = [4, 4], strides = [1, 1]} : vector<36x4xf32> to vector<4x4xf32>
    %285 = arith.truncf %283 : vector<64x4xf32> to vector<64x4xbf16>
    %286 = arith.truncf %284 : vector<4x4xf32> to vector<4x4xbf16>
    %cst_171 = arith.constant dense<0.000000e+00> : vector<64x4xf32>
    %287 = tpu.matmul %285, %286, %cst_171 {dimension_numbers = #tpu.dot_dimension_numbers<[1], [0], [0], [1], [0, 0, 1, 1], [], []>} : vector<64x4xbf16>, vector<4x4xbf16>, vector<64x4xf32> -> vector<64x4xf32>
    %288 = arith.addf %281, %287 : vector<64x4xf32>
    %c1_172 = arith.constant 1 : index
    %c2_173 = arith.constant 2 : index
    %c0_174 = arith.constant 0 : index
    %289 = vector.load %arg11[%c1_172, %c2_173, %c0_174] : memref<10x10x16xf32, #tpu.memory_space<vmem>>, vector<8x8x4xf32>
    %290 = vector.shape_cast %289 : vector<8x8x4xf32> to vector<64x4xf32>
    %291 = vector.extract_strided_slice %251 {offsets = [20, 0], sizes = [4, 4], strides = [1, 1]} : vector<36x4xf32> to vector<4x4xf32>
    %292 = arith.truncf %290 : vector<64x4xf32> to vector<64x4xbf16>
    %293 = arith.truncf %291 : vector<4x4xf32> to vector<4x4xbf16>
    %cst_175 = arith.constant dense<0.000000e+00> : vector<64x4xf32>
    %294 = tpu.matmul %292, %293, %cst_175 {dimension_numbers = #tpu.dot_dimension_numbers<[1], [0], [0], [1], [0, 0, 1, 1], [], []>} : vector<64x4xbf16>, vector<4x4xbf16>, vector<64x4xf32> -> vector<64x4xf32>
    %295 = arith.addf %288, %294 : vector<64x4xf32>
    %c2_176 = arith.constant 2 : index
    %c0_177 = arith.constant 0 : index
    %c0_178 = arith.constant 0 : index
    %296 = vector.load %arg11[%c2_176, %c0_177, %c0_178] : memref<10x10x16xf32, #tpu.memory_space<vmem>>, vector<8x8x4xf32>
    %297 = vector.shape_cast %296 : vector<8x8x4xf32> to vector<64x4xf32>
    %298 = vector.extract_strided_slice %251 {offsets = [24, 0], sizes = [4, 4], strides = [1, 1]} : vector<36x4xf32> to vector<4x4xf32>
    %299 = arith.truncf %297 : vector<64x4xf32> to vector<64x4xbf16>
    %300 = arith.truncf %298 : vector<4x4xf32> to vector<4x4xbf16>
    %cst_179 = arith.constant dense<0.000000e+00> : vector<64x4xf32>
    %301 = tpu.matmul %299, %300, %cst_179 {dimension_numbers = #tpu.dot_dimension_numbers<[1], [0], [0], [1], [0, 0, 1, 1], [], []>} : vector<64x4xbf16>, vector<4x4xbf16>, vector<64x4xf32> -> vector<64x4xf32>
    %302 = arith.addf %295, %301 : vector<64x4xf32>
    %c2_180 = arith.constant 2 : index
    %c1_181 = arith.constant 1 : index
    %c0_182 = arith.constant 0 : index
    %303 = vector.load %arg11[%c2_180, %c1_181, %c0_182] : memref<10x10x16xf32, #tpu.memory_space<vmem>>, vector<8x8x4xf32>
    %304 = vector.shape_cast %303 : vector<8x8x4xf32> to vector<64x4xf32>
    %305 = vector.extract_strided_slice %251 {offsets = [28, 0], sizes = [4, 4], strides = [1, 1]} : vector<36x4xf32> to vector<4x4xf32>
    %306 = arith.truncf %304 : vector<64x4xf32> to vector<64x4xbf16>
    %307 = arith.truncf %305 : vector<4x4xf32> to vector<4x4xbf16>
    %cst_183 = arith.constant dense<0.000000e+00> : vector<64x4xf32>
    %308 = tpu.matmul %306, %307, %cst_183 {dimension_numbers = #tpu.dot_dimension_numbers<[1], [0], [0], [1], [0, 0, 1, 1], [], []>} : vector<64x4xbf16>, vector<4x4xbf16>, vector<64x4xf32> -> vector<64x4xf32>
    %309 = arith.addf %302, %308 : vector<64x4xf32>
    %c2_184 = arith.constant 2 : index
    %c2_185 = arith.constant 2 : index
    %c0_186 = arith.constant 0 : index
    %310 = vector.load %arg11[%c2_184, %c2_185, %c0_186] : memref<10x10x16xf32, #tpu.memory_space<vmem>>, vector<8x8x4xf32>
    %311 = vector.shape_cast %310 : vector<8x8x4xf32> to vector<64x4xf32>
    %312 = vector.extract_strided_slice %251 {offsets = [32, 0], sizes = [4, 4], strides = [1, 1]} : vector<36x4xf32> to vector<4x4xf32>
    %313 = arith.truncf %311 : vector<64x4xf32> to vector<64x4xbf16>
    %314 = arith.truncf %312 : vector<4x4xf32> to vector<4x4xbf16>
    %cst_187 = arith.constant dense<0.000000e+00> : vector<64x4xf32>
    %315 = tpu.matmul %313, %314, %cst_187 {dimension_numbers = #tpu.dot_dimension_numbers<[1], [0], [0], [1], [0, 0, 1, 1], [], []>} : vector<64x4xbf16>, vector<4x4xbf16>, vector<64x4xf32> -> vector<64x4xf32>
    %316 = arith.addf %309, %315 : vector<64x4xf32>
    %317 = vector.broadcast %252 : vector<1x4xf32> to vector<64x4xf32>
    %318 = arith.addf %316, %317 : vector<64x4xf32>
    %319 = arith.negf %318 : vector<64x4xf32>
    %320 = math.exp %319 : vector<64x4xf32>
    %cst_188 = arith.constant 1.000000e+00 : f32
    %321 = vector.broadcast %cst_188 : f32 to vector<64x4xf32>
    %322 = arith.addf %321, %320 : vector<64x4xf32>
    %323 = arith.divf %321, %322 : vector<64x4xf32>
    %324 = arith.mulf %318, %323 : vector<64x4xf32>
    %c288 = arith.constant 288 : index
    %c0_189 = arith.constant 0 : index
    %325 = vector.load %arg8[%c288, %c0_189] : memref<648x64xf32, #tpu.memory_space<vmem>>, vector<36x4xf32>
    %c5 = arith.constant 5 : index
    %c0_190 = arith.constant 0 : index
    %326 = vector.load %arg9[%c5, %c0_190] : memref<16x64xf32, #tpu.memory_space<vmem>>, vector<1x4xf32>
    %327 = vector.shape_cast %324 : vector<64x4xf32> to vector<8x8x4xf32>
    %c1_191 = arith.constant 1 : index
    %c1_192 = arith.constant 1 : index
    %c0_193 = arith.constant 0 : index
    %328 = vector.load %arg11[%c1_191, %c1_192, %c0_193] : memref<10x10x16xf32, #tpu.memory_space<vmem>>, vector<8x8x4xf32>
    tpu.vector_store %arg11[%c1_191, %c1_192, %c0_193], %327 {strides = array<i32>} : memref<10x10x16xf32, #tpu.memory_space<vmem>>, vector<8x8x4xf32>,
    %c0_194 = arith.constant 0 : index
    %c0_195 = arith.constant 0 : index
    %c0_196 = arith.constant 0 : index
    %329 = vector.load %arg11[%c0_194, %c0_195, %c0_196] : memref<10x10x16xf32, #tpu.memory_space<vmem>>, vector<8x8x4xf32>
    %330 = vector.shape_cast %329 : vector<8x8x4xf32> to vector<64x4xf32>
    %331 = vector.extract_strided_slice %325 {offsets = [0, 0], sizes = [4, 4], strides = [1, 1]} : vector<36x4xf32> to vector<4x4xf32>
    %332 = arith.truncf %330 : vector<64x4xf32> to vector<64x4xbf16>
    %333 = arith.truncf %331 : vector<4x4xf32> to vector<4x4xbf16>
    %cst_197 = arith.constant dense<0.000000e+00> : vector<64x4xf32>
    %334 = tpu.matmul %332, %333, %cst_197 {dimension_numbers = #tpu.dot_dimension_numbers<[1], [0], [0], [1], [0, 0, 1, 1], [], []>} : vector<64x4xbf16>, vector<4x4xbf16>, vector<64x4xf32> -> vector<64x4xf32>
    %c0_198 = arith.constant 0 : index
    %c1_199 = arith.constant 1 : index
    %c0_200 = arith.constant 0 : index
    %335 = vector.load %arg11[%c0_198, %c1_199, %c0_200] : memref<10x10x16xf32, #tpu.memory_space<vmem>>, vector<8x8x4xf32>
    %336 = vector.shape_cast %335 : vector<8x8x4xf32> to vector<64x4xf32>
    %337 = vector.extract_strided_slice %325 {offsets = [4, 0], sizes = [4, 4], strides = [1, 1]} : vector<36x4xf32> to vector<4x4xf32>
    %338 = arith.truncf %336 : vector<64x4xf32> to vector<64x4xbf16>
    %339 = arith.truncf %337 : vector<4x4xf32> to vector<4x4xbf16>
    %cst_201 = arith.constant dense<0.000000e+00> : vector<64x4xf32>
    %340 = tpu.matmul %338, %339, %cst_201 {dimension_numbers = #tpu.dot_dimension_numbers<[1], [0], [0], [1], [0, 0, 1, 1], [], []>} : vector<64x4xbf16>, vector<4x4xbf16>, vector<64x4xf32> -> vector<64x4xf32>
    %341 = arith.addf %334, %340 : vector<64x4xf32>
    %c0_202 = arith.constant 0 : index
    %c2_203 = arith.constant 2 : index
    %c0_204 = arith.constant 0 : index
    %342 = vector.load %arg11[%c0_202, %c2_203, %c0_204] : memref<10x10x16xf32, #tpu.memory_space<vmem>>, vector<8x8x4xf32>
    %343 = vector.shape_cast %342 : vector<8x8x4xf32> to vector<64x4xf32>
    %344 = vector.extract_strided_slice %325 {offsets = [8, 0], sizes = [4, 4], strides = [1, 1]} : vector<36x4xf32> to vector<4x4xf32>
    %345 = arith.truncf %343 : vector<64x4xf32> to vector<64x4xbf16>
    %346 = arith.truncf %344 : vector<4x4xf32> to vector<4x4xbf16>
    %cst_205 = arith.constant dense<0.000000e+00> : vector<64x4xf32>
    %347 = tpu.matmul %345, %346, %cst_205 {dimension_numbers = #tpu.dot_dimension_numbers<[1], [0], [0], [1], [0, 0, 1, 1], [], []>} : vector<64x4xbf16>, vector<4x4xbf16>, vector<64x4xf32> -> vector<64x4xf32>
    %348 = arith.addf %341, %347 : vector<64x4xf32>
    %c1_206 = arith.constant 1 : index
    %c0_207 = arith.constant 0 : index
    %c0_208 = arith.constant 0 : index
    %349 = vector.load %arg11[%c1_206, %c0_207, %c0_208] : memref<10x10x16xf32, #tpu.memory_space<vmem>>, vector<8x8x4xf32>
    %350 = vector.shape_cast %349 : vector<8x8x4xf32> to vector<64x4xf32>
    %351 = vector.extract_strided_slice %325 {offsets = [12, 0], sizes = [4, 4], strides = [1, 1]} : vector<36x4xf32> to vector<4x4xf32>
    %352 = arith.truncf %350 : vector<64x4xf32> to vector<64x4xbf16>
    %353 = arith.truncf %351 : vector<4x4xf32> to vector<4x4xbf16>
    %cst_209 = arith.constant dense<0.000000e+00> : vector<64x4xf32>
    %354 = tpu.matmul %352, %353, %cst_209 {dimension_numbers = #tpu.dot_dimension_numbers<[1], [0], [0], [1], [0, 0, 1, 1], [], []>} : vector<64x4xbf16>, vector<4x4xbf16>, vector<64x4xf32> -> vector<64x4xf32>
    %355 = arith.addf %348, %354 : vector<64x4xf32>
    %c1_210 = arith.constant 1 : index
    %c1_211 = arith.constant 1 : index
    %c0_212 = arith.constant 0 : index
    %356 = vector.load %arg11[%c1_210, %c1_211, %c0_212] : memref<10x10x16xf32, #tpu.memory_space<vmem>>, vector<8x8x4xf32>
    %357 = vector.shape_cast %356 : vector<8x8x4xf32> to vector<64x4xf32>
    %358 = vector.extract_strided_slice %325 {offsets = [16, 0], sizes = [4, 4], strides = [1, 1]} : vector<36x4xf32> to vector<4x4xf32>
    %359 = arith.truncf %357 : vector<64x4xf32> to vector<64x4xbf16>
    %360 = arith.truncf %358 : vector<4x4xf32> to vector<4x4xbf16>
    %cst_213 = arith.constant dense<0.000000e+00> : vector<64x4xf32>
    %361 = tpu.matmul %359, %360, %cst_213 {dimension_numbers = #tpu.dot_dimension_numbers<[1], [0], [0], [1], [0, 0, 1, 1], [], []>} : vector<64x4xbf16>, vector<4x4xbf16>, vector<64x4xf32> -> vector<64x4xf32>
    %362 = arith.addf %355, %361 : vector<64x4xf32>
    %c1_214 = arith.constant 1 : index
    %c2_215 = arith.constant 2 : index
    %c0_216 = arith.constant 0 : index
    %363 = vector.load %arg11[%c1_214, %c2_215, %c0_216] : memref<10x10x16xf32, #tpu.memory_space<vmem>>, vector<8x8x4xf32>
    %364 = vector.shape_cast %363 : vector<8x8x4xf32> to vector<64x4xf32>
    %365 = vector.extract_strided_slice %325 {offsets = [20, 0], sizes = [4, 4], strides = [1, 1]} : vector<36x4xf32> to vector<4x4xf32>
    %366 = arith.truncf %364 : vector<64x4xf32> to vector<64x4xbf16>
    %367 = arith.truncf %365 : vector<4x4xf32> to vector<4x4xbf16>
    %cst_217 = arith.constant dense<0.000000e+00> : vector<64x4xf32>
    %368 = tpu.matmul %366, %367, %cst_217 {dimension_numbers = #tpu.dot_dimension_numbers<[1], [0], [0], [1], [0, 0, 1, 1], [], []>} : vector<64x4xbf16>, vector<4x4xbf16>, vector<64x4xf32> -> vector<64x4xf32>
    %369 = arith.addf %362, %368 : vector<64x4xf32>
    %c2_218 = arith.constant 2 : index
    %c0_219 = arith.constant 0 : index
    %c0_220 = arith.constant 0 : index
    %370 = vector.load %arg11[%c2_218, %c0_219, %c0_220] : memref<10x10x16xf32, #tpu.memory_space<vmem>>, vector<8x8x4xf32>
    %371 = vector.shape_cast %370 : vector<8x8x4xf32> to vector<64x4xf32>
    %372 = vector.extract_strided_slice %325 {offsets = [24, 0], sizes = [4, 4], strides = [1, 1]} : vector<36x4xf32> to vector<4x4xf32>
    %373 = arith.truncf %371 : vector<64x4xf32> to vector<64x4xbf16>
    %374 = arith.truncf %372 : vector<4x4xf32> to vector<4x4xbf16>
    %cst_221 = arith.constant dense<0.000000e+00> : vector<64x4xf32>
    %375 = tpu.matmul %373, %374, %cst_221 {dimension_numbers = #tpu.dot_dimension_numbers<[1], [0], [0], [1], [0, 0, 1, 1], [], []>} : vector<64x4xbf16>, vector<4x4xbf16>, vector<64x4xf32> -> vector<64x4xf32>
    %376 = arith.addf %369, %375 : vector<64x4xf32>
    %c2_222 = arith.constant 2 : index
    %c1_223 = arith.constant 1 : index
    %c0_224 = arith.constant 0 : index
    %377 = vector.load %arg11[%c2_222, %c1_223, %c0_224] : memref<10x10x16xf32, #tpu.memory_space<vmem>>, vector<8x8x4xf32>
    %378 = vector.shape_cast %377 : vector<8x8x4xf32> to vector<64x4xf32>
    %379 = vector.extract_strided_slice %325 {offsets = [28, 0], sizes = [4, 4], strides = [1, 1]} : vector<36x4xf32> to vector<4x4xf32>
    %380 = arith.truncf %378 : vector<64x4xf32> to vector<64x4xbf16>
    %381 = arith.truncf %379 : vector<4x4xf32> to vector<4x4xbf16>
    %cst_225 = arith.constant dense<0.000000e+00> : vector<64x4xf32>
    %382 = tpu.matmul %380, %381, %cst_225 {dimension_numbers = #tpu.dot_dimension_numbers<[1], [0], [0], [1], [0, 0, 1, 1], [], []>} : vector<64x4xbf16>, vector<4x4xbf16>, vector<64x4xf32> -> vector<64x4xf32>
    %383 = arith.addf %376, %382 : vector<64x4xf32>
    %c2_226 = arith.constant 2 : index
    %c2_227 = arith.constant 2 : index
    %c0_228 = arith.constant 0 : index
    %384 = vector.load %arg11[%c2_226, %c2_227, %c0_228] : memref<10x10x16xf32, #tpu.memory_space<vmem>>, vector<8x8x4xf32>
    %385 = vector.shape_cast %384 : vector<8x8x4xf32> to vector<64x4xf32>
    %386 = vector.extract_strided_slice %325 {offsets = [32, 0], sizes = [4, 4], strides = [1, 1]} : vector<36x4xf32> to vector<4x4xf32>
    %387 = arith.truncf %385 : vector<64x4xf32> to vector<64x4xbf16>
    %388 = arith.truncf %386 : vector<4x4xf32> to vector<4x4xbf16>
    %cst_229 = arith.constant dense<0.000000e+00> : vector<64x4xf32>
    %389 = tpu.matmul %387, %388, %cst_229 {dimension_numbers = #tpu.dot_dimension_numbers<[1], [0], [0], [1], [0, 0, 1, 1], [], []>} : vector<64x4xbf16>, vector<4x4xbf16>, vector<64x4xf32> -> vector<64x4xf32>
    %390 = arith.addf %383, %389 : vector<64x4xf32>
    %391 = vector.broadcast %326 : vector<1x4xf32> to vector<64x4xf32>
    %392 = arith.addf %390, %391 : vector<64x4xf32>
    %393 = arith.negf %392 : vector<64x4xf32>
    %394 = math.exp %393 : vector<64x4xf32>
    %cst_230 = arith.constant 1.000000e+00 : f32
    %395 = vector.broadcast %cst_230 : f32 to vector<64x4xf32>
    %396 = arith.addf %395, %394 : vector<64x4xf32>
    %397 = arith.divf %395, %396 : vector<64x4xf32>
    %398 = arith.mulf %392, %397 : vector<64x4xf32>
    %c328 = arith.constant 328 : index
    %c0_231 = arith.constant 0 : index
    %399 = vector.load %arg8[%c328, %c0_231] : memref<648x64xf32, #tpu.memory_space<vmem>>, vector<36x4xf32>
    %c6 = arith.constant 6 : index
    %c0_232 = arith.constant 0 : index
    %400 = vector.load %arg9[%c6, %c0_232] : memref<16x64xf32, #tpu.memory_space<vmem>>, vector<1x4xf32>
    %401 = vector.shape_cast %398 : vector<64x4xf32> to vector<8x8x4xf32>
    %c1_233 = arith.constant 1 : index
    %c1_234 = arith.constant 1 : index
    %c0_235 = arith.constant 0 : index
    %402 = vector.load %arg11[%c1_233, %c1_234, %c0_235] : memref<10x10x16xf32, #tpu.memory_space<vmem>>, vector<8x8x4xf32>
    tpu.vector_store %arg11[%c1_233, %c1_234, %c0_235], %401 {strides = array<i32>} : memref<10x10x16xf32, #tpu.memory_space<vmem>>, vector<8x8x4xf32>,
    %c0_236 = arith.constant 0 : index
    %c0_237 = arith.constant 0 : index
    %c0_238 = arith.constant 0 : index
    %403 = vector.load %arg11[%c0_236, %c0_237, %c0_238] : memref<10x10x16xf32, #tpu.memory_space<vmem>>, vector<8x8x4xf32>
    %404 = vector.shape_cast %403 : vector<8x8x4xf32> to vector<64x4xf32>
    %405 = vector.extract_strided_slice %399 {offsets = [0, 0], sizes = [4, 4], strides = [1, 1]} : vector<36x4xf32> to vector<4x4xf32>
    %406 = arith.truncf %404 : vector<64x4xf32> to vector<64x4xbf16>
    %407 = arith.truncf %405 : vector<4x4xf32> to vector<4x4xbf16>
    %cst_239 = arith.constant dense<0.000000e+00> : vector<64x4xf32>
    %408 = tpu.matmul %406, %407, %cst_239 {dimension_numbers = #tpu.dot_dimension_numbers<[1], [0], [0], [1], [0, 0, 1, 1], [], []>} : vector<64x4xbf16>, vector<4x4xbf16>, vector<64x4xf32> -> vector<64x4xf32>
    %c0_240 = arith.constant 0 : index
    %c1_241 = arith.constant 1 : index
    %c0_242 = arith.constant 0 : index
    %409 = vector.load %arg11[%c0_240, %c1_241, %c0_242] : memref<10x10x16xf32, #tpu.memory_space<vmem>>, vector<8x8x4xf32>
    %410 = vector.shape_cast %409 : vector<8x8x4xf32> to vector<64x4xf32>
    %411 = vector.extract_strided_slice %399 {offsets = [4, 0], sizes = [4, 4], strides = [1, 1]} : vector<36x4xf32> to vector<4x4xf32>
    %412 = arith.truncf %410 : vector<64x4xf32> to vector<64x4xbf16>
    %413 = arith.truncf %411 : vector<4x4xf32> to vector<4x4xbf16>
    %cst_243 = arith.constant dense<0.000000e+00> : vector<64x4xf32>
    %414 = tpu.matmul %412, %413, %cst_243 {dimension_numbers = #tpu.dot_dimension_numbers<[1], [0], [0], [1], [0, 0, 1, 1], [], []>} : vector<64x4xbf16>, vector<4x4xbf16>, vector<64x4xf32> -> vector<64x4xf32>
    %415 = arith.addf %408, %414 : vector<64x4xf32>
    %c0_244 = arith.constant 0 : index
    %c2_245 = arith.constant 2 : index
    %c0_246 = arith.constant 0 : index
    %416 = vector.load %arg11[%c0_244, %c2_245, %c0_246] : memref<10x10x16xf32, #tpu.memory_space<vmem>>, vector<8x8x4xf32>
    %417 = vector.shape_cast %416 : vector<8x8x4xf32> to vector<64x4xf32>
    %418 = vector.extract_strided_slice %399 {offsets = [8, 0], sizes = [4, 4], strides = [1, 1]} : vector<36x4xf32> to vector<4x4xf32>
    %419 = arith.truncf %417 : vector<64x4xf32> to vector<64x4xbf16>
    %420 = arith.truncf %418 : vector<4x4xf32> to vector<4x4xbf16>
    %cst_247 = arith.constant dense<0.000000e+00> : vector<64x4xf32>
    %421 = tpu.matmul %419, %420, %cst_247 {dimension_numbers = #tpu.dot_dimension_numbers<[1], [0], [0], [1], [0, 0, 1, 1], [], []>} : vector<64x4xbf16>, vector<4x4xbf16>, vector<64x4xf32> -> vector<64x4xf32>
    %422 = arith.addf %415, %421 : vector<64x4xf32>
    %c1_248 = arith.constant 1 : index
    %c0_249 = arith.constant 0 : index
    %c0_250 = arith.constant 0 : index
    %423 = vector.load %arg11[%c1_248, %c0_249, %c0_250] : memref<10x10x16xf32, #tpu.memory_space<vmem>>, vector<8x8x4xf32>
    %424 = vector.shape_cast %423 : vector<8x8x4xf32> to vector<64x4xf32>
    %425 = vector.extract_strided_slice %399 {offsets = [12, 0], sizes = [4, 4], strides = [1, 1]} : vector<36x4xf32> to vector<4x4xf32>
    %426 = arith.truncf %424 : vector<64x4xf32> to vector<64x4xbf16>
    %427 = arith.truncf %425 : vector<4x4xf32> to vector<4x4xbf16>
    %cst_251 = arith.constant dense<0.000000e+00> : vector<64x4xf32>
    %428 = tpu.matmul %426, %427, %cst_251 {dimension_numbers = #tpu.dot_dimension_numbers<[1], [0], [0], [1], [0, 0, 1, 1], [], []>} : vector<64x4xbf16>, vector<4x4xbf16>, vector<64x4xf32> -> vector<64x4xf32>
    %429 = arith.addf %422, %428 : vector<64x4xf32>
    %c1_252 = arith.constant 1 : index
    %c1_253 = arith.constant 1 : index
    %c0_254 = arith.constant 0 : index
    %430 = vector.load %arg11[%c1_252, %c1_253, %c0_254] : memref<10x10x16xf32, #tpu.memory_space<vmem>>, vector<8x8x4xf32>
    %431 = vector.shape_cast %430 : vector<8x8x4xf32> to vector<64x4xf32>
    %432 = vector.extract_strided_slice %399 {offsets = [16, 0], sizes = [4, 4], strides = [1, 1]} : vector<36x4xf32> to vector<4x4xf32>
    %433 = arith.truncf %431 : vector<64x4xf32> to vector<64x4xbf16>
    %434 = arith.truncf %432 : vector<4x4xf32> to vector<4x4xbf16>
    %cst_255 = arith.constant dense<0.000000e+00> : vector<64x4xf32>
    %435 = tpu.matmul %433, %434, %cst_255 {dimension_numbers = #tpu.dot_dimension_numbers<[1], [0], [0], [1], [0, 0, 1, 1], [], []>} : vector<64x4xbf16>, vector<4x4xbf16>, vector<64x4xf32> -> vector<64x4xf32>
    %436 = arith.addf %429, %435 : vector<64x4xf32>
    %c1_256 = arith.constant 1 : index
    %c2_257 = arith.constant 2 : index
    %c0_258 = arith.constant 0 : index
    %437 = vector.load %arg11[%c1_256, %c2_257, %c0_258] : memref<10x10x16xf32, #tpu.memory_space<vmem>>, vector<8x8x4xf32>
    %438 = vector.shape_cast %437 : vector<8x8x4xf32> to vector<64x4xf32>
    %439 = vector.extract_strided_slice %399 {offsets = [20, 0], sizes = [4, 4], strides = [1, 1]} : vector<36x4xf32> to vector<4x4xf32>
    %440 = arith.truncf %438 : vector<64x4xf32> to vector<64x4xbf16>
    %441 = arith.truncf %439 : vector<4x4xf32> to vector<4x4xbf16>
    %cst_259 = arith.constant dense<0.000000e+00> : vector<64x4xf32>
    %442 = tpu.matmul %440, %441, %cst_259 {dimension_numbers = #tpu.dot_dimension_numbers<[1], [0], [0], [1], [0, 0, 1, 1], [], []>} : vector<64x4xbf16>, vector<4x4xbf16>, vector<64x4xf32> -> vector<64x4xf32>
    %443 = arith.addf %436, %442 : vector<64x4xf32>
    %c2_260 = arith.constant 2 : index
    %c0_261 = arith.constant 0 : index
    %c0_262 = arith.constant 0 : index
    %444 = vector.load %arg11[%c2_260, %c0_261, %c0_262] : memref<10x10x16xf32, #tpu.memory_space<vmem>>, vector<8x8x4xf32>
    %445 = vector.shape_cast %444 : vector<8x8x4xf32> to vector<64x4xf32>
    %446 = vector.extract_strided_slice %399 {offsets = [24, 0], sizes = [4, 4], strides = [1, 1]} : vector<36x4xf32> to vector<4x4xf32>
    %447 = arith.truncf %445 : vector<64x4xf32> to vector<64x4xbf16>
    %448 = arith.truncf %446 : vector<4x4xf32> to vector<4x4xbf16>
    %cst_263 = arith.constant dense<0.000000e+00> : vector<64x4xf32>
    %449 = tpu.matmul %447, %448, %cst_263 {dimension_numbers = #tpu.dot_dimension_numbers<[1], [0], [0], [1], [0, 0, 1, 1], [], []>} : vector<64x4xbf16>, vector<4x4xbf16>, vector<64x4xf32> -> vector<64x4xf32>
    %450 = arith.addf %443, %449 : vector<64x4xf32>
    %c2_264 = arith.constant 2 : index
    %c1_265 = arith.constant 1 : index
    %c0_266 = arith.constant 0 : index
    %451 = vector.load %arg11[%c2_264, %c1_265, %c0_266] : memref<10x10x16xf32, #tpu.memory_space<vmem>>, vector<8x8x4xf32>
    %452 = vector.shape_cast %451 : vector<8x8x4xf32> to vector<64x4xf32>
    %453 = vector.extract_strided_slice %399 {offsets = [28, 0], sizes = [4, 4], strides = [1, 1]} : vector<36x4xf32> to vector<4x4xf32>
    %454 = arith.truncf %452 : vector<64x4xf32> to vector<64x4xbf16>
    %455 = arith.truncf %453 : vector<4x4xf32> to vector<4x4xbf16>
    %cst_267 = arith.constant dense<0.000000e+00> : vector<64x4xf32>
    %456 = tpu.matmul %454, %455, %cst_267 {dimension_numbers = #tpu.dot_dimension_numbers<[1], [0], [0], [1], [0, 0, 1, 1], [], []>} : vector<64x4xbf16>, vector<4x4xbf16>, vector<64x4xf32> -> vector<64x4xf32>
    %457 = arith.addf %450, %456 : vector<64x4xf32>
    %c2_268 = arith.constant 2 : index
    %c2_269 = arith.constant 2 : index
    %c0_270 = arith.constant 0 : index
    %458 = vector.load %arg11[%c2_268, %c2_269, %c0_270] : memref<10x10x16xf32, #tpu.memory_space<vmem>>, vector<8x8x4xf32>
    %459 = vector.shape_cast %458 : vector<8x8x4xf32> to vector<64x4xf32>
    %460 = vector.extract_strided_slice %399 {offsets = [32, 0], sizes = [4, 4], strides = [1, 1]} : vector<36x4xf32> to vector<4x4xf32>
    %461 = arith.truncf %459 : vector<64x4xf32> to vector<64x4xbf16>
    %462 = arith.truncf %460 : vector<4x4xf32> to vector<4x4xbf16>
    %cst_271 = arith.constant dense<0.000000e+00> : vector<64x4xf32>
    %463 = tpu.matmul %461, %462, %cst_271 {dimension_numbers = #tpu.dot_dimension_numbers<[1], [0], [0], [1], [0, 0, 1, 1], [], []>} : vector<64x4xbf16>, vector<4x4xbf16>, vector<64x4xf32> -> vector<64x4xf32>
    %464 = arith.addf %457, %463 : vector<64x4xf32>
    %465 = vector.broadcast %400 : vector<1x4xf32> to vector<64x4xf32>
    %466 = arith.addf %464, %465 : vector<64x4xf32>
    %467 = arith.addf %318, %392 : vector<64x4xf32>
    %468 = arith.addf %467, %466 : vector<64x4xf32>
    %c368 = arith.constant 368 : index
    %c0_272 = arith.constant 0 : index
    %469 = vector.load %arg8[%c368, %c0_272] : memref<648x64xf32, #tpu.memory_space<vmem>>, vector<36x4xf32>
    %c7 = arith.constant 7 : index
    %c0_273 = arith.constant 0 : index
    %470 = vector.load %arg9[%c7, %c0_273] : memref<16x64xf32, #tpu.memory_space<vmem>>, vector<1x4xf32>
    %471 = vector.shape_cast %114 : vector<64x4xf32> to vector<8x8x4xf32>
    %c1_274 = arith.constant 1 : index
    %c1_275 = arith.constant 1 : index
    %c0_276 = arith.constant 0 : index
    %472 = vector.load %arg11[%c1_274, %c1_275, %c0_276] : memref<10x10x16xf32, #tpu.memory_space<vmem>>, vector<8x8x4xf32>
    tpu.vector_store %arg11[%c1_274, %c1_275, %c0_276], %471 {strides = array<i32>} : memref<10x10x16xf32, #tpu.memory_space<vmem>>, vector<8x8x4xf32>,
    %c0_277 = arith.constant 0 : index
    %c0_278 = arith.constant 0 : index
    %c0_279 = arith.constant 0 : index
    %473 = vector.load %arg11[%c0_277, %c0_278, %c0_279] : memref<10x10x16xf32, #tpu.memory_space<vmem>>, vector<8x8x4xf32>
    %474 = vector.shape_cast %473 : vector<8x8x4xf32> to vector<64x4xf32>
    %475 = vector.extract_strided_slice %469 {offsets = [0, 0], sizes = [4, 4], strides = [1, 1]} : vector<36x4xf32> to vector<4x4xf32>
    %476 = arith.truncf %474 : vector<64x4xf32> to vector<64x4xbf16>
    %477 = arith.truncf %475 : vector<4x4xf32> to vector<4x4xbf16>
    %cst_280 = arith.constant dense<0.000000e+00> : vector<64x4xf32>
    %478 = tpu.matmul %476, %477, %cst_280 {dimension_numbers = #tpu.dot_dimension_numbers<[1], [0], [0], [1], [0, 0, 1, 1], [], []>} : vector<64x4xbf16>, vector<4x4xbf16>, vector<64x4xf32> -> vector<64x4xf32>
    %c0_281 = arith.constant 0 : index
    %c1_282 = arith.constant 1 : index
    %c0_283 = arith.constant 0 : index
    %479 = vector.load %arg11[%c0_281, %c1_282, %c0_283] : memref<10x10x16xf32, #tpu.memory_space<vmem>>, vector<8x8x4xf32>
    %480 = vector.shape_cast %479 : vector<8x8x4xf32> to vector<64x4xf32>
    %481 = vector.extract_strided_slice %469 {offsets = [4, 0], sizes = [4, 4], strides = [1, 1]} : vector<36x4xf32> to vector<4x4xf32>
    %482 = arith.truncf %480 : vector<64x4xf32> to vector<64x4xbf16>
    %483 = arith.truncf %481 : vector<4x4xf32> to vector<4x4xbf16>
    %cst_284 = arith.constant dense<0.000000e+00> : vector<64x4xf32>
    %484 = tpu.matmul %482, %483, %cst_284 {dimension_numbers = #tpu.dot_dimension_numbers<[1], [0], [0], [1], [0, 0, 1, 1], [], []>} : vector<64x4xbf16>, vector<4x4xbf16>, vector<64x4xf32> -> vector<64x4xf32>
    %485 = arith.addf %478, %484 : vector<64x4xf32>
    %c0_285 = arith.constant 0 : index
    %c2_286 = arith.constant 2 : index
    %c0_287 = arith.constant 0 : index
    %486 = vector.load %arg11[%c0_285, %c2_286, %c0_287] : memref<10x10x16xf32, #tpu.memory_space<vmem>>, vector<8x8x4xf32>
    %487 = vector.shape_cast %486 : vector<8x8x4xf32> to vector<64x4xf32>
    %488 = vector.extract_strided_slice %469 {offsets = [8, 0], sizes = [4, 4], strides = [1, 1]} : vector<36x4xf32> to vector<4x4xf32>
    %489 = arith.truncf %487 : vector<64x4xf32> to vector<64x4xbf16>
    %490 = arith.truncf %488 : vector<4x4xf32> to vector<4x4xbf16>
    %cst_288 = arith.constant dense<0.000000e+00> : vector<64x4xf32>
    %491 = tpu.matmul %489, %490, %cst_288 {dimension_numbers = #tpu.dot_dimension_numbers<[1], [0], [0], [1], [0, 0, 1, 1], [], []>} : vector<64x4xbf16>, vector<4x4xbf16>, vector<64x4xf32> -> vector<64x4xf32>
    %492 = arith.addf %485, %491 : vector<64x4xf32>
    %c1_289 = arith.constant 1 : index
    %c0_290 = arith.constant 0 : index
    %c0_291 = arith.constant 0 : index
    %493 = vector.load %arg11[%c1_289, %c0_290, %c0_291] : memref<10x10x16xf32, #tpu.memory_space<vmem>>, vector<8x8x4xf32>
    %494 = vector.shape_cast %493 : vector<8x8x4xf32> to vector<64x4xf32>
    %495 = vector.extract_strided_slice %469 {offsets = [12, 0], sizes = [4, 4], strides = [1, 1]} : vector<36x4xf32> to vector<4x4xf32>
    %496 = arith.truncf %494 : vector<64x4xf32> to vector<64x4xbf16>
    %497 = arith.truncf %495 : vector<4x4xf32> to vector<4x4xbf16>
    %cst_292 = arith.constant dense<0.000000e+00> : vector<64x4xf32>
    %498 = tpu.matmul %496, %497, %cst_292 {dimension_numbers = #tpu.dot_dimension_numbers<[1], [0], [0], [1], [0, 0, 1, 1], [], []>} : vector<64x4xbf16>, vector<4x4xbf16>, vector<64x4xf32> -> vector<64x4xf32>
    %499 = arith.addf %492, %498 : vector<64x4xf32>
    %c1_293 = arith.constant 1 : index
    %c1_294 = arith.constant 1 : index
    %c0_295 = arith.constant 0 : index
    %500 = vector.load %arg11[%c1_293, %c1_294, %c0_295] : memref<10x10x16xf32, #tpu.memory_space<vmem>>, vector<8x8x4xf32>
    %501 = vector.shape_cast %500 : vector<8x8x4xf32> to vector<64x4xf32>
    %502 = vector.extract_strided_slice %469 {offsets = [16, 0], sizes = [4, 4], strides = [1, 1]} : vector<36x4xf32> to vector<4x4xf32>
    %503 = arith.truncf %501 : vector<64x4xf32> to vector<64x4xbf16>
    %504 = arith.truncf %502 : vector<4x4xf32> to vector<4x4xbf16>
    %cst_296 = arith.constant dense<0.000000e+00> : vector<64x4xf32>
    %505 = tpu.matmul %503, %504, %cst_296 {dimension_numbers = #tpu.dot_dimension_numbers<[1], [0], [0], [1], [0, 0, 1, 1], [], []>} : vector<64x4xbf16>, vector<4x4xbf16>, vector<64x4xf32> -> vector<64x4xf32>
    %506 = arith.addf %499, %505 : vector<64x4xf32>
    %c1_297 = arith.constant 1 : index
    %c2_298 = arith.constant 2 : index
    %c0_299 = arith.constant 0 : index
    %507 = vector.load %arg11[%c1_297, %c2_298, %c0_299] : memref<10x10x16xf32, #tpu.memory_space<vmem>>, vector<8x8x4xf32>
    %508 = vector.shape_cast %507 : vector<8x8x4xf32> to vector<64x4xf32>
    %509 = vector.extract_strided_slice %469 {offsets = [20, 0], sizes = [4, 4], strides = [1, 1]} : vector<36x4xf32> to vector<4x4xf32>
    %510 = arith.truncf %508 : vector<64x4xf32> to vector<64x4xbf16>
    %511 = arith.truncf %509 : vector<4x4xf32> to vector<4x4xbf16>
    %cst_300 = arith.constant dense<0.000000e+00> : vector<64x4xf32>
    %512 = tpu.matmul %510, %511, %cst_300 {dimension_numbers = #tpu.dot_dimension_numbers<[1], [0], [0], [1], [0, 0, 1, 1], [], []>} : vector<64x4xbf16>, vector<4x4xbf16>, vector<64x4xf32> -> vector<64x4xf32>
    %513 = arith.addf %506, %512 : vector<64x4xf32>
    %c2_301 = arith.constant 2 : index
    %c0_302 = arith.constant 0 : index
    %c0_303 = arith.constant 0 : index
    %514 = vector.load %arg11[%c2_301, %c0_302, %c0_303] : memref<10x10x16xf32, #tpu.memory_space<vmem>>, vector<8x8x4xf32>
    %515 = vector.shape_cast %514 : vector<8x8x4xf32> to vector<64x4xf32>
    %516 = vector.extract_strided_slice %469 {offsets = [24, 0], sizes = [4, 4], strides = [1, 1]} : vector<36x4xf32> to vector<4x4xf32>
    %517 = arith.truncf %515 : vector<64x4xf32> to vector<64x4xbf16>
    %518 = arith.truncf %516 : vector<4x4xf32> to vector<4x4xbf16>
    %cst_304 = arith.constant dense<0.000000e+00> : vector<64x4xf32>
    %519 = tpu.matmul %517, %518, %cst_304 {dimension_numbers = #tpu.dot_dimension_numbers<[1], [0], [0], [1], [0, 0, 1, 1], [], []>} : vector<64x4xbf16>, vector<4x4xbf16>, vector<64x4xf32> -> vector<64x4xf32>
    %520 = arith.addf %513, %519 : vector<64x4xf32>
    %c2_305 = arith.constant 2 : index
    %c1_306 = arith.constant 1 : index
    %c0_307 = arith.constant 0 : index
    %521 = vector.load %arg11[%c2_305, %c1_306, %c0_307] : memref<10x10x16xf32, #tpu.memory_space<vmem>>, vector<8x8x4xf32>
    %522 = vector.shape_cast %521 : vector<8x8x4xf32> to vector<64x4xf32>
    %523 = vector.extract_strided_slice %469 {offsets = [28, 0], sizes = [4, 4], strides = [1, 1]} : vector<36x4xf32> to vector<4x4xf32>
    %524 = arith.truncf %522 : vector<64x4xf32> to vector<64x4xbf16>
    %525 = arith.truncf %523 : vector<4x4xf32> to vector<4x4xbf16>
    %cst_308 = arith.constant dense<0.000000e+00> : vector<64x4xf32>
    %526 = tpu.matmul %524, %525, %cst_308 {dimension_numbers = #tpu.dot_dimension_numbers<[1], [0], [0], [1], [0, 0, 1, 1], [], []>} : vector<64x4xbf16>, vector<4x4xbf16>, vector<64x4xf32> -> vector<64x4xf32>
    %527 = arith.addf %520, %526 : vector<64x4xf32>
    %c2_309 = arith.constant 2 : index
    %c2_310 = arith.constant 2 : index
    %c0_311 = arith.constant 0 : index
    %528 = vector.load %arg11[%c2_309, %c2_310, %c0_311] : memref<10x10x16xf32, #tpu.memory_space<vmem>>, vector<8x8x4xf32>
    %529 = vector.shape_cast %528 : vector<8x8x4xf32> to vector<64x4xf32>
    %530 = vector.extract_strided_slice %469 {offsets = [32, 0], sizes = [4, 4], strides = [1, 1]} : vector<36x4xf32> to vector<4x4xf32>
    %531 = arith.truncf %529 : vector<64x4xf32> to vector<64x4xbf16>
    %532 = arith.truncf %530 : vector<4x4xf32> to vector<4x4xbf16>
    %cst_312 = arith.constant dense<0.000000e+00> : vector<64x4xf32>
    %533 = tpu.matmul %531, %532, %cst_312 {dimension_numbers = #tpu.dot_dimension_numbers<[1], [0], [0], [1], [0, 0, 1, 1], [], []>} : vector<64x4xbf16>, vector<4x4xbf16>, vector<64x4xf32> -> vector<64x4xf32>
    %534 = arith.addf %527, %533 : vector<64x4xf32>
    %535 = vector.broadcast %470 : vector<1x4xf32> to vector<64x4xf32>
    %536 = arith.addf %534, %535 : vector<64x4xf32>
    %537 = vector.broadcast %136 : vector<1x4xf32> to vector<64x4xf32>
    %538 = arith.addf %536, %537 : vector<64x4xf32>
    %c576 = arith.constant 576 : index
    %c0_313 = arith.constant 0 : index
    %539 = vector.load %arg8[%c576, %c0_313] : memref<648x64xf32, #tpu.memory_space<vmem>>, vector<4x32xf32>
    %540 = arith.truncf %538 : vector<64x4xf32> to vector<64x4xbf16>
    %541 = arith.truncf %539 : vector<4x32xf32> to vector<4x32xbf16>
    %cst_314 = arith.constant dense<0.000000e+00> : vector<64x32xf32>
    %542 = tpu.matmul %540, %541, %cst_314 {dimension_numbers = #tpu.dot_dimension_numbers<[1], [0], [0], [1], [0, 0, 1, 1], [], []>} : vector<64x4xbf16>, vector<4x32xbf16>, vector<64x32xf32> -> vector<64x32xf32>
    %c13 = arith.constant 13 : index
    %c0_315 = arith.constant 0 : index
    %543 = vector.load %arg9[%c13, %c0_315] : memref<16x64xf32, #tpu.memory_space<vmem>>, vector<1x32xf32>
    %544 = vector.broadcast %543 : vector<1x32xf32> to vector<64x32xf32>
    %545 = arith.addf %542, %544 : vector<64x32xf32>
    %c584 = arith.constant 584 : index
    %c0_316 = arith.constant 0 : index
    %546 = vector.load %arg8[%c584, %c0_316] : memref<648x64xf32, #tpu.memory_space<vmem>>, vector<32x64xf32>
    %547 = arith.truncf %158 : vector<80x32xf32> to vector<80x32xbf16>
    %548 = arith.truncf %546 : vector<32x64xf32> to vector<32x64xbf16>
    %cst_317 = arith.constant dense<0.000000e+00> : vector<80x64xf32>
    %549 = tpu.matmul %547, %548, %cst_317 {dimension_numbers = #tpu.dot_dimension_numbers<[1], [0], [0], [1], [0, 0, 1, 1], [], []>} : vector<80x32xbf16>, vector<32x64xbf16>, vector<80x64xf32> -> vector<80x64xf32>
    %c14 = arith.constant 14 : index
    %c0_318 = arith.constant 0 : index
    %550 = vector.load %arg9[%c14, %c0_318] : memref<16x64xf32, #tpu.memory_space<vmem>>, vector<1x64xf32>
    %551 = vector.broadcast %550 : vector<1x64xf32> to vector<80x64xf32>
    %552 = arith.addf %549, %551 : vector<80x64xf32>
    %553 = vector.extract_strided_slice %552 {offsets = [0, 0], sizes = [80, 32], strides = [1, 1]} : vector<80x64xf32> to vector<80x32xf32>
    %554 = vector.extract_strided_slice %552 {offsets = [0, 32], sizes = [80, 32], strides = [1, 1]} : vector<80x64xf32> to vector<80x32xf32>
    %555 = arith.truncf %545 : vector<64x32xf32> to vector<64x32xbf16>
    %556 = arith.truncf %553 : vector<80x32xf32> to vector<80x32xbf16>
    %cst_319 = arith.constant dense<0.000000e+00> : vector<64x80xf32>
    %557 = tpu.matmul %555, %556, %cst_319 {dimension_numbers = #tpu.dot_dimension_numbers<[1], [1], [0], [0], [0, 0, 1, 0], [], []>} : vector<64x32xbf16>, vector<80x32xbf16>, vector<64x80xf32> -> vector<64x80xf32>
    %cst_320 = arith.constant 0.176776692 : f32
    %558 = vector.broadcast %cst_320 : f32 to vector<64x80xf32>
    %559 = arith.mulf %557, %558 : vector<64x80xf32>
    %560 = tpu.iota {dimensions = array<i32: 1>} : vector<64x80xi32>
    %c77_i32 = arith.constant 77 : i32
    %561 = vector.broadcast %c77_i32 : i32 to vector<64x80xi32>
    %562 = arith.cmpi slt, %560, %561 : vector<64x80xi32>
    %cst_321 = arith.constant -1.000000e+30 : f32
    %563 = vector.broadcast %cst_321 : f32 to vector<64x80xf32>
    %564 = arith.select %562, %559, %563 : vector<64x80xi1>, vector<64x80xf32>
    %cst_322 = arith.constant dense<0xFF800000> : vector<64xf32>
    %565 = vector.multi_reduction <maximumf>, %564, %cst_322 [1] : vector<64x80xf32> to vector<64xf32>
    %566 = vector.shape_cast %565 : vector<64xf32> to vector<64x1xf32>
    %567 = vector.broadcast %566 : vector<64x1xf32> to vector<64x80xf32>
    %568 = arith.subf %564, %567 : vector<64x80xf32>
    %569 = math.exp %568 : vector<64x80xf32>
    %cst_323 = arith.constant dense<0.000000e+00> : vector<64xf32>
    %570 = vector.multi_reduction <add>, %569, %cst_323 [1] : vector<64x80xf32> to vector<64xf32>
    %571 = vector.shape_cast %570 : vector<64xf32> to vector<64x1xf32>
    %572 = tpu.reciprocal %571 {approx = true} : vector<64x1xf32> -> vector<64x1xf32>
    %573 = vector.broadcast %572 : vector<64x1xf32> to vector<64x80xf32>
    %574 = arith.mulf %569, %573 : vector<64x80xf32>
    %575 = arith.truncf %574 : vector<64x80xf32> to vector<64x80xbf16>
    %576 = arith.truncf %554 : vector<80x32xf32> to vector<80x32xbf16>
    %cst_324 = arith.constant dense<0.000000e+00> : vector<64x32xf32>
    %577 = tpu.matmul %575, %576, %cst_324 {dimension_numbers = #tpu.dot_dimension_numbers<[1], [0], [0], [1], [0, 0, 1, 1], [], []>} : vector<64x80xbf16>, vector<80x32xbf16>, vector<64x32xf32> -> vector<64x32xf32>
    %c616 = arith.constant 616 : index
    %c0_325 = arith.constant 0 : index
    %578 = vector.load %arg8[%c616, %c0_325] : memref<648x64xf32, #tpu.memory_space<vmem>>, vector<32x4xf32>
    %579 = arith.truncf %577 : vector<64x32xf32> to vector<64x32xbf16>
    %580 = arith.truncf %578 : vector<32x4xf32> to vector<32x4xbf16>
    %cst_326 = arith.constant dense<0.000000e+00> : vector<64x4xf32>
    %581 = tpu.matmul %579, %580, %cst_326 {dimension_numbers = #tpu.dot_dimension_numbers<[1], [0], [0], [1], [0, 0, 1, 1], [], []>} : vector<64x32xbf16>, vector<32x4xbf16>, vector<64x4xf32> -> vector<64x4xf32>
    %582 = arith.addf %538, %581 : vector<64x4xf32>
    %c15 = arith.constant 15 : index
    %c0_327 = arith.constant 0 : index
    %583 = vector.load %arg9[%c15, %c0_327] : memref<16x64xf32, #tpu.memory_space<vmem>>, vector<1x4xf32>
    %584 = vector.broadcast %583 : vector<1x4xf32> to vector<64x4xf32>
    %585 = arith.addf %582, %584 : vector<64x4xf32>
    %586 = arith.addf %585, %468 : vector<64x4xf32>
    %587 = arith.negf %586 : vector<64x4xf32>
    %588 = math.exp %587 : vector<64x4xf32>
    %cst_328 = arith.constant 1.000000e+00 : f32
    %589 = vector.broadcast %cst_328 : f32 to vector<64x4xf32>
    %590 = arith.addf %589, %588 : vector<64x4xf32>
    %591 = arith.divf %589, %590 : vector<64x4xf32>
    %592 = arith.mulf %586, %591 : vector<64x4xf32>
    %c408 = arith.constant 408 : index
    %c0_329 = arith.constant 0 : index
    %593 = vector.load %arg8[%c408, %c0_329] : memref<648x64xf32, #tpu.memory_space<vmem>>, vector<36x4xf32>
    %c8 = arith.constant 8 : index
    %c0_330 = arith.constant 0 : index
    %594 = vector.load %arg9[%c8, %c0_330] : memref<16x64xf32, #tpu.memory_space<vmem>>, vector<1x4xf32>
    %595 = vector.shape_cast %592 : vector<64x4xf32> to vector<8x8x4xf32>
    %c1_331 = arith.constant 1 : index
    %c1_332 = arith.constant 1 : index
    %c0_333 = arith.constant 0 : index
    %596 = vector.load %arg11[%c1_331, %c1_332, %c0_333] : memref<10x10x16xf32, #tpu.memory_space<vmem>>, vector<8x8x4xf32>
    tpu.vector_store %arg11[%c1_331, %c1_332, %c0_333], %595 {strides = array<i32>} : memref<10x10x16xf32, #tpu.memory_space<vmem>>, vector<8x8x4xf32>,
    %c0_334 = arith.constant 0 : index
    %c0_335 = arith.constant 0 : index
    %c0_336 = arith.constant 0 : index
    %597 = vector.load %arg11[%c0_334, %c0_335, %c0_336] : memref<10x10x16xf32, #tpu.memory_space<vmem>>, vector<8x8x4xf32>
    %598 = vector.shape_cast %597 : vector<8x8x4xf32> to vector<64x4xf32>
    %599 = vector.extract_strided_slice %593 {offsets = [0, 0], sizes = [4, 4], strides = [1, 1]} : vector<36x4xf32> to vector<4x4xf32>
    %600 = arith.truncf %598 : vector<64x4xf32> to vector<64x4xbf16>
    %601 = arith.truncf %599 : vector<4x4xf32> to vector<4x4xbf16>
    %cst_337 = arith.constant dense<0.000000e+00> : vector<64x4xf32>
    %602 = tpu.matmul %600, %601, %cst_337 {dimension_numbers = #tpu.dot_dimension_numbers<[1], [0], [0], [1], [0, 0, 1, 1], [], []>} : vector<64x4xbf16>, vector<4x4xbf16>, vector<64x4xf32> -> vector<64x4xf32>
    %c0_338 = arith.constant 0 : index
    %c1_339 = arith.constant 1 : index
    %c0_340 = arith.constant 0 : index
    %603 = vector.load %arg11[%c0_338, %c1_339, %c0_340] : memref<10x10x16xf32, #tpu.memory_space<vmem>>, vector<8x8x4xf32>
    %604 = vector.shape_cast %603 : vector<8x8x4xf32> to vector<64x4xf32>
    %605 = vector.extract_strided_slice %593 {offsets = [4, 0], sizes = [4, 4], strides = [1, 1]} : vector<36x4xf32> to vector<4x4xf32>
    %606 = arith.truncf %604 : vector<64x4xf32> to vector<64x4xbf16>
    %607 = arith.truncf %605 : vector<4x4xf32> to vector<4x4xbf16>
    %cst_341 = arith.constant dense<0.000000e+00> : vector<64x4xf32>
    %608 = tpu.matmul %606, %607, %cst_341 {dimension_numbers = #tpu.dot_dimension_numbers<[1], [0], [0], [1], [0, 0, 1, 1], [], []>} : vector<64x4xbf16>, vector<4x4xbf16>, vector<64x4xf32> -> vector<64x4xf32>
    %609 = arith.addf %602, %608 : vector<64x4xf32>
    %c0_342 = arith.constant 0 : index
    %c2_343 = arith.constant 2 : index
    %c0_344 = arith.constant 0 : index
    %610 = vector.load %arg11[%c0_342, %c2_343, %c0_344] : memref<10x10x16xf32, #tpu.memory_space<vmem>>, vector<8x8x4xf32>
    %611 = vector.shape_cast %610 : vector<8x8x4xf32> to vector<64x4xf32>
    %612 = vector.extract_strided_slice %593 {offsets = [8, 0], sizes = [4, 4], strides = [1, 1]} : vector<36x4xf32> to vector<4x4xf32>
    %613 = arith.truncf %611 : vector<64x4xf32> to vector<64x4xbf16>
    %614 = arith.truncf %612 : vector<4x4xf32> to vector<4x4xbf16>
    %cst_345 = arith.constant dense<0.000000e+00> : vector<64x4xf32>
    %615 = tpu.matmul %613, %614, %cst_345 {dimension_numbers = #tpu.dot_dimension_numbers<[1], [0], [0], [1], [0, 0, 1, 1], [], []>} : vector<64x4xbf16>, vector<4x4xbf16>, vector<64x4xf32> -> vector<64x4xf32>
    %616 = arith.addf %609, %615 : vector<64x4xf32>
    %c1_346 = arith.constant 1 : index
    %c0_347 = arith.constant 0 : index
    %c0_348 = arith.constant 0 : index
    %617 = vector.load %arg11[%c1_346, %c0_347, %c0_348] : memref<10x10x16xf32, #tpu.memory_space<vmem>>, vector<8x8x4xf32>
    %618 = vector.shape_cast %617 : vector<8x8x4xf32> to vector<64x4xf32>
    %619 = vector.extract_strided_slice %593 {offsets = [12, 0], sizes = [4, 4], strides = [1, 1]} : vector<36x4xf32> to vector<4x4xf32>
    %620 = arith.truncf %618 : vector<64x4xf32> to vector<64x4xbf16>
    %621 = arith.truncf %619 : vector<4x4xf32> to vector<4x4xbf16>
    %cst_349 = arith.constant dense<0.000000e+00> : vector<64x4xf32>
    %622 = tpu.matmul %620, %621, %cst_349 {dimension_numbers = #tpu.dot_dimension_numbers<[1], [0], [0], [1], [0, 0, 1, 1], [], []>} : vector<64x4xbf16>, vector<4x4xbf16>, vector<64x4xf32> -> vector<64x4xf32>
    %623 = arith.addf %616, %622 : vector<64x4xf32>
    %c1_350 = arith.constant 1 : index
    %c1_351 = arith.constant 1 : index
    %c0_352 = arith.constant 0 : index
    %624 = vector.load %arg11[%c1_350, %c1_351, %c0_352] : memref<10x10x16xf32, #tpu.memory_space<vmem>>, vector<8x8x4xf32>
    %625 = vector.shape_cast %624 : vector<8x8x4xf32> to vector<64x4xf32>
    %626 = vector.extract_strided_slice %593 {offsets = [16, 0], sizes = [4, 4], strides = [1, 1]} : vector<36x4xf32> to vector<4x4xf32>
    %627 = arith.truncf %625 : vector<64x4xf32> to vector<64x4xbf16>
    %628 = arith.truncf %626 : vector<4x4xf32> to vector<4x4xbf16>
    %cst_353 = arith.constant dense<0.000000e+00> : vector<64x4xf32>
    %629 = tpu.matmul %627, %628, %cst_353 {dimension_numbers = #tpu.dot_dimension_numbers<[1], [0], [0], [1], [0, 0, 1, 1], [], []>} : vector<64x4xbf16>, vector<4x4xbf16>, vector<64x4xf32> -> vector<64x4xf32>
    %630 = arith.addf %623, %629 : vector<64x4xf32>
    %c1_354 = arith.constant 1 : index
    %c2_355 = arith.constant 2 : index
    %c0_356 = arith.constant 0 : index
    %631 = vector.load %arg11[%c1_354, %c2_355, %c0_356] : memref<10x10x16xf32, #tpu.memory_space<vmem>>, vector<8x8x4xf32>
    %632 = vector.shape_cast %631 : vector<8x8x4xf32> to vector<64x4xf32>
    %633 = vector.extract_strided_slice %593 {offsets = [20, 0], sizes = [4, 4], strides = [1, 1]} : vector<36x4xf32> to vector<4x4xf32>
    %634 = arith.truncf %632 : vector<64x4xf32> to vector<64x4xbf16>
    %635 = arith.truncf %633 : vector<4x4xf32> to vector<4x4xbf16>
    %cst_357 = arith.constant dense<0.000000e+00> : vector<64x4xf32>
    %636 = tpu.matmul %634, %635, %cst_357 {dimension_numbers = #tpu.dot_dimension_numbers<[1], [0], [0], [1], [0, 0, 1, 1], [], []>} : vector<64x4xbf16>, vector<4x4xbf16>, vector<64x4xf32> -> vector<64x4xf32>
    %637 = arith.addf %630, %636 : vector<64x4xf32>
    %c2_358 = arith.constant 2 : index
    %c0_359 = arith.constant 0 : index
    %c0_360 = arith.constant 0 : index
    %638 = vector.load %arg11[%c2_358, %c0_359, %c0_360] : memref<10x10x16xf32, #tpu.memory_space<vmem>>, vector<8x8x4xf32>
    %639 = vector.shape_cast %638 : vector<8x8x4xf32> to vector<64x4xf32>
    %640 = vector.extract_strided_slice %593 {offsets = [24, 0], sizes = [4, 4], strides = [1, 1]} : vector<36x4xf32> to vector<4x4xf32>
    %641 = arith.truncf %639 : vector<64x4xf32> to vector<64x4xbf16>
    %642 = arith.truncf %640 : vector<4x4xf32> to vector<4x4xbf16>
    %cst_361 = arith.constant dense<0.000000e+00> : vector<64x4xf32>
    %643 = tpu.matmul %641, %642, %cst_361 {dimension_numbers = #tpu.dot_dimension_numbers<[1], [0], [0], [1], [0, 0, 1, 1], [], []>} : vector<64x4xbf16>, vector<4x4xbf16>, vector<64x4xf32> -> vector<64x4xf32>
    %644 = arith.addf %637, %643 : vector<64x4xf32>
    %c2_362 = arith.constant 2 : index
    %c1_363 = arith.constant 1 : index
    %c0_364 = arith.constant 0 : index
    %645 = vector.load %arg11[%c2_362, %c1_363, %c0_364] : memref<10x10x16xf32, #tpu.memory_space<vmem>>, vector<8x8x4xf32>
    %646 = vector.shape_cast %645 : vector<8x8x4xf32> to vector<64x4xf32>
    %647 = vector.extract_strided_slice %593 {offsets = [28, 0], sizes = [4, 4], strides = [1, 1]} : vector<36x4xf32> to vector<4x4xf32>
    %648 = arith.truncf %646 : vector<64x4xf32> to vector<64x4xbf16>
    %649 = arith.truncf %647 : vector<4x4xf32> to vector<4x4xbf16>
    %cst_365 = arith.constant dense<0.000000e+00> : vector<64x4xf32>
    %650 = tpu.matmul %648, %649, %cst_365 {dimension_numbers = #tpu.dot_dimension_numbers<[1], [0], [0], [1], [0, 0, 1, 1], [], []>} : vector<64x4xbf16>, vector<4x4xbf16>, vector<64x4xf32> -> vector<64x4xf32>
    %651 = arith.addf %644, %650 : vector<64x4xf32>
    %c2_366 = arith.constant 2 : index
    %c2_367 = arith.constant 2 : index
    %c0_368 = arith.constant 0 : index
    %652 = vector.load %arg11[%c2_366, %c2_367, %c0_368] : memref<10x10x16xf32, #tpu.memory_space<vmem>>, vector<8x8x4xf32>
    %653 = vector.shape_cast %652 : vector<8x8x4xf32> to vector<64x4xf32>
    %654 = vector.extract_strided_slice %593 {offsets = [32, 0], sizes = [4, 4], strides = [1, 1]} : vector<36x4xf32> to vector<4x4xf32>
    %655 = arith.truncf %653 : vector<64x4xf32> to vector<64x4xbf16>
    %656 = arith.truncf %654 : vector<4x4xf32> to vector<4x4xbf16>
    %cst_369 = arith.constant dense<0.000000e+00> : vector<64x4xf32>
    %657 = tpu.matmul %655, %656, %cst_369 {dimension_numbers = #tpu.dot_dimension_numbers<[1], [0], [0], [1], [0, 0, 1, 1], [], []>} : vector<64x4xbf16>, vector<4x4xbf16>, vector<64x4xf32> -> vector<64x4xf32>
    %658 = arith.addf %651, %657 : vector<64x4xf32>
    %659 = vector.broadcast %594 : vector<1x4xf32> to vector<64x4xf32>
    %660 = arith.addf %658, %659 : vector<64x4xf32>
    %c0_370 = arith.constant 0 : index
    %c0_371 = arith.constant 0 : index
    %c0_372 = arith.constant 0 : index
    %661 = vector.load %arg10[%c0_370, %c0_371, %c0_372] : memref<1x64x4xf32, #tpu.memory_space<vmem>>, vector<1x64x4xf32>
    %662 = vector.shape_cast %661 : vector<1x64x4xf32> to vector<64x4xf32>
    %663 = vector.shape_cast %660 : vector<64x4xf32> to vector<1x64x4xf32>
    tpu.vector_store %arg10[%c0_370, %c0_371, %c0_372], %663 {strides = array<i32>} : memref<1x64x4xf32, #tpu.memory_space<vmem>>, vector<1x64x4xf32>,
    return
  }
  func.func @transform_0(%arg0: i32) -> (i32, i32, i32) {
    %c0_i32 = arith.constant 0 : i32
    %c0_i32_0 = arith.constant 0 : i32
    %c0_i32_1 = arith.constant 0 : i32
    return %arg0, %c0_i32, %c0_i32_0 : i32, i32, i32
  }
  func.func @transform_1(%arg0: i32) -> (i32, i32, i32) {
    %c0_i32 = arith.constant 0 : i32
    %c0_i32_0 = arith.constant 0 : i32
    %c0_i32_1 = arith.constant 0 : i32
    return %arg0, %c0_i32, %c0_i32_0 : i32, i32, i32
  }
  func.func @transform_2(%arg0: i32) -> (i32, i32, i32) {
    %c0_i32 = arith.constant 0 : i32
    %c0_i32_0 = arith.constant 0 : i32
    %c0_i32_1 = arith.constant 0 : i32
    return %arg0, %c0_i32, %c0_i32_0 : i32, i32, i32
  }
  func.func @transform_3(%arg0: i32) -> (i32, i32, i32) {
    %c0_i32 = arith.constant 0 : i32
    %c0_i32_0 = arith.constant 0 : i32
    %c0_i32_1 = arith.constant 0 : i32
    return %arg0, %c0_i32, %c0_i32_0 : i32, i32, i32
  }
  func.func @transform_4(%arg0: i32) -> (i32, i32, i32) {
    %c0_i32 = arith.constant 0 : i32
    %c0_i32_0 = arith.constant 0 : i32
    %c0_i32_1 = arith.constant 0 : i32
    return %arg0, %c0_i32, %c0_i32_0 : i32, i32, i32
  }
  func.func @transform_5(%arg0: i32) -> (i32, i32, i32) {
    %c0_i32 = arith.constant 0 : i32
    %c0_i32_0 = arith.constant 0 : i32
    %c0_i32_1 = arith.constant 0 : i32
    return %arg0, %c0_i32, %c0_i32_0 : i32, i32, i32
  }
  func.func @transform_6(%arg0: i32) -> (i32, i32, i32) {
    %c0_i32 = arith.constant 0 : i32
    %c0_i32_0 = arith.constant 0 : i32
    %c0_i32_1 = arith.constant 0 : i32
    return %arg0, %c0_i32, %c0_i32_0 : i32, i32, i32
  }
  func.func @transform_7(%arg0: i32) -> (i32, i32) {
    %c0_i32 = arith.constant 0 : i32
    %c0_i32_0 = arith.constant 0 : i32
    %c0_i32_1 = arith.constant 0 : i32
    return %c0_i32, %c0_i32_0 : i32, i32
  }
  func.func @transform_8(%arg0: i32) -> (i32, i32) {
    %c0_i32 = arith.constant 0 : i32
    %c0_i32_0 = arith.constant 0 : i32
    %c0_i32_1 = arith.constant 0 : i32
    return %c0_i32, %c0_i32_0 : i32, i32
  }
  func.func @transform_9(%arg0: i32) -> (i32, i32, i32) {
    %c0_i32 = arith.constant 0 : i32
    %c0_i32_0 = arith.constant 0 : i32
    %c0_i32_1 = arith.constant 0 : i32
    return %arg0, %c0_i32, %c0_i32_0 : i32, i32, i32
  }
}

</mosaic_0001>

<llo_original>
// kernel: controlnet_forward.3
$region0: #{controlnet_forward.3}
  #allocation0 [shape = 'u32[]', space=smem, size = 0x4, offset = 0x4, fixed_abs, tag = 'smem constant byte address 0x4 - core index']
  #allocation1 [shape = 'u32[72,128]{1,0:T(1,128)}', space=vmem, size = 0x9000, scoped, tag = 'internal scratch']
  #allocation2 [shape = 'f32[10,10,16]{2,1,0:T(8,128)}', space=vmem, size = 0x14000, scoped, tag = 'scratch operand']
  %s0 = inlined_call_operand.vmem [shape: f32[2,64,27], index: 0, kind: input, shape index: {}]
  %s1 = inlined_call_operand.vmem [shape: f32[2,64,27], index: 1, kind: input, shape index: {}]
  %s2 = inlined_call_operand.vmem [shape: f32[2,64,4], index: 2, kind: input, shape index: {}]
  %s3 = inlined_call_operand.vmem [shape: f32[2,64,4], index: 3, kind: input, shape index: {}]
  %s4 = inlined_call_operand.vmem [shape: f32[2,1,2], index: 4, kind: input, shape index: {}]
  %s5 = inlined_call_operand.vmem [shape: f32[2,1,32], index: 5, kind: input, shape index: {}]
  %s6 = inlined_call_operand.vmem [shape: f32[2,80,32], index: 6, kind: input, shape index: {}]
  %s7 = inlined_call_operand.vmem [shape: f32[648,64], index: 7, kind: input, shape index: {}]
  %s8 = inlined_call_operand.vmem [shape: f32[16,64], index: 8, kind: input, shape index: {}]
  %s9 = inlined_call_operand.vmem [shape: f32[2,64,4], index: 9, kind: output, shape index: {}]
  %s10 = sld [smem:[#allocation0]]
  $region69: #{controlnet_forward.3} parent=0
    _
  %s12 = ssub.s32 1, %s10
  %s13 = scalar_select 0, %s12, %s10
  loop: start=0, step=1, limit=4
  $region2: #{controlnet_forward.3} parent=0 // loop_pre_header
    _
  $region3: #{controlnet_forward.3} parent=0 // loop_header
    %s15 = sphi 0, %s19
    %p16 = scmp.ge.s32.totalorder %s15, 4
    %s25 = sphi 0, %s27
    %s28 = sphi 0, %s25
    %s29 = sphi 0, %s28
    %s45 = sphi 0, %s29
    %s51 = sphi 0, %s53
    %s54 = sphi 0, %s51
    %s55 = sphi 0, %s54
    %s71 = sphi 0, %s55
    %s77 = sphi 0, %s79
    %s80 = sphi 0, %s77
    %s81 = sphi 0, %s80
    %s97 = sphi 0, %s81
    %s103 = sphi 0, %s105
    %s106 = sphi 0, %s103
    %s107 = sphi 0, %s106
    %s123 = sphi 0, %s107
    %s129 = sphi 0, %s131
    %s132 = sphi 0, %s129
    %s133 = sphi 0, %s132
    %s149 = sphi 0, %s133
    %s155 = sphi 0, %s157
    %s158 = sphi 0, %s155
    %s159 = sphi 0, %s158
    %s175 = sphi 0, %s159
    %s181 = sphi 0, %s183
    %s184 = sphi 0, %s181
    %s185 = sphi 0, %s184
    %s201 = sphi 0, %s185
    %s205 = sphi 0, %s205
    %s207 = sphi 0, %s205
    %s208 = sphi 0, %s207
    %s222 = sphi 0, %s208
    %s226 = sphi 0, %s226
    %s228 = sphi 0, %s226
    %s229 = sphi 0, %s228
    %s243 = sphi 0, %s229
    %s249 = sphi 0, %s251
    %s252 = sphi 0, %s249
    %s253 = sphi 0, %s252
    %s269 = sphi 0, %s253
  $region4: #{controlnet_forward.3} parent=0 // loop_header_branch
    %18 = sbr.rel (%p16) target = $region8
  $region5: #{controlnet_forward.3} parent=0 // loop_body
    %s20 = ssub.s32 %s15, 1
    %s21 = ssub.s32 %s15, 2
    %s22 = sadd.s32 %s15, 1
    %s23 = ssub.s32 %s15, %s22
    %p24 = scmp.eq.s32.totalorder %s23, 0
    %s26 = sadd.s32 %s25, 1
    %s27 = scalar_select %p24, %s25, %s26
    %p30 = pneg %p24
    %p31 = scmp.eq.s32.totalorder %s15, 1
    %p32 = por %p30, %p31
    %p33 = scmp.ne.s32.totalorder %s25, %s28
    %p34 = scmp.eq.s32.totalorder %s15, 0
    %p35 = por %p33, %p34
    %p36 = scmp.ne.s32.totalorder %s25, %s28
    %p37 = scmp.eq.s32.totalorder %s20, 1
    %p38 = por %p36, %p37
    %p39 = scmp.ne.s32.totalorder %s28, %s29
    %p40 = scmp.eq.s32.totalorder %s20, 0
    %p41 = por %p39, %p40
    %p42 = scmp.ne.s32.totalorder %s28, %s29
    %p43 = scmp.eq.s32.totalorder %s21, 1
    %p44 = por %p42, %p43
    %p46 = scmp.ne.s32.totalorder %s29, %s45
    %p47 = scmp.eq.s32.totalorder %s21, 0
    %p48 = por %p46, %p47
    %s49 = ssub.s32 %s15, %s22
    %p50 = scmp.eq.s32.totalorder %s49, 0
    %s52 = sadd.s32 %s51, 1
    %s53 = scalar_select %p50, %s51, %s52
    %p56 = pneg %p50
    %p57 = scmp.eq.s32.totalorder %s15, 1
    %p58 = por %p56, %p57
    %p59 = scmp.ne.s32.totalorder %s51, %s54
    %p60 = scmp.eq.s32.totalorder %s15, 0
    %p61 = por %p59, %p60
    %p62 = scmp.ne.s32.totalorder %s51, %s54
    %p63 = scmp.eq.s32.totalorder %s20, 1
    %p64 = por %p62, %p63
    %p65 = scmp.ne.s32.totalorder %s54, %s55
    %p66 = scmp.eq.s32.totalorder %s20, 0
    %p67 = por %p65, %p66
    %p68 = scmp.ne.s32.totalorder %s54, %s55
    %p69 = scmp.eq.s32.totalorder %s21, 1
    %p70 = por %p68, %p69
    %p72 = scmp.ne.s32.totalorder %s55, %s71
    %p73 = scmp.eq.s32.totalorder %s21, 0
    %p74 = por %p72, %p73
    %s75 = ssub.s32 %s15, %s22
    %p76 = scmp.eq.s32.totalorder %s75, 0
    %s78 = sadd.s32 %s77, 1
    %s79 = scalar_select %p76, %s77, %s78
    %p82 = pneg %p76
    %p83 = scmp.eq.s32.totalorder %s15, 1
    %p84 = por %p82, %p83
    %p85 = scmp.ne.s32.totalorder %s77, %s80
    %p86 = scmp.eq.s32.totalorder %s15, 0
    %p87 = por %p85, %p86
    %p88 = scmp.ne.s32.totalorder %s77, %s80
    %p89 = scmp.eq.s32.totalorder %s20, 1
    %p90 = por %p88, %p89
    %p91 = scmp.ne.s32.totalorder %s80, %s81
    %p92 = scmp.eq.s32.totalorder %s20, 0
    %p93 = por %p91, %p92
    %p94 = scmp.ne.s32.totalorder %s80, %s81
    %p95 = scmp.eq.s32.totalorder %s21, 1
    %p96 = por %p94, %p95
    %p98 = scmp.ne.s32.totalorder %s81, %s97
    %p99 = scmp.eq.s32.totalorder %s21, 0
    %p100 = por %p98, %p99
    %s101 = ssub.s32 %s15, %s22
    %p102 = scmp.eq.s32.totalorder %s101, 0
    %s104 = sadd.s32 %s103, 1
    %s105 = scalar_select %p102, %s103, %s104
    %p108 = pneg %p102
    %p109 = scmp.eq.s32.totalorder %s15, 1
    %p110 = por %p108, %p109
    %p111 = scmp.ne.s32.totalorder %s103, %s106
    %p112 = scmp.eq.s32.totalorder %s15, 0
    %p113 = por %p111, %p112
    %p114 = scmp.ne.s32.totalorder %s103, %s106
    %p115 = scmp.eq.s32.totalorder %s20, 1
    %p116 = por %p114, %p115
    %p117 = scmp.ne.s32.totalorder %s106, %s107
    %p118 = scmp.eq.s32.totalorder %s20, 0
    %p119 = por %p117, %p118
    %p120 = scmp.ne.s32.totalorder %s106, %s107
    %p121 = scmp.eq.s32.totalorder %s21, 1
    %p122 = por %p120, %p121
    %p124 = scmp.ne.s32.totalorder %s107, %s123
    %p125 = scmp.eq.s32.totalorder %s21, 0
    %p126 = por %p124, %p125
    %s127 = ssub.s32 %s15, %s22
    %p128 = scmp.eq.s32.totalorder %s127, 0
    %s130 = sadd.s32 %s129, 1
    %s131 = scalar_select %p128, %s129, %s130
    %p134 = pneg %p128
    %p135 = scmp.eq.s32.totalorder %s15, 1
    %p136 = por %p134, %p135
    %p137 = scmp.ne.s32.totalorder %s129, %s132
    %p138 = scmp.eq.s32.totalorder %s15, 0
    %p139 = por %p137, %p138
    %p140 = scmp.ne.s32.totalorder %s129, %s132
    %p141 = scmp.eq.s32.totalorder %s20, 1
    %p142 = por %p140, %p141
    %p143 = scmp.ne.s32.totalorder %s132, %s133
    %p144 = scmp.eq.s32.totalorder %s20, 0
    %p145 = por %p143, %p144
    %p146 = scmp.ne.s32.totalorder %s132, %s133
    %p147 = scmp.eq.s32.totalorder %s21, 1
    %p148 = por %p146, %p147
    %p150 = scmp.ne.s32.totalorder %s133, %s149
    %p151 = scmp.eq.s32.totalorder %s21, 0
    %p152 = por %p150, %p151
    %s153 = ssub.s32 %s15, %s22
    %p154 = scmp.eq.s32.totalorder %s153, 0
    %s156 = sadd.s32 %s155, 1
    %s157 = scalar_select %p154, %s155, %s156
    %p160 = pneg %p154
    %p161 = scmp.eq.s32.totalorder %s15, 1
    %p162 = por %p160, %p161
    %p163 = scmp.ne.s32.totalorder %s155, %s158
    %p164 = scmp.eq.s32.totalorder %s15, 0
    %p165 = por %p163, %p164
    %p166 = scmp.ne.s32.totalorder %s155, %s158
    %p167 = scmp.eq.s32.totalorder %s20, 1
    %p168 = por %p166, %p167
    %p169 = scmp.ne.s32.totalorder %s158, %s159
    %p170 = scmp.eq.s32.totalorder %s20, 0
    %p171 = por %p169, %p170
    %p172 = scmp.ne.s32.totalorder %s158, %s159
    %p173 = scmp.eq.s32.totalorder %s21, 1
    %p174 = por %p172, %p173
    %p176 = scmp.ne.s32.totalorder %s159, %s175
    %p177 = scmp.eq.s32.totalorder %s21, 0
    %p178 = por %p176, %p177
    %s179 = ssub.s32 %s15, %s22
    %p180 = scmp.eq.s32.totalorder %s179, 0
    %s182 = sadd.s32 %s181, 1
    %s183 = scalar_select %p180, %s181, %s182
    %p186 = pneg %p180
    %p187 = scmp.eq.s32.totalorder %s15, 1
    %p188 = por %p186, %p187
    %p189 = scmp.ne.s32.totalorder %s181, %s184
    %p190 = scmp.eq.s32.totalorder %s15, 0
    %p191 = por %p189, %p190
    %p192 = scmp.ne.s32.totalorder %s181, %s184
    %p193 = scmp.eq.s32.totalorder %s20, 1
    %p194 = por %p192, %p193
    %p195 = scmp.ne.s32.totalorder %s184, %s185
    %p196 = scmp.eq.s32.totalorder %s20, 0
    %p197 = por %p195, %p196
    %p198 = scmp.ne.s32.totalorder %s184, %s185
    %p199 = scmp.eq.s32.totalorder %s21, 1
    %p200 = por %p198, %p199
    %p202 = scmp.ne.s32.totalorder %s185, %s201
    %p203 = scmp.eq.s32.totalorder %s21, 0
    %p204 = por %p202, %p203
    %s206 = sadd.s32 %s205, 1
    %p209 = scmp.eq.s32.totalorder %s15, 1
    %p210 = scmp.ne.s32.totalorder %s205, %s207
    %p211 = scmp.eq.s32.totalorder %s15, 0
    %p212 = por %p210, %p211
    %p213 = scmp.ne.s32.totalorder %s205, %s207
    %p214 = scmp.eq.s32.totalorder %s20, 1
    %p215 = por %p213, %p214
    %p216 = scmp.ne.s32.totalorder %s207, %s208
    %p217 = scmp.eq.s32.totalorder %s20, 0
    %p218 = por %p216, %p217
    %p219 = scmp.ne.s32.totalorder %s207, %s208
    %p220 = scmp.eq.s32.totalorder %s21, 1
    %p221 = por %p219, %p220
    %p223 = scmp.ne.s32.totalorder %s208, %s222
    %p224 = scmp.eq.s32.totalorder %s21, 0
    %p225 = por %p223, %p224
    %s227 = sadd.s32 %s226, 1
    %p230 = scmp.eq.s32.totalorder %s15, 1
    %p231 = scmp.ne.s32.totalorder %s226, %s228
    %p232 = scmp.eq.s32.totalorder %s15, 0
    %p233 = por %p231, %p232
    %p234 = scmp.ne.s32.totalorder %s226, %s228
    %p235 = scmp.eq.s32.totalorder %s20, 1
    %p236 = por %p234, %p235
    %p237 = scmp.ne.s32.totalorder %s228, %s229
    %p238 = scmp.eq.s32.totalorder %s20, 0
    %p239 = por %p237, %p238
    %p240 = scmp.ne.s32.totalorder %s228, %s229
    %p241 = scmp.eq.s32.totalorder %s21, 1
    %p242 = por %p240, %p241
    %p244 = scmp.ne.s32.totalorder %s229, %s243
    %p245 = scmp.eq.s32.totalorder %s21, 0
    %p246 = por %p244, %p245
    %s247 = ssub.s32 %s15, %s22
    %p248 = scmp.eq.s32.totalorder %s247, 0
    %s250 = sadd.s32 %s249, 1
    %s251 = scalar_select %p248, %s249, %s250
    %p254 = pneg %p248
    %p255 = scmp.eq.s32.totalorder %s15, 1
    %p256 = por %p254, %p255
    %p257 = scmp.ne.s32.totalorder %s249, %s252
    %p258 = scmp.eq.s32.totalorder %s15, 0
    %p259 = por %p257, %p258
    %p260 = scmp.ne.s32.totalorder %s249, %s252
    %p261 = scmp.eq.s32.totalorder %s20, 1
    %p262 = por %p260, %p261
    %p263 = scmp.ne.s32.totalorder %s252, %s253
    %p264 = scmp.eq.s32.totalorder %s20, 0
    %p265 = por %p263, %p264
    %p266 = scmp.ne.s32.totalorder %s252, %s253
    %p267 = scmp.eq.s32.totalorder %s21, 1
    %p268 = por %p266, %p267
    %p270 = scmp.ne.s32.totalorder %s253, %s269
    %p271 = scmp.eq.s32.totalorder %s21, 0
    %p272 = por %p270, %p271
    %p273 = scmp.le.s32.totalorder 1, %s15
    %p274 = scmp.lt.s32.totalorder %s15, 3
    %p275 = pnand %p273, %p274
    %p276 = pneg %p275
    // Predicated region
    $region9: #{controlnet_forward.3} parent=5 // pred_check
      _
    $region10: #{controlnet_forward.3} parent=5 // pred_check_branch
      %278 = sbr.rel (%p275) target = $region12
    $region11: #{controlnet_forward.3} parent=5 // pred_region
      %s279 = ssub.s32 %s15, 1
      // Predicated region
      $region13: #{controlnet_forward.3} parent=11 // pred_check
        %p280 = pneg %p218
      $region14: #{controlnet_forward.3} parent=11 // pred_check_branch
        %282 = sbr.rel (%p280) target = $region16
      $region15: #{controlnet_forward.3} parent=11 // pred_region
        _
      $region16: #{controlnet_forward.3} parent=11 // pred_fallthru
        _
      // Predicated region
      $region17: #{controlnet_forward.3} parent=11 // pred_check
        %p283 = pneg %p239
      $region18: #{controlnet_forward.3} parent=11 // pred_check_branch
        %285 = sbr.rel (%p283) target = $region20
      $region19: #{controlnet_forward.3} parent=11 // pred_region
        _
      $region20: #{controlnet_forward.3} parent=11 // pred_fallthru
        _
    $region12: #{controlnet_forward.3} parent=5 // pred_fallthru
      _
    %p286 = scmp.lt.s32.totalorder %s15, 2
    // Predicated region
    $region21: #{controlnet_forward.3} parent=5 // pred_check
      %p287 = pneg %p286
    $region22: #{controlnet_forward.3} parent=5 // pred_check_branch
      %289 = sbr.rel (%p287) target = $region24
    $region23: #{controlnet_forward.3} parent=5 // pred_region
      // Predicated region
      $region25: #{controlnet_forward.3} parent=23 // pred_check
        %p290 = pneg %p35
      $region26: #{controlnet_forward.3} parent=23 // pred_check_branch
        %292 = sbr.rel (%p290) target = $region28
      $region27: #{controlnet_forward.3} parent=23 // pred_region
        %p293 = scmp.lt.s32.totalorder %s15, 1
        %s294 = scalar_select %p293, %s15, 1
        %s295 = smul.addr %s294, 8
        %s296 = smul.addr %s295, 8
        %s297 = scalar_lea.vmem %s0, %s296
      $region28: #{controlnet_forward.3} parent=23 // pred_fallthru
        _
      // Predicated region
      $region29: #{controlnet_forward.3} parent=23 // pred_check
        %p298 = pneg %p61
      $region30: #{controlnet_forward.3} parent=23 // pred_check_branch
        %300 = sbr.rel (%p298) target = $region32
      $region31: #{controlnet_forward.3} parent=23 // pred_region
        %p301 = scmp.lt.s32.totalorder %s15, 1
        %s302 = scalar_select %p301, %s15, 1
        %s303 = smul.addr %s302, 8
        %s304 = smul.addr %s303, 8
        %s305 = scalar_lea.vmem %s1, %s304
      $region32: #{controlnet_forward.3} parent=23 // pred_fallthru
        _
      // Predicated region
      $region33: #{controlnet_forward.3} parent=23 // pred_check
        %p306 = pneg %p87
      $region34: #{controlnet_forward.3} parent=23 // pred_check_branch
        %308 = sbr.rel (%p306) target = $region36
      $region35: #{controlnet_forward.3} parent=23 // pred_region
        %p309 = scmp.lt.s32.totalorder %s15, 1
        %s310 = scalar_select %p309, %s15, 1
        %s311 = smul.addr %s310, 8
        %s312 = smul.addr %s311, 8
        %s313 = scalar_lea.vmem %s2, %s312
      $region36: #{controlnet_forward.3} parent=23 // pred_fallthru
        _
      // Predicated region
      $region37: #{controlnet_forward.3} parent=23 // pred_check
        %p314 = pneg %p113
      $region38: #{controlnet_forward.3} parent=23 // pred_check_branch
        %316 = sbr.rel (%p314) target = $region40
      $region39: #{controlnet_forward.3} parent=23 // pred_region
        %p317 = scmp.lt.s32.totalorder %s15, 1
        %s318 = scalar_select %p317, %s15, 1
        %s319 = smul.addr %s318, 8
        %s320 = smul.addr %s319, 8
        %s321 = scalar_lea.vmem %s3, %s320
      $region40: #{controlnet_forward.3} parent=23 // pred_fallthru
        _
      // Predicated region
      $region41: #{controlnet_forward.3} parent=23 // pred_check
        %p322 = pneg %p139
      $region42: #{controlnet_forward.3} parent=23 // pred_check_branch
        %324 = sbr.rel (%p322) target = $region44
      $region43: #{controlnet_forward.3} parent=23 // pred_region
        %p325 = scmp.lt.s32.totalorder %s15, 1
        %s326 = scalar_select %p325, %s15, 1
        %s327 = scalar_lea.vmem %s4, %s326
      $region44: #{controlnet_forward.3} parent=23 // pred_fallthru
        _
      // Predicated region
      $region45: #{controlnet_forward.3} parent=23 // pred_check
        %p328 = pneg %p165
      $region46: #{controlnet_forward.3} parent=23 // pred_check_branch
        %330 = sbr.rel (%p328) target = $region48
      $region47: #{controlnet_forward.3} parent=23 // pred_region
        %p331 = scmp.lt.s32.totalorder %s15, 1
        %s332 = scalar_select %p331, %s15, 1
        %s333 = scalar_lea.vmem %s5, %s332
      $region48: #{controlnet_forward.3} parent=23 // pred_fallthru
        _
      // Predicated region
      $region49: #{controlnet_forward.3} parent=23 // pred_check
        %p334 = pneg %p191
      $region50: #{controlnet_forward.3} parent=23 // pred_check_branch
        %336 = sbr.rel (%p334) target = $region52
      $region51: #{controlnet_forward.3} parent=23 // pred_region
        %p337 = scmp.lt.s32.totalorder %s15, 1
        %s338 = scalar_select %p337, %s15, 1
        %s339 = smul.addr %s338, 10
        %s340 = smul.addr %s339, 8
        %s341 = scalar_lea.vmem %s6, %s340
      $region52: #{controlnet_forward.3} parent=23 // pred_fallthru
        _
    $region24: #{controlnet_forward.3} parent=5 // pred_fallthru
      _
    %p342 = scmp.le.s32.totalorder 1, %s15
    %p343 = scmp.lt.s32.totalorder %s15, 3
    %p344 = pnand %p342, %p343
    %p345 = pneg %p344
    // Predicated region
    $region53: #{controlnet_forward.3} parent=5 // pred_check
      _
    $region54: #{controlnet_forward.3} parent=5 // pred_check_branch
      %347 = sbr.rel (%p344) target = $region56
    $region55: #{controlnet_forward.3} parent=5 // pred_region
      %s348 = ssub.s32 %s15, 1
      %p349 = scmp.lt.s32.totalorder %s20, 1
      %s350 = scalar_select %p349, %s20, 1
      %s351 = smul.addr %s350, 8
      %s352 = smul.addr %s351, 8
      %s353 = scalar_lea.vmem %s0, %s352
      %p354 = pneg %p41
      %p355 = pneg %p38
      %p356 = scmp.lt.s32.totalorder %s20, 1
      %s357 = scalar_select %p356, %s20, 1
      %s358 = smul.addr %s357, 8
      %s359 = smul.addr %s358, 8
      %s360 = scalar_lea.vmem %s1, %s359
      %p361 = pneg %p67
      %p362 = pneg %p64
      %p363 = scmp.lt.s32.totalorder %s20, 1
      %s364 = scalar_select %p363, %s20, 1
      %s365 = smul.addr %s364, 8
      %s366 = smul.addr %s365, 8
      %s367 = scalar_lea.vmem %s2, %s366
      %p368 = pneg %p93
      %p369 = pneg %p90
      %p370 = scmp.lt.s32.totalorder %s20, 1
      %s371 = scalar_select %p370, %s20, 1
      %s372 = smul.addr %s371, 8
      %s373 = smul.addr %s372, 8
      %s374 = scalar_lea.vmem %s3, %s373
      %p375 = pneg %p119
      %p376 = pneg %p116
      %p377 = scmp.lt.s32.totalorder %s20, 1
      %s378 = scalar_select %p377, %s20, 1
      %s379 = scalar_lea.vmem %s4, %s378
      %p380 = pneg %p145
      %p381 = pneg %p142
      %p382 = scmp.lt.s32.totalorder %s20, 1
      %s383 = scalar_select %p382, %s20, 1
      %s384 = scalar_lea.vmem %s5, %s383
      %p385 = pneg %p171
      %p386 = pneg %p168
      %p387 = scmp.lt.s32.totalorder %s20, 1
      %s388 = scalar_select %p387, %s20, 1
      %s389 = smul.addr %s388, 10
      %s390 = smul.addr %s389, 8
      %s391 = scalar_lea.vmem %s6, %s390
      %p392 = pneg %p197
      %p393 = pneg %p194
      %p394 = pneg %p218
      %p395 = pneg %p215
      %p396 = pneg %p239
      %p397 = pneg %p236
      %p398 = pneg %p265
      %p399 = pneg %p262
      %p400 = scmp.lt.s32.totalorder %s20, 1
      %s401 = scalar_select %p400, %s20, 1
      %s402 = smul.addr %s401, 8
      %s403 = smul.addr %s402, 8
      %s404 = scalar_lea.vmem %s9, %s403
      %p405 = scmp.lt.s32.totalorder %s20, 1
      %s406 = scalar_select %p405, %s20, 1
      %s407 = smul.addr %s406, 8
      %s408 = smul.addr %s407, 8
      %s409 = scalar_lea.vmem %s0, %s408
      %p410 = scmp.lt.s32.totalorder %s20, 1
      %s411 = scalar_select %p410, %s20, 1
      %s412 = smul.addr %s411, 8
      %s413 = smul.addr %s412, 8
      %s414 = scalar_lea.vmem %s1, %s413
      %p415 = scmp.lt.s32.totalorder %s20, 1
      %s416 = scalar_select %p415, %s20, 1
      %s417 = smul.addr %s416, 8
      %s418 = smul.addr %s417, 8
      %s419 = scalar_lea.vmem %s2, %s418
      %p420 = scmp.lt.s32.totalorder %s20, 1
      %s421 = scalar_select %p420, %s20, 1
      %s422 = smul.addr %s421, 8
      %s423 = smul.addr %s422, 8
      %s424 = scalar_lea.vmem %s3, %s423
      %p425 = scmp.lt.s32.totalorder %s20, 1
      %s426 = scalar_select %p425, %s20, 1
      %s427 = scalar_lea.vmem %s4, %s426
      %p428 = scmp.lt.s32.totalorder %s20, 1
      %s429 = scalar_select %p428, %s20, 1
      %s430 = scalar_lea.vmem %s5, %s429
      %p431 = scmp.lt.s32.totalorder %s20, 1
      %s432 = scalar_select %p431, %s20, 1
      %s433 = smul.addr %s432, 10
      %s434 = smul.addr %s433, 8
      %s435 = scalar_lea.vmem %s6, %s434
      %p436 = scmp.lt.s32.totalorder %s20, 1
      %s437 = scalar_select %p436, %s20, 1
      %s438 = smul.addr %s437, 8
      %s439 = smul.addr %s438, 8
      %s440 = scalar_lea.vmem %s9, %s439
      %vm442 = vcmask 130048
      %443 = vst.msk [vmem:[#allocation2] sm:$0xff] %vm442, 0.0
      %vm444 = vcmask 123904
      %445 = vst.msk [vmem:[#allocation2 + $0x8] sm:$0x3] %vm444, 0.0
      %s446 = scalar_lea.vmem [#allocation2], 144
      %447 = vst.msk [vmem:[%s446] sm:$0xff] %vm442, 0.0
      %448 = vst.msk [vmem:[%s446 + $0x8] sm:$0x3] %vm444, 0.0
      %vm449 = vcmask 122880
      %450 = vst.msk [vmem:[#allocation2] sm:$0x1] %vm449, 0.0
      %451 = vst.msk [vmem:[#allocation2 + $0x10] sm:$0x1] %vm449, 0.0
      %452 = vst.msk [vmem:[#allocation2 + $0x20] sm:$0x1] %vm449, 0.0
      %453 = vst.msk [vmem:[#allocation2 + $0x30] sm:$0x1] %vm449, 0.0
      %454 = vst.msk [vmem:[#allocation2 + $0x40] sm:$0x1] %vm449, 0.0
      %455 = vst.msk [vmem:[#allocation2 + $0x50] sm:$0x1] %vm449, 0.0
      %456 = vst.msk [vmem:[#allocation2 + $0x60] sm:$0x1] %vm449, 0.0
      %457 = vst.msk [vmem:[#allocation2 + $0x70] sm:$0x1] %vm449, 0.0
      %458 = vst.msk [vmem:[#allocation2 + $0x80] sm:$0x1] %vm449, 0.0
      %459 = vst.msk [vmem:[#allocation2 + $0x90] sm:$0x1] %vm449, 0.0
      %460 = vst.msk [vmem:[#allocation2 + $0x9] sm:$0x1] %vm449, 0.0
      %461 = vst.msk [vmem:[#allocation2 + $0x19] sm:$0x1] %vm449, 0.0
      %462 = vst.msk [vmem:[#allocation2 + $0x29] sm:$0x1] %vm449, 0.0
      %463 = vst.msk [vmem:[#allocation2 + $0x39] sm:$0x1] %vm449, 0.0
      %464 = vst.msk [vmem:[#allocation2 + $0x49] sm:$0x1] %vm449, 0.0
      %465 = vst.msk [vmem:[#allocation2 + $0x59] sm:$0x1] %vm449, 0.0
      %466 = vst.msk [vmem:[#allocation2 + $0x69] sm:$0x1] %vm449, 0.0
      %467 = vst.msk [vmem:[#allocation2 + $0x79] sm:$0x1] %vm449, 0.0
      %468 = vst.msk [vmem:[#allocation2 + $0x89] sm:$0x1] %vm449, 0.0
      %469 = vst.msk [vmem:[#allocation2 + $0x99] sm:$0x1] %vm449, 0.0
      %v470 = vld [vmem:[%s409] sm:$0xff]
      %v471 = vld [vmem:[%s409 + $0x8] sm:$0xff]
      %v472 = vld [vmem:[%s409 + $0x10] sm:$0xff]
      %v473 = vld [vmem:[%s409 + $0x18] sm:$0xff]
      %v474 = vld [vmem:[%s409 + $0x20] sm:$0xff]
      %v475 = vld [vmem:[%s409 + $0x28] sm:$0xff]
      %v476 = vld [vmem:[%s409 + $0x30] sm:$0xff]
      %v477 = vld [vmem:[%s409 + $0x38] sm:$0xff]
      %v478 = vld [vmem:[%s7] sm:$0xff]
      %v479 = vld [vmem:[%s7 + $0x8] sm:$0xff]
      %v480 = vld [vmem:[%s7 + $0x10] sm:$0xff]
      %v481 = vld [vmem:[%s7 + $0x18] sm:$0x7]
      %v482 = vpack.c.bf16 %v471, %v470
      %v483 = vpack.c.bf16 %v473, %v472
      %v484 = vpack.c.bf16 %v475, %v474
      %v485 = vpack.c.bf16 %v477, %v476
      %v486 = vpack.c.bf16 %v479, %v478
      %v487 = vpack.c.bf16 %v481, %v480
      %v488 = vld [vmem:[%s8] sm:$0x1]
      %v489 = vperm.slane %v488, 0
      %vm490 = vcmask 220160
      %v492 = vsel %vm490, %v482, 0
      %v495 = vsel %vm490, %v483, 0
      %v498 = vsel %vm490, %v484, 0
      %v501 = vsel %vm490, %v485, 0
      %vm503 = vcmask 1044480
      %vm504 = vcmask 1045504
      %v505 = vsel %vm503, 4294967295, 65535
      %v506 = vsel %vm504, %v505, 0
      %v508 = vand.u32 %v487, %v506
      %510 = vmatpush.bf16.msra.mxu0 0
      %511 = vmatpush.bf16.msra.mxu0 0
      %512 = vmatpush.bf16.msra.mxu0 0
      %513 = vmatpush.bf16.msra.mxu0 0
      %514 = vmatpush.bf16.msra.mxu0 0
      %515 = vmatpush.bf16.msra.mxu0 0
      %516 = vmatpush.bf16.msra.mxu0 %v508
      %517 = vmatpush.bf16.msra.mxu0 %v486
      %518 = vmatmul.bf16.gmra.mxu0 %v492
      %v519 = vpop.f32.mrf.mxu0
      %v520 = vadd.f32 %v489, %v519
      %v521 = vpop.f32.mrf.mxu0
      %v522 = vadd.f32 %v489, %v521
      %523 = vmatmul.bf16.gmra.mxu0 %v495
      %v524 = vpop.f32.mrf.mxu0
      %v525 = vadd.f32 %v489, %v524
      %v526 = vpop.f32.mrf.mxu0
      %v527 = vadd.f32 %v489, %v526
      %528 = vmatmul.bf16.gmra.mxu0 %v498
      %v529 = vpop.f32.mrf.mxu0
      %v530 = vadd.f32 %v489, %v529
      %v531 = vpop.f32.mrf.mxu0
      %v532 = vadd.f32 %v489, %v531
      %533 = vmatmul.bf16.gmra.mxu0 %v501
      %v534 = vpop.f32.mrf.mxu0
      %v535 = vadd.f32 %v489, %v534
      %v536 = vpop.f32.mrf.mxu0
      %v537 = vadd.f32 %v489, %v536
      %538 = vdwg.mxu0
      %v539 = vxor.u32 %v520, 2147483648
      %v540 = vxor.u32 %v522, 2147483648
      %v541 = vxor.u32 %v525, 2147483648
      %v542 = vxor.u32 %v527, 2147483648
      %v543 = vxor.u32 %v530, 2147483648
      %v544 = vxor.u32 %v532, 2147483648
      %v545 = vxor.u32 %v535, 2147483648
      %v546 = vxor.u32 %v537, 2147483648
      %v547 = vmul.f32 %v539, 1.442695
      %v548 = vpow.pop %v547
      %v549 = vmul.f32 %v540, 1.442695
      %v550 = vpow.pop %v549
      %v551 = vmul.f32 %v541, 1.442695
      %v552 = vpow.pop %v551
      %v553 = vmul.f32 %v542, 1.442695
      %v554 = vpow.pop %v553
      %v555 = vmul.f32 %v543, 1.442695
      %v556 = vpow.pop %v555
      %v557 = vmul.f32 %v544, 1.442695
      %v558 = vpow.pop %v557
      %v559 = vmul.f32 %v545, 1.442695
      %v560 = vpow.pop %v559
      %v561 = vmul.f32 %v546, 1.442695
      %v562 = vpow.pop %v561
      %v563 = vadd.f32 %v548, 1.0
      %v564 = vadd.f32 %v550, 1.0
      %v565 = vadd.f32 %v552, 1.0
      %v566 = vadd.f32 %v554, 1.0
      %v567 = vadd.f32 %v556, 1.0
      %v568 = vadd.f32 %v558, 1.0
      %v569 = vadd.f32 %v560, 1.0
      %v570 = vadd.f32 %v562, 1.0
      %v571 = vrcp.pop %v563
      %v572 = vmul.f32 %v563, %v571
      %v573 = vsub.f32 1.0, %v572
      %v574 = vmul.f32 %v571, %v573
      %v575 = vadd.f32 %v571, %v574
      %vm576 = vweird.f32 %v563
      %vm577 = vweird.f32 %v571
      %vm578 = vmor %vm576, %vm577
      %v579 = vsel %vm578, %v571, %v575
      %v580 = vand.u32 2147483647, %v563
      %vm581 = vcmp.eq.f32.partialorder %v580, 8.507059e+37
      %v582 = vand.u32 %v563, 2147483648
      %v583 = vor.u32 1.1754944e-38, %v582
      %v584 = vsel %vm581, %v583, %v579
      %v585 = vmul.f32 1.0, %v584
      %v586 = vrcp.pop %v564
      %v587 = vmul.f32 %v564, %v586
      %v588 = vsub.f32 1.0, %v587
      %v589 = vmul.f32 %v586, %v588
      %v590 = vadd.f32 %v586, %v589
      %vm591 = vweird.f32 %v564
      %vm592 = vweird.f32 %v586
      %vm593 = vmor %vm591, %vm592
      %v594 = vsel %vm593, %v586, %v590
      %v595 = vand.u32 2147483647, %v564
      %vm596 = vcmp.eq.f32.partialorder %v595, 8.507059e+37
      %v597 = vand.u32 %v564, 2147483648
      %v598 = vor.u32 1.1754944e-38, %v597
      %v599 = vsel %vm596, %v598, %v594
      %v600 = vmul.f32 1.0, %v599
      %v601 = vrcp.pop %v565
      %v602 = vmul.f32 %v565, %v601
      %v603 = vsub.f32 1.0, %v602
      %v604 = vmul.f32 %v601, %v603
      %v605 = vadd.f32 %v601, %v604
      %vm606 = vweird.f32 %v565
      %vm607 = vweird.f32 %v601
      %vm608 = vmor %vm606, %vm607
      %v609 = vsel %vm608, %v601, %v605
      %v610 = vand.u32 2147483647, %v565
      %vm611 = vcmp.eq.f32.partialorder %v610, 8.507059e+37
      %v612 = vand.u32 %v565, 2147483648
      %v613 = vor.u32 1.1754944e-38, %v612
      %v614 = vsel %vm611, %v613, %v609
      %v615 = vmul.f32 1.0, %v614
      %v616 = vrcp.pop %v566
      %v617 = vmul.f32 %v566, %v616
      %v618 = vsub.f32 1.0, %v617
      %v619 = vmul.f32 %v616, %v618
      %v620 = vadd.f32 %v616, %v619
      %vm621 = vweird.f32 %v566
      %vm622 = vweird.f32 %v616
      %vm623 = vmor %vm621, %vm622
      %v624 = vsel %vm623, %v616, %v620
      %v625 = vand.u32 2147483647, %v566
      %vm626 = vcmp.eq.f32.partialorder %v625, 8.507059e+37
      %v627 = vand.u32 %v566, 2147483648
      %v628 = vor.u32 1.1754944e-38, %v627
      %v629 = vsel %vm626, %v628, %v624
      %v630 = vmul.f32 1.0, %v629
      %v631 = vrcp.pop %v567
      %v632 = vmul.f32 %v567, %v631
      %v633 = vsub.f32 1.0, %v632
      %v634 = vmul.f32 %v631, %v633
      %v635 = vadd.f32 %v631, %v634
      %vm636 = vweird.f32 %v567
      %vm637 = vweird.f32 %v631
      %vm638 = vmor %vm636, %vm637
      %v639 = vsel %vm638, %v631, %v635
      %v640 = vand.u32 2147483647, %v567
      %vm641 = vcmp.eq.f32.partialorder %v640, 8.507059e+37
      %v642 = vand.u32 %v567, 2147483648
      %v643 = vor.u32 1.1754944e-38, %v642
      %v644 = vsel %vm641, %v643, %v639
      %v645 = vmul.f32 1.0, %v644
      %v646 = vrcp.pop %v568
      %v647 = vmul.f32 %v568, %v646
      %v648 = vsub.f32 1.0, %v647
      %v649 = vmul.f32 %v646, %v648
      %v650 = vadd.f32 %v646, %v649
      %vm651 = vweird.f32 %v568
      %vm652 = vweird.f32 %v646
      %vm653 = vmor %vm651, %vm652
      %v654 = vsel %vm653, %v646, %v650
      %v655 = vand.u32 2147483647, %v568
      %vm656 = vcmp.eq.f32.partialorder %v655, 8.507059e+37
      %v657 = vand.u32 %v568, 2147483648
      %v658 = vor.u32 1.1754944e-38, %v657
      %v659 = vsel %vm656, %v658, %v654
      %v660 = vmul.f32 1.0, %v659
      %v661 = vrcp.pop %v569
      %v662 = vmul.f32 %v569, %v661
      %v663 = vsub.f32 1.0, %v662
      %v664 = vmul.f32 %v661, %v663
      %v665 = vadd.f32 %v661, %v664
      %vm666 = vweird.f32 %v569
      %vm667 = vweird.f32 %v661
      %vm668 = vmor %vm666, %vm667
      %v669 = vsel %vm668, %v661, %v665
      %v670 = vand.u32 2147483647, %v569
      %vm671 = vcmp.eq.f32.partialorder %v670, 8.507059e+37
      %v672 = vand.u32 %v569, 2147483648
      %v673 = vor.u32 1.1754944e-38, %v672
      %v674 = vsel %vm671, %v673, %v669
      %v675 = vmul.f32 1.0, %v674
      %v676 = vrcp.pop %v570
      %v677 = vmul.f32 %v570, %v676
      %v678 = vsub.f32 1.0, %v677
      %v679 = vmul.f32 %v676, %v678
      %v680 = vadd.f32 %v676, %v679
      %vm681 = vweird.f32 %v570
      %vm682 = vweird.f32 %v676
      %vm683 = vmor %vm681, %vm682
      %v684 = vsel %vm683, %v676, %v680
      %v685 = vand.u32 2147483647, %v570
      %vm686 = vcmp.eq.f32.partialorder %v685, 8.507059e+37
      %v687 = vand.u32 %v570, 2147483648
      %v688 = vor.u32 1.1754944e-38, %v687
      %v689 = vsel %vm686, %v688, %v684
      %v690 = vmul.f32 1.0, %v689
      %v691 = vmul.f32 %v520, %v585
      %v692 = vmul.f32 %v522, %v600
      %v693 = vmul.f32 %v525, %v615
      %v694 = vmul.f32 %v527, %v630
      %v695 = vmul.f32 %v530, %v645
      %v696 = vmul.f32 %v532, %v660
      %v697 = vmul.f32 %v535, %v675
      %v698 = vmul.f32 %v537, %v690
      %v699 = vld [vmem:[%s7 + $0x20] sm:$0xff]
      %v700 = vld [vmem:[%s7 + $0x28] sm:$0xff]
      %v701 = vld [vmem:[%s7 + $0x30] sm:$0xff]
      %v702 = vld [vmem:[%s7 + $0x38] sm:$0xff]
      %v703 = vld [vmem:[%s7 + $0x40] sm:$0xff]
      %v704 = vld [vmem:[%s7 + $0x48] sm:$0xff]
      %v705 = vld [vmem:[%s7 + $0x50] sm:$0xff]
      %v706 = vld [vmem:[%s7 + $0x58] sm:$0xff]
      %v707 = vld [vmem:[%s7 + $0x60] sm:$0xff]
      %v708 = vld [vmem:[%s7 + $0x68] sm:$0xff]
      %v709 = vld [vmem:[%s7 + $0x70] sm:$0xff]
      %v710 = vld [vmem:[%s7 + $0x78] sm:$0xff]
      %v711 = vld [vmem:[%s7 + $0x80] sm:$0xff]
      %v712 = vld [vmem:[%s7 + $0x88] sm:$0xff]
      %v713 = vld [vmem:[%s7 + $0x90] sm:$0xff]
      %v714 = vld [vmem:[%s7 + $0x98] sm:$0xff]
      %v715 = vld [vmem:[%s7 + $0xa0] sm:$0xff]
      %v716 = vld [vmem:[%s7 + $0xa8] sm:$0xff]
      %v717 = vld [vmem:[%s8 + $0x1] sm:$0x1]
      %s718 = scalar_lea.vmem [#allocation2], 16
      %719 = vst.msk [vmem:[%s718 + $0x1] sm:$0xff] %vm442, %v691
      %720 = vst.msk [vmem:[%s718 + $0x11] sm:$0xff] %vm442, %v692
      %721 = vst.msk [vmem:[%s718 + $0x21] sm:$0xff] %vm442, %v693
      %722 = vst.msk [vmem:[%s718 + $0x31] sm:$0xff] %vm442, %v694
      %723 = vst.msk [vmem:[%s718 + $0x41] sm:$0xff] %vm442, %v695
      %724 = vst.msk [vmem:[%s718 + $0x51] sm:$0xff] %vm442, %v696
      %725 = vst.msk [vmem:[%s718 + $0x61] sm:$0xff] %vm442, %v697
      %726 = vst.msk [vmem:[%s718 + $0x71] sm:$0xff] %vm442, %v698
      %v727 = vld [vmem:[#allocation2] sm:$0xff]
      %v728 = vld [vmem:[#allocation2 + $0x10] sm:$0xff]
      %v729 = vld [vmem:[#allocation2 + $0x20] sm:$0xff]
      %v730 = vld [vmem:[#allocation2 + $0x30] sm:$0xff]
      %v731 = vld [vmem:[#allocation2 + $0x40] sm:$0xff]
      %v732 = vld [vmem:[#allocation2 + $0x50] sm:$0xff]
      %v733 = vld [vmem:[#allocation2 + $0x60] sm:$0xff]
      %v734 = vld [vmem:[#allocation2 + $0x70] sm:$0xff]
      %v735 = vpack.c.bf16 %v728, %v727
      %v736 = vpack.c.bf16 %v730, %v729
      %v737 = vpack.c.bf16 %v732, %v731
      %v738 = vpack.c.bf16 %v734, %v733
      %v739 = vpack.c.bf16 %v700, %v699
      %v740 = vld [vmem:[#allocation2 + $0x1] sm:$0xff]
      %v741 = vld [vmem:[#allocation2 + $0x11] sm:$0xff]
      %v742 = vld [vmem:[#allocation2 + $0x21] sm:$0xff]
      %v743 = vld [vmem:[#allocation2 + $0x31] sm:$0xff]
      %v744 = vld [vmem:[#allocation2 + $0x41] sm:$0xff]
      %v745 = vld [vmem:[#allocation2 + $0x51] sm:$0xff]
      %v746 = vld [vmem:[#allocation2 + $0x61] sm:$0xff]
      %v747 = vld [vmem:[#allocation2 + $0x71] sm:$0xff]
      %v748 = vpack.c.bf16 %v741, %v740
      %v749 = vpack.c.bf16 %v743, %v742
      %v750 = vpack.c.bf16 %v745, %v744
      %v751 = vpack.c.bf16 %v747, %v746
      %v752 = vpack.c.bf16 %v702, %v701
      %v754 = vsel %vm442, %v748, 0
      %v757 = vsel %vm442, %v749, 0
      %v760 = vsel %vm442, %v750, 0
      %v763 = vsel %vm442, %v751, 0
      %765 = vmatpush.bf16.msra.mxu0 0
      %766 = vmatpush.bf16.msra.mxu0 0
      %767 = vmatpush.bf16.msra.mxu0 0
      %768 = vmatpush.bf16.msra.mxu0 0
      %769 = vmatpush.bf16.msra.mxu0 0
      %770 = vmatpush.bf16.msra.mxu0 0
      %771 = vmatpush.bf16.msra.mxu0 0
      %772 = vmatpush.bf16.msra.mxu0 %v752
      %773 = vmatmul.bf16.gmra.mxu0 %v754
      %v774 = vpop.f32.mrf.mxu0
      %v775 = vadd.f32 0.0, %v774
      %v776 = vpop.f32.mrf.mxu0
      %v777 = vadd.f32 0.0, %v776
      %778 = vmatmul.bf16.gmra.mxu0 %v757
      %v779 = vpop.f32.mrf.mxu0
      %v780 = vadd.f32 0.0, %v779
      %v781 = vpop.f32.mrf.mxu0
      %v782 = vadd.f32 0.0, %v781
      %783 = vmatmul.bf16.gmra.mxu0 %v760
      %v784 = vpop.f32.mrf.mxu0
      %v785 = vadd.f32 0.0, %v784
      %v786 = vpop.f32.mrf.mxu0
      %v787 = vadd.f32 0.0, %v786
      %788 = vmatmul.bf16.gmra.mxu0 %v763
      %v789 = vpop.f32.mrf.mxu0
      %v790 = vadd.f32 0.0, %v789
      %v791 = vpop.f32.mrf.mxu0
      %v792 = vadd.f32 0.0, %v791
      %793 = vdwg.mxu0
      %v795 = vsel %vm442, %v735, 0
      %v798 = vsel %vm442, %v736, 0
      %v801 = vsel %vm442, %v737, 0
      %v804 = vsel %vm442, %v738, 0
      %806 = vmatpush.bf16.msra.mxu0 0
      %807 = vmatpush.bf16.msra.mxu0 0
      %808 = vmatpush.bf16.msra.mxu0 0
      %809 = vmatpush.bf16.msra.mxu0 0
      %810 = vmatpush.bf16.msra.mxu0 0
      %811 = vmatpush.bf16.msra.mxu0 0
      %812 = vmatpush.bf16.msra.mxu0 0
      %813 = vmatpush.bf16.msra.mxu0 %v739
      %814 = vmatmul.bf16.gmra.mxu0 %v795
      %v815 = vpop.f32.mrf.mxu0
      %v816 = vadd.f32 %v775, %v815
      %v817 = vpop.f32.mrf.mxu0
      %v818 = vadd.f32 %v777, %v817
      %819 = vmatmul.bf16.gmra.mxu0 %v798
      %v820 = vpop.f32.mrf.mxu0
      %v821 = vadd.f32 %v780, %v820
      %v822 = vpop.f32.mrf.mxu0
      %v823 = vadd.f32 %v782, %v822
      %824 = vmatmul.bf16.gmra.mxu0 %v801
      %v825 = vpop.f32.mrf.mxu0
      %v826 = vadd.f32 %v785, %v825
      %v827 = vpop.f32.mrf.mxu0
      %v828 = vadd.f32 %v787, %v827
      %829 = vmatmul.bf16.gmra.mxu0 %v804
      %v830 = vpop.f32.mrf.mxu0
      %v831 = vadd.f32 %v790, %v830
      %v832 = vpop.f32.mrf.mxu0
      %v833 = vadd.f32 %v792, %v832
      %834 = vdwg.mxu0
      %v835 = vld [vmem:[#allocation2 + $0x2] sm:$0xff]
      %v836 = vld [vmem:[#allocation2 + $0x12] sm:$0xff]
      %v837 = vld [vmem:[#allocation2 + $0x22] sm:$0xff]
      %v838 = vld [vmem:[#allocation2 + $0x32] sm:$0xff]
      %v839 = vld [vmem:[#allocation2 + $0x42] sm:$0xff]
      %v840 = vld [vmem:[#allocation2 + $0x52] sm:$0xff]
      %v841 = vld [vmem:[#allocation2 + $0x62] sm:$0xff]
      %v842 = vld [vmem:[#allocation2 + $0x72] sm:$0xff]
      %v843 = vpack.c.bf16 %v836, %v835
      %v844 = vpack.c.bf16 %v838, %v837
      %v845 = vpack.c.bf16 %v840, %v839
      %v846 = vpack.c.bf16 %v842, %v841
      %v847 = vpack.c.bf16 %v704, %v703
      %v849 = vsel %vm442, %v843, 0
      %v852 = vsel %vm442, %v844, 0
      %v855 = vsel %vm442, %v845, 0
      %v858 = vsel %vm442, %v846, 0
      %860 = vmatpush.bf16.msra.mxu0 0
      %861 = vmatpush.bf16.msra.mxu0 0
      %862 = vmatpush.bf16.msra.mxu0 0
      %863 = vmatpush.bf16.msra.mxu0 0
      %864 = vmatpush.bf16.msra.mxu0 0
      %865 = vmatpush.bf16.msra.mxu0 0
      %866 = vmatpush.bf16.msra.mxu0 0
      %867 = vmatpush.bf16.msra.mxu0 %v847
      %868 = vmatmul.bf16.gmra.mxu0 %v849
      %v869 = vpop.f32.mrf.mxu0
      %v870 = vadd.f32 0.0, %v869
      %v871 = vpop.f32.mrf.mxu0
      %v872 = vadd.f32 0.0, %v871
      %873 = vmatmul.bf16.gmra.mxu0 %v852
      %v874 = vpop.f32.mrf.mxu0
      %v875 = vadd.f32 0.0, %v874
      %v876 = vpop.f32.mrf.mxu0
      %v877 = vadd.f32 0.0, %v876
      %878 = vmatmul.bf16.gmra.mxu0 %v855
      %v879 = vpop.f32.mrf.mxu0
      %v880 = vadd.f32 0.0, %v879
      %v881 = vpop.f32.mrf.mxu0
      %v882 = vadd.f32 0.0, %v881
      %883 = vmatmul.bf16.gmra.mxu0 %v858
      %v884 = vpop.f32.mrf.mxu0
      %v885 = vadd.f32 0.0, %v884
      %v886 = vpop.f32.mrf.mxu0
      %v887 = vadd.f32 0.0, %v886
      %888 = vdwg.mxu0
      %v889 = vadd.f32 %v816, %v870
      %v890 = vadd.f32 %v818, %v872
      %v891 = vadd.f32 %v821, %v875
      %v892 = vadd.f32 %v823, %v877
      %v893 = vadd.f32 %v826, %v880
      %v894 = vadd.f32 %v828, %v882
      %v895 = vadd.f32 %v831, %v885
      %v896 = vadd.f32 %v833, %v887
      %v897 = vld [vmem:[%s718] sm:$0xff]
      %v898 = vld [vmem:[%s718 + $0x10] sm:$0xff]
      %v899 = vld [vmem:[%s718 + $0x20] sm:$0xff]
      %v900 = vld [vmem:[%s718 + $0x30] sm:$0xff]
      %v901 = vld [vmem:[%s718 + $0x40] sm:$0xff]
      %v902 = vld [vmem:[%s718 + $0x50] sm:$0xff]
      %v903 = vld [vmem:[%s718 + $0x60] sm:$0xff]
      %v904 = vld [vmem:[%s718 + $0x70] sm:$0xff]
      %v905 = vpack.c.bf16 %v898, %v897
      %v906 = vpack.c.bf16 %v900, %v899
      %v907 = vpack.c.bf16 %v902, %v901
      %v908 = vpack.c.bf16 %v904, %v903
      %v909 = vpack.c.bf16 %v706, %v705
      %v911 = vsel %vm442, %v905, 0
      %v914 = vsel %vm442, %v906, 0
      %v917 = vsel %vm442, %v907, 0
      %v920 = vsel %vm442, %v908, 0
      %922 = vmatpush.bf16.msra.mxu0 0
      %923 = vmatpush.bf16.msra.mxu0 0
      %924 = vmatpush.bf16.msra.mxu0 0
      %925 = vmatpush.bf16.msra.mxu0 0
      %926 = vmatpush.bf16.msra.mxu0 0
      %927 = vmatpush.bf16.msra.mxu0 0
      %928 = vmatpush.bf16.msra.mxu0 0
      %929 = vmatpush.bf16.msra.mxu0 %v909
      %930 = vmatmul.bf16.gmra.mxu0 %v911
      %v931 = vpop.f32.mrf.mxu0
      %v932 = vadd.f32 0.0, %v931
      %v933 = vpop.f32.mrf.mxu0
      %v934 = vadd.f32 0.0, %v933
      %935 = vmatmul.bf16.gmra.mxu0 %v914
      %v936 = vpop.f32.mrf.mxu0
      %v937 = vadd.f32 0.0, %v936
      %v938 = vpop.f32.mrf.mxu0
      %v939 = vadd.f32 0.0, %v938
      %940 = vmatmul.bf16.gmra.mxu0 %v917
      %v941 = vpop.f32.mrf.mxu0
      %v942 = vadd.f32 0.0, %v941
      %v943 = vpop.f32.mrf.mxu0
      %v944 = vadd.f32 0.0, %v943
      %945 = vmatmul.bf16.gmra.mxu0 %v920
      %v946 = vpop.f32.mrf.mxu0
      %v947 = vadd.f32 0.0, %v946
      %v948 = vpop.f32.mrf.mxu0
      %v949 = vadd.f32 0.0, %v948
      %950 = vdwg.mxu0
      %v951 = vadd.f32 %v889, %v932
      %v952 = vadd.f32 %v890, %v934
      %v953 = vadd.f32 %v891, %v937
      %v954 = vadd.f32 %v892, %v939
      %v955 = vadd.f32 %v893, %v942
      %v956 = vadd.f32 %v894, %v944
      %v957 = vadd.f32 %v895, %v947
      %v958 = vadd.f32 %v896, %v949
      %v959 = vld [vmem:[%s718 + $0x1] sm:$0xff]
      %v960 = vld [vmem:[%s718 + $0x11] sm:$0xff]
      %v961 = vld [vmem:[%s718 + $0x21] sm:$0xff]
      %v962 = vld [vmem:[%s718 + $0x31] sm:$0xff]
      %v963 = vld [vmem:[%s718 + $0x41] sm:$0xff]
      %v964 = vld [vmem:[%s718 + $0x51] sm:$0xff]
      %v965 = vld [vmem:[%s718 + $0x61] sm:$0xff]
      %v966 = vld [vmem:[%s718 + $0x71] sm:$0xff]
      %v967 = vpack.c.bf16 %v960, %v959
      %v968 = vpack.c.bf16 %v962, %v961
      %v969 = vpack.c.bf16 %v964, %v963
      %v970 = vpack.c.bf16 %v966, %v965
      %v971 = vpack.c.bf16 %v708, %v707
      %v973 = vsel %vm442, %v967, 0
      %v976 = vsel %vm442, %v968, 0
      %v979 = vsel %vm442, %v969, 0
      %v982 = vsel %vm442, %v970, 0
      %984 = vmatpush.bf16.msra.mxu0 0
      %985 = vmatpush.bf16.msra.mxu0 0
      %986 = vmatpush.bf16.msra.mxu0 0
      %987 = vmatpush.bf16.msra.mxu0 0
      %988 = vmatpush.bf16.msra.mxu0 0
      %989 = vmatpush.bf16.msra.mxu0 0
      %990 = vmatpush.bf16.msra.mxu0 0
      %991 = vmatpush.bf16.msra.mxu0 %v971
      %992 = vmatmul.bf16.gmra.mxu0 %v973
      %v993 = vpop.f32.mrf.mxu0
      %v994 = vadd.f32 0.0, %v993
      %v995 = vpop.f32.mrf.mxu0
      %v996 = vadd.f32 0.0, %v995
      %997 = vmatmul.bf16.gmra.mxu0 %v976
      %v998 = vpop.f32.mrf.mxu0
      %v999 = vadd.f32 0.0, %v998
      %v1000 = vpop.f32.mrf.mxu0
      %v1001 = vadd.f32 0.0, %v1000
      %1002 = vmatmul.bf16.gmra.mxu0 %v979
      %v1003 = vpop.f32.mrf.mxu0
      %v1004 = vadd.f32 0.0, %v1003
      %v1005 = vpop.f32.mrf.mxu0
      %v1006 = vadd.f32 0.0, %v1005
      %1007 = vmatmul.bf16.gmra.mxu0 %v982
      %v1008 = vpop.f32.mrf.mxu0
      %v1009 = vadd.f32 0.0, %v1008
      %v1010 = vpop.f32.mrf.mxu0
      %v1011 = vadd.f32 0.0, %v1010
      %1012 = vdwg.mxu0
      %v1013 = vadd.f32 %v951, %v994
      %v1014 = vadd.f32 %v952, %v996
      %v1015 = vadd.f32 %v953, %v999
      %v1016 = vadd.f32 %v954, %v1001
      %v1017 = vadd.f32 %v955, %v1004
      %v1018 = vadd.f32 %v956, %v1006
      %v1019 = vadd.f32 %v957, %v1009
      %v1020 = vadd.f32 %v958, %v1011
      %v1021 = vld [vmem:[%s718 + $0x2] sm:$0xff]
      %v1022 = vld [vmem:[%s718 + $0x12] sm:$0xff]
      %v1023 = vld [vmem:[%s718 + $0x22] sm:$0xff]
      %v1024 = vld [vmem:[%s718 + $0x32] sm:$0xff]
      %v1025 = vld [vmem:[%s718 + $0x42] sm:$0xff]
      %v1026 = vld [vmem:[%s718 + $0x52] sm:$0xff]
      %v1027 = vld [vmem:[%s718 + $0x62] sm:$0xff]
      %v1028 = vld [vmem:[%s718 + $0x72] sm:$0xff]
      %v1029 = vpack.c.bf16 %v1022, %v1021
      %v1030 = vpack.c.bf16 %v1024, %v1023
      %v1031 = vpack.c.bf16 %v1026, %v1025
      %v1032 = vpack.c.bf16 %v1028, %v1027
      %v1033 = vpack.c.bf16 %v710, %v709
      %v1035 = vsel %vm442, %v1029, 0
      %v1038 = vsel %vm442, %v1030, 0
      %v1041 = vsel %vm442, %v1031, 0
      %v1044 = vsel %vm442, %v1032, 0
      %1046 = vmatpush.bf16.msra.mxu0 0
      %1047 = vmatpush.bf16.msra.mxu0 0
      %1048 = vmatpush.bf16.msra.mxu0 0
      %1049 = vmatpush.bf16.msra.mxu0 0
      %1050 = vmatpush.bf16.msra.mxu0 0
      %1051 = vmatpush.bf16.msra.mxu0 0
      %1052 = vmatpush.bf16.msra.mxu0 0
      %1053 = vmatpush.bf16.msra.mxu0 %v1033
      %1054 = vmatmul.bf16.gmra.mxu0 %v1035
      %v1055 = vpop.f32.mrf.mxu0
      %v1056 = vadd.f32 0.0, %v1055
      %v1057 = vpop.f32.mrf.mxu0
      %v1058 = vadd.f32 0.0, %v1057
      %1059 = vmatmul.bf16.gmra.mxu0 %v1038
      %v1060 = vpop.f32.mrf.mxu0
      %v1061 = vadd.f32 0.0, %v1060
      %v1062 = vpop.f32.mrf.mxu0
      %v1063 = vadd.f32 0.0, %v1062
      %1064 = vmatmul.bf16.gmra.mxu0 %v1041
      %v1065 = vpop.f32.mrf.mxu0
      %v1066 = vadd.f32 0.0, %v1065
      %v1067 = vpop.f32.mrf.mxu0
      %v1068 = vadd.f32 0.0, %v1067
      %1069 = vmatmul.bf16.gmra.mxu0 %v1044
      %v1070 = vpop.f32.mrf.mxu0
      %v1071 = vadd.f32 0.0, %v1070
      %v1072 = vpop.f32.mrf.mxu0
      %v1073 = vadd.f32 0.0, %v1072
      %1074 = vdwg.mxu0
      %v1075 = vadd.f32 %v1013, %v1056
      %v1076 = vadd.f32 %v1014, %v1058
      %v1077 = vadd.f32 %v1015, %v1061
      %v1078 = vadd.f32 %v1016, %v1063
      %v1079 = vadd.f32 %v1017, %v1066
      %v1080 = vadd.f32 %v1018, %v1068
      %v1081 = vadd.f32 %v1019, %v1071
      %v1082 = vadd.f32 %v1020, %v1073
      %s1083 = scalar_lea.vmem [#allocation2], 32
      %v1084 = vld [vmem:[%s1083] sm:$0xff]
      %v1085 = vld [vmem:[%s1083 + $0x10] sm:$0xff]
      %v1086 = vld [vmem:[%s1083 + $0x20] sm:$0xff]
      %v1087 = vld [vmem:[%s1083 + $0x30] sm:$0xff]
      %v1088 = vld [vmem:[%s1083 + $0x40] sm:$0xff]
      %v1089 = vld [vmem:[%s1083 + $0x50] sm:$0xff]
      %v1090 = vld [vmem:[%s1083 + $0x60] sm:$0xff]
      %v1091 = vld [vmem:[%s1083 + $0x70] sm:$0xff]
      %v1092 = vpack.c.bf16 %v1085, %v1084
      %v1093 = vpack.c.bf16 %v1087, %v1086
      %v1094 = vpack.c.bf16 %v1089, %v1088
      %v1095 = vpack.c.bf16 %v1091, %v1090
      %v1096 = vpack.c.bf16 %v712, %v711
      %v1098 = vsel %vm442, %v1092, 0
      %v1101 = vsel %vm442, %v1093, 0
      %v1104 = vsel %vm442, %v1094, 0
      %v1107 = vsel %vm442, %v1095, 0
      %1109 = vmatpush.bf16.msra.mxu0 0
      %1110 = vmatpush.bf16.msra.mxu0 0
      %1111 = vmatpush.bf16.msra.mxu0 0
      %1112 = vmatpush.bf16.msra.mxu0 0
      %1113 = vmatpush.bf16.msra.mxu0 0
      %1114 = vmatpush.bf16.msra.mxu0 0
      %1115 = vmatpush.bf16.msra.mxu0 0
      %1116 = vmatpush.bf16.msra.mxu0 %v1096
      %1117 = vmatmul.bf16.gmra.mxu0 %v1098
      %v1118 = vpop.f32.mrf.mxu0
      %v1119 = vadd.f32 0.0, %v1118
      %v1120 = vpop.f32.mrf.mxu0
      %v1121 = vadd.f32 0.0, %v1120
      %1122 = vmatmul.bf16.gmra.mxu0 %v1101
      %v1123 = vpop.f32.mrf.mxu0
      %v1124 = vadd.f32 0.0, %v1123
      %v1125 = vpop.f32.mrf.mxu0
      %v1126 = vadd.f32 0.0, %v1125
      %1127 = vmatmul.bf16.gmra.mxu0 %v1104
      %v1128 = vpop.f32.mrf.mxu0
      %v1129 = vadd.f32 0.0, %v1128
      %v1130 = vpop.f32.mrf.mxu0
      %v1131 = vadd.f32 0.0, %v1130
      %1132 = vmatmul.bf16.gmra.mxu0 %v1107
      %v1133 = vpop.f32.mrf.mxu0
      %v1134 = vadd.f32 0.0, %v1133
      %v1135 = vpop.f32.mrf.mxu0
      %v1136 = vadd.f32 0.0, %v1135
      %1137 = vdwg.mxu0
      %v1138 = vadd.f32 %v1075, %v1119
      %v1139 = vadd.f32 %v1076, %v1121
      %v1140 = vadd.f32 %v1077, %v1124
      %v1141 = vadd.f32 %v1078, %v1126
      %v1142 = vadd.f32 %v1079, %v1129
      %v1143 = vadd.f32 %v1080, %v1131
      %v1144 = vadd.f32 %v1081, %v1134
      %v1145 = vadd.f32 %v1082, %v1136
      %v1146 = vld [vmem:[%s1083 + $0x1] sm:$0xff]
      %v1147 = vld [vmem:[%s1083 + $0x11] sm:$0xff]
      %v1148 = vld [vmem:[%s1083 + $0x21] sm:$0xff]
      %v1149 = vld [vmem:[%s1083 + $0x31] sm:$0xff]
      %v1150 = vld [vmem:[%s1083 + $0x41] sm:$0xff]
      %v1151 = vld [vmem:[%s1083 + $0x51] sm:$0xff]
      %v1152 = vld [vmem:[%s1083 + $0x61] sm:$0xff]
      %v1153 = vld [vmem:[%s1083 + $0x71] sm:$0xff]
      %v1154 = vpack.c.bf16 %v1147, %v1146
      %v1155 = vpack.c.bf16 %v1149, %v1148
      %v1156 = vpack.c.bf16 %v1151, %v1150
      %v1157 = vpack.c.bf16 %v1153, %v1152
      %v1158 = vpack.c.bf16 %v714, %v713
      %v1160 = vsel %vm442, %v1154, 0
      %v1163 = vsel %vm442, %v1155, 0
      %v1166 = vsel %vm442, %v1156, 0
      %v1169 = vsel %vm442, %v1157, 0
      %1171 = vmatpush.bf16.msra.mxu0 0
      %1172 = vmatpush.bf16.msra.mxu0 0
      %1173 = vmatpush.bf16.msra.mxu0 0
      %1174 = vmatpush.bf16.msra.mxu0 0
      %1175 = vmatpush.bf16.msra.mxu0 0
      %1176 = vmatpush.bf16.msra.mxu0 0
      %1177 = vmatpush.bf16.msra.mxu0 0
      %1178 = vmatpush.bf16.msra.mxu0 %v1158
      %1179 = vmatmul.bf16.gmra.mxu0 %v1160
      %v1180 = vpop.f32.mrf.mxu0
      %v1181 = vadd.f32 0.0, %v1180
      %v1182 = vpop.f32.mrf.mxu0
      %v1183 = vadd.f32 0.0, %v1182
      %1184 = vmatmul.bf16.gmra.mxu0 %v1163
      %v1185 = vpop.f32.mrf.mxu0
      %v1186 = vadd.f32 0.0, %v1185
      %v1187 = vpop.f32.mrf.mxu0
      %v1188 = vadd.f32 0.0, %v1187
      %1189 = vmatmul.bf16.gmra.mxu0 %v1166
      %v1190 = vpop.f32.mrf.mxu0
      %v1191 = vadd.f32 0.0, %v1190
      %v1192 = vpop.f32.mrf.mxu0
      %v1193 = vadd.f32 0.0, %v1192
      %1194 = vmatmul.bf16.gmra.mxu0 %v1169
      %v1195 = vpop.f32.mrf.mxu0
      %v1196 = vadd.f32 0.0, %v1195
      %v1197 = vpop.f32.mrf.mxu0
      %v1198 = vadd.f32 0.0, %v1197
      %1199 = vdwg.mxu0
      %v1200 = vadd.f32 %v1138, %v1181
      %v1201 = vadd.f32 %v1139, %v1183
      %v1202 = vadd.f32 %v1140, %v1186
      %v1203 = vadd.f32 %v1141, %v1188
      %v1204 = vadd.f32 %v1142, %v1191
      %v1205 = vadd.f32 %v1143, %v1193
      %v1206 = vadd.f32 %v1144, %v1196
      %v1207 = vadd.f32 %v1145, %v1198
      %v1208 = vld [vmem:[%s1083 + $0x2] sm:$0xff]
      %v1209 = vld [vmem:[%s1083 + $0x12] sm:$0xff]
      %v1210 = vld [vmem:[%s1083 + $0x22] sm:$0xff]
      %v1211 = vld [vmem:[%s1083 + $0x32] sm:$0xff]
      %v1212 = vld [vmem:[%s1083 + $0x42] sm:$0xff]
      %v1213 = vld [vmem:[%s1083 + $0x52] sm:$0xff]
      %v1214 = vld [vmem:[%s1083 + $0x62] sm:$0xff]
      %v1215 = vld [vmem:[%s1083 + $0x72] sm:$0xff]
      %v1216 = vpack.c.bf16 %v1209, %v1208
      %v1217 = vpack.c.bf16 %v1211, %v1210
      %v1218 = vpack.c.bf16 %v1213, %v1212
      %v1219 = vpack.c.bf16 %v1215, %v1214
      %v1220 = vpack.c.bf16 %v716, %v715
      %v1222 = vsel %vm442, %v1216, 0
      %v1225 = vsel %vm442, %v1217, 0
      %v1228 = vsel %vm442, %v1218, 0
      %v1231 = vsel %vm442, %v1219, 0
      %1233 = vmatpush.bf16.msra.mxu0 0
      %1234 = vmatpush.bf16.msra.mxu0 0
      %1235 = vmatpush.bf16.msra.mxu0 0
      %1236 = vmatpush.bf16.msra.mxu0 0
      %1237 = vmatpush.bf16.msra.mxu0 0
      %1238 = vmatpush.bf16.msra.mxu0 0
      %1239 = vmatpush.bf16.msra.mxu0 0
      %1240 = vmatpush.bf16.msra.mxu0 %v1220
      %1241 = vmatmul.bf16.gmra.mxu0 %v1222
      %v1242 = vpop.f32.mrf.mxu0
      %v1243 = vadd.f32 0.0, %v1242
      %v1244 = vpop.f32.mrf.mxu0
      %v1245 = vadd.f32 0.0, %v1244
      %1246 = vmatmul.bf16.gmra.mxu0 %v1225
      %v1247 = vpop.f32.mrf.mxu0
      %v1248 = vadd.f32 0.0, %v1247
      %v1249 = vpop.f32.mrf.mxu0
      %v1250 = vadd.f32 0.0, %v1249
      %1251 = vmatmul.bf16.gmra.mxu0 %v1228
      %v1252 = vpop.f32.mrf.mxu0
      %v1253 = vadd.f32 0.0, %v1252
      %v1254 = vpop.f32.mrf.mxu0
      %v1255 = vadd.f32 0.0, %v1254
      %1256 = vmatmul.bf16.gmra.mxu0 %v1231
      %v1257 = vpop.f32.mrf.mxu0
      %v1258 = vadd.f32 0.0, %v1257
      %v1259 = vpop.f32.mrf.mxu0
      %v1260 = vadd.f32 0.0, %v1259
      %1261 = vdwg.mxu0
      %v1262 = vadd.f32 %v1200, %v1243
      %v1263 = vadd.f32 %v1201, %v1245
      %v1264 = vadd.f32 %v1202, %v1248
      %v1265 = vadd.f32 %v1203, %v1250
      %v1266 = vadd.f32 %v1204, %v1253
      %v1267 = vadd.f32 %v1205, %v1255
      %v1268 = vadd.f32 %v1206, %v1258
      %v1269 = vadd.f32 %v1207, %v1260
      %v1270 = vperm.slane %v717, 0
      %v1271 = vadd.f32 %v1262, %v1270
      %v1272 = vadd.f32 %v1263, %v1270
      %v1273 = vadd.f32 %v1264, %v1270
      %v1274 = vadd.f32 %v1265, %v1270
      %v1275 = vadd.f32 %v1266, %v1270
      %v1276 = vadd.f32 %v1267, %v1270
      %v1277 = vadd.f32 %v1268, %v1270
      %v1278 = vadd.f32 %v1269, %v1270
      %v1279 = vmax.f32 %v1271, -30.0
      %v1280 = vmax.f32 %v1272, -30.0
      %v1281 = vmax.f32 %v1273, -30.0
      %v1282 = vmax.f32 %v1274, -30.0
      %v1283 = vmax.f32 %v1275, -30.0
      %v1284 = vmax.f32 %v1276, -30.0
      %v1285 = vmax.f32 %v1277, -30.0
      %v1286 = vmax.f32 %v1278, -30.0
      %v1287 = vmin.f32 %v1279, 20.0
      %v1288 = vmin.f32 %v1280, 20.0
      %v1289 = vmin.f32 %v1281, 20.0
      %v1290 = vmin.f32 %v1282, 20.0
      %v1291 = vmin.f32 %v1283, 20.0
      %v1292 = vmin.f32 %v1284, 20.0
      %v1293 = vmin.f32 %v1285, 20.0
      %v1294 = vmin.f32 %v1286, 20.0
      %v1295 = vmul.f32 %v1287, 0.5
      %v1296 = vmul.f32 %v1288, 0.5
      %v1297 = vmul.f32 %v1289, 0.5
      %v1298 = vmul.f32 %v1290, 0.5
      %v1299 = vmul.f32 %v1291, 0.5
      %v1300 = vmul.f32 %v1292, 0.5
      %v1301 = vmul.f32 %v1293, 0.5
      %v1302 = vmul.f32 %v1294, 0.5
      %v1303 = vmul.f32 %v1295, 1.442695
      %v1304 = vpow.pop %v1303
      %v1305 = vmul.f32 %v1296, 1.442695
      %v1306 = vpow.pop %v1305
      %v1307 = vmul.f32 %v1297, 1.442695
      %v1308 = vpow.pop %v1307
      %v1309 = vmul.f32 %v1298, 1.442695
      %v1310 = vpow.pop %v1309
      %v1311 = vmul.f32 %v1299, 1.442695
      %v1312 = vpow.pop %v1311
      %v1313 = vmul.f32 %v1300, 1.442695
      %v1314 = vpow.pop %v1313
      %v1315 = vmul.f32 %v1301, 1.442695
      %v1316 = vpow.pop %v1315
      %v1317 = vmul.f32 %v1302, 1.442695
      %v1318 = vpow.pop %v1317
      %v1319 = vld [vmem:[%s419] sm:$0xff]
      %v1320 = vld [vmem:[%s419 + $0x8] sm:$0xff]
      %v1321 = vld [vmem:[%s419 + $0x10] sm:$0xff]
      %v1322 = vld [vmem:[%s419 + $0x18] sm:$0xff]
      %v1323 = vld [vmem:[%s419 + $0x20] sm:$0xff]
      %v1324 = vld [vmem:[%s419 + $0x28] sm:$0xff]
      %v1325 = vld [vmem:[%s419 + $0x30] sm:$0xff]
      %v1326 = vld [vmem:[%s419 + $0x38] sm:$0xff]
      %1335 = vrot.lane.b32.xlu0 %v1319, 4
      %v1336 = vpop.permute.xlu0 %1335
      %1337 = vrot.lane.b32.xlu0 %v1320, 4
      %v1338 = vpop.permute.xlu0 %1337
      %1339 = vrot.lane.b32.xlu0 %v1321, 4
      %v1340 = vpop.permute.xlu0 %1339
      %1341 = vrot.lane.b32.xlu0 %v1322, 4
      %v1342 = vpop.permute.xlu0 %1341
      %1343 = vrot.lane.b32.xlu0 %v1323, 4
      %v1344 = vpop.permute.xlu0 %1343
      %1345 = vrot.lane.b32.xlu0 %v1324, 4
      %v1346 = vpop.permute.xlu0 %1345
      %1347 = vrot.lane.b32.xlu0 %v1325, 4
      %v1348 = vpop.permute.xlu0 %1347
      %1349 = vrot.lane.b32.xlu0 %v1326, 4
      %v1350 = vpop.permute.xlu0 %1349
      %v1359 = vmul.f32 %v1304, %v1336
      %v1360 = vmul.f32 %v1306, %v1338
      %v1361 = vmul.f32 %v1308, %v1340
      %v1362 = vmul.f32 %v1310, %v1342
      %v1363 = vmul.f32 %v1312, %v1344
      %v1364 = vmul.f32 %v1314, %v1346
      %v1365 = vmul.f32 %v1316, %v1348
      %v1366 = vmul.f32 %v1318, %v1350
      %1375 = vrot.lane.b32.xlu0 %v1359, 124
      %v1376 = vpop.permute.xlu0 %1375
      %1377 = vrot.lane.b32.xlu0 %v1360, 124
      %v1378 = vpop.permute.xlu0 %1377
      %1379 = vrot.lane.b32.xlu0 %v1361, 124
      %v1380 = vpop.permute.xlu0 %1379
      %1381 = vrot.lane.b32.xlu0 %v1362, 124
      %v1382 = vpop.permute.xlu0 %1381
      %1383 = vrot.lane.b32.xlu0 %v1363, 124
      %v1384 = vpop.permute.xlu0 %1383
      %1385 = vrot.lane.b32.xlu0 %v1364, 124
      %v1386 = vpop.permute.xlu0 %1385
      %1387 = vrot.lane.b32.xlu0 %v1365, 124
      %v1388 = vpop.permute.xlu0 %1387
      %1389 = vrot.lane.b32.xlu0 %v1366, 124
      %v1390 = vpop.permute.xlu0 %1389
      %v1399 = vadd.f32 %v1271, %v1376
      %v1400 = vadd.f32 %v1272, %v1378
      %v1401 = vadd.f32 %v1273, %v1380
      %v1402 = vadd.f32 %v1274, %v1382
      %v1403 = vadd.f32 %v1275, %v1384
      %v1404 = vadd.f32 %v1276, %v1386
      %v1405 = vadd.f32 %v1277, %v1388
      %v1406 = vadd.f32 %v1278, %v1390
      %v1407 = vmul.f32 %v1399, 0.18215
      %v1408 = vmul.f32 %v1400, 0.18215
      %v1409 = vmul.f32 %v1401, 0.18215
      %v1410 = vmul.f32 %v1402, 0.18215
      %v1411 = vmul.f32 %v1403, 0.18215
      %v1412 = vmul.f32 %v1404, 0.18215
      %v1413 = vmul.f32 %v1405, 0.18215
      %v1414 = vmul.f32 %v1406, 0.18215
      %v1415 = vld [vmem:[%s427] sm:$0x1]
      %v1417 = vperm.slane %v1415, 0
      %1418 = vset.pattern.permute.xlu0 0
      %1419 = vperm.xlu0 %1418, %v1417
      %v1420 = vpop.permute.xlu0 %1419
      %v1422 = vmul.f32 %v1420, %v1407
      %v1423 = vmul.f32 %v1420, %v1408
      %v1424 = vmul.f32 %v1420, %v1409
      %v1425 = vmul.f32 %v1420, %v1410
      %v1426 = vmul.f32 %v1420, %v1411
      %v1427 = vmul.f32 %v1420, %v1412
      %v1428 = vmul.f32 %v1420, %v1413
      %v1429 = vmul.f32 %v1420, %v1414
      %v1430 = vld [vmem:[%s424] sm:$0xff]
      %v1431 = vld [vmem:[%s424 + $0x8] sm:$0xff]
      %v1432 = vld [vmem:[%s424 + $0x10] sm:$0xff]
      %v1433 = vld [vmem:[%s424 + $0x18] sm:$0xff]
      %v1434 = vld [vmem:[%s424 + $0x20] sm:$0xff]
      %v1435 = vld [vmem:[%s424 + $0x28] sm:$0xff]
      %v1436 = vld [vmem:[%s424 + $0x30] sm:$0xff]
      %v1437 = vld [vmem:[%s424 + $0x38] sm:$0xff]
      %1438 = vset.pattern.permute.xlu0 1
      %1439 = vperm.xlu0 %1438, %v1417
      %v1440 = vpop.permute.xlu0 %1439
      %v1442 = vmul.f32 %v1440, %v1430
      %v1443 = vmul.f32 %v1440, %v1431
      %v1444 = vmul.f32 %v1440, %v1432
      %v1445 = vmul.f32 %v1440, %v1433
      %v1446 = vmul.f32 %v1440, %v1434
      %v1447 = vmul.f32 %v1440, %v1435
      %v1448 = vmul.f32 %v1440, %v1436
      %v1449 = vmul.f32 %v1440, %v1437
      %v1450 = vadd.f32 %v1422, %v1442
      %v1451 = vadd.f32 %v1423, %v1443
      %v1452 = vadd.f32 %v1424, %v1444
      %v1453 = vadd.f32 %v1425, %v1445
      %v1454 = vadd.f32 %v1426, %v1446
      %v1455 = vadd.f32 %v1427, %v1447
      %v1456 = vadd.f32 %v1428, %v1448
      %v1457 = vadd.f32 %v1429, %v1449
      %v1458 = vld [vmem:[%s430] sm:$0x1]
      %v1459 = vld [vmem:[%s7 + $0x1c0] sm:$0xff]
      %v1460 = vld [vmem:[%s7 + $0x1c8] sm:$0xff]
      %v1461 = vld [vmem:[%s7 + $0x1d0] sm:$0xff]
      %v1462 = vld [vmem:[%s7 + $0x1d8] sm:$0xff]
      %v1463 = vpack.c.bf16 %v1458, %v1458
      %v1464 = vpack.c.bf16 %v1460, %v1459
      %v1465 = vpack.c.bf16 %v1462, %v1461
      %v1466 = vld [vmem:[%s8 + $0x9] sm:$0x1]
      %vm1467 = vcmask 261120
      %v1469 = vsel %vm1467, %v1463, 0
      %1471 = vmatpush.bf16.msra.mxu0 0
      %1472 = vmatpush.bf16.msra.mxu0 0
      %1473 = vmatpush.bf16.msra.mxu0 0
      %1474 = vmatpush.bf16.msra.mxu0 0
      %1475 = vmatpush.bf16.msra.mxu0 0
      %1476 = vmatpush.bf16.msra.mxu0 0
      %1477 = vmatpush.bf16.msra.mxu0 %v1465
      %1478 = vmatpush.bf16.msra.mxu0 %v1464
      %1479 = vmatmul.bf16.gmra.mxu0 %v1469
      %v1480 = vpop.f32.mrf.mxu0
      %v1481 = vadd.f32 %v1466, %v1480
      %v1482 = vpop.f32.mrf.mxu0
      %1483 = vdwg.mxu0
      %v1484 = vxor.u32 %v1481, 2147483648
      %v1485 = vmul.f32 %v1484, 1.442695
      %v1486 = vpow.pop %v1485
      %v1487 = vadd.f32 %v1486, 1.0
      %v1488 = vrcp.pop %v1487
      %v1489 = vmul.f32 %v1487, %v1488
      %v1490 = vsub.f32 1.0, %v1489
      %v1491 = vmul.f32 %v1488, %v1490
      %v1492 = vadd.f32 %v1488, %v1491
      %vm1493 = vweird.f32 %v1487
      %vm1494 = vweird.f32 %v1488
      %vm1495 = vmor %vm1493, %vm1494
      %v1496 = vsel %vm1495, %v1488, %v1492
      %v1497 = vand.u32 2147483647, %v1487
      %vm1498 = vcmp.eq.f32.partialorder %v1497, 8.507059e+37
      %v1499 = vand.u32 %v1487, 2147483648
      %v1500 = vor.u32 1.1754944e-38, %v1499
      %v1501 = vsel %vm1498, %v1500, %v1496
      %v1502 = vmul.f32 1.0, %v1501
      %v1503 = vmul.f32 %v1481, %v1502
      %v1504 = vld [vmem:[%s7 + $0x1e0] sm:$0xff]
      %v1505 = vld [vmem:[%s7 + $0x1e8] sm:$0xff]
      %v1506 = vld [vmem:[%s7 + $0x1f0] sm:$0xff]
      %v1507 = vld [vmem:[%s7 + $0x1f8] sm:$0xff]
      %v1508 = vpack.c.bf16 %v1503, %v1503
      %v1509 = vpack.c.bf16 %v1505, %v1504
      %v1510 = vpack.c.bf16 %v1507, %v1506
      %v1511 = vld [vmem:[%s8 + $0xa] sm:$0x1]
      %v1513 = vsel %vm1467, %v1508, 0
      %1515 = vmatpush.bf16.msra.mxu0 0
      %1516 = vmatpush.bf16.msra.mxu0 0
      %1517 = vmatpush.bf16.msra.mxu0 0
      %1518 = vmatpush.bf16.msra.mxu0 0
      %1519 = vmatpush.bf16.msra.mxu0 0
      %1520 = vmatpush.bf16.msra.mxu0 0
      %1521 = vmatpush.bf16.msra.mxu0 %v1510
      %1522 = vmatpush.bf16.msra.mxu0 %v1509
      %1523 = vmatmul.bf16.gmra.mxu0 %v1513
      %v1524 = vpop.f32.mrf.mxu0
      %v1525 = vadd.f32 %v1511, %v1524
      %v1526 = vpop.f32.mrf.mxu0
      %1527 = vdwg.mxu0
      %v1528 = vld [vmem:[%s435] sm:$0xff]
      %v1529 = vld [vmem:[%s435 + $0x8] sm:$0xff]
      %v1530 = vld [vmem:[%s435 + $0x10] sm:$0xff]
      %v1531 = vld [vmem:[%s435 + $0x18] sm:$0xff]
      %v1532 = vld [vmem:[%s435 + $0x20] sm:$0xff]
      %v1533 = vld [vmem:[%s435 + $0x28] sm:$0xff]
      %v1534 = vld [vmem:[%s435 + $0x30] sm:$0xff]
      %v1535 = vld [vmem:[%s435 + $0x38] sm:$0xff]
      %v1536 = vld [vmem:[%s435 + $0x40] sm:$0xff]
      %v1537 = vld [vmem:[%s435 + $0x48] sm:$0xff]
      %v1538 = vld [vmem:[%s7 + $0x200] sm:$0xff]
      %v1539 = vld [vmem:[%s7 + $0x208] sm:$0xff]
      %v1540 = vld [vmem:[%s7 + $0x210] sm:$0xff]
      %v1541 = vld [vmem:[%s7 + $0x218] sm:$0xff]
      %v1542 = vpack.c.bf16 %v1529, %v1528
      %v1543 = vpack.c.bf16 %v1531, %v1530
      %v1544 = vpack.c.bf16 %v1533, %v1532
      %v1545 = vpack.c.bf16 %v1535, %v1534
      %v1546 = vpack.c.bf16 %v1537, %v1536
      %v1547 = vpack.c.bf16 %v1539, %v1538
      %v1548 = vpack.c.bf16 %v1541, %v1540
      %v1549 = vld [vmem:[%s8 + $0xb] sm:$0x1]
      %v1550 = vperm.slane %v1549, 0
      %v1552 = vsel %vm1467, %v1542, 0
      %v1555 = vsel %vm1467, %v1543, 0
      %v1558 = vsel %vm1467, %v1544, 0
      %v1561 = vsel %vm1467, %v1545, 0
      %v1564 = vsel %vm1467, %v1546, 0
      %1566 = vmatpush.bf16.msra.mxu0 0
      %1567 = vmatpush.bf16.msra.mxu0 0
      %1568 = vmatpush.bf16.msra.mxu0 0
      %1569 = vmatpush.bf16.msra.mxu0 0
      %1570 = vmatpush.bf16.msra.mxu0 0
      %1571 = vmatpush.bf16.msra.mxu0 0
      %1572 = vmatpush.bf16.msra.mxu0 %v1548
      %1573 = vmatpush.bf16.msra.mxu0 %v1547
      %1574 = vmatmul.bf16.gmra.mxu0 %v1552
      %v1575 = vpop.f32.mrf.mxu0
      %v1576 = vadd.f32 %v1550, %v1575
      %v1577 = vpop.f32.mrf.mxu0
      %v1578 = vadd.f32 %v1550, %v1577
      %1579 = vmatmul.bf16.gmra.mxu0 %v1555
      %v1580 = vpop.f32.mrf.mxu0
      %v1581 = vadd.f32 %v1550, %v1580
      %v1582 = vpop.f32.mrf.mxu0
      %v1583 = vadd.f32 %v1550, %v1582
      %1584 = vmatmul.bf16.gmra.mxu0 %v1558
      %v1585 = vpop.f32.mrf.mxu0
      %v1586 = vadd.f32 %v1550, %v1585
      %v1587 = vpop.f32.mrf.mxu0
      %v1588 = vadd.f32 %v1550, %v1587
      %1589 = vmatmul.bf16.gmra.mxu0 %v1561
      %v1590 = vpop.f32.mrf.mxu0
      %v1591 = vadd.f32 %v1550, %v1590
      %v1592 = vpop.f32.mrf.mxu0
      %v1593 = vadd.f32 %v1550, %v1592
      %1594 = vmatmul.bf16.gmra.mxu0 %v1564
      %v1595 = vpop.f32.mrf.mxu0
      %v1596 = vadd.f32 %v1550, %v1595
      %v1597 = vpop.f32.mrf.mxu0
      %v1598 = vadd.f32 %v1550, %v1597
      %1599 = vdwg.mxu0
      %v1600 = vxor.u32 %v1576, 2147483648
      %v1601 = vxor.u32 %v1578, 2147483648
      %v1602 = vxor.u32 %v1581, 2147483648
      %v1603 = vxor.u32 %v1583, 2147483648
      %v1604 = vxor.u32 %v1586, 2147483648
      %v1605 = vxor.u32 %v1588, 2147483648
      %v1606 = vxor.u32 %v1591, 2147483648
      %v1607 = vxor.u32 %v1593, 2147483648
      %v1608 = vxor.u32 %v1596, 2147483648
      %v1609 = vxor.u32 %v1598, 2147483648
      %v1610 = vmul.f32 %v1600, 1.442695
      %v1611 = vpow.pop %v1610
      %v1612 = vmul.f32 %v1601, 1.442695
      %v1613 = vpow.pop %v1612
      %v1614 = vmul.f32 %v1602, 1.442695
      %v1615 = vpow.pop %v1614
      %v1616 = vmul.f32 %v1603, 1.442695
      %v1617 = vpow.pop %v1616
      %v1618 = vmul.f32 %v1604, 1.442695
      %v1619 = vpow.pop %v1618
      %v1620 = vmul.f32 %v1605, 1.442695
      %v1621 = vpow.pop %v1620
      %v1622 = vmul.f32 %v1606, 1.442695
      %v1623 = vpow.pop %v1622
      %v1624 = vmul.f32 %v1607, 1.442695
      %v1625 = vpow.pop %v1624
      %v1626 = vmul.f32 %v1608, 1.442695
      %v1627 = vpow.pop %v1626
      %v1628 = vmul.f32 %v1609, 1.442695
      %v1629 = vpow.pop %v1628
      %v1630 = vadd.f32 %v1611, 1.0
      %v1631 = vadd.f32 %v1613, 1.0
      %v1632 = vadd.f32 %v1615, 1.0
      %v1633 = vadd.f32 %v1617, 1.0
      %v1634 = vadd.f32 %v1619, 1.0
      %v1635 = vadd.f32 %v1621, 1.0
      %v1636 = vadd.f32 %v1623, 1.0
      %v1637 = vadd.f32 %v1625, 1.0
      %v1638 = vadd.f32 %v1627, 1.0
      %v1639 = vadd.f32 %v1629, 1.0
      %v1640 = vrcp.pop %v1630
      %v1641 = vmul.f32 %v1630, %v1640
      %v1642 = vsub.f32 1.0, %v1641
      %v1643 = vmul.f32 %v1640, %v1642
      %v1644 = vadd.f32 %v1640, %v1643
      %vm1645 = vweird.f32 %v1630
      %vm1646 = vweird.f32 %v1640
      %vm1647 = vmor %vm1645, %vm1646
      %v1648 = vsel %vm1647, %v1640, %v1644
      %v1649 = vand.u32 2147483647, %v1630
      %vm1650 = vcmp.eq.f32.partialorder %v1649, 8.507059e+37
      %v1651 = vand.u32 %v1630, 2147483648
      %v1652 = vor.u32 1.1754944e-38, %v1651
      %v1653 = vsel %vm1650, %v1652, %v1648
      %v1654 = vmul.f32 1.0, %v1653
      %v1655 = vrcp.pop %v1631
      %v1656 = vmul.f32 %v1631, %v1655
      %v1657 = vsub.f32 1.0, %v1656
      %v1658 = vmul.f32 %v1655, %v1657
      %v1659 = vadd.f32 %v1655, %v1658
      %vm1660 = vweird.f32 %v1631
      %vm1661 = vweird.f32 %v1655
      %vm1662 = vmor %vm1660, %vm1661
      %v1663 = vsel %vm1662, %v1655, %v1659
      %v1664 = vand.u32 2147483647, %v1631
      %vm1665 = vcmp.eq.f32.partialorder %v1664, 8.507059e+37
      %v1666 = vand.u32 %v1631, 2147483648
      %v1667 = vor.u32 1.1754944e-38, %v1666
      %v1668 = vsel %vm1665, %v1667, %v1663
      %v1669 = vmul.f32 1.0, %v1668
      %v1670 = vrcp.pop %v1632
      %v1671 = vmul.f32 %v1632, %v1670
      %v1672 = vsub.f32 1.0, %v1671
      %v1673 = vmul.f32 %v1670, %v1672
      %v1674 = vadd.f32 %v1670, %v1673
      %vm1675 = vweird.f32 %v1632
      %vm1676 = vweird.f32 %v1670
      %vm1677 = vmor %vm1675, %vm1676
      %v1678 = vsel %vm1677, %v1670, %v1674
      %v1679 = vand.u32 2147483647, %v1632
      %vm1680 = vcmp.eq.f32.partialorder %v1679, 8.507059e+37
      %v1681 = vand.u32 %v1632, 2147483648
      %v1682 = vor.u32 1.1754944e-38, %v1681
      %v1683 = vsel %vm1680, %v1682, %v1678
      %v1684 = vmul.f32 1.0, %v1683
      %v1685 = vrcp.pop %v1633
      %v1686 = vmul.f32 %v1633, %v1685
      %v1687 = vsub.f32 1.0, %v1686
      %v1688 = vmul.f32 %v1685, %v1687
      %v1689 = vadd.f32 %v1685, %v1688
      %vm1690 = vweird.f32 %v1633
      %vm1691 = vweird.f32 %v1685
      %vm1692 = vmor %vm1690, %vm1691
      %v1693 = vsel %vm1692, %v1685, %v1689
      %v1694 = vand.u32 2147483647, %v1633
      %vm1695 = vcmp.eq.f32.partialorder %v1694, 8.507059e+37
      %v1696 = vand.u32 %v1633, 2147483648
      %v1697 = vor.u32 1.1754944e-38, %v1696
      %v1698 = vsel %vm1695, %v1697, %v1693
      %v1699 = vmul.f32 1.0, %v1698
      %v1700 = vrcp.pop %v1634
      %v1701 = vmul.f32 %v1634, %v1700
      %v1702 = vsub.f32 1.0, %v1701
      %v1703 = vmul.f32 %v1700, %v1702
      %v1704 = vadd.f32 %v1700, %v1703
      %vm1705 = vweird.f32 %v1634
      %vm1706 = vweird.f32 %v1700
      %vm1707 = vmor %vm1705, %vm1706
      %v1708 = vsel %vm1707, %v1700, %v1704
      %v1709 = vand.u32 2147483647, %v1634
      %vm1710 = vcmp.eq.f32.partialorder %v1709, 8.507059e+37
      %v1711 = vand.u32 %v1634, 2147483648
      %v1712 = vor.u32 1.1754944e-38, %v1711
      %v1713 = vsel %vm1710, %v1712, %v1708
      %v1714 = vmul.f32 1.0, %v1713
      %v1715 = vrcp.pop %v1635
      %v1716 = vmul.f32 %v1635, %v1715
      %v1717 = vsub.f32 1.0, %v1716
      %v1718 = vmul.f32 %v1715, %v1717
      %v1719 = vadd.f32 %v1715, %v1718
      %vm1720 = vweird.f32 %v1635
      %vm1721 = vweird.f32 %v1715
      %vm1722 = vmor %vm1720, %vm1721
      %v1723 = vsel %vm1722, %v1715, %v1719
      %v1724 = vand.u32 2147483647, %v1635
      %vm1725 = vcmp.eq.f32.partialorder %v1724, 8.507059e+37
      %v1726 = vand.u32 %v1635, 2147483648
      %v1727 = vor.u32 1.1754944e-38, %v1726
      %v1728 = vsel %vm1725, %v1727, %v1723
      %v1729 = vmul.f32 1.0, %v1728
      %v1730 = vrcp.pop %v1636
      %v1731 = vmul.f32 %v1636, %v1730
      %v1732 = vsub.f32 1.0, %v1731
      %v1733 = vmul.f32 %v1730, %v1732
      %v1734 = vadd.f32 %v1730, %v1733
      %vm1735 = vweird.f32 %v1636
      %vm1736 = vweird.f32 %v1730
      %vm1737 = vmor %vm1735, %vm1736
      %v1738 = vsel %vm1737, %v1730, %v1734
      %v1739 = vand.u32 2147483647, %v1636
      %vm1740 = vcmp.eq.f32.partialorder %v1739, 8.507059e+37
      %v1741 = vand.u32 %v1636, 2147483648
      %v1742 = vor.u32 1.1754944e-38, %v1741
      %v1743 = vsel %vm1740, %v1742, %v1738
      %v1744 = vmul.f32 1.0, %v1743
      %v1745 = vrcp.pop %v1637
      %v1746 = vmul.f32 %v1637, %v1745
      %v1747 = vsub.f32 1.0, %v1746
      %v1748 = vmul.f32 %v1745, %v1747
      %v1749 = vadd.f32 %v1745, %v1748
      %vm1750 = vweird.f32 %v1637
      %vm1751 = vweird.f32 %v1745
      %vm1752 = vmor %vm1750, %vm1751
      %v1753 = vsel %vm1752, %v1745, %v1749
      %v1754 = vand.u32 2147483647, %v1637
      %vm1755 = vcmp.eq.f32.partialorder %v1754, 8.507059e+37
      %v1756 = vand.u32 %v1637, 2147483648
      %v1757 = vor.u32 1.1754944e-38, %v1756
      %v1758 = vsel %vm1755, %v1757, %v1753
      %v1759 = vmul.f32 1.0, %v1758
      %v1760 = vrcp.pop %v1638
      %v1761 = vmul.f32 %v1638, %v1760
      %v1762 = vsub.f32 1.0, %v1761
      %v1763 = vmul.f32 %v1760, %v1762
      %v1764 = vadd.f32 %v1760, %v1763
      %vm1765 = vweird.f32 %v1638
      %vm1766 = vweird.f32 %v1760
      %vm1767 = vmor %vm1765, %vm1766
      %v1768 = vsel %vm1767, %v1760, %v1764
      %v1769 = vand.u32 2147483647, %v1638
      %vm1770 = vcmp.eq.f32.partialorder %v1769, 8.507059e+37
      %v1771 = vand.u32 %v1638, 2147483648
      %v1772 = vor.u32 1.1754944e-38, %v1771
      %v1773 = vsel %vm1770, %v1772, %v1768
      %v1774 = vmul.f32 1.0, %v1773
      %v1775 = vrcp.pop %v1639
      %v1776 = vmul.f32 %v1639, %v1775
      %v1777 = vsub.f32 1.0, %v1776
      %v1778 = vmul.f32 %v1775, %v1777
      %v1779 = vadd.f32 %v1775, %v1778
      %vm1780 = vweird.f32 %v1639
      %vm1781 = vweird.f32 %v1775
      %vm1782 = vmor %vm1780, %vm1781
      %v1783 = vsel %vm1782, %v1775, %v1779
      %v1784 = vand.u32 2147483647, %v1639
      %vm1785 = vcmp.eq.f32.partialorder %v1784, 8.507059e+37
      %v1786 = vand.u32 %v1639, 2147483648
      %v1787 = vor.u32 1.1754944e-38, %v1786
      %v1788 = vsel %vm1785, %v1787, %v1783
      %v1789 = vmul.f32 1.0, %v1788
      %v1790 = vmul.f32 %v1576, %v1654
      %v1791 = vmul.f32 %v1578, %v1669
      %v1792 = vmul.f32 %v1581, %v1684
      %v1793 = vmul.f32 %v1583, %v1699
      %v1794 = vmul.f32 %v1586, %v1714
      %v1795 = vmul.f32 %v1588, %v1729
      %v1796 = vmul.f32 %v1591, %v1744
      %v1797 = vmul.f32 %v1593, %v1759
      %v1798 = vmul.f32 %v1596, %v1774
      %v1799 = vmul.f32 %v1598, %v1789
      %v1800 = vld [vmem:[%s7 + $0x220] sm:$0xff]
      %v1801 = vld [vmem:[%s7 + $0x228] sm:$0xff]
      %v1802 = vld [vmem:[%s7 + $0x230] sm:$0xff]
      %v1803 = vld [vmem:[%s7 + $0x238] sm:$0xff]
      %v1804 = vpack.c.bf16 %v1791, %v1790
      %v1805 = vpack.c.bf16 %v1793, %v1792
      %v1806 = vpack.c.bf16 %v1795, %v1794
      %v1807 = vpack.c.bf16 %v1797, %v1796
      %v1808 = vpack.c.bf16 %v1799, %v1798
      %v1809 = vpack.c.bf16 %v1801, %v1800
      %v1810 = vpack.c.bf16 %v1803, %v1802
      %v1811 = vld [vmem:[%s8 + $0xc] sm:$0x1]
      %v1812 = vperm.slane %v1811, 0
      %v1814 = vsel %vm1467, %v1804, 0
      %v1817 = vsel %vm1467, %v1805, 0
      %v1820 = vsel %vm1467, %v1806, 0
      %v1823 = vsel %vm1467, %v1807, 0
      %v1826 = vsel %vm1467, %v1808, 0
      %1828 = vmatpush.bf16.msra.mxu0 0
      %1829 = vmatpush.bf16.msra.mxu0 0
      %1830 = vmatpush.bf16.msra.mxu0 0
      %1831 = vmatpush.bf16.msra.mxu0 0
      %1832 = vmatpush.bf16.msra.mxu0 0
      %1833 = vmatpush.bf16.msra.mxu0 0
      %1834 = vmatpush.bf16.msra.mxu0 %v1810
      %1835 = vmatpush.bf16.msra.mxu0 %v1809
      %1836 = vmatmul.bf16.gmra.mxu0 %v1814
      %v1837 = vpop.f32.mrf.mxu0
      %v1838 = vadd.f32 %v1812, %v1837
      %v1839 = vpop.f32.mrf.mxu0
      %v1840 = vadd.f32 %v1812, %v1839
      %1841 = vmatmul.bf16.gmra.mxu0 %v1817
      %v1842 = vpop.f32.mrf.mxu0
      %v1843 = vadd.f32 %v1812, %v1842
      %v1844 = vpop.f32.mrf.mxu0
      %v1845 = vadd.f32 %v1812, %v1844
      %1846 = vmatmul.bf16.gmra.mxu0 %v1820
      %v1847 = vpop.f32.mrf.mxu0
      %v1848 = vadd.f32 %v1812, %v1847
      %v1849 = vpop.f32.mrf.mxu0
      %v1850 = vadd.f32 %v1812, %v1849
      %1851 = vmatmul.bf16.gmra.mxu0 %v1823
      %v1852 = vpop.f32.mrf.mxu0
      %v1853 = vadd.f32 %v1812, %v1852
      %v1854 = vpop.f32.mrf.mxu0
      %v1855 = vadd.f32 %v1812, %v1854
      %1856 = vmatmul.bf16.gmra.mxu0 %v1826
      %v1857 = vpop.f32.mrf.mxu0
      %v1858 = vadd.f32 %v1812, %v1857
      %v1859 = vpop.f32.mrf.mxu0
      %v1860 = vadd.f32 %v1812, %v1859
      %1861 = vdwg.mxu0
      %v1862 = vld [vmem:[%s414] sm:$0xff]
      %v1863 = vld [vmem:[%s414 + $0x8] sm:$0xff]
      %v1864 = vld [vmem:[%s414 + $0x10] sm:$0xff]
      %v1865 = vld [vmem:[%s414 + $0x18] sm:$0xff]
      %v1866 = vld [vmem:[%s414 + $0x20] sm:$0xff]
      %v1867 = vld [vmem:[%s414 + $0x28] sm:$0xff]
      %v1868 = vld [vmem:[%s414 + $0x30] sm:$0xff]
      %v1869 = vld [vmem:[%s414 + $0x38] sm:$0xff]
      %v1870 = vld [vmem:[%s7 + $0xb0] sm:$0xff]
      %v1871 = vld [vmem:[%s7 + $0xb8] sm:$0xff]
      %v1872 = vld [vmem:[%s7 + $0xc0] sm:$0xff]
      %v1873 = vld [vmem:[%s7 + $0xc8] sm:$0x7]
      %v1874 = vpack.c.bf16 %v1863, %v1862
      %v1875 = vpack.c.bf16 %v1865, %v1864
      %v1876 = vpack.c.bf16 %v1867, %v1866
      %v1877 = vpack.c.bf16 %v1869, %v1868
      %v1878 = vpack.c.bf16 %v1871, %v1870
      %v1879 = vpack.c.bf16 %v1873, %v1872
      %v1880 = vld [vmem:[%s8 + $0x2] sm:$0x1]
      %v1881 = vperm.slane %v1880, 0
      %v1883 = vsel %vm490, %v1874, 0
      %v1886 = vsel %vm490, %v1875, 0
      %v1889 = vsel %vm490, %v1876, 0
      %v1892 = vsel %vm490, %v1877, 0
      %v1895 = vand.u32 %v1879, %v506
      %1897 = vmatpush.bf16.msra.mxu0 0
      %1898 = vmatpush.bf16.msra.mxu0 0
      %1899 = vmatpush.bf16.msra.mxu0 0
      %1900 = vmatpush.bf16.msra.mxu0 0
      %1901 = vmatpush.bf16.msra.mxu0 0
      %1902 = vmatpush.bf16.msra.mxu0 0
      %1903 = vmatpush.bf16.msra.mxu0 %v1895
      %1904 = vmatpush.bf16.msra.mxu0 %v1878
      %1905 = vmatmul.bf16.gmra.mxu0 %v1883
      %v1906 = vpop.f32.mrf.mxu0
      %v1907 = vadd.f32 %v1881, %v1906
      %v1908 = vpop.f32.mrf.mxu0
      %v1909 = vadd.f32 %v1881, %v1908
      %1910 = vmatmul.bf16.gmra.mxu0 %v1886
      %v1911 = vpop.f32.mrf.mxu0
      %v1912 = vadd.f32 %v1881, %v1911
      %v1913 = vpop.f32.mrf.mxu0
      %v1914 = vadd.f32 %v1881, %v1913
      %1915 = vmatmul.bf16.gmra.mxu0 %v1889
      %v1916 = vpop.f32.mrf.mxu0
      %v1917 = vadd.f32 %v1881, %v1916
      %v1918 = vpop.f32.mrf.mxu0
      %v1919 = vadd.f32 %v1881, %v1918
      %1920 = vmatmul.bf16.gmra.mxu0 %v1892
      %v1921 = vpop.f32.mrf.mxu0
      %v1922 = vadd.f32 %v1881, %v1921
      %v1923 = vpop.f32.mrf.mxu0
      %v1924 = vadd.f32 %v1881, %v1923
      %1925 = vdwg.mxu0
      %v1926 = vxor.u32 %v1907, 2147483648
      %v1927 = vxor.u32 %v1909, 2147483648
      %v1928 = vxor.u32 %v1912, 2147483648
      %v1929 = vxor.u32 %v1914, 2147483648
      %v1930 = vxor.u32 %v1917, 2147483648
      %v1931 = vxor.u32 %v1919, 2147483648
      %v1932 = vxor.u32 %v1922, 2147483648
      %v1933 = vxor.u32 %v1924, 2147483648
      %v1934 = vmul.f32 %v1926, 1.442695
      %v1935 = vpow.pop %v1934
      %v1936 = vmul.f32 %v1927, 1.442695
      %v1937 = vpow.pop %v1936
      %v1938 = vmul.f32 %v1928, 1.442695
      %v1939 = vpow.pop %v1938
      %v1940 = vmul.f32 %v1929, 1.442695
      %v1941 = vpow.pop %v1940
      %v1942 = vmul.f32 %v1930, 1.442695
      %v1943 = vpow.pop %v1942
      %v1944 = vmul.f32 %v1931, 1.442695
      %v1945 = vpow.pop %v1944
      %v1946 = vmul.f32 %v1932, 1.442695
      %v1947 = vpow.pop %v1946
      %v1948 = vmul.f32 %v1933, 1.442695
      %v1949 = vpow.pop %v1948
      %v1950 = vadd.f32 %v1935, 1.0
      %v1951 = vadd.f32 %v1937, 1.0
      %v1952 = vadd.f32 %v1939, 1.0
      %v1953 = vadd.f32 %v1941, 1.0
      %v1954 = vadd.f32 %v1943, 1.0
      %v1955 = vadd.f32 %v1945, 1.0
      %v1956 = vadd.f32 %v1947, 1.0
      %v1957 = vadd.f32 %v1949, 1.0
      %v1958 = vrcp.pop %v1950
      %v1959 = vmul.f32 %v1950, %v1958
      %v1960 = vsub.f32 1.0, %v1959
      %v1961 = vmul.f32 %v1958, %v1960
      %v1962 = vadd.f32 %v1958, %v1961
      %vm1963 = vweird.f32 %v1950
      %vm1964 = vweird.f32 %v1958
      %vm1965 = vmor %vm1963, %vm1964
      %v1966 = vsel %vm1965, %v1958, %v1962
      %v1967 = vand.u32 2147483647, %v1950
      %vm1968 = vcmp.eq.f32.partialorder %v1967, 8.507059e+37
      %v1969 = vand.u32 %v1950, 2147483648
      %v1970 = vor.u32 1.1754944e-38, %v1969
      %v1971 = vsel %vm1968, %v1970, %v1966
      %v1972 = vmul.f32 1.0, %v1971
      %v1973 = vrcp.pop %v1951
      %v1974 = vmul.f32 %v1951, %v1973
      %v1975 = vsub.f32 1.0, %v1974
      %v1976 = vmul.f32 %v1973, %v1975
      %v1977 = vadd.f32 %v1973, %v1976
      %vm1978 = vweird.f32 %v1951
      %vm1979 = vweird.f32 %v1973
      %vm1980 = vmor %vm1978, %vm1979
      %v1981 = vsel %vm1980, %v1973, %v1977
      %v1982 = vand.u32 2147483647, %v1951
      %vm1983 = vcmp.eq.f32.partialorder %v1982, 8.507059e+37
      %v1984 = vand.u32 %v1951, 2147483648
      %v1985 = vor.u32 1.1754944e-38, %v1984
      %v1986 = vsel %vm1983, %v1985, %v1981
      %v1987 = vmul.f32 1.0, %v1986
      %v1988 = vrcp.pop %v1952
      %v1989 = vmul.f32 %v1952, %v1988
      %v1990 = vsub.f32 1.0, %v1989
      %v1991 = vmul.f32 %v1988, %v1990
      %v1992 = vadd.f32 %v1988, %v1991
      %vm1993 = vweird.f32 %v1952
      %vm1994 = vweird.f32 %v1988
      %vm1995 = vmor %vm1993, %vm1994
      %v1996 = vsel %vm1995, %v1988, %v1992
      %v1997 = vand.u32 2147483647, %v1952
      %vm1998 = vcmp.eq.f32.partialorder %v1997, 8.507059e+37
      %v1999 = vand.u32 %v1952, 2147483648
      %v2000 = vor.u32 1.1754944e-38, %v1999
      %v2001 = vsel %vm1998, %v2000, %v1996
      %v2002 = vmul.f32 1.0, %v2001
      %v2003 = vrcp.pop %v1953
      %v2004 = vmul.f32 %v1953, %v2003
      %v2005 = vsub.f32 1.0, %v2004
      %v2006 = vmul.f32 %v2003, %v2005
      %v2007 = vadd.f32 %v2003, %v2006
      %vm2008 = vweird.f32 %v1953
      %vm2009 = vweird.f32 %v2003
      %vm2010 = vmor %vm2008, %vm2009
      %v2011 = vsel %vm2010, %v2003, %v2007
      %v2012 = vand.u32 2147483647, %v1953
      %vm2013 = vcmp.eq.f32.partialorder %v2012, 8.507059e+37
      %v2014 = vand.u32 %v1953, 2147483648
      %v2015 = vor.u32 1.1754944e-38, %v2014
      %v2016 = vsel %vm2013, %v2015, %v2011
      %v2017 = vmul.f32 1.0, %v2016
      %v2018 = vrcp.pop %v1954
      %v2019 = vmul.f32 %v1954, %v2018
      %v2020 = vsub.f32 1.0, %v2019
      %v2021 = vmul.f32 %v2018, %v2020
      %v2022 = vadd.f32 %v2018, %v2021
      %vm2023 = vweird.f32 %v1954
      %vm2024 = vweird.f32 %v2018
      %vm2025 = vmor %vm2023, %vm2024
      %v2026 = vsel %vm2025, %v2018, %v2022
      %v2027 = vand.u32 2147483647, %v1954
      %vm2028 = vcmp.eq.f32.partialorder %v2027, 8.507059e+37
      %v2029 = vand.u32 %v1954, 2147483648
      %v2030 = vor.u32 1.1754944e-38, %v2029
      %v2031 = vsel %vm2028, %v2030, %v2026
      %v2032 = vmul.f32 1.0, %v2031
      %v2033 = vrcp.pop %v1955
      %v2034 = vmul.f32 %v1955, %v2033
      %v2035 = vsub.f32 1.0, %v2034
      %v2036 = vmul.f32 %v2033, %v2035
      %v2037 = vadd.f32 %v2033, %v2036
      %vm2038 = vweird.f32 %v1955
      %vm2039 = vweird.f32 %v2033
      %vm2040 = vmor %vm2038, %vm2039
      %v2041 = vsel %vm2040, %v2033, %v2037
      %v2042 = vand.u32 2147483647, %v1955
      %vm2043 = vcmp.eq.f32.partialorder %v2042, 8.507059e+37
      %v2044 = vand.u32 %v1955, 2147483648
      %v2045 = vor.u32 1.1754944e-38, %v2044
      %v2046 = vsel %vm2043, %v2045, %v2041
      %v2047 = vmul.f32 1.0, %v2046
      %v2048 = vrcp.pop %v1956
      %v2049 = vmul.f32 %v1956, %v2048
      %v2050 = vsub.f32 1.0, %v2049
      %v2051 = vmul.f32 %v2048, %v2050
      %v2052 = vadd.f32 %v2048, %v2051
      %vm2053 = vweird.f32 %v1956
      %vm2054 = vweird.f32 %v2048
      %vm2055 = vmor %vm2053, %vm2054
      %v2056 = vsel %vm2055, %v2048, %v2052
      %v2057 = vand.u32 2147483647, %v1956
      %vm2058 = vcmp.eq.f32.partialorder %v2057, 8.507059e+37
      %v2059 = vand.u32 %v1956, 2147483648
      %v2060 = vor.u32 1.1754944e-38, %v2059
      %v2061 = vsel %vm2058, %v2060, %v2056
      %v2062 = vmul.f32 1.0, %v2061
      %v2063 = vrcp.pop %v1957
      %v2064 = vmul.f32 %v1957, %v2063
      %v2065 = vsub.f32 1.0, %v2064
      %v2066 = vmul.f32 %v2063, %v2065
      %v2067 = vadd.f32 %v2063, %v2066
      %vm2068 = vweird.f32 %v1957
      %vm2069 = vweird.f32 %v2063
      %vm2070 = vmor %vm2068, %vm2069
      %v2071 = vsel %vm2070, %v2063, %v2067
      %v2072 = vand.u32 2147483647, %v1957
      %vm2073 = vcmp.eq.f32.partialorder %v2072, 8.507059e+37
      %v2074 = vand.u32 %v1957, 2147483648
      %v2075 = vor.u32 1.1754944e-38, %v2074
      %v2076 = vsel %vm2073, %v2075, %v2071
      %v2077 = vmul.f32 1.0, %v2076
      %v2078 = vmul.f32 %v1907, %v1972
      %v2079 = vmul.f32 %v1909, %v1987
      %v2080 = vmul.f32 %v1912, %v2002
      %v2081 = vmul.f32 %v1914, %v2017
      %v2082 = vmul.f32 %v1917, %v2032
      %v2083 = vmul.f32 %v1919, %v2047
      %v2084 = vmul.f32 %v1922, %v2062
      %v2085 = vmul.f32 %v1924, %v2077
      %v2086 = vld [vmem:[%s7 + $0xd0] sm:$0xff]
      %v2087 = vld [vmem:[%s7 + $0xd8] sm:$0xff]
      %v2088 = vld [vmem:[%s7 + $0xe0] sm:$0xff]
      %v2089 = vld [vmem:[%s7 + $0xe8] sm:$0xff]
      %v2090 = vld [vmem:[%s7 + $0xf0] sm:$0xf]
      %v2091 = vld [vmem:[%s8 + $0x3] sm:$0x1]
      %vm2092 = vcmask 31744
      %2093 = vst.msk [vmem:[%s718 + $0x1] sm:$0xff] %vm2092, %v1450
      %2094 = vst.msk [vmem:[%s718 + $0x11] sm:$0xff] %vm2092, %v1451
      %2095 = vst.msk [vmem:[%s718 + $0x21] sm:$0xff] %vm2092, %v1452
      %2096 = vst.msk [vmem:[%s718 + $0x31] sm:$0xff] %vm2092, %v1453
      %2097 = vst.msk [vmem:[%s718 + $0x41] sm:$0xff] %vm2092, %v1454
      %2098 = vst.msk [vmem:[%s718 + $0x51] sm:$0xff] %vm2092, %v1455
      %2099 = vst.msk [vmem:[%s718 + $0x61] sm:$0xff] %vm2092, %v1456
      %2100 = vst.msk [vmem:[%s718 + $0x71] sm:$0xff] %vm2092, %v1457
      %v2101 = vld [vmem:[#allocation2] sm:$0xff]
      %v2102 = vld [vmem:[#allocation2 + $0x10] sm:$0xff]
      %v2103 = vld [vmem:[#allocation2 + $0x20] sm:$0xff]
      %v2104 = vld [vmem:[#allocation2 + $0x30] sm:$0xff]
      %v2105 = vld [vmem:[#allocation2 + $0x40] sm:$0xff]
      %v2106 = vld [vmem:[#allocation2 + $0x50] sm:$0xff]
      %v2107 = vld [vmem:[#allocation2 + $0x60] sm:$0xff]
      %v2108 = vld [vmem:[#allocation2 + $0x70] sm:$0xff]
      %v2109 = vpack.c.bf16 %v2102, %v2101
      %v2110 = vpack.c.bf16 %v2104, %v2103
      %v2111 = vpack.c.bf16 %v2106, %v2105
      %v2112 = vpack.c.bf16 %v2108, %v2107
      %v2113 = vpack.c.bf16 %v2086, %v2086
      %v2114 = vld [vmem:[#allocation2 + $0x1] sm:$0xff]
      %v2115 = vld [vmem:[#allocation2 + $0x11] sm:$0xff]
      %v2116 = vld [vmem:[#allocation2 + $0x21] sm:$0xff]
      %v2117 = vld [vmem:[#allocation2 + $0x31] sm:$0xff]
      %v2118 = vld [vmem:[#allocation2 + $0x41] sm:$0xff]
      %v2119 = vld [vmem:[#allocation2 + $0x51] sm:$0xff]
      %v2120 = vld [vmem:[#allocation2 + $0x61] sm:$0xff]
      %v2121 = vld [vmem:[#allocation2 + $0x71] sm:$0xff]
      %v2122 = vpack.c.bf16 %v2115, %v2114
      %v2123 = vpack.c.bf16 %v2117, %v2116
      %v2124 = vpack.c.bf16 %v2119, %v2118
      %v2125 = vpack.c.bf16 %v2121, %v2120
      %v2127 = vrot.slane %v2113, 2
      %v2129 = vsel %vm2092, %v2122, 0
      %v2132 = vsel %vm2092, %v2123, 0
      %v2135 = vsel %vm2092, %v2124, 0
      %v2138 = vsel %vm2092, %v2125, 0
      %vm2140 = vcmask 1041408
      %v2142 = vsel %vm2140, %v2127, 0
      %2144 = vmatpush.bf16.msra.mxu0 0
      %2145 = vmatpush.bf16.msra.mxu0 0
      %2146 = vmatpush.bf16.msra.mxu0 0
      %2147 = vmatpush.bf16.msra.mxu0 0
      %2148 = vmatpush.bf16.msra.mxu0 0
      %2149 = vmatpush.bf16.msra.mxu0 0
      %2150 = vmatpush.bf16.msra.mxu0 0
      %2151 = vmatpush.bf16.msra.mxu0 %v2142
      %2152 = vmatmul.bf16.gmra.mxu0 %v2129
      %v2153 = vpop.f32.mrf.mxu0
      %v2154 = vadd.f32 0.0, %v2153
      %v2155 = vpop.f32.mrf.mxu0
      %v2156 = vadd.f32 0.0, %v2155
      %2157 = vmatmul.bf16.gmra.mxu0 %v2132
      %v2158 = vpop.f32.mrf.mxu0
      %v2159 = vadd.f32 0.0, %v2158
      %v2160 = vpop.f32.mrf.mxu0
      %v2161 = vadd.f32 0.0, %v2160
      %2162 = vmatmul.bf16.gmra.mxu0 %v2135
      %v2163 = vpop.f32.mrf.mxu0
      %v2164 = vadd.f32 0.0, %v2163
      %v2165 = vpop.f32.mrf.mxu0
      %v2166 = vadd.f32 0.0, %v2165
      %2167 = vmatmul.bf16.gmra.mxu0 %v2138
      %v2168 = vpop.f32.mrf.mxu0
      %v2169 = vadd.f32 0.0, %v2168
      %v2170 = vpop.f32.mrf.mxu0
      %v2171 = vadd.f32 0.0, %v2170
      %2172 = vdwg.mxu0
      %v2174 = vsel %vm2092, %v2109, 0
      %v2177 = vsel %vm2092, %v2110, 0
      %v2180 = vsel %vm2092, %v2111, 0
      %v2183 = vsel %vm2092, %v2112, 0
      %v2186 = vsel %vm2140, %v2113, 0
      %2188 = vmatpush.bf16.msra.mxu0 0
      %2189 = vmatpush.bf16.msra.mxu0 0
      %2190 = vmatpush.bf16.msra.mxu0 0
      %2191 = vmatpush.bf16.msra.mxu0 0
      %2192 = vmatpush.bf16.msra.mxu0 0
      %2193 = vmatpush.bf16.msra.mxu0 0
      %2194 = vmatpush.bf16.msra.mxu0 0
      %2195 = vmatpush.bf16.msra.mxu0 %v2186
      %2196 = vmatmul.bf16.gmra.mxu0 %v2174
      %v2197 = vpop.f32.mrf.mxu0
      %v2198 = vadd.f32 %v2154, %v2197
      %v2199 = vpop.f32.mrf.mxu0
      %v2200 = vadd.f32 %v2156, %v2199
      %2201 = vmatmul.bf16.gmra.mxu0 %v2177
      %v2202 = vpop.f32.mrf.mxu0
      %v2203 = vadd.f32 %v2159, %v2202
      %v2204 = vpop.f32.mrf.mxu0
      %v2205 = vadd.f32 %v2161, %v2204
      %2206 = vmatmul.bf16.gmra.mxu0 %v2180
      %v2207 = vpop.f32.mrf.mxu0
      %v2208 = vadd.f32 %v2164, %v2207
      %v2209 = vpop.f32.mrf.mxu0
      %v2210 = vadd.f32 %v2166, %v2209
      %2211 = vmatmul.bf16.gmra.mxu0 %v2183
      %v2212 = vpop.f32.mrf.mxu0
      %v2213 = vadd.f32 %v2169, %v2212
      %v2214 = vpop.f32.mrf.mxu0
      %v2215 = vadd.f32 %v2171, %v2214
      %2216 = vdwg.mxu0
      %v2217 = vld [vmem:[#allocation2 + $0x2] sm:$0xff]
      %v2218 = vld [vmem:[#allocation2 + $0x12] sm:$0xff]
      %v2219 = vld [vmem:[#allocation2 + $0x22] sm:$0xff]
      %v2220 = vld [vmem:[#allocation2 + $0x32] sm:$0xff]
      %v2221 = vld [vmem:[#allocation2 + $0x42] sm:$0xff]
      %v2222 = vld [vmem:[#allocation2 + $0x52] sm:$0xff]
      %v2223 = vld [vmem:[#allocation2 + $0x62] sm:$0xff]
      %v2224 = vld [vmem:[#allocation2 + $0x72] sm:$0xff]
      %v2225 = vpack.c.bf16 %v2218, %v2217
      %v2226 = vpack.c.bf16 %v2220, %v2219
      %v2227 = vpack.c.bf16 %v2222, %v2221
      %v2228 = vpack.c.bf16 %v2224, %v2223
      %v2229 = vpack.c.bf16 %v2087, %v2087
      %v2231 = vsel %vm2092, %v2225, 0
      %v2234 = vsel %vm2092, %v2226, 0
      %v2237 = vsel %vm2092, %v2227, 0
      %v2240 = vsel %vm2092, %v2228, 0
      %v2243 = vsel %vm2140, %v2229, 0
      %2245 = vmatpush.bf16.msra.mxu0 0
      %2246 = vmatpush.bf16.msra.mxu0 0
      %2247 = vmatpush.bf16.msra.mxu0 0
      %2248 = vmatpush.bf16.msra.mxu0 0
      %2249 = vmatpush.bf16.msra.mxu0 0
      %2250 = vmatpush.bf16.msra.mxu0 0
      %2251 = vmatpush.bf16.msra.mxu0 0
      %2252 = vmatpush.bf16.msra.mxu0 %v2243
      %2253 = vmatmul.bf16.gmra.mxu0 %v2231
      %v2254 = vpop.f32.mrf.mxu0
      %v2255 = vadd.f32 0.0, %v2254
      %v2256 = vpop.f32.mrf.mxu0
      %v2257 = vadd.f32 0.0, %v2256
      %2258 = vmatmul.bf16.gmra.mxu0 %v2234
      %v2259 = vpop.f32.mrf.mxu0
      %v2260 = vadd.f32 0.0, %v2259
      %v2261 = vpop.f32.mrf.mxu0
      %v2262 = vadd.f32 0.0, %v2261
      %2263 = vmatmul.bf16.gmra.mxu0 %v2237
      %v2264 = vpop.f32.mrf.mxu0
      %v2265 = vadd.f32 0.0, %v2264
      %v2266 = vpop.f32.mrf.mxu0
      %v2267 = vadd.f32 0.0, %v2266
      %2268 = vmatmul.bf16.gmra.mxu0 %v2240
      %v2269 = vpop.f32.mrf.mxu0
      %v2270 = vadd.f32 0.0, %v2269
      %v2271 = vpop.f32.mrf.mxu0
      %v2272 = vadd.f32 0.0, %v2271
      %2273 = vdwg.mxu0
      %v2274 = vadd.f32 %v2198, %v2255
      %v2275 = vadd.f32 %v2200, %v2257
      %v2276 = vadd.f32 %v2203, %v2260
      %v2277 = vadd.f32 %v2205, %v2262
      %v2278 = vadd.f32 %v2208, %v2265
      %v2279 = vadd.f32 %v2210, %v2267
      %v2280 = vadd.f32 %v2213, %v2270
      %v2281 = vadd.f32 %v2215, %v2272
      %v2282 = vld [vmem:[%s718] sm:$0xff]
      %v2283 = vld [vmem:[%s718 + $0x10] sm:$0xff]
      %v2284 = vld [vmem:[%s718 + $0x20] sm:$0xff]
      %v2285 = vld [vmem:[%s718 + $0x30] sm:$0xff]
      %v2286 = vld [vmem:[%s718 + $0x40] sm:$0xff]
      %v2287 = vld [vmem:[%s718 + $0x50] sm:$0xff]
      %v2288 = vld [vmem:[%s718 + $0x60] sm:$0xff]
      %v2289 = vld [vmem:[%s718 + $0x70] sm:$0xff]
      %v2290 = vpack.c.bf16 %v2283, %v2282
      %v2291 = vpack.c.bf16 %v2285, %v2284
      %v2292 = vpack.c.bf16 %v2287, %v2286
      %v2293 = vpack.c.bf16 %v2289, %v2288
      %v2295 = vrot.slane %v2229, 2
      %v2297 = vsel %vm2092, %v2290, 0
      %v2300 = vsel %vm2092, %v2291, 0
      %v2303 = vsel %vm2092, %v2292, 0
      %v2306 = vsel %vm2092, %v2293, 0
      %v2309 = vsel %vm2140, %v2295, 0
      %2311 = vmatpush.bf16.msra.mxu0 0
      %2312 = vmatpush.bf16.msra.mxu0 0
      %2313 = vmatpush.bf16.msra.mxu0 0
      %2314 = vmatpush.bf16.msra.mxu0 0
      %2315 = vmatpush.bf16.msra.mxu0 0
      %2316 = vmatpush.bf16.msra.mxu0 0
      %2317 = vmatpush.bf16.msra.mxu0 0
      %2318 = vmatpush.bf16.msra.mxu0 %v2309
      %2319 = vmatmul.bf16.gmra.mxu0 %v2297
      %v2320 = vpop.f32.mrf.mxu0
      %v2321 = vadd.f32 0.0, %v2320
      %v2322 = vpop.f32.mrf.mxu0
      %v2323 = vadd.f32 0.0, %v2322
      %2324 = vmatmul.bf16.gmra.mxu0 %v2300
      %v2325 = vpop.f32.mrf.mxu0
      %v2326 = vadd.f32 0.0, %v2325
      %v2327 = vpop.f32.mrf.mxu0
      %v2328 = vadd.f32 0.0, %v2327
      %2329 = vmatmul.bf16.gmra.mxu0 %v2303
      %v2330 = vpop.f32.mrf.mxu0
      %v2331 = vadd.f32 0.0, %v2330
      %v2332 = vpop.f32.mrf.mxu0
      %v2333 = vadd.f32 0.0, %v2332
      %2334 = vmatmul.bf16.gmra.mxu0 %v2306
      %v2335 = vpop.f32.mrf.mxu0
      %v2336 = vadd.f32 0.0, %v2335
      %v2337 = vpop.f32.mrf.mxu0
      %v2338 = vadd.f32 0.0, %v2337
      %2339 = vdwg.mxu0
      %v2340 = vadd.f32 %v2274, %v2321
      %v2341 = vadd.f32 %v2275, %v2323
      %v2342 = vadd.f32 %v2276, %v2326
      %v2343 = vadd.f32 %v2277, %v2328
      %v2344 = vadd.f32 %v2278, %v2331
      %v2345 = vadd.f32 %v2279, %v2333
      %v2346 = vadd.f32 %v2280, %v2336
      %v2347 = vadd.f32 %v2281, %v2338
      %v2348 = vld [vmem:[%s718 + $0x1] sm:$0xff]
      %v2349 = vld [vmem:[%s718 + $0x11] sm:$0xff]
      %v2350 = vld [vmem:[%s718 + $0x21] sm:$0xff]
      %v2351 = vld [vmem:[%s718 + $0x31] sm:$0xff]
      %v2352 = vld [vmem:[%s718 + $0x41] sm:$0xff]
      %v2353 = vld [vmem:[%s718 + $0x51] sm:$0xff]
      %v2354 = vld [vmem:[%s718 + $0x61] sm:$0xff]
      %v2355 = vld [vmem:[%s718 + $0x71] sm:$0xff]
      %v2356 = vpack.c.bf16 %v2349, %v2348
      %v2357 = vpack.c.bf16 %v2351, %v2350
      %v2358 = vpack.c.bf16 %v2353, %v2352
      %v2359 = vpack.c.bf16 %v2355, %v2354
      %v2360 = vpack.c.bf16 %v2088, %v2088
      %v2362 = vsel %vm2092, %v2356, 0
      %v2365 = vsel %vm2092, %v2357, 0
      %v2368 = vsel %vm2092, %v2358, 0
      %v2371 = vsel %vm2092, %v2359, 0
      %v2374 = vsel %vm2140, %v2360, 0
      %2376 = vmatpush.bf16.msra.mxu0 0
      %2377 = vmatpush.bf16.msra.mxu0 0
      %2378 = vmatpush.bf16.msra.mxu0 0
      %2379 = vmatpush.bf16.msra.mxu0 0
      %2380 = vmatpush.bf16.msra.mxu0 0
      %2381 = vmatpush.bf16.msra.mxu0 0
      %2382 = vmatpush.bf16.msra.mxu0 0
      %2383 = vmatpush.bf16.msra.mxu0 %v2374
      %2384 = vmatmul.bf16.gmra.mxu0 %v2362
      %v2385 = vpop.f32.mrf.mxu0
      %v2386 = vadd.f32 0.0, %v2385
      %v2387 = vpop.f32.mrf.mxu0
      %v2388 = vadd.f32 0.0, %v2387
      %2389 = vmatmul.bf16.gmra.mxu0 %v2365
      %v2390 = vpop.f32.mrf.mxu0
      %v2391 = vadd.f32 0.0, %v2390
      %v2392 = vpop.f32.mrf.mxu0
      %v2393 = vadd.f32 0.0, %v2392
      %2394 = vmatmul.bf16.gmra.mxu0 %v2368
      %v2395 = vpop.f32.mrf.mxu0
      %v2396 = vadd.f32 0.0, %v2395
      %v2397 = vpop.f32.mrf.mxu0
      %v2398 = vadd.f32 0.0, %v2397
      %2399 = vmatmul.bf16.gmra.mxu0 %v2371
      %v2400 = vpop.f32.mrf.mxu0
      %v2401 = vadd.f32 0.0, %v2400
      %v2402 = vpop.f32.mrf.mxu0
      %v2403 = vadd.f32 0.0, %v2402
      %2404 = vdwg.mxu0
      %v2405 = vadd.f32 %v2340, %v2386
      %v2406 = vadd.f32 %v2341, %v2388
      %v2407 = vadd.f32 %v2342, %v2391
      %v2408 = vadd.f32 %v2343, %v2393
      %v2409 = vadd.f32 %v2344, %v2396
      %v2410 = vadd.f32 %v2345, %v2398
      %v2411 = vadd.f32 %v2346, %v2401
      %v2412 = vadd.f32 %v2347, %v2403
      %v2413 = vld [vmem:[%s718 + $0x2] sm:$0xff]
      %v2414 = vld [vmem:[%s718 + $0x12] sm:$0xff]
      %v2415 = vld [vmem:[%s718 + $0x22] sm:$0xff]
      %v2416 = vld [vmem:[%s718 + $0x32] sm:$0xff]
      %v2417 = vld [vmem:[%s718 + $0x42] sm:$0xff]
      %v2418 = vld [vmem:[%s718 + $0x52] sm:$0xff]
      %v2419 = vld [vmem:[%s718 + $0x62] sm:$0xff]
      %v2420 = vld [vmem:[%s718 + $0x72] sm:$0xff]
      %v2421 = vpack.c.bf16 %v2414, %v2413
      %v2422 = vpack.c.bf16 %v2416, %v2415
      %v2423 = vpack.c.bf16 %v2418, %v2417
      %v2424 = vpack.c.bf16 %v2420, %v2419
      %v2426 = vrot.slane %v2360, 2
      %v2428 = vsel %vm2092, %v2421, 0
      %v2431 = vsel %vm2092, %v2422, 0
      %v2434 = vsel %vm2092, %v2423, 0
      %v2437 = vsel %vm2092, %v2424, 0
      %v2440 = vsel %vm2140, %v2426, 0
      %2442 = vmatpush.bf16.msra.mxu0 0
      %2443 = vmatpush.bf16.msra.mxu0 0
      %2444 = vmatpush.bf16.msra.mxu0 0
      %2445 = vmatpush.bf16.msra.mxu0 0
      %2446 = vmatpush.bf16.msra.mxu0 0
      %2447 = vmatpush.bf16.msra.mxu0 0
      %2448 = vmatpush.bf16.msra.mxu0 0
      %2449 = vmatpush.bf16.msra.mxu0 %v2440
      %2450 = vmatmul.bf16.gmra.mxu0 %v2428
      %v2451 = vpop.f32.mrf.mxu0
      %v2452 = vadd.f32 0.0, %v2451
      %v2453 = vpop.f32.mrf.mxu0
      %v2454 = vadd.f32 0.0, %v2453
      %2455 = vmatmul.bf16.gmra.mxu0 %v2431
      %v2456 = vpop.f32.mrf.mxu0
      %v2457 = vadd.f32 0.0, %v2456
      %v2458 = vpop.f32.mrf.mxu0
      %v2459 = vadd.f32 0.0, %v2458
      %2460 = vmatmul.bf16.gmra.mxu0 %v2434
      %v2461 = vpop.f32.mrf.mxu0
      %v2462 = vadd.f32 0.0, %v2461
      %v2463 = vpop.f32.mrf.mxu0
      %v2464 = vadd.f32 0.0, %v2463
      %2465 = vmatmul.bf16.gmra.mxu0 %v2437
      %v2466 = vpop.f32.mrf.mxu0
      %v2467 = vadd.f32 0.0, %v2466
      %v2468 = vpop.f32.mrf.mxu0
      %v2469 = vadd.f32 0.0, %v2468
      %2470 = vdwg.mxu0
      %v2471 = vadd.f32 %v2405, %v2452
      %v2472 = vadd.f32 %v2406, %v2454
      %v2473 = vadd.f32 %v2407, %v2457
      %v2474 = vadd.f32 %v2408, %v2459
      %v2475 = vadd.f32 %v2409, %v2462
      %v2476 = vadd.f32 %v2410, %v2464
      %v2477 = vadd.f32 %v2411, %v2467
      %v2478 = vadd.f32 %v2412, %v2469
      %v2479 = vld [vmem:[%s1083] sm:$0xff]
      %v2480 = vld [vmem:[%s1083 + $0x10] sm:$0xff]
      %v2481 = vld [vmem:[%s1083 + $0x20] sm:$0xff]
      %v2482 = vld [vmem:[%s1083 + $0x30] sm:$0xff]
      %v2483 = vld [vmem:[%s1083 + $0x40] sm:$0xff]
      %v2484 = vld [vmem:[%s1083 + $0x50] sm:$0xff]
      %v2485 = vld [vmem:[%s1083 + $0x60] sm:$0xff]
      %v2486 = vld [vmem:[%s1083 + $0x70] sm:$0xff]
      %v2487 = vpack.c.bf16 %v2480, %v2479
      %v2488 = vpack.c.bf16 %v2482, %v2481
      %v2489 = vpack.c.bf16 %v2484, %v2483
      %v2490 = vpack.c.bf16 %v2486, %v2485
      %v2491 = vpack.c.bf16 %v2089, %v2089
      %v2493 = vsel %vm2092, %v2487, 0
      %v2496 = vsel %vm2092, %v2488, 0
      %v2499 = vsel %vm2092, %v2489, 0
      %v2502 = vsel %vm2092, %v2490, 0
      %v2505 = vsel %vm2140, %v2491, 0
      %2507 = vmatpush.bf16.msra.mxu0 0
      %2508 = vmatpush.bf16.msra.mxu0 0
      %2509 = vmatpush.bf16.msra.mxu0 0
      %2510 = vmatpush.bf16.msra.mxu0 0
      %2511 = vmatpush.bf16.msra.mxu0 0
      %2512 = vmatpush.bf16.msra.mxu0 0
      %2513 = vmatpush.bf16.msra.mxu0 0
      %2514 = vmatpush.bf16.msra.mxu0 %v2505
      %2515 = vmatmul.bf16.gmra.mxu0 %v2493
      %v2516 = vpop.f32.mrf.mxu0
      %v2517 = vadd.f32 0.0, %v2516
      %v2518 = vpop.f32.mrf.mxu0
      %v2519 = vadd.f32 0.0, %v2518
      %2520 = vmatmul.bf16.gmra.mxu0 %v2496
      %v2521 = vpop.f32.mrf.mxu0
      %v2522 = vadd.f32 0.0, %v2521
      %v2523 = vpop.f32.mrf.mxu0
      %v2524 = vadd.f32 0.0, %v2523
      %2525 = vmatmul.bf16.gmra.mxu0 %v2499
      %v2526 = vpop.f32.mrf.mxu0
      %v2527 = vadd.f32 0.0, %v2526
      %v2528 = vpop.f32.mrf.mxu0
      %v2529 = vadd.f32 0.0, %v2528
      %2530 = vmatmul.bf16.gmra.mxu0 %v2502
      %v2531 = vpop.f32.mrf.mxu0
      %v2532 = vadd.f32 0.0, %v2531
      %v2533 = vpop.f32.mrf.mxu0
      %v2534 = vadd.f32 0.0, %v2533
      %2535 = vdwg.mxu0
      %v2536 = vadd.f32 %v2471, %v2517
      %v2537 = vadd.f32 %v2472, %v2519
      %v2538 = vadd.f32 %v2473, %v2522
      %v2539 = vadd.f32 %v2474, %v2524
      %v2540 = vadd.f32 %v2475, %v2527
      %v2541 = vadd.f32 %v2476, %v2529
      %v2542 = vadd.f32 %v2477, %v2532
      %v2543 = vadd.f32 %v2478, %v2534
      %v2544 = vld [vmem:[%s1083 + $0x1] sm:$0xff]
      %v2545 = vld [vmem:[%s1083 + $0x11] sm:$0xff]
      %v2546 = vld [vmem:[%s1083 + $0x21] sm:$0xff]
      %v2547 = vld [vmem:[%s1083 + $0x31] sm:$0xff]
      %v2548 = vld [vmem:[%s1083 + $0x41] sm:$0xff]
      %v2549 = vld [vmem:[%s1083 + $0x51] sm:$0xff]
      %v2550 = vld [vmem:[%s1083 + $0x61] sm:$0xff]
      %v2551 = vld [vmem:[%s1083 + $0x71] sm:$0xff]
      %v2552 = vpack.c.bf16 %v2545, %v2544
      %v2553 = vpack.c.bf16 %v2547, %v2546
      %v2554 = vpack.c.bf16 %v2549, %v2548
      %v2555 = vpack.c.bf16 %v2551, %v2550
      %v2557 = vrot.slane %v2491, 2
      %v2559 = vsel %vm2092, %v2552, 0
      %v2562 = vsel %vm2092, %v2553, 0
      %v2565 = vsel %vm2092, %v2554, 0
      %v2568 = vsel %vm2092, %v2555, 0
      %v2571 = vsel %vm2140, %v2557, 0
      %2573 = vmatpush.bf16.msra.mxu0 0
      %2574 = vmatpush.bf16.msra.mxu0 0
      %2575 = vmatpush.bf16.msra.mxu0 0
      %2576 = vmatpush.bf16.msra.mxu0 0
      %2577 = vmatpush.bf16.msra.mxu0 0
      %2578 = vmatpush.bf16.msra.mxu0 0
      %2579 = vmatpush.bf16.msra.mxu0 0
      %2580 = vmatpush.bf16.msra.mxu0 %v2571
      %2581 = vmatmul.bf16.gmra.mxu0 %v2559
      %v2582 = vpop.f32.mrf.mxu0
      %v2583 = vadd.f32 0.0, %v2582
      %v2584 = vpop.f32.mrf.mxu0
      %v2585 = vadd.f32 0.0, %v2584
      %2586 = vmatmul.bf16.gmra.mxu0 %v2562
      %v2587 = vpop.f32.mrf.mxu0
      %v2588 = vadd.f32 0.0, %v2587
      %v2589 = vpop.f32.mrf.mxu0
      %v2590 = vadd.f32 0.0, %v2589
      %2591 = vmatmul.bf16.gmra.mxu0 %v2565
      %v2592 = vpop.f32.mrf.mxu0
      %v2593 = vadd.f32 0.0, %v2592
      %v2594 = vpop.f32.mrf.mxu0
      %v2595 = vadd.f32 0.0, %v2594
      %2596 = vmatmul.bf16.gmra.mxu0 %v2568
      %v2597 = vpop.f32.mrf.mxu0
      %v2598 = vadd.f32 0.0, %v2597
      %v2599 = vpop.f32.mrf.mxu0
      %v2600 = vadd.f32 0.0, %v2599
      %2601 = vdwg.mxu0
      %v2602 = vadd.f32 %v2536, %v2583
      %v2603 = vadd.f32 %v2537, %v2585
      %v2604 = vadd.f32 %v2538, %v2588
      %v2605 = vadd.f32 %v2539, %v2590
      %v2606 = vadd.f32 %v2540, %v2593
      %v2607 = vadd.f32 %v2541, %v2595
      %v2608 = vadd.f32 %v2542, %v2598
      %v2609 = vadd.f32 %v2543, %v2600
      %v2610 = vld [vmem:[%s1083 + $0x2] sm:$0xff]
      %v2611 = vld [vmem:[%s1083 + $0x12] sm:$0xff]
      %v2612 = vld [vmem:[%s1083 + $0x22] sm:$0xff]
      %v2613 = vld [vmem:[%s1083 + $0x32] sm:$0xff]
      %v2614 = vld [vmem:[%s1083 + $0x42] sm:$0xff]
      %v2615 = vld [vmem:[%s1083 + $0x52] sm:$0xff]
      %v2616 = vld [vmem:[%s1083 + $0x62] sm:$0xff]
      %v2617 = vld [vmem:[%s1083 + $0x72] sm:$0xff]
      %v2618 = vpack.c.bf16 %v2611, %v2610
      %v2619 = vpack.c.bf16 %v2613, %v2612
      %v2620 = vpack.c.bf16 %v2615, %v2614
      %v2621 = vpack.c.bf16 %v2617, %v2616
      %v2622 = vpack.c.bf16 %v2090, %v2090
      %v2624 = vsel %vm2092, %v2618, 0
      %v2627 = vsel %vm2092, %v2619, 0
      %v2630 = vsel %vm2092, %v2620, 0
      %v2633 = vsel %vm2092, %v2621, 0
      %v2636 = vsel %vm2140, %v2622, 0
      %2638 = vmatpush.bf16.msra.mxu0 0
      %2639 = vmatpush.bf16.msra.mxu0 0
      %2640 = vmatpush.bf16.msra.mxu0 0
      %2641 = vmatpush.bf16.msra.mxu0 0
      %2642 = vmatpush.bf16.msra.mxu0 0
      %2643 = vmatpush.bf16.msra.mxu0 0
      %2644 = vmatpush.bf16.msra.mxu0 0
      %2645 = vmatpush.bf16.msra.mxu0 %v2636
      %2646 = vmatmul.bf16.gmra.mxu0 %v2624
      %v2647 = vpop.f32.mrf.mxu0
      %v2648 = vadd.f32 0.0, %v2647
      %v2649 = vpop.f32.mrf.mxu0
      %v2650 = vadd.f32 0.0, %v2649
      %2651 = vmatmul.bf16.gmra.mxu0 %v2627
      %v2652 = vpop.f32.mrf.mxu0
      %v2653 = vadd.f32 0.0, %v2652
      %v2654 = vpop.f32.mrf.mxu0
      %v2655 = vadd.f32 0.0, %v2654
      %2656 = vmatmul.bf16.gmra.mxu0 %v2630
      %v2657 = vpop.f32.mrf.mxu0
      %v2658 = vadd.f32 0.0, %v2657
      %v2659 = vpop.f32.mrf.mxu0
      %v2660 = vadd.f32 0.0, %v2659
      %2661 = vmatmul.bf16.gmra.mxu0 %v2633
      %v2662 = vpop.f32.mrf.mxu0
      %v2663 = vadd.f32 0.0, %v2662
      %v2664 = vpop.f32.mrf.mxu0
      %v2665 = vadd.f32 0.0, %v2664
      %2666 = vdwg.mxu0
      %v2667 = vadd.f32 %v2602, %v2648
      %v2668 = vadd.f32 %v2603, %v2650
      %v2669 = vadd.f32 %v2604, %v2653
      %v2670 = vadd.f32 %v2605, %v2655
      %v2671 = vadd.f32 %v2606, %v2658
      %v2672 = vadd.f32 %v2607, %v2660
      %v2673 = vadd.f32 %v2608, %v2663
      %v2674 = vadd.f32 %v2609, %v2665
      %v2675 = vperm.slane %v2091, 0
      %v2676 = vadd.f32 %v2667, %v2675
      %v2677 = vadd.f32 %v2668, %v2675
      %v2678 = vadd.f32 %v2669, %v2675
      %v2679 = vadd.f32 %v2670, %v2675
      %v2680 = vadd.f32 %v2671, %v2675
      %v2681 = vadd.f32 %v2672, %v2675
      %v2682 = vadd.f32 %v2673, %v2675
      %v2683 = vadd.f32 %v2674, %v2675
      %v2684 = vadd.f32 %v2676, %v2078
      %v2685 = vadd.f32 %v2677, %v2079
      %v2686 = vadd.f32 %v2678, %v2080
      %v2687 = vadd.f32 %v2679, %v2081
      %v2688 = vadd.f32 %v2680, %v2082
      %v2689 = vadd.f32 %v2681, %v2083
      %v2690 = vadd.f32 %v2682, %v2084
      %v2691 = vadd.f32 %v2683, %v2085
      %v2692 = vperm.slane %v1525, 0
      %v2693 = vadd.f32 %v2684, %v2692
      %v2694 = vadd.f32 %v2685, %v2692
      %v2695 = vadd.f32 %v2686, %v2692
      %v2696 = vadd.f32 %v2687, %v2692
      %v2697 = vadd.f32 %v2688, %v2692
      %v2698 = vadd.f32 %v2689, %v2692
      %v2699 = vadd.f32 %v2690, %v2692
      %v2700 = vadd.f32 %v2691, %v2692
      %v2701 = vxor.u32 %v2693, 2147483648
      %v2702 = vxor.u32 %v2694, 2147483648
      %v2703 = vxor.u32 %v2695, 2147483648
      %v2704 = vxor.u32 %v2696, 2147483648
      %v2705 = vxor.u32 %v2697, 2147483648
      %v2706 = vxor.u32 %v2698, 2147483648
      %v2707 = vxor.u32 %v2699, 2147483648
      %v2708 = vxor.u32 %v2700, 2147483648
      %v2709 = vmul.f32 %v2701, 1.442695
      %v2710 = vpow.pop %v2709
      %v2711 = vmul.f32 %v2702, 1.442695
      %v2712 = vpow.pop %v2711
      %v2713 = vmul.f32 %v2703, 1.442695
      %v2714 = vpow.pop %v2713
      %v2715 = vmul.f32 %v2704, 1.442695
      %v2716 = vpow.pop %v2715
      %v2717 = vmul.f32 %v2705, 1.442695
      %v2718 = vpow.pop %v2717
      %v2719 = vmul.f32 %v2706, 1.442695
      %v2720 = vpow.pop %v2719
      %v2721 = vmul.f32 %v2707, 1.442695
      %v2722 = vpow.pop %v2721
      %v2723 = vmul.f32 %v2708, 1.442695
      %v2724 = vpow.pop %v2723
      %v2725 = vadd.f32 %v2710, 1.0
      %v2726 = vadd.f32 %v2712, 1.0
      %v2727 = vadd.f32 %v2714, 1.0
      %v2728 = vadd.f32 %v2716, 1.0
      %v2729 = vadd.f32 %v2718, 1.0
      %v2730 = vadd.f32 %v2720, 1.0
      %v2731 = vadd.f32 %v2722, 1.0
      %v2732 = vadd.f32 %v2724, 1.0
      %v2733 = vrcp.pop %v2725
      %v2734 = vmul.f32 %v2725, %v2733
      %v2735 = vsub.f32 1.0, %v2734
      %v2736 = vmul.f32 %v2733, %v2735
      %v2737 = vadd.f32 %v2733, %v2736
      %vm2738 = vweird.f32 %v2725
      %vm2739 = vweird.f32 %v2733
      %vm2740 = vmor %vm2738, %vm2739
      %v2741 = vsel %vm2740, %v2733, %v2737
      %v2742 = vand.u32 2147483647, %v2725
      %vm2743 = vcmp.eq.f32.partialorder %v2742, 8.507059e+37
      %v2744 = vand.u32 %v2725, 2147483648
      %v2745 = vor.u32 1.1754944e-38, %v2744
      %v2746 = vsel %vm2743, %v2745, %v2741
      %v2747 = vmul.f32 1.0, %v2746
      %v2748 = vrcp.pop %v2726
      %v2749 = vmul.f32 %v2726, %v2748
      %v2750 = vsub.f32 1.0, %v2749
      %v2751 = vmul.f32 %v2748, %v2750
      %v2752 = vadd.f32 %v2748, %v2751
      %vm2753 = vweird.f32 %v2726
      %vm2754 = vweird.f32 %v2748
      %vm2755 = vmor %vm2753, %vm2754
      %v2756 = vsel %vm2755, %v2748, %v2752
      %v2757 = vand.u32 2147483647, %v2726
      %vm2758 = vcmp.eq.f32.partialorder %v2757, 8.507059e+37
      %v2759 = vand.u32 %v2726, 2147483648
      %v2760 = vor.u32 1.1754944e-38, %v2759
      %v2761 = vsel %vm2758, %v2760, %v2756
      %v2762 = vmul.f32 1.0, %v2761
      %v2763 = vrcp.pop %v2727
      %v2764 = vmul.f32 %v2727, %v2763
      %v2765 = vsub.f32 1.0, %v2764
      %v2766 = vmul.f32 %v2763, %v2765
      %v2767 = vadd.f32 %v2763, %v2766
      %vm2768 = vweird.f32 %v2727
      %vm2769 = vweird.f32 %v2763
      %vm2770 = vmor %vm2768, %vm2769
      %v2771 = vsel %vm2770, %v2763, %v2767
      %v2772 = vand.u32 2147483647, %v2727
      %vm2773 = vcmp.eq.f32.partialorder %v2772, 8.507059e+37
      %v2774 = vand.u32 %v2727, 2147483648
      %v2775 = vor.u32 1.1754944e-38, %v2774
      %v2776 = vsel %vm2773, %v2775, %v2771
      %v2777 = vmul.f32 1.0, %v2776
      %v2778 = vrcp.pop %v2728
      %v2779 = vmul.f32 %v2728, %v2778
      %v2780 = vsub.f32 1.0, %v2779
      %v2781 = vmul.f32 %v2778, %v2780
      %v2782 = vadd.f32 %v2778, %v2781
      %vm2783 = vweird.f32 %v2728
      %vm2784 = vweird.f32 %v2778
      %vm2785 = vmor %vm2783, %vm2784
      %v2786 = vsel %vm2785, %v2778, %v2782
      %v2787 = vand.u32 2147483647, %v2728
      %vm2788 = vcmp.eq.f32.partialorder %v2787, 8.507059e+37
      %v2789 = vand.u32 %v2728, 2147483648
      %v2790 = vor.u32 1.1754944e-38, %v2789
      %v2791 = vsel %vm2788, %v2790, %v2786
      %v2792 = vmul.f32 1.0, %v2791
      %v2793 = vrcp.pop %v2729
      %v2794 = vmul.f32 %v2729, %v2793
      %v2795 = vsub.f32 1.0, %v2794
      %v2796 = vmul.f32 %v2793, %v2795
      %v2797 = vadd.f32 %v2793, %v2796
      %vm2798 = vweird.f32 %v2729
      %vm2799 = vweird.f32 %v2793
      %vm2800 = vmor %vm2798, %vm2799
      %v2801 = vsel %vm2800, %v2793, %v2797
      %v2802 = vand.u32 2147483647, %v2729
      %vm2803 = vcmp.eq.f32.partialorder %v2802, 8.507059e+37
      %v2804 = vand.u32 %v2729, 2147483648
      %v2805 = vor.u32 1.1754944e-38, %v2804
      %v2806 = vsel %vm2803, %v2805, %v2801
      %v2807 = vmul.f32 1.0, %v2806
      %v2808 = vrcp.pop %v2730
      %v2809 = vmul.f32 %v2730, %v2808
      %v2810 = vsub.f32 1.0, %v2809
      %v2811 = vmul.f32 %v2808, %v2810
      %v2812 = vadd.f32 %v2808, %v2811
      %vm2813 = vweird.f32 %v2730
      %vm2814 = vweird.f32 %v2808
      %vm2815 = vmor %vm2813, %vm2814
      %v2816 = vsel %vm2815, %v2808, %v2812
      %v2817 = vand.u32 2147483647, %v2730
      %vm2818 = vcmp.eq.f32.partialorder %v2817, 8.507059e+37
      %v2819 = vand.u32 %v2730, 2147483648
      %v2820 = vor.u32 1.1754944e-38, %v2819
      %v2821 = vsel %vm2818, %v2820, %v2816
      %v2822 = vmul.f32 1.0, %v2821
      %v2823 = vrcp.pop %v2731
      %v2824 = vmul.f32 %v2731, %v2823
      %v2825 = vsub.f32 1.0, %v2824
      %v2826 = vmul.f32 %v2823, %v2825
      %v2827 = vadd.f32 %v2823, %v2826
      %vm2828 = vweird.f32 %v2731
      %vm2829 = vweird.f32 %v2823
      %vm2830 = vmor %vm2828, %vm2829
      %v2831 = vsel %vm2830, %v2823, %v2827
      %v2832 = vand.u32 2147483647, %v2731
      %vm2833 = vcmp.eq.f32.partialorder %v2832, 8.507059e+37
      %v2834 = vand.u32 %v2731, 2147483648
      %v2835 = vor.u32 1.1754944e-38, %v2834
      %v2836 = vsel %vm2833, %v2835, %v2831
      %v2837 = vmul.f32 1.0, %v2836
      %v2838 = vrcp.pop %v2732
      %v2839 = vmul.f32 %v2732, %v2838
      %v2840 = vsub.f32 1.0, %v2839
      %v2841 = vmul.f32 %v2838, %v2840
      %v2842 = vadd.f32 %v2838, %v2841
      %vm2843 = vweird.f32 %v2732
      %vm2844 = vweird.f32 %v2838
      %vm2845 = vmor %vm2843, %vm2844
      %v2846 = vsel %vm2845, %v2838, %v2842
      %v2847 = vand.u32 2147483647, %v2732
      %vm2848 = vcmp.eq.f32.partialorder %v2847, 8.507059e+37
      %v2849 = vand.u32 %v2732, 2147483648
      %v2850 = vor.u32 1.1754944e-38, %v2849
      %v2851 = vsel %vm2848, %v2850, %v2846
      %v2852 = vmul.f32 1.0, %v2851
      %v2853 = vmul.f32 %v2693, %v2747
      %v2854 = vmul.f32 %v2694, %v2762
      %v2855 = vmul.f32 %v2695, %v2777
      %v2856 = vmul.f32 %v2696, %v2792
      %v2857 = vmul.f32 %v2697, %v2807
      %v2858 = vmul.f32 %v2698, %v2822
      %v2859 = vmul.f32 %v2699, %v2837
      %v2860 = vmul.f32 %v2700, %v2852
      %v2861 = vld [vmem:[%s7 + $0xf8] sm:$0xff]
      %v2862 = vld [vmem:[%s7 + $0x100] sm:$0xff]
      %v2863 = vld [vmem:[%s7 + $0x108] sm:$0xff]
      %v2864 = vld [vmem:[%s7 + $0x110] sm:$0xff]
      %v2865 = vld [vmem:[%s7 + $0x118] sm:$0xf]
      %v2866 = vld [vmem:[%s8 + $0x4] sm:$0x1]
      %2867 = vst.msk [vmem:[%s718 + $0x1] sm:$0xff] %vm2092, %v2853
      %2868 = vst.msk [vmem:[%s718 + $0x11] sm:$0xff] %vm2092, %v2854
      %2869 = vst.msk [vmem:[%s718 + $0x21] sm:$0xff] %vm2092, %v2855
      %2870 = vst.msk [vmem:[%s718 + $0x31] sm:$0xff] %vm2092, %v2856
      %2871 = vst.msk [vmem:[%s718 + $0x41] sm:$0xff] %vm2092, %v2857
      %2872 = vst.msk [vmem:[%s718 + $0x51] sm:$0xff] %vm2092, %v2858
      %2873 = vst.msk [vmem:[%s718 + $0x61] sm:$0xff] %vm2092, %v2859
      %2874 = vst.msk [vmem:[%s718 + $0x71] sm:$0xff] %vm2092, %v2860
      %v2875 = vld [vmem:[#allocation2] sm:$0xff]
      %v2876 = vld [vmem:[#allocation2 + $0x10] sm:$0xff]
      %v2877 = vld [vmem:[#allocation2 + $0x20] sm:$0xff]
      %v2878 = vld [vmem:[#allocation2 + $0x30] sm:$0xff]
      %v2879 = vld [vmem:[#allocation2 + $0x40] sm:$0xff]
      %v2880 = vld [vmem:[#allocation2 + $0x50] sm:$0xff]
      %v2881 = vld [vmem:[#allocation2 + $0x60] sm:$0xff]
      %v2882 = vld [vmem:[#allocation2 + $0x70] sm:$0xff]
      %v2883 = vpack.c.bf16 %v2876, %v2875
      %v2884 = vpack.c.bf16 %v2878, %v2877
      %v2885 = vpack.c.bf16 %v2880, %v2879
      %v2886 = vpack.c.bf16 %v2882, %v2881
      %v2887 = vpack.c.bf16 %v2861, %v2861
      %v2888 = vld [vmem:[#allocation2 + $0x1] sm:$0xff]
      %v2889 = vld [vmem:[#allocation2 + $0x11] sm:$0xff]
      %v2890 = vld [vmem:[#allocation2 + $0x21] sm:$0xff]
      %v2891 = vld [vmem:[#allocation2 + $0x31] sm:$0xff]
      %v2892 = vld [vmem:[#allocation2 + $0x41] sm:$0xff]
      %v2893 = vld [vmem:[#allocation2 + $0x51] sm:$0xff]
      %v2894 = vld [vmem:[#allocation2 + $0x61] sm:$0xff]
      %v2895 = vld [vmem:[#allocation2 + $0x71] sm:$0xff]
      %v2896 = vpack.c.bf16 %v2889, %v2888
      %v2897 = vpack.c.bf16 %v2891, %v2890
      %v2898 = vpack.c.bf16 %v2893, %v2892
      %v2899 = vpack.c.bf16 %v2895, %v2894
      %v2901 = vrot.slane %v2887, 2
      %v2903 = vsel %vm2092, %v2896, 0
      %v2906 = vsel %vm2092, %v2897, 0
      %v2909 = vsel %vm2092, %v2898, 0
      %v2912 = vsel %vm2092, %v2899, 0
      %v2915 = vsel %vm2140, %v2901, 0
      %2917 = vmatpush.bf16.msra.mxu0 0
      %2918 = vmatpush.bf16.msra.mxu0 0
      %2919 = vmatpush.bf16.msra.mxu0 0
      %2920 = vmatpush.bf16.msra.mxu0 0
      %2921 = vmatpush.bf16.msra.mxu0 0
      %2922 = vmatpush.bf16.msra.mxu0 0
      %2923 = vmatpush.bf16.msra.mxu0 0
      %2924 = vmatpush.bf16.msra.mxu0 %v2915
      %2925 = vmatmul.bf16.gmra.mxu0 %v2903
      %v2926 = vpop.f32.mrf.mxu0
      %v2927 = vadd.f32 0.0, %v2926
      %v2928 = vpop.f32.mrf.mxu0
      %v2929 = vadd.f32 0.0, %v2928
      %2930 = vmatmul.bf16.gmra.mxu0 %v2906
      %v2931 = vpop.f32.mrf.mxu0
      %v2932 = vadd.f32 0.0, %v2931
      %v2933 = vpop.f32.mrf.mxu0
      %v2934 = vadd.f32 0.0, %v2933
      %2935 = vmatmul.bf16.gmra.mxu0 %v2909
      %v2936 = vpop.f32.mrf.mxu0
      %v2937 = vadd.f32 0.0, %v2936
      %v2938 = vpop.f32.mrf.mxu0
      %v2939 = vadd.f32 0.0, %v2938
      %2940 = vmatmul.bf16.gmra.mxu0 %v2912
      %v2941 = vpop.f32.mrf.mxu0
      %v2942 = vadd.f32 0.0, %v2941
      %v2943 = vpop.f32.mrf.mxu0
      %v2944 = vadd.f32 0.0, %v2943
      %2945 = vdwg.mxu0
      %v2947 = vsel %vm2092, %v2883, 0
      %v2950 = vsel %vm2092, %v2884, 0
      %v2953 = vsel %vm2092, %v2885, 0
      %v2956 = vsel %vm2092, %v2886, 0
      %v2959 = vsel %vm2140, %v2887, 0
      %2961 = vmatpush.bf16.msra.mxu0 0
      %2962 = vmatpush.bf16.msra.mxu0 0
      %2963 = vmatpush.bf16.msra.mxu0 0
      %2964 = vmatpush.bf16.msra.mxu0 0
      %2965 = vmatpush.bf16.msra.mxu0 0
      %2966 = vmatpush.bf16.msra.mxu0 0
      %2967 = vmatpush.bf16.msra.mxu0 0
      %2968 = vmatpush.bf16.msra.mxu0 %v2959
      %2969 = vmatmul.bf16.gmra.mxu0 %v2947
      %v2970 = vpop.f32.mrf.mxu0
      %v2971 = vadd.f32 %v2927, %v2970
      %v2972 = vpop.f32.mrf.mxu0
      %v2973 = vadd.f32 %v2929, %v2972
      %2974 = vmatmul.bf16.gmra.mxu0 %v2950
      %v2975 = vpop.f32.mrf.mxu0
      %v2976 = vadd.f32 %v2932, %v2975
      %v2977 = vpop.f32.mrf.mxu0
      %v2978 = vadd.f32 %v2934, %v2977
      %2979 = vmatmul.bf16.gmra.mxu0 %v2953
      %v2980 = vpop.f32.mrf.mxu0
      %v2981 = vadd.f32 %v2937, %v2980
      %v2982 = vpop.f32.mrf.mxu0
      %v2983 = vadd.f32 %v2939, %v2982
      %2984 = vmatmul.bf16.gmra.mxu0 %v2956
      %v2985 = vpop.f32.mrf.mxu0
      %v2986 = vadd.f32 %v2942, %v2985
      %v2987 = vpop.f32.mrf.mxu0
      %v2988 = vadd.f32 %v2944, %v2987
      %2989 = vdwg.mxu0
      %v2990 = vld [vmem:[#allocation2 + $0x2] sm:$0xff]
      %v2991 = vld [vmem:[#allocation2 + $0x12] sm:$0xff]
      %v2992 = vld [vmem:[#allocation2 + $0x22] sm:$0xff]
      %v2993 = vld [vmem:[#allocation2 + $0x32] sm:$0xff]
      %v2994 = vld [vmem:[#allocation2 + $0x42] sm:$0xff]
      %v2995 = vld [vmem:[#allocation2 + $0x52] sm:$0xff]
      %v2996 = vld [vmem:[#allocation2 + $0x62] sm:$0xff]
      %v2997 = vld [vmem:[#allocation2 + $0x72] sm:$0xff]
      %v2998 = vpack.c.bf16 %v2991, %v2990
      %v2999 = vpack.c.bf16 %v2993, %v2992
      %v3000 = vpack.c.bf16 %v2995, %v2994
      %v3001 = vpack.c.bf16 %v2997, %v2996
      %v3002 = vpack.c.bf16 %v2862, %v2862
      %v3004 = vsel %vm2092, %v2998, 0
      %v3007 = vsel %vm2092, %v2999, 0
      %v3010 = vsel %vm2092, %v3000, 0
      %v3013 = vsel %vm2092, %v3001, 0
      %v3016 = vsel %vm2140, %v3002, 0
      %3018 = vmatpush.bf16.msra.mxu0 0
      %3019 = vmatpush.bf16.msra.mxu0 0
      %3020 = vmatpush.bf16.msra.mxu0 0
      %3021 = vmatpush.bf16.msra.mxu0 0
      %3022 = vmatpush.bf16.msra.mxu0 0
      %3023 = vmatpush.bf16.msra.mxu0 0
      %3024 = vmatpush.bf16.msra.mxu0 0
      %3025 = vmatpush.bf16.msra.mxu0 %v3016
      %3026 = vmatmul.bf16.gmra.mxu0 %v3004
      %v3027 = vpop.f32.mrf.mxu0
      %v3028 = vadd.f32 0.0, %v3027
      %v3029 = vpop.f32.mrf.mxu0
      %v3030 = vadd.f32 0.0, %v3029
      %3031 = vmatmul.bf16.gmra.mxu0 %v3007
      %v3032 = vpop.f32.mrf.mxu0
      %v3033 = vadd.f32 0.0, %v3032
      %v3034 = vpop.f32.mrf.mxu0
      %v3035 = vadd.f32 0.0, %v3034
      %3036 = vmatmul.bf16.gmra.mxu0 %v3010
      %v3037 = vpop.f32.mrf.mxu0
      %v3038 = vadd.f32 0.0, %v3037
      %v3039 = vpop.f32.mrf.mxu0
      %v3040 = vadd.f32 0.0, %v3039
      %3041 = vmatmul.bf16.gmra.mxu0 %v3013
      %v3042 = vpop.f32.mrf.mxu0
      %v3043 = vadd.f32 0.0, %v3042
      %v3044 = vpop.f32.mrf.mxu0
      %v3045 = vadd.f32 0.0, %v3044
      %3046 = vdwg.mxu0
      %v3047 = vadd.f32 %v2971, %v3028
      %v3048 = vadd.f32 %v2973, %v3030
      %v3049 = vadd.f32 %v2976, %v3033
      %v3050 = vadd.f32 %v2978, %v3035
      %v3051 = vadd.f32 %v2981, %v3038
      %v3052 = vadd.f32 %v2983, %v3040
      %v3053 = vadd.f32 %v2986, %v3043
      %v3054 = vadd.f32 %v2988, %v3045
      %v3055 = vld [vmem:[%s718] sm:$0xff]
      %v3056 = vld [vmem:[%s718 + $0x10] sm:$0xff]
      %v3057 = vld [vmem:[%s718 + $0x20] sm:$0xff]
      %v3058 = vld [vmem:[%s718 + $0x30] sm:$0xff]
      %v3059 = vld [vmem:[%s718 + $0x40] sm:$0xff]
      %v3060 = vld [vmem:[%s718 + $0x50] sm:$0xff]
      %v3061 = vld [vmem:[%s718 + $0x60] sm:$0xff]
      %v3062 = vld [vmem:[%s718 + $0x70] sm:$0xff]
      %v3063 = vpack.c.bf16 %v3056, %v3055
      %v3064 = vpack.c.bf16 %v3058, %v3057
      %v3065 = vpack.c.bf16 %v3060, %v3059
      %v3066 = vpack.c.bf16 %v3062, %v3061
      %v3068 = vrot.slane %v3002, 2
      %v3070 = vsel %vm2092, %v3063, 0
      %v3073 = vsel %vm2092, %v3064, 0
      %v3076 = vsel %vm2092, %v3065, 0
      %v3079 = vsel %vm2092, %v3066, 0
      %v3082 = vsel %vm2140, %v3068, 0
      %3084 = vmatpush.bf16.msra.mxu0 0
      %3085 = vmatpush.bf16.msra.mxu0 0
      %3086 = vmatpush.bf16.msra.mxu0 0
      %3087 = vmatpush.bf16.msra.mxu0 0
      %3088 = vmatpush.bf16.msra.mxu0 0
      %3089 = vmatpush.bf16.msra.mxu0 0
      %3090 = vmatpush.bf16.msra.mxu0 0
      %3091 = vmatpush.bf16.msra.mxu0 %v3082
      %3092 = vmatmul.bf16.gmra.mxu0 %v3070
      %v3093 = vpop.f32.mrf.mxu0
      %v3094 = vadd.f32 0.0, %v3093
      %v3095 = vpop.f32.mrf.mxu0
      %v3096 = vadd.f32 0.0, %v3095
      %3097 = vmatmul.bf16.gmra.mxu0 %v3073
      %v3098 = vpop.f32.mrf.mxu0
      %v3099 = vadd.f32 0.0, %v3098
      %v3100 = vpop.f32.mrf.mxu0
      %v3101 = vadd.f32 0.0, %v3100
      %3102 = vmatmul.bf16.gmra.mxu0 %v3076
      %v3103 = vpop.f32.mrf.mxu0
      %v3104 = vadd.f32 0.0, %v3103
      %v3105 = vpop.f32.mrf.mxu0
      %v3106 = vadd.f32 0.0, %v3105
      %3107 = vmatmul.bf16.gmra.mxu0 %v3079
      %v3108 = vpop.f32.mrf.mxu0
      %v3109 = vadd.f32 0.0, %v3108
      %v3110 = vpop.f32.mrf.mxu0
      %v3111 = vadd.f32 0.0, %v3110
      %3112 = vdwg.mxu0
      %v3113 = vadd.f32 %v3047, %v3094
      %v3114 = vadd.f32 %v3048, %v3096
      %v3115 = vadd.f32 %v3049, %v3099
      %v3116 = vadd.f32 %v3050, %v3101
      %v3117 = vadd.f32 %v3051, %v3104
      %v3118 = vadd.f32 %v3052, %v3106
      %v3119 = vadd.f32 %v3053, %v3109
      %v3120 = vadd.f32 %v3054, %v3111
      %v3121 = vld [vmem:[%s718 + $0x1] sm:$0xff]
      %v3122 = vld [vmem:[%s718 + $0x11] sm:$0xff]
      %v3123 = vld [vmem:[%s718 + $0x21] sm:$0xff]
      %v3124 = vld [vmem:[%s718 + $0x31] sm:$0xff]
      %v3125 = vld [vmem:[%s718 + $0x41] sm:$0xff]
      %v3126 = vld [vmem:[%s718 + $0x51] sm:$0xff]
      %v3127 = vld [vmem:[%s718 + $0x61] sm:$0xff]
      %v3128 = vld [vmem:[%s718 + $0x71] sm:$0xff]
      %v3129 = vpack.c.bf16 %v3122, %v3121
      %v3130 = vpack.c.bf16 %v3124, %v3123
      %v3131 = vpack.c.bf16 %v3126, %v3125
      %v3132 = vpack.c.bf16 %v3128, %v3127
      %v3133 = vpack.c.bf16 %v2863, %v2863
      %v3135 = vsel %vm2092, %v3129, 0
      %v3138 = vsel %vm2092, %v3130, 0
      %v3141 = vsel %vm2092, %v3131, 0
      %v3144 = vsel %vm2092, %v3132, 0
      %v3147 = vsel %vm2140, %v3133, 0
      %3149 = vmatpush.bf16.msra.mxu0 0
      %3150 = vmatpush.bf16.msra.mxu0 0
      %3151 = vmatpush.bf16.msra.mxu0 0
      %3152 = vmatpush.bf16.msra.mxu0 0
      %3153 = vmatpush.bf16.msra.mxu0 0
      %3154 = vmatpush.bf16.msra.mxu0 0
      %3155 = vmatpush.bf16.msra.mxu0 0
      %3156 = vmatpush.bf16.msra.mxu0 %v3147
      %3157 = vmatmul.bf16.gmra.mxu0 %v3135
      %v3158 = vpop.f32.mrf.mxu0
      %v3159 = vadd.f32 0.0, %v3158
      %v3160 = vpop.f32.mrf.mxu0
      %v3161 = vadd.f32 0.0, %v3160
      %3162 = vmatmul.bf16.gmra.mxu0 %v3138
      %v3163 = vpop.f32.mrf.mxu0
      %v3164 = vadd.f32 0.0, %v3163
      %v3165 = vpop.f32.mrf.mxu0
      %v3166 = vadd.f32 0.0, %v3165
      %3167 = vmatmul.bf16.gmra.mxu0 %v3141
      %v3168 = vpop.f32.mrf.mxu0
      %v3169 = vadd.f32 0.0, %v3168
      %v3170 = vpop.f32.mrf.mxu0
      %v3171 = vadd.f32 0.0, %v3170
      %3172 = vmatmul.bf16.gmra.mxu0 %v3144
      %v3173 = vpop.f32.mrf.mxu0
      %v3174 = vadd.f32 0.0, %v3173
      %v3175 = vpop.f32.mrf.mxu0
      %v3176 = vadd.f32 0.0, %v3175
      %3177 = vdwg.mxu0
      %v3178 = vadd.f32 %v3113, %v3159
      %v3179 = vadd.f32 %v3114, %v3161
      %v3180 = vadd.f32 %v3115, %v3164
      %v3181 = vadd.f32 %v3116, %v3166
      %v3182 = vadd.f32 %v3117, %v3169
      %v3183 = vadd.f32 %v3118, %v3171
      %v3184 = vadd.f32 %v3119, %v3174
      %v3185 = vadd.f32 %v3120, %v3176
      %v3186 = vld [vmem:[%s718 + $0x2] sm:$0xff]
      %v3187 = vld [vmem:[%s718 + $0x12] sm:$0xff]
      %v3188 = vld [vmem:[%s718 + $0x22] sm:$0xff]
      %v3189 = vld [vmem:[%s718 + $0x32] sm:$0xff]
      %v3190 = vld [vmem:[%s718 + $0x42] sm:$0xff]
      %v3191 = vld [vmem:[%s718 + $0x52] sm:$0xff]
      %v3192 = vld [vmem:[%s718 + $0x62] sm:$0xff]
      %v3193 = vld [vmem:[%s718 + $0x72] sm:$0xff]
      %v3194 = vpack.c.bf16 %v3187, %v3186
      %v3195 = vpack.c.bf16 %v3189, %v3188
      %v3196 = vpack.c.bf16 %v3191, %v3190
      %v3197 = vpack.c.bf16 %v3193, %v3192
      %v3199 = vrot.slane %v3133, 2
      %v3201 = vsel %vm2092, %v3194, 0
      %v3204 = vsel %vm2092, %v3195, 0
      %v3207 = vsel %vm2092, %v3196, 0
      %v3210 = vsel %vm2092, %v3197, 0
      %v3213 = vsel %vm2140, %v3199, 0
      %3215 = vmatpush.bf16.msra.mxu0 0
      %3216 = vmatpush.bf16.msra.mxu0 0
      %3217 = vmatpush.bf16.msra.mxu0 0
      %3218 = vmatpush.bf16.msra.mxu0 0
      %3219 = vmatpush.bf16.msra.mxu0 0
      %3220 = vmatpush.bf16.msra.mxu0 0
      %3221 = vmatpush.bf16.msra.mxu0 0
      %3222 = vmatpush.bf16.msra.mxu0 %v3213
      %3223 = vmatmul.bf16.gmra.mxu0 %v3201
      %v3224 = vpop.f32.mrf.mxu0
      %v3225 = vadd.f32 0.0, %v3224
      %v3226 = vpop.f32.mrf.mxu0
      %v3227 = vadd.f32 0.0, %v3226
      %3228 = vmatmul.bf16.gmra.mxu0 %v3204
      %v3229 = vpop.f32.mrf.mxu0
      %v3230 = vadd.f32 0.0, %v3229
      %v3231 = vpop.f32.mrf.mxu0
      %v3232 = vadd.f32 0.0, %v3231
      %3233 = vmatmul.bf16.gmra.mxu0 %v3207
      %v3234 = vpop.f32.mrf.mxu0
      %v3235 = vadd.f32 0.0, %v3234
      %v3236 = vpop.f32.mrf.mxu0
      %v3237 = vadd.f32 0.0, %v3236
      %3238 = vmatmul.bf16.gmra.mxu0 %v3210
      %v3239 = vpop.f32.mrf.mxu0
      %v3240 = vadd.f32 0.0, %v3239
      %v3241 = vpop.f32.mrf.mxu0
      %v3242 = vadd.f32 0.0, %v3241
      %3243 = vdwg.mxu0
      %v3244 = vadd.f32 %v3178, %v3225
      %v3245 = vadd.f32 %v3179, %v3227
      %v3246 = vadd.f32 %v3180, %v3230
      %v3247 = vadd.f32 %v3181, %v3232
      %v3248 = vadd.f32 %v3182, %v3235
      %v3249 = vadd.f32 %v3183, %v3237
      %v3250 = vadd.f32 %v3184, %v3240
      %v3251 = vadd.f32 %v3185, %v3242
      %v3252 = vld [vmem:[%s1083] sm:$0xff]
      %v3253 = vld [vmem:[%s1083 + $0x10] sm:$0xff]
      %v3254 = vld [vmem:[%s1083 + $0x20] sm:$0xff]
      %v3255 = vld [vmem:[%s1083 + $0x30] sm:$0xff]
      %v3256 = vld [vmem:[%s1083 + $0x40] sm:$0xff]
      %v3257 = vld [vmem:[%s1083 + $0x50] sm:$0xff]
      %v3258 = vld [vmem:[%s1083 + $0x60] sm:$0xff]
      %v3259 = vld [vmem:[%s1083 + $0x70] sm:$0xff]
      %v3260 = vpack.c.bf16 %v3253, %v3252
      %v3261 = vpack.c.bf16 %v3255, %v3254
      %v3262 = vpack.c.bf16 %v3257, %v3256
      %v3263 = vpack.c.bf16 %v3259, %v3258
      %v3264 = vpack.c.bf16 %v2864, %v2864
      %v3266 = vsel %vm2092, %v3260, 0
      %v3269 = vsel %vm2092, %v3261, 0
      %v3272 = vsel %vm2092, %v3262, 0
      %v3275 = vsel %vm2092, %v3263, 0
      %v3278 = vsel %vm2140, %v3264, 0
      %3280 = vmatpush.bf16.msra.mxu0 0
      %3281 = vmatpush.bf16.msra.mxu0 0
      %3282 = vmatpush.bf16.msra.mxu0 0
      %3283 = vmatpush.bf16.msra.mxu0 0
      %3284 = vmatpush.bf16.msra.mxu0 0
      %3285 = vmatpush.bf16.msra.mxu0 0
      %3286 = vmatpush.bf16.msra.mxu0 0
      %3287 = vmatpush.bf16.msra.mxu0 %v3278
      %3288 = vmatmul.bf16.gmra.mxu0 %v3266
      %v3289 = vpop.f32.mrf.mxu0
      %v3290 = vadd.f32 0.0, %v3289
      %v3291 = vpop.f32.mrf.mxu0
      %v3292 = vadd.f32 0.0, %v3291
      %3293 = vmatmul.bf16.gmra.mxu0 %v3269
      %v3294 = vpop.f32.mrf.mxu0
      %v3295 = vadd.f32 0.0, %v3294
      %v3296 = vpop.f32.mrf.mxu0
      %v3297 = vadd.f32 0.0, %v3296
      %3298 = vmatmul.bf16.gmra.mxu0 %v3272
      %v3299 = vpop.f32.mrf.mxu0
      %v3300 = vadd.f32 0.0, %v3299
      %v3301 = vpop.f32.mrf.mxu0
      %v3302 = vadd.f32 0.0, %v3301
      %3303 = vmatmul.bf16.gmra.mxu0 %v3275
      %v3304 = vpop.f32.mrf.mxu0
      %v3305 = vadd.f32 0.0, %v3304
      %v3306 = vpop.f32.mrf.mxu0
      %v3307 = vadd.f32 0.0, %v3306
      %3308 = vdwg.mxu0
      %v3309 = vadd.f32 %v3244, %v3290
      %v3310 = vadd.f32 %v3245, %v3292
      %v3311 = vadd.f32 %v3246, %v3295
      %v3312 = vadd.f32 %v3247, %v3297
      %v3313 = vadd.f32 %v3248, %v3300
      %v3314 = vadd.f32 %v3249, %v3302
      %v3315 = vadd.f32 %v3250, %v3305
      %v3316 = vadd.f32 %v3251, %v3307
      %v3317 = vld [vmem:[%s1083 + $0x1] sm:$0xff]
      %v3318 = vld [vmem:[%s1083 + $0x11] sm:$0xff]
      %v3319 = vld [vmem:[%s1083 + $0x21] sm:$0xff]
      %v3320 = vld [vmem:[%s1083 + $0x31] sm:$0xff]
      %v3321 = vld [vmem:[%s1083 + $0x41] sm:$0xff]
      %v3322 = vld [vmem:[%s1083 + $0x51] sm:$0xff]
      %v3323 = vld [vmem:[%s1083 + $0x61] sm:$0xff]
      %v3324 = vld [vmem:[%s1083 + $0x71] sm:$0xff]
      %v3325 = vpack.c.bf16 %v3318, %v3317
      %v3326 = vpack.c.bf16 %v3320, %v3319
      %v3327 = vpack.c.bf16 %v3322, %v3321
      %v3328 = vpack.c.bf16 %v3324, %v3323
      %v3330 = vrot.slane %v3264, 2
      %v3332 = vsel %vm2092, %v3325, 0
      %v3335 = vsel %vm2092, %v3326, 0
      %v3338 = vsel %vm2092, %v3327, 0
      %v3341 = vsel %vm2092, %v3328, 0
      %v3344 = vsel %vm2140, %v3330, 0
      %3346 = vmatpush.bf16.msra.mxu0 0
      %3347 = vmatpush.bf16.msra.mxu0 0
      %3348 = vmatpush.bf16.msra.mxu0 0
      %3349 = vmatpush.bf16.msra.mxu0 0
      %3350 = vmatpush.bf16.msra.mxu0 0
      %3351 = vmatpush.bf16.msra.mxu0 0
      %3352 = vmatpush.bf16.msra.mxu0 0
      %3353 = vmatpush.bf16.msra.mxu0 %v3344
      %3354 = vmatmul.bf16.gmra.mxu0 %v3332
      %v3355 = vpop.f32.mrf.mxu0
      %v3356 = vadd.f32 0.0, %v3355
      %v3357 = vpop.f32.mrf.mxu0
      %v3358 = vadd.f32 0.0, %v3357
      %3359 = vmatmul.bf16.gmra.mxu0 %v3335
      %v3360 = vpop.f32.mrf.mxu0
      %v3361 = vadd.f32 0.0, %v3360
      %v3362 = vpop.f32.mrf.mxu0
      %v3363 = vadd.f32 0.0, %v3362
      %3364 = vmatmul.bf16.gmra.mxu0 %v3338
      %v3365 = vpop.f32.mrf.mxu0
      %v3366 = vadd.f32 0.0, %v3365
      %v3367 = vpop.f32.mrf.mxu0
      %v3368 = vadd.f32 0.0, %v3367
      %3369 = vmatmul.bf16.gmra.mxu0 %v3341
      %v3370 = vpop.f32.mrf.mxu0
      %v3371 = vadd.f32 0.0, %v3370
      %v3372 = vpop.f32.mrf.mxu0
      %v3373 = vadd.f32 0.0, %v3372
      %3374 = vdwg.mxu0
      %v3375 = vadd.f32 %v3309, %v3356
      %v3376 = vadd.f32 %v3310, %v3358
      %v3377 = vadd.f32 %v3311, %v3361
      %v3378 = vadd.f32 %v3312, %v3363
      %v3379 = vadd.f32 %v3313, %v3366
      %v3380 = vadd.f32 %v3314, %v3368
      %v3381 = vadd.f32 %v3315, %v3371
      %v3382 = vadd.f32 %v3316, %v3373
      %v3383 = vld [vmem:[%s1083 + $0x2] sm:$0xff]
      %v3384 = vld [vmem:[%s1083 + $0x12] sm:$0xff]
      %v3385 = vld [vmem:[%s1083 + $0x22] sm:$0xff]
      %v3386 = vld [vmem:[%s1083 + $0x32] sm:$0xff]
      %v3387 = vld [vmem:[%s1083 + $0x42] sm:$0xff]
      %v3388 = vld [vmem:[%s1083 + $0x52] sm:$0xff]
      %v3389 = vld [vmem:[%s1083 + $0x62] sm:$0xff]
      %v3390 = vld [vmem:[%s1083 + $0x72] sm:$0xff]
      %v3391 = vpack.c.bf16 %v3384, %v3383
      %v3392 = vpack.c.bf16 %v3386, %v3385
      %v3393 = vpack.c.bf16 %v3388, %v3387
      %v3394 = vpack.c.bf16 %v3390, %v3389
      %v3395 = vpack.c.bf16 %v2865, %v2865
      %v3397 = vsel %vm2092, %v3391, 0
      %v3400 = vsel %vm2092, %v3392, 0
      %v3403 = vsel %vm2092, %v3393, 0
      %v3406 = vsel %vm2092, %v3394, 0
      %v3409 = vsel %vm2140, %v3395, 0
      %3411 = vmatpush.bf16.msra.mxu0 0
      %3412 = vmatpush.bf16.msra.mxu0 0
      %3413 = vmatpush.bf16.msra.mxu0 0
      %3414 = vmatpush.bf16.msra.mxu0 0
      %3415 = vmatpush.bf16.msra.mxu0 0
      %3416 = vmatpush.bf16.msra.mxu0 0
      %3417 = vmatpush.bf16.msra.mxu0 0
      %3418 = vmatpush.bf16.msra.mxu0 %v3409
      %3419 = vmatmul.bf16.gmra.mxu0 %v3397
      %v3420 = vpop.f32.mrf.mxu0
      %v3421 = vadd.f32 0.0, %v3420
      %v3422 = vpop.f32.mrf.mxu0
      %v3423 = vadd.f32 0.0, %v3422
      %3424 = vmatmul.bf16.gmra.mxu0 %v3400
      %v3425 = vpop.f32.mrf.mxu0
      %v3426 = vadd.f32 0.0, %v3425
      %v3427 = vpop.f32.mrf.mxu0
      %v3428 = vadd.f32 0.0, %v3427
      %3429 = vmatmul.bf16.gmra.mxu0 %v3403
      %v3430 = vpop.f32.mrf.mxu0
      %v3431 = vadd.f32 0.0, %v3430
      %v3432 = vpop.f32.mrf.mxu0
      %v3433 = vadd.f32 0.0, %v3432
      %3434 = vmatmul.bf16.gmra.mxu0 %v3406
      %v3435 = vpop.f32.mrf.mxu0
      %v3436 = vadd.f32 0.0, %v3435
      %v3437 = vpop.f32.mrf.mxu0
      %v3438 = vadd.f32 0.0, %v3437
      %3439 = vdwg.mxu0
      %v3440 = vadd.f32 %v3375, %v3421
      %v3441 = vadd.f32 %v3376, %v3423
      %v3442 = vadd.f32 %v3377, %v3426
      %v3443 = vadd.f32 %v3378, %v3428
      %v3444 = vadd.f32 %v3379, %v3431
      %v3445 = vadd.f32 %v3380, %v3433
      %v3446 = vadd.f32 %v3381, %v3436
      %v3447 = vadd.f32 %v3382, %v3438
      %v3448 = vperm.slane %v2866, 0
      %v3449 = vadd.f32 %v3440, %v3448
      %v3450 = vadd.f32 %v3441, %v3448
      %v3451 = vadd.f32 %v3442, %v3448
      %v3452 = vadd.f32 %v3443, %v3448
      %v3453 = vadd.f32 %v3444, %v3448
      %v3454 = vadd.f32 %v3445, %v3448
      %v3455 = vadd.f32 %v3446, %v3448
      %v3456 = vadd.f32 %v3447, %v3448
      %v3457 = vxor.u32 %v3449, 2147483648
      %v3458 = vxor.u32 %v3450, 2147483648
      %v3459 = vxor.u32 %v3451, 2147483648
      %v3460 = vxor.u32 %v3452, 2147483648
      %v3461 = vxor.u32 %v3453, 2147483648
      %v3462 = vxor.u32 %v3454, 2147483648
      %v3463 = vxor.u32 %v3455, 2147483648
      %v3464 = vxor.u32 %v3456, 2147483648
      %v3465 = vmul.f32 %v3457, 1.442695
      %v3466 = vpow.pop %v3465
      %v3467 = vmul.f32 %v3458, 1.442695
      %v3468 = vpow.pop %v3467
      %v3469 = vmul.f32 %v3459, 1.442695
      %v3470 = vpow.pop %v3469
      %v3471 = vmul.f32 %v3460, 1.442695
      %v3472 = vpow.pop %v3471
      %v3473 = vmul.f32 %v3461, 1.442695
      %v3474 = vpow.pop %v3473
      %v3475 = vmul.f32 %v3462, 1.442695
      %v3476 = vpow.pop %v3475
      %v3477 = vmul.f32 %v3463, 1.442695
      %v3478 = vpow.pop %v3477
      %v3479 = vmul.f32 %v3464, 1.442695
      %v3480 = vpow.pop %v3479
      %v3481 = vadd.f32 %v3466, 1.0
      %v3482 = vadd.f32 %v3468, 1.0
      %v3483 = vadd.f32 %v3470, 1.0
      %v3484 = vadd.f32 %v3472, 1.0
      %v3485 = vadd.f32 %v3474, 1.0
      %v3486 = vadd.f32 %v3476, 1.0
      %v3487 = vadd.f32 %v3478, 1.0
      %v3488 = vadd.f32 %v3480, 1.0
      %v3489 = vrcp.pop %v3481
      %v3490 = vmul.f32 %v3481, %v3489
      %v3491 = vsub.f32 1.0, %v3490
      %v3492 = vmul.f32 %v3489, %v3491
      %v3493 = vadd.f32 %v3489, %v3492
      %vm3494 = vweird.f32 %v3481
      %vm3495 = vweird.f32 %v3489
      %vm3496 = vmor %vm3494, %vm3495
      %v3497 = vsel %vm3496, %v3489, %v3493
      %v3498 = vand.u32 2147483647, %v3481
      %vm3499 = vcmp.eq.f32.partialorder %v3498, 8.507059e+37
      %v3500 = vand.u32 %v3481, 2147483648
      %v3501 = vor.u32 1.1754944e-38, %v3500
      %v3502 = vsel %vm3499, %v3501, %v3497
      %v3503 = vmul.f32 1.0, %v3502
      %v3504 = vrcp.pop %v3482
      %v3505 = vmul.f32 %v3482, %v3504
      %v3506 = vsub.f32 1.0, %v3505
      %v3507 = vmul.f32 %v3504, %v3506
      %v3508 = vadd.f32 %v3504, %v3507
      %vm3509 = vweird.f32 %v3482
      %vm3510 = vweird.f32 %v3504
      %vm3511 = vmor %vm3509, %vm3510
      %v3512 = vsel %vm3511, %v3504, %v3508
      %v3513 = vand.u32 2147483647, %v3482
      %vm3514 = vcmp.eq.f32.partialorder %v3513, 8.507059e+37
      %v3515 = vand.u32 %v3482, 2147483648
      %v3516 = vor.u32 1.1754944e-38, %v3515
      %v3517 = vsel %vm3514, %v3516, %v3512
      %v3518 = vmul.f32 1.0, %v3517
      %v3519 = vrcp.pop %v3483
      %v3520 = vmul.f32 %v3483, %v3519
      %v3521 = vsub.f32 1.0, %v3520
      %v3522 = vmul.f32 %v3519, %v3521
      %v3523 = vadd.f32 %v3519, %v3522
      %vm3524 = vweird.f32 %v3483
      %vm3525 = vweird.f32 %v3519
      %vm3526 = vmor %vm3524, %vm3525
      %v3527 = vsel %vm3526, %v3519, %v3523
      %v3528 = vand.u32 2147483647, %v3483
      %vm3529 = vcmp.eq.f32.partialorder %v3528, 8.507059e+37
      %v3530 = vand.u32 %v3483, 2147483648
      %v3531 = vor.u32 1.1754944e-38, %v3530
      %v3532 = vsel %vm3529, %v3531, %v3527
      %v3533 = vmul.f32 1.0, %v3532
      %v3534 = vrcp.pop %v3484
      %v3535 = vmul.f32 %v3484, %v3534
      %v3536 = vsub.f32 1.0, %v3535
      %v3537 = vmul.f32 %v3534, %v3536
      %v3538 = vadd.f32 %v3534, %v3537
      %vm3539 = vweird.f32 %v3484
      %vm3540 = vweird.f32 %v3534
      %vm3541 = vmor %vm3539, %vm3540
      %v3542 = vsel %vm3541, %v3534, %v3538
      %v3543 = vand.u32 2147483647, %v3484
      %vm3544 = vcmp.eq.f32.partialorder %v3543, 8.507059e+37
      %v3545 = vand.u32 %v3484, 2147483648
      %v3546 = vor.u32 1.1754944e-38, %v3545
      %v3547 = vsel %vm3544, %v3546, %v3542
      %v3548 = vmul.f32 1.0, %v3547
      %v3549 = vrcp.pop %v3485
      %v3550 = vmul.f32 %v3485, %v3549
      %v3551 = vsub.f32 1.0, %v3550
      %v3552 = vmul.f32 %v3549, %v3551
      %v3553 = vadd.f32 %v3549, %v3552
      %vm3554 = vweird.f32 %v3485
      %vm3555 = vweird.f32 %v3549
      %vm3556 = vmor %vm3554, %vm3555
      %v3557 = vsel %vm3556, %v3549, %v3553
      %v3558 = vand.u32 2147483647, %v3485
      %vm3559 = vcmp.eq.f32.partialorder %v3558, 8.507059e+37
      %v3560 = vand.u32 %v3485, 2147483648
      %v3561 = vor.u32 1.1754944e-38, %v3560
      %v3562 = vsel %vm3559, %v3561, %v3557
      %v3563 = vmul.f32 1.0, %v3562
      %v3564 = vrcp.pop %v3486
      %v3565 = vmul.f32 %v3486, %v3564
      %v3566 = vsub.f32 1.0, %v3565
      %v3567 = vmul.f32 %v3564, %v3566
      %v3568 = vadd.f32 %v3564, %v3567
      %vm3569 = vweird.f32 %v3486
      %vm3570 = vweird.f32 %v3564
      %vm3571 = vmor %vm3569, %vm3570
      %v3572 = vsel %vm3571, %v3564, %v3568
      %v3573 = vand.u32 2147483647, %v3486
      %vm3574 = vcmp.eq.f32.partialorder %v3573, 8.507059e+37
      %v3575 = vand.u32 %v3486, 2147483648
      %v3576 = vor.u32 1.1754944e-38, %v3575
      %v3577 = vsel %vm3574, %v3576, %v3572
      %v3578 = vmul.f32 1.0, %v3577
      %v3579 = vrcp.pop %v3487
      %v3580 = vmul.f32 %v3487, %v3579
      %v3581 = vsub.f32 1.0, %v3580
      %v3582 = vmul.f32 %v3579, %v3581
      %v3583 = vadd.f32 %v3579, %v3582
      %vm3584 = vweird.f32 %v3487
      %vm3585 = vweird.f32 %v3579
      %vm3586 = vmor %vm3584, %vm3585
      %v3587 = vsel %vm3586, %v3579, %v3583
      %v3588 = vand.u32 2147483647, %v3487
      %vm3589 = vcmp.eq.f32.partialorder %v3588, 8.507059e+37
      %v3590 = vand.u32 %v3487, 2147483648
      %v3591 = vor.u32 1.1754944e-38, %v3590
      %v3592 = vsel %vm3589, %v3591, %v3587
      %v3593 = vmul.f32 1.0, %v3592
      %v3594 = vrcp.pop %v3488
      %v3595 = vmul.f32 %v3488, %v3594
      %v3596 = vsub.f32 1.0, %v3595
      %v3597 = vmul.f32 %v3594, %v3596
      %v3598 = vadd.f32 %v3594, %v3597
      %vm3599 = vweird.f32 %v3488
      %vm3600 = vweird.f32 %v3594
      %vm3601 = vmor %vm3599, %vm3600
      %v3602 = vsel %vm3601, %v3594, %v3598
      %v3603 = vand.u32 2147483647, %v3488
      %vm3604 = vcmp.eq.f32.partialorder %v3603, 8.507059e+37
      %v3605 = vand.u32 %v3488, 2147483648
      %v3606 = vor.u32 1.1754944e-38, %v3605
      %v3607 = vsel %vm3604, %v3606, %v3602
      %v3608 = vmul.f32 1.0, %v3607
      %v3609 = vmul.f32 %v3449, %v3503
      %v3610 = vmul.f32 %v3450, %v3518
      %v3611 = vmul.f32 %v3451, %v3533
      %v3612 = vmul.f32 %v3452, %v3548
      %v3613 = vmul.f32 %v3453, %v3563
      %v3614 = vmul.f32 %v3454, %v3578
      %v3615 = vmul.f32 %v3455, %v3593
      %v3616 = vmul.f32 %v3456, %v3608
      %v3617 = vld [vmem:[%s7 + $0x120] sm:$0xff]
      %v3618 = vld [vmem:[%s7 + $0x128] sm:$0xff]
      %v3619 = vld [vmem:[%s7 + $0x130] sm:$0xff]
      %v3620 = vld [vmem:[%s7 + $0x138] sm:$0xff]
      %v3621 = vld [vmem:[%s7 + $0x140] sm:$0xf]
      %v3622 = vld [vmem:[%s8 + $0x5] sm:$0x1]
      %3623 = vst.msk [vmem:[%s718 + $0x1] sm:$0xff] %vm2092, %v3609
      %3624 = vst.msk [vmem:[%s718 + $0x11] sm:$0xff] %vm2092, %v3610
      %3625 = vst.msk [vmem:[%s718 + $0x21] sm:$0xff] %vm2092, %v3611
      %3626 = vst.msk [vmem:[%s718 + $0x31] sm:$0xff] %vm2092, %v3612
      %3627 = vst.msk [vmem:[%s718 + $0x41] sm:$0xff] %vm2092, %v3613
      %3628 = vst.msk [vmem:[%s718 + $0x51] sm:$0xff] %vm2092, %v3614
      %3629 = vst.msk [vmem:[%s718 + $0x61] sm:$0xff] %vm2092, %v3615
      %3630 = vst.msk [vmem:[%s718 + $0x71] sm:$0xff] %vm2092, %v3616
      %v3631 = vld [vmem:[#allocation2] sm:$0xff]
      %v3632 = vld [vmem:[#allocation2 + $0x10] sm:$0xff]
      %v3633 = vld [vmem:[#allocation2 + $0x20] sm:$0xff]
      %v3634 = vld [vmem:[#allocation2 + $0x30] sm:$0xff]
      %v3635 = vld [vmem:[#allocation2 + $0x40] sm:$0xff]
      %v3636 = vld [vmem:[#allocation2 + $0x50] sm:$0xff]
      %v3637 = vld [vmem:[#allocation2 + $0x60] sm:$0xff]
      %v3638 = vld [vmem:[#allocation2 + $0x70] sm:$0xff]
      %v3639 = vpack.c.bf16 %v3632, %v3631
      %v3640 = vpack.c.bf16 %v3634, %v3633
      %v3641 = vpack.c.bf16 %v3636, %v3635
      %v3642 = vpack.c.bf16 %v3638, %v3637
      %v3643 = vpack.c.bf16 %v3617, %v3617
      %v3644 = vld [vmem:[#allocation2 + $0x1] sm:$0xff]
      %v3645 = vld [vmem:[#allocation2 + $0x11] sm:$0xff]
      %v3646 = vld [vmem:[#allocation2 + $0x21] sm:$0xff]
      %v3647 = vld [vmem:[#allocation2 + $0x31] sm:$0xff]
      %v3648 = vld [vmem:[#allocation2 + $0x41] sm:$0xff]
      %v3649 = vld [vmem:[#allocation2 + $0x51] sm:$0xff]
      %v3650 = vld [vmem:[#allocation2 + $0x61] sm:$0xff]
      %v3651 = vld [vmem:[#allocation2 + $0x71] sm:$0xff]
      %v3652 = vpack.c.bf16 %v3645, %v3644
      %v3653 = vpack.c.bf16 %v3647, %v3646
      %v3654 = vpack.c.bf16 %v3649, %v3648
      %v3655 = vpack.c.bf16 %v3651, %v3650
      %v3657 = vrot.slane %v3643, 2
      %v3659 = vsel %vm2092, %v3652, 0
      %v3662 = vsel %vm2092, %v3653, 0
      %v3665 = vsel %vm2092, %v3654, 0
      %v3668 = vsel %vm2092, %v3655, 0
      %v3671 = vsel %vm2140, %v3657, 0
      %3673 = vmatpush.bf16.msra.mxu0 0
      %3674 = vmatpush.bf16.msra.mxu0 0
      %3675 = vmatpush.bf16.msra.mxu0 0
      %3676 = vmatpush.bf16.msra.mxu0 0
      %3677 = vmatpush.bf16.msra.mxu0 0
      %3678 = vmatpush.bf16.msra.mxu0 0
      %3679 = vmatpush.bf16.msra.mxu0 0
      %3680 = vmatpush.bf16.msra.mxu0 %v3671
      %3681 = vmatmul.bf16.gmra.mxu0 %v3659
      %v3682 = vpop.f32.mrf.mxu0
      %v3683 = vadd.f32 0.0, %v3682
      %v3684 = vpop.f32.mrf.mxu0
      %v3685 = vadd.f32 0.0, %v3684
      %3686 = vmatmul.bf16.gmra.mxu0 %v3662
      %v3687 = vpop.f32.mrf.mxu0
      %v3688 = vadd.f32 0.0, %v3687
      %v3689 = vpop.f32.mrf.mxu0
      %v3690 = vadd.f32 0.0, %v3689
      %3691 = vmatmul.bf16.gmra.mxu0 %v3665
      %v3692 = vpop.f32.mrf.mxu0
      %v3693 = vadd.f32 0.0, %v3692
      %v3694 = vpop.f32.mrf.mxu0
      %v3695 = vadd.f32 0.0, %v3694
      %3696 = vmatmul.bf16.gmra.mxu0 %v3668
      %v3697 = vpop.f32.mrf.mxu0
      %v3698 = vadd.f32 0.0, %v3697
      %v3699 = vpop.f32.mrf.mxu0
      %v3700 = vadd.f32 0.0, %v3699
      %3701 = vdwg.mxu0
      %v3703 = vsel %vm2092, %v3639, 0
      %v3706 = vsel %vm2092, %v3640, 0
      %v3709 = vsel %vm2092, %v3641, 0
      %v3712 = vsel %vm2092, %v3642, 0
      %v3715 = vsel %vm2140, %v3643, 0
      %3717 = vmatpush.bf16.msra.mxu0 0
      %3718 = vmatpush.bf16.msra.mxu0 0
      %3719 = vmatpush.bf16.msra.mxu0 0
      %3720 = vmatpush.bf16.msra.mxu0 0
      %3721 = vmatpush.bf16.msra.mxu0 0
      %3722 = vmatpush.bf16.msra.mxu0 0
      %3723 = vmatpush.bf16.msra.mxu0 0
      %3724 = vmatpush.bf16.msra.mxu0 %v3715
      %3725 = vmatmul.bf16.gmra.mxu0 %v3703
      %v3726 = vpop.f32.mrf.mxu0
      %v3727 = vadd.f32 %v3683, %v3726
      %v3728 = vpop.f32.mrf.mxu0
      %v3729 = vadd.f32 %v3685, %v3728
      %3730 = vmatmul.bf16.gmra.mxu0 %v3706
      %v3731 = vpop.f32.mrf.mxu0
      %v3732 = vadd.f32 %v3688, %v3731
      %v3733 = vpop.f32.mrf.mxu0
      %v3734 = vadd.f32 %v3690, %v3733
      %3735 = vmatmul.bf16.gmra.mxu0 %v3709
      %v3736 = vpop.f32.mrf.mxu0
      %v3737 = vadd.f32 %v3693, %v3736
      %v3738 = vpop.f32.mrf.mxu0
      %v3739 = vadd.f32 %v3695, %v3738
      %3740 = vmatmul.bf16.gmra.mxu0 %v3712
      %v3741 = vpop.f32.mrf.mxu0
      %v3742 = vadd.f32 %v3698, %v3741
      %v3743 = vpop.f32.mrf.mxu0
      %v3744 = vadd.f32 %v3700, %v3743
      %3745 = vdwg.mxu0
      %v3746 = vld [vmem:[#allocation2 + $0x2] sm:$0xff]
      %v3747 = vld [vmem:[#allocation2 + $0x12] sm:$0xff]
      %v3748 = vld [vmem:[#allocation2 + $0x22] sm:$0xff]
      %v3749 = vld [vmem:[#allocation2 + $0x32] sm:$0xff]
      %v3750 = vld [vmem:[#allocation2 + $0x42] sm:$0xff]
      %v3751 = vld [vmem:[#allocation2 + $0x52] sm:$0xff]
      %v3752 = vld [vmem:[#allocation2 + $0x62] sm:$0xff]
      %v3753 = vld [vmem:[#allocation2 + $0x72] sm:$0xff]
      %v3754 = vpack.c.bf16 %v3747, %v3746
      %v3755 = vpack.c.bf16 %v3749, %v3748
      %v3756 = vpack.c.bf16 %v3751, %v3750
      %v3757 = vpack.c.bf16 %v3753, %v3752
      %v3758 = vpack.c.bf16 %v3618, %v3618
      %v3760 = vsel %vm2092, %v3754, 0
      %v3763 = vsel %vm2092, %v3755, 0
      %v3766 = vsel %vm2092, %v3756, 0
      %v3769 = vsel %vm2092, %v3757, 0
      %v3772 = vsel %vm2140, %v3758, 0
      %3774 = vmatpush.bf16.msra.mxu0 0
      %3775 = vmatpush.bf16.msra.mxu0 0
      %3776 = vmatpush.bf16.msra.mxu0 0
      %3777 = vmatpush.bf16.msra.mxu0 0
      %3778 = vmatpush.bf16.msra.mxu0 0
      %3779 = vmatpush.bf16.msra.mxu0 0
      %3780 = vmatpush.bf16.msra.mxu0 0
      %3781 = vmatpush.bf16.msra.mxu0 %v3772
      %3782 = vmatmul.bf16.gmra.mxu0 %v3760
      %v3783 = vpop.f32.mrf.mxu0
      %v3784 = vadd.f32 0.0, %v3783
      %v3785 = vpop.f32.mrf.mxu0
      %v3786 = vadd.f32 0.0, %v3785
      %3787 = vmatmul.bf16.gmra.mxu0 %v3763
      %v3788 = vpop.f32.mrf.mxu0
      %v3789 = vadd.f32 0.0, %v3788
      %v3790 = vpop.f32.mrf.mxu0
      %v3791 = vadd.f32 0.0, %v3790
      %3792 = vmatmul.bf16.gmra.mxu0 %v3766
      %v3793 = vpop.f32.mrf.mxu0
      %v3794 = vadd.f32 0.0, %v3793
      %v3795 = vpop.f32.mrf.mxu0
      %v3796 = vadd.f32 0.0, %v3795
      %3797 = vmatmul.bf16.gmra.mxu0 %v3769
      %v3798 = vpop.f32.mrf.mxu0
      %v3799 = vadd.f32 0.0, %v3798
      %v3800 = vpop.f32.mrf.mxu0
      %v3801 = vadd.f32 0.0, %v3800
      %3802 = vdwg.mxu0
      %v3803 = vadd.f32 %v3727, %v3784
      %v3804 = vadd.f32 %v3729, %v3786
      %v3805 = vadd.f32 %v3732, %v3789
      %v3806 = vadd.f32 %v3734, %v3791
      %v3807 = vadd.f32 %v3737, %v3794
      %v3808 = vadd.f32 %v3739, %v3796
      %v3809 = vadd.f32 %v3742, %v3799
      %v3810 = vadd.f32 %v3744, %v3801
      %v3811 = vld [vmem:[%s718] sm:$0xff]
      %v3812 = vld [vmem:[%s718 + $0x10] sm:$0xff]
      %v3813 = vld [vmem:[%s718 + $0x20] sm:$0xff]
      %v3814 = vld [vmem:[%s718 + $0x30] sm:$0xff]
      %v3815 = vld [vmem:[%s718 + $0x40] sm:$0xff]
      %v3816 = vld [vmem:[%s718 + $0x50] sm:$0xff]
      %v3817 = vld [vmem:[%s718 + $0x60] sm:$0xff]
      %v3818 = vld [vmem:[%s718 + $0x70] sm:$0xff]
      %v3819 = vpack.c.bf16 %v3812, %v3811
      %v3820 = vpack.c.bf16 %v3814, %v3813
      %v3821 = vpack.c.bf16 %v3816, %v3815
      %v3822 = vpack.c.bf16 %v3818, %v3817
      %v3824 = vrot.slane %v3758, 2
      %v3826 = vsel %vm2092, %v3819, 0
      %v3829 = vsel %vm2092, %v3820, 0
      %v3832 = vsel %vm2092, %v3821, 0
      %v3835 = vsel %vm2092, %v3822, 0
      %v3838 = vsel %vm2140, %v3824, 0
      %3840 = vmatpush.bf16.msra.mxu0 0
      %3841 = vmatpush.bf16.msra.mxu0 0
      %3842 = vmatpush.bf16.msra.mxu0 0
      %3843 = vmatpush.bf16.msra.mxu0 0
      %3844 = vmatpush.bf16.msra.mxu0 0
      %3845 = vmatpush.bf16.msra.mxu0 0
      %3846 = vmatpush.bf16.msra.mxu0 0
      %3847 = vmatpush.bf16.msra.mxu0 %v3838
      %3848 = vmatmul.bf16.gmra.mxu0 %v3826
      %v3849 = vpop.f32.mrf.mxu0
      %v3850 = vadd.f32 0.0, %v3849
      %v3851 = vpop.f32.mrf.mxu0
      %v3852 = vadd.f32 0.0, %v3851
      %3853 = vmatmul.bf16.gmra.mxu0 %v3829
      %v3854 = vpop.f32.mrf.mxu0
      %v3855 = vadd.f32 0.0, %v3854
      %v3856 = vpop.f32.mrf.mxu0
      %v3857 = vadd.f32 0.0, %v3856
      %3858 = vmatmul.bf16.gmra.mxu0 %v3832
      %v3859 = vpop.f32.mrf.mxu0
      %v3860 = vadd.f32 0.0, %v3859
      %v3861 = vpop.f32.mrf.mxu0
      %v3862 = vadd.f32 0.0, %v3861
      %3863 = vmatmul.bf16.gmra.mxu0 %v3835
      %v3864 = vpop.f32.mrf.mxu0
      %v3865 = vadd.f32 0.0, %v3864
      %v3866 = vpop.f32.mrf.mxu0
      %v3867 = vadd.f32 0.0, %v3866
      %3868 = vdwg.mxu0
      %v3869 = vadd.f32 %v3803, %v3850
      %v3870 = vadd.f32 %v3804, %v3852
      %v3871 = vadd.f32 %v3805, %v3855
      %v3872 = vadd.f32 %v3806, %v3857
      %v3873 = vadd.f32 %v3807, %v3860
      %v3874 = vadd.f32 %v3808, %v3862
      %v3875 = vadd.f32 %v3809, %v3865
      %v3876 = vadd.f32 %v3810, %v3867
      %v3877 = vld [vmem:[%s718 + $0x1] sm:$0xff]
      %v3878 = vld [vmem:[%s718 + $0x11] sm:$0xff]
      %v3879 = vld [vmem:[%s718 + $0x21] sm:$0xff]
      %v3880 = vld [vmem:[%s718 + $0x31] sm:$0xff]
      %v3881 = vld [vmem:[%s718 + $0x41] sm:$0xff]
      %v3882 = vld [vmem:[%s718 + $0x51] sm:$0xff]
      %v3883 = vld [vmem:[%s718 + $0x61] sm:$0xff]
      %v3884 = vld [vmem:[%s718 + $0x71] sm:$0xff]
      %v3885 = vpack.c.bf16 %v3878, %v3877
      %v3886 = vpack.c.bf16 %v3880, %v3879
      %v3887 = vpack.c.bf16 %v3882, %v3881
      %v3888 = vpack.c.bf16 %v3884, %v3883
      %v3889 = vpack.c.bf16 %v3619, %v3619
      %v3891 = vsel %vm2092, %v3885, 0
      %v3894 = vsel %vm2092, %v3886, 0
      %v3897 = vsel %vm2092, %v3887, 0
      %v3900 = vsel %vm2092, %v3888, 0
      %v3903 = vsel %vm2140, %v3889, 0
      %3905 = vmatpush.bf16.msra.mxu0 0
      %3906 = vmatpush.bf16.msra.mxu0 0
      %3907 = vmatpush.bf16.msra.mxu0 0
      %3908 = vmatpush.bf16.msra.mxu0 0
      %3909 = vmatpush.bf16.msra.mxu0 0
      %3910 = vmatpush.bf16.msra.mxu0 0
      %3911 = vmatpush.bf16.msra.mxu0 0
      %3912 = vmatpush.bf16.msra.mxu0 %v3903
      %3913 = vmatmul.bf16.gmra.mxu0 %v3891
      %v3914 = vpop.f32.mrf.mxu0
      %v3915 = vadd.f32 0.0, %v3914
      %v3916 = vpop.f32.mrf.mxu0
      %v3917 = vadd.f32 0.0, %v3916
      %3918 = vmatmul.bf16.gmra.mxu0 %v3894
      %v3919 = vpop.f32.mrf.mxu0
      %v3920 = vadd.f32 0.0, %v3919
      %v3921 = vpop.f32.mrf.mxu0
      %v3922 = vadd.f32 0.0, %v3921
      %3923 = vmatmul.bf16.gmra.mxu0 %v3897
      %v3924 = vpop.f32.mrf.mxu0
      %v3925 = vadd.f32 0.0, %v3924
      %v3926 = vpop.f32.mrf.mxu0
      %v3927 = vadd.f32 0.0, %v3926
      %3928 = vmatmul.bf16.gmra.mxu0 %v3900
      %v3929 = vpop.f32.mrf.mxu0
      %v3930 = vadd.f32 0.0, %v3929
      %v3931 = vpop.f32.mrf.mxu0
      %v3932 = vadd.f32 0.0, %v3931
      %3933 = vdwg.mxu0
      %v3934 = vadd.f32 %v3869, %v3915
      %v3935 = vadd.f32 %v3870, %v3917
      %v3936 = vadd.f32 %v3871, %v3920
      %v3937 = vadd.f32 %v3872, %v3922
      %v3938 = vadd.f32 %v3873, %v3925
      %v3939 = vadd.f32 %v3874, %v3927
      %v3940 = vadd.f32 %v3875, %v3930
      %v3941 = vadd.f32 %v3876, %v3932
      %v3942 = vld [vmem:[%s718 + $0x2] sm:$0xff]
      %v3943 = vld [vmem:[%s718 + $0x12] sm:$0xff]
      %v3944 = vld [vmem:[%s718 + $0x22] sm:$0xff]
      %v3945 = vld [vmem:[%s718 + $0x32] sm:$0xff]
      %v3946 = vld [vmem:[%s718 + $0x42] sm:$0xff]
      %v3947 = vld [vmem:[%s718 + $0x52] sm:$0xff]
      %v3948 = vld [vmem:[%s718 + $0x62] sm:$0xff]
      %v3949 = vld [vmem:[%s718 + $0x72] sm:$0xff]
      %v3950 = vpack.c.bf16 %v3943, %v3942
      %v3951 = vpack.c.bf16 %v3945, %v3944
      %v3952 = vpack.c.bf16 %v3947, %v3946
      %v3953 = vpack.c.bf16 %v3949, %v3948
      %v3955 = vrot.slane %v3889, 2
      %v3957 = vsel %vm2092, %v3950, 0
      %v3960 = vsel %vm2092, %v3951, 0
      %v3963 = vsel %vm2092, %v3952, 0
      %v3966 = vsel %vm2092, %v3953, 0
      %v3969 = vsel %vm2140, %v3955, 0
      %3971 = vmatpush.bf16.msra.mxu0 0
      %3972 = vmatpush.bf16.msra.mxu0 0
      %3973 = vmatpush.bf16.msra.mxu0 0
      %3974 = vmatpush.bf16.msra.mxu0 0
      %3975 = vmatpush.bf16.msra.mxu0 0
      %3976 = vmatpush.bf16.msra.mxu0 0
      %3977 = vmatpush.bf16.msra.mxu0 0
      %3978 = vmatpush.bf16.msra.mxu0 %v3969
      %3979 = vmatmul.bf16.gmra.mxu0 %v3957
      %v3980 = vpop.f32.mrf.mxu0
      %v3981 = vadd.f32 0.0, %v3980
      %v3982 = vpop.f32.mrf.mxu0
      %v3983 = vadd.f32 0.0, %v3982
      %3984 = vmatmul.bf16.gmra.mxu0 %v3960
      %v3985 = vpop.f32.mrf.mxu0
      %v3986 = vadd.f32 0.0, %v3985
      %v3987 = vpop.f32.mrf.mxu0
      %v3988 = vadd.f32 0.0, %v3987
      %3989 = vmatmul.bf16.gmra.mxu0 %v3963
      %v3990 = vpop.f32.mrf.mxu0
      %v3991 = vadd.f32 0.0, %v3990
      %v3992 = vpop.f32.mrf.mxu0
      %v3993 = vadd.f32 0.0, %v3992
      %3994 = vmatmul.bf16.gmra.mxu0 %v3966
      %v3995 = vpop.f32.mrf.mxu0
      %v3996 = vadd.f32 0.0, %v3995
      %v3997 = vpop.f32.mrf.mxu0
      %v3998 = vadd.f32 0.0, %v3997
      %3999 = vdwg.mxu0
      %v4000 = vadd.f32 %v3934, %v3981
      %v4001 = vadd.f32 %v3935, %v3983
      %v4002 = vadd.f32 %v3936, %v3986
      %v4003 = vadd.f32 %v3937, %v3988
      %v4004 = vadd.f32 %v3938, %v3991
      %v4005 = vadd.f32 %v3939, %v3993
      %v4006 = vadd.f32 %v3940, %v3996
      %v4007 = vadd.f32 %v3941, %v3998
      %v4008 = vld [vmem:[%s1083] sm:$0xff]
      %v4009 = vld [vmem:[%s1083 + $0x10] sm:$0xff]
      %v4010 = vld [vmem:[%s1083 + $0x20] sm:$0xff]
      %v4011 = vld [vmem:[%s1083 + $0x30] sm:$0xff]
      %v4012 = vld [vmem:[%s1083 + $0x40] sm:$0xff]
      %v4013 = vld [vmem:[%s1083 + $0x50] sm:$0xff]
      %v4014 = vld [vmem:[%s1083 + $0x60] sm:$0xff]
      %v4015 = vld [vmem:[%s1083 + $0x70] sm:$0xff]
      %v4016 = vpack.c.bf16 %v4009, %v4008
      %v4017 = vpack.c.bf16 %v4011, %v4010
      %v4018 = vpack.c.bf16 %v4013, %v4012
      %v4019 = vpack.c.bf16 %v4015, %v4014
      %v4020 = vpack.c.bf16 %v3620, %v3620
      %v4022 = vsel %vm2092, %v4016, 0
      %v4025 = vsel %vm2092, %v4017, 0
      %v4028 = vsel %vm2092, %v4018, 0
      %v4031 = vsel %vm2092, %v4019, 0
      %v4034 = vsel %vm2140, %v4020, 0
      %4036 = vmatpush.bf16.msra.mxu0 0
      %4037 = vmatpush.bf16.msra.mxu0 0
      %4038 = vmatpush.bf16.msra.mxu0 0
      %4039 = vmatpush.bf16.msra.mxu0 0
      %4040 = vmatpush.bf16.msra.mxu0 0
      %4041 = vmatpush.bf16.msra.mxu0 0
      %4042 = vmatpush.bf16.msra.mxu0 0
      %4043 = vmatpush.bf16.msra.mxu0 %v4034
      %4044 = vmatmul.bf16.gmra.mxu0 %v4022
      %v4045 = vpop.f32.mrf.mxu0
      %v4046 = vadd.f32 0.0, %v4045
      %v4047 = vpop.f32.mrf.mxu0
      %v4048 = vadd.f32 0.0, %v4047
      %4049 = vmatmul.bf16.gmra.mxu0 %v4025
      %v4050 = vpop.f32.mrf.mxu0
      %v4051 = vadd.f32 0.0, %v4050
      %v4052 = vpop.f32.mrf.mxu0
      %v4053 = vadd.f32 0.0, %v4052
      %4054 = vmatmul.bf16.gmra.mxu0 %v4028
      %v4055 = vpop.f32.mrf.mxu0
      %v4056 = vadd.f32 0.0, %v4055
      %v4057 = vpop.f32.mrf.mxu0
      %v4058 = vadd.f32 0.0, %v4057
      %4059 = vmatmul.bf16.gmra.mxu0 %v4031
      %v4060 = vpop.f32.mrf.mxu0
      %v4061 = vadd.f32 0.0, %v4060
      %v4062 = vpop.f32.mrf.mxu0
      %v4063 = vadd.f32 0.0, %v4062
      %4064 = vdwg.mxu0
      %v4065 = vadd.f32 %v4000, %v4046
      %v4066 = vadd.f32 %v4001, %v4048
      %v4067 = vadd.f32 %v4002, %v4051
      %v4068 = vadd.f32 %v4003, %v4053
      %v4069 = vadd.f32 %v4004, %v4056
      %v4070 = vadd.f32 %v4005, %v4058
      %v4071 = vadd.f32 %v4006, %v4061
      %v4072 = vadd.f32 %v4007, %v4063
      %v4073 = vld [vmem:[%s1083 + $0x1] sm:$0xff]
      %v4074 = vld [vmem:[%s1083 + $0x11] sm:$0xff]
      %v4075 = vld [vmem:[%s1083 + $0x21] sm:$0xff]
      %v4076 = vld [vmem:[%s1083 + $0x31] sm:$0xff]
      %v4077 = vld [vmem:[%s1083 + $0x41] sm:$0xff]
      %v4078 = vld [vmem:[%s1083 + $0x51] sm:$0xff]
      %v4079 = vld [vmem:[%s1083 + $0x61] sm:$0xff]
      %v4080 = vld [vmem:[%s1083 + $0x71] sm:$0xff]
      %v4081 = vpack.c.bf16 %v4074, %v4073
      %v4082 = vpack.c.bf16 %v4076, %v4075
      %v4083 = vpack.c.bf16 %v4078, %v4077
      %v4084 = vpack.c.bf16 %v4080, %v4079
      %v4086 = vrot.slane %v4020, 2
      %v4088 = vsel %vm2092, %v4081, 0
      %v4091 = vsel %vm2092, %v4082, 0
      %v4094 = vsel %vm2092, %v4083, 0
      %v4097 = vsel %vm2092, %v4084, 0
      %v4100 = vsel %vm2140, %v4086, 0
      %4102 = vmatpush.bf16.msra.mxu0 0
      %4103 = vmatpush.bf16.msra.mxu0 0
      %4104 = vmatpush.bf16.msra.mxu0 0
      %4105 = vmatpush.bf16.msra.mxu0 0
      %4106 = vmatpush.bf16.msra.mxu0 0
      %4107 = vmatpush.bf16.msra.mxu0 0
      %4108 = vmatpush.bf16.msra.mxu0 0
      %4109 = vmatpush.bf16.msra.mxu0 %v4100
      %4110 = vmatmul.bf16.gmra.mxu0 %v4088
      %v4111 = vpop.f32.mrf.mxu0
      %v4112 = vadd.f32 0.0, %v4111
      %v4113 = vpop.f32.mrf.mxu0
      %v4114 = vadd.f32 0.0, %v4113
      %4115 = vmatmul.bf16.gmra.mxu0 %v4091
      %v4116 = vpop.f32.mrf.mxu0
      %v4117 = vadd.f32 0.0, %v4116
      %v4118 = vpop.f32.mrf.mxu0
      %v4119 = vadd.f32 0.0, %v4118
      %4120 = vmatmul.bf16.gmra.mxu0 %v4094
      %v4121 = vpop.f32.mrf.mxu0
      %v4122 = vadd.f32 0.0, %v4121
      %v4123 = vpop.f32.mrf.mxu0
      %v4124 = vadd.f32 0.0, %v4123
      %4125 = vmatmul.bf16.gmra.mxu0 %v4097
      %v4126 = vpop.f32.mrf.mxu0
      %v4127 = vadd.f32 0.0, %v4126
      %v4128 = vpop.f32.mrf.mxu0
      %v4129 = vadd.f32 0.0, %v4128
      %4130 = vdwg.mxu0
      %v4131 = vadd.f32 %v4065, %v4112
      %v4132 = vadd.f32 %v4066, %v4114
      %v4133 = vadd.f32 %v4067, %v4117
      %v4134 = vadd.f32 %v4068, %v4119
      %v4135 = vadd.f32 %v4069, %v4122
      %v4136 = vadd.f32 %v4070, %v4124
      %v4137 = vadd.f32 %v4071, %v4127
      %v4138 = vadd.f32 %v4072, %v4129
      %v4139 = vld [vmem:[%s1083 + $0x2] sm:$0xff]
      %v4140 = vld [vmem:[%s1083 + $0x12] sm:$0xff]
      %v4141 = vld [vmem:[%s1083 + $0x22] sm:$0xff]
      %v4142 = vld [vmem:[%s1083 + $0x32] sm:$0xff]
      %v4143 = vld [vmem:[%s1083 + $0x42] sm:$0xff]
      %v4144 = vld [vmem:[%s1083 + $0x52] sm:$0xff]
      %v4145 = vld [vmem:[%s1083 + $0x62] sm:$0xff]
      %v4146 = vld [vmem:[%s1083 + $0x72] sm:$0xff]
      %v4147 = vpack.c.bf16 %v4140, %v4139
      %v4148 = vpack.c.bf16 %v4142, %v4141
      %v4149 = vpack.c.bf16 %v4144, %v4143
      %v4150 = vpack.c.bf16 %v4146, %v4145
      %v4151 = vpack.c.bf16 %v3621, %v3621
      %v4153 = vsel %vm2092, %v4147, 0
      %v4156 = vsel %vm2092, %v4148, 0
      %v4159 = vsel %vm2092, %v4149, 0
      %v4162 = vsel %vm2092, %v4150, 0
      %v4165 = vsel %vm2140, %v4151, 0
      %4167 = vmatpush.bf16.msra.mxu0 0
      %4168 = vmatpush.bf16.msra.mxu0 0
      %4169 = vmatpush.bf16.msra.mxu0 0
      %4170 = vmatpush.bf16.msra.mxu0 0
      %4171 = vmatpush.bf16.msra.mxu0 0
      %4172 = vmatpush.bf16.msra.mxu0 0
      %4173 = vmatpush.bf16.msra.mxu0 0
      %4174 = vmatpush.bf16.msra.mxu0 %v4165
      %4175 = vmatmul.bf16.gmra.mxu0 %v4153
      %v4176 = vpop.f32.mrf.mxu0
      %v4177 = vadd.f32 0.0, %v4176
      %v4178 = vpop.f32.mrf.mxu0
      %v4179 = vadd.f32 0.0, %v4178
      %4180 = vmatmul.bf16.gmra.mxu0 %v4156
      %v4181 = vpop.f32.mrf.mxu0
      %v4182 = vadd.f32 0.0, %v4181
      %v4183 = vpop.f32.mrf.mxu0
      %v4184 = vadd.f32 0.0, %v4183
      %4185 = vmatmul.bf16.gmra.mxu0 %v4159
      %v4186 = vpop.f32.mrf.mxu0
      %v4187 = vadd.f32 0.0, %v4186
      %v4188 = vpop.f32.mrf.mxu0
      %v4189 = vadd.f32 0.0, %v4188
      %4190 = vmatmul.bf16.gmra.mxu0 %v4162
      %v4191 = vpop.f32.mrf.mxu0
      %v4192 = vadd.f32 0.0, %v4191
      %v4193 = vpop.f32.mrf.mxu0
      %v4194 = vadd.f32 0.0, %v4193
      %4195 = vdwg.mxu0
      %v4196 = vadd.f32 %v4131, %v4177
      %v4197 = vadd.f32 %v4132, %v4179
      %v4198 = vadd.f32 %v4133, %v4182
      %v4199 = vadd.f32 %v4134, %v4184
      %v4200 = vadd.f32 %v4135, %v4187
      %v4201 = vadd.f32 %v4136, %v4189
      %v4202 = vadd.f32 %v4137, %v4192
      %v4203 = vadd.f32 %v4138, %v4194
      %v4204 = vperm.slane %v3622, 0
      %v4205 = vadd.f32 %v4196, %v4204
      %v4206 = vadd.f32 %v4197, %v4204
      %v4207 = vadd.f32 %v4198, %v4204
      %v4208 = vadd.f32 %v4199, %v4204
      %v4209 = vadd.f32 %v4200, %v4204
      %v4210 = vadd.f32 %v4201, %v4204
      %v4211 = vadd.f32 %v4202, %v4204
      %v4212 = vadd.f32 %v4203, %v4204
      %v4213 = vxor.u32 %v4205, 2147483648
      %v4214 = vxor.u32 %v4206, 2147483648
      %v4215 = vxor.u32 %v4207, 2147483648
      %v4216 = vxor.u32 %v4208, 2147483648
      %v4217 = vxor.u32 %v4209, 2147483648
      %v4218 = vxor.u32 %v4210, 2147483648
      %v4219 = vxor.u32 %v4211, 2147483648
      %v4220 = vxor.u32 %v4212, 2147483648
      %v4221 = vmul.f32 %v4213, 1.442695
      %v4222 = vpow.pop %v4221
      %v4223 = vmul.f32 %v4214, 1.442695
      %v4224 = vpow.pop %v4223
      %v4225 = vmul.f32 %v4215, 1.442695
      %v4226 = vpow.pop %v4225
      %v4227 = vmul.f32 %v4216, 1.442695
      %v4228 = vpow.pop %v4227
      %v4229 = vmul.f32 %v4217, 1.442695
      %v4230 = vpow.pop %v4229
      %v4231 = vmul.f32 %v4218, 1.442695
      %v4232 = vpow.pop %v4231
      %v4233 = vmul.f32 %v4219, 1.442695
      %v4234 = vpow.pop %v4233
      %v4235 = vmul.f32 %v4220, 1.442695
      %v4236 = vpow.pop %v4235
      %v4237 = vadd.f32 %v4222, 1.0
      %v4238 = vadd.f32 %v4224, 1.0
      %v4239 = vadd.f32 %v4226, 1.0
      %v4240 = vadd.f32 %v4228, 1.0
      %v4241 = vadd.f32 %v4230, 1.0
      %v4242 = vadd.f32 %v4232, 1.0
      %v4243 = vadd.f32 %v4234, 1.0
      %v4244 = vadd.f32 %v4236, 1.0
      %v4245 = vrcp.pop %v4237
      %v4246 = vmul.f32 %v4237, %v4245
      %v4247 = vsub.f32 1.0, %v4246
      %v4248 = vmul.f32 %v4245, %v4247
      %v4249 = vadd.f32 %v4245, %v4248
      %vm4250 = vweird.f32 %v4237
      %vm4251 = vweird.f32 %v4245
      %vm4252 = vmor %vm4250, %vm4251
      %v4253 = vsel %vm4252, %v4245, %v4249
      %v4254 = vand.u32 2147483647, %v4237
      %vm4255 = vcmp.eq.f32.partialorder %v4254, 8.507059e+37
      %v4256 = vand.u32 %v4237, 2147483648
      %v4257 = vor.u32 1.1754944e-38, %v4256
      %v4258 = vsel %vm4255, %v4257, %v4253
      %v4259 = vmul.f32 1.0, %v4258
      %v4260 = vrcp.pop %v4238
      %v4261 = vmul.f32 %v4238, %v4260
      %v4262 = vsub.f32 1.0, %v4261
      %v4263 = vmul.f32 %v4260, %v4262
      %v4264 = vadd.f32 %v4260, %v4263
      %vm4265 = vweird.f32 %v4238
      %vm4266 = vweird.f32 %v4260
      %vm4267 = vmor %vm4265, %vm4266
      %v4268 = vsel %vm4267, %v4260, %v4264
      %v4269 = vand.u32 2147483647, %v4238
      %vm4270 = vcmp.eq.f32.partialorder %v4269, 8.507059e+37
      %v4271 = vand.u32 %v4238, 2147483648
      %v4272 = vor.u32 1.1754944e-38, %v4271
      %v4273 = vsel %vm4270, %v4272, %v4268
      %v4274 = vmul.f32 1.0, %v4273
      %v4275 = vrcp.pop %v4239
      %v4276 = vmul.f32 %v4239, %v4275
      %v4277 = vsub.f32 1.0, %v4276
      %v4278 = vmul.f32 %v4275, %v4277
      %v4279 = vadd.f32 %v4275, %v4278
      %vm4280 = vweird.f32 %v4239
      %vm4281 = vweird.f32 %v4275
      %vm4282 = vmor %vm4280, %vm4281
      %v4283 = vsel %vm4282, %v4275, %v4279
      %v4284 = vand.u32 2147483647, %v4239
      %vm4285 = vcmp.eq.f32.partialorder %v4284, 8.507059e+37
      %v4286 = vand.u32 %v4239, 2147483648
      %v4287 = vor.u32 1.1754944e-38, %v4286
      %v4288 = vsel %vm4285, %v4287, %v4283
      %v4289 = vmul.f32 1.0, %v4288
      %v4290 = vrcp.pop %v4240
      %v4291 = vmul.f32 %v4240, %v4290
      %v4292 = vsub.f32 1.0, %v4291
      %v4293 = vmul.f32 %v4290, %v4292
      %v4294 = vadd.f32 %v4290, %v4293
      %vm4295 = vweird.f32 %v4240
      %vm4296 = vweird.f32 %v4290
      %vm4297 = vmor %vm4295, %vm4296
      %v4298 = vsel %vm4297, %v4290, %v4294
      %v4299 = vand.u32 2147483647, %v4240
      %vm4300 = vcmp.eq.f32.partialorder %v4299, 8.507059e+37
      %v4301 = vand.u32 %v4240, 2147483648
      %v4302 = vor.u32 1.1754944e-38, %v4301
      %v4303 = vsel %vm4300, %v4302, %v4298
      %v4304 = vmul.f32 1.0, %v4303
      %v4305 = vrcp.pop %v4241
      %v4306 = vmul.f32 %v4241, %v4305
      %v4307 = vsub.f32 1.0, %v4306
      %v4308 = vmul.f32 %v4305, %v4307
      %v4309 = vadd.f32 %v4305, %v4308
      %vm4310 = vweird.f32 %v4241
      %vm4311 = vweird.f32 %v4305
      %vm4312 = vmor %vm4310, %vm4311
      %v4313 = vsel %vm4312, %v4305, %v4309
      %v4314 = vand.u32 2147483647, %v4241
      %vm4315 = vcmp.eq.f32.partialorder %v4314, 8.507059e+37
      %v4316 = vand.u32 %v4241, 2147483648
      %v4317 = vor.u32 1.1754944e-38, %v4316
      %v4318 = vsel %vm4315, %v4317, %v4313
      %v4319 = vmul.f32 1.0, %v4318
      %v4320 = vrcp.pop %v4242
      %v4321 = vmul.f32 %v4242, %v4320
      %v4322 = vsub.f32 1.0, %v4321
      %v4323 = vmul.f32 %v4320, %v4322
      %v4324 = vadd.f32 %v4320, %v4323
      %vm4325 = vweird.f32 %v4242
      %vm4326 = vweird.f32 %v4320
      %vm4327 = vmor %vm4325, %vm4326
      %v4328 = vsel %vm4327, %v4320, %v4324
      %v4329 = vand.u32 2147483647, %v4242
      %vm4330 = vcmp.eq.f32.partialorder %v4329, 8.507059e+37
      %v4331 = vand.u32 %v4242, 2147483648
      %v4332 = vor.u32 1.1754944e-38, %v4331
      %v4333 = vsel %vm4330, %v4332, %v4328
      %v4334 = vmul.f32 1.0, %v4333
      %v4335 = vrcp.pop %v4243
      %v4336 = vmul.f32 %v4243, %v4335
      %v4337 = vsub.f32 1.0, %v4336
      %v4338 = vmul.f32 %v4335, %v4337
      %v4339 = vadd.f32 %v4335, %v4338
      %vm4340 = vweird.f32 %v4243
      %vm4341 = vweird.f32 %v4335
      %vm4342 = vmor %vm4340, %vm4341
      %v4343 = vsel %vm4342, %v4335, %v4339
      %v4344 = vand.u32 2147483647, %v4243
      %vm4345 = vcmp.eq.f32.partialorder %v4344, 8.507059e+37
      %v4346 = vand.u32 %v4243, 2147483648
      %v4347 = vor.u32 1.1754944e-38, %v4346
      %v4348 = vsel %vm4345, %v4347, %v4343
      %v4349 = vmul.f32 1.0, %v4348
      %v4350 = vrcp.pop %v4244
      %v4351 = vmul.f32 %v4244, %v4350
      %v4352 = vsub.f32 1.0, %v4351
      %v4353 = vmul.f32 %v4350, %v4352
      %v4354 = vadd.f32 %v4350, %v4353
      %vm4355 = vweird.f32 %v4244
      %vm4356 = vweird.f32 %v4350
      %vm4357 = vmor %vm4355, %vm4356
      %v4358 = vsel %vm4357, %v4350, %v4354
      %v4359 = vand.u32 2147483647, %v4244
      %vm4360 = vcmp.eq.f32.partialorder %v4359, 8.507059e+37
      %v4361 = vand.u32 %v4244, 2147483648
      %v4362 = vor.u32 1.1754944e-38, %v4361
      %v4363 = vsel %vm4360, %v4362, %v4358
      %v4364 = vmul.f32 1.0, %v4363
      %v4365 = vmul.f32 %v4205, %v4259
      %v4366 = vmul.f32 %v4206, %v4274
      %v4367 = vmul.f32 %v4207, %v4289
      %v4368 = vmul.f32 %v4208, %v4304
      %v4369 = vmul.f32 %v4209, %v4319
      %v4370 = vmul.f32 %v4210, %v4334
      %v4371 = vmul.f32 %v4211, %v4349
      %v4372 = vmul.f32 %v4212, %v4364
      %v4373 = vld [vmem:[%s7 + $0x148] sm:$0xff]
      %v4374 = vld [vmem:[%s7 + $0x150] sm:$0xff]
      %v4375 = vld [vmem:[%s7 + $0x158] sm:$0xff]
      %v4376 = vld [vmem:[%s7 + $0x160] sm:$0xff]
      %v4377 = vld [vmem:[%s7 + $0x168] sm:$0xf]
      %v4378 = vld [vmem:[%s8 + $0x6] sm:$0x1]
      %4379 = vst.msk [vmem:[%s718 + $0x1] sm:$0xff] %vm2092, %v4365
      %4380 = vst.msk [vmem:[%s718 + $0x11] sm:$0xff] %vm2092, %v4366
      %4381 = vst.msk [vmem:[%s718 + $0x21] sm:$0xff] %vm2092, %v4367
      %4382 = vst.msk [vmem:[%s718 + $0x31] sm:$0xff] %vm2092, %v4368
      %4383 = vst.msk [vmem:[%s718 + $0x41] sm:$0xff] %vm2092, %v4369
      %4384 = vst.msk [vmem:[%s718 + $0x51] sm:$0xff] %vm2092, %v4370
      %4385 = vst.msk [vmem:[%s718 + $0x61] sm:$0xff] %vm2092, %v4371
      %4386 = vst.msk [vmem:[%s718 + $0x71] sm:$0xff] %vm2092, %v4372
      %v4387 = vld [vmem:[#allocation2] sm:$0xff]
      %v4388 = vld [vmem:[#allocation2 + $0x10] sm:$0xff]
      %v4389 = vld [vmem:[#allocation2 + $0x20] sm:$0xff]
      %v4390 = vld [vmem:[#allocation2 + $0x30] sm:$0xff]
      %v4391 = vld [vmem:[#allocation2 + $0x40] sm:$0xff]
      %v4392 = vld [vmem:[#allocation2 + $0x50] sm:$0xff]
      %v4393 = vld [vmem:[#allocation2 + $0x60] sm:$0xff]
      %v4394 = vld [vmem:[#allocation2 + $0x70] sm:$0xff]
      %v4395 = vpack.c.bf16 %v4388, %v4387
      %v4396 = vpack.c.bf16 %v4390, %v4389
      %v4397 = vpack.c.bf16 %v4392, %v4391
      %v4398 = vpack.c.bf16 %v4394, %v4393
      %v4399 = vpack.c.bf16 %v4373, %v4373
      %v4400 = vld [vmem:[#allocation2 + $0x1] sm:$0xff]
      %v4401 = vld [vmem:[#allocation2 + $0x11] sm:$0xff]
      %v4402 = vld [vmem:[#allocation2 + $0x21] sm:$0xff]
      %v4403 = vld [vmem:[#allocation2 + $0x31] sm:$0xff]
      %v4404 = vld [vmem:[#allocation2 + $0x41] sm:$0xff]
      %v4405 = vld [vmem:[#allocation2 + $0x51] sm:$0xff]
      %v4406 = vld [vmem:[#allocation2 + $0x61] sm:$0xff]
      %v4407 = vld [vmem:[#allocation2 + $0x71] sm:$0xff]
      %v4408 = vpack.c.bf16 %v4401, %v4400
      %v4409 = vpack.c.bf16 %v4403, %v4402
      %v4410 = vpack.c.bf16 %v4405, %v4404
      %v4411 = vpack.c.bf16 %v4407, %v4406
      %v4413 = vrot.slane %v4399, 2
      %v4415 = vsel %vm2092, %v4408, 0
      %v4418 = vsel %vm2092, %v4409, 0
      %v4421 = vsel %vm2092, %v4410, 0
      %v4424 = vsel %vm2092, %v4411, 0
      %v4427 = vsel %vm2140, %v4413, 0
      %4429 = vmatpush.bf16.msra.mxu0 0
      %4430 = vmatpush.bf16.msra.mxu0 0
      %4431 = vmatpush.bf16.msra.mxu0 0
      %4432 = vmatpush.bf16.msra.mxu0 0
      %4433 = vmatpush.bf16.msra.mxu0 0
      %4434 = vmatpush.bf16.msra.mxu0 0
      %4435 = vmatpush.bf16.msra.mxu0 0
      %4436 = vmatpush.bf16.msra.mxu0 %v4427
      %4437 = vmatmul.bf16.gmra.mxu0 %v4415
      %v4438 = vpop.f32.mrf.mxu0
      %v4439 = vadd.f32 0.0, %v4438
      %v4440 = vpop.f32.mrf.mxu0
      %v4441 = vadd.f32 0.0, %v4440
      %4442 = vmatmul.bf16.gmra.mxu0 %v4418
      %v4443 = vpop.f32.mrf.mxu0
      %v4444 = vadd.f32 0.0, %v4443
      %v4445 = vpop.f32.mrf.mxu0
      %v4446 = vadd.f32 0.0, %v4445
      %4447 = vmatmul.bf16.gmra.mxu0 %v4421
      %v4448 = vpop.f32.mrf.mxu0
      %v4449 = vadd.f32 0.0, %v4448
      %v4450 = vpop.f32.mrf.mxu0
      %v4451 = vadd.f32 0.0, %v4450
      %4452 = vmatmul.bf16.gmra.mxu0 %v4424
      %v4453 = vpop.f32.mrf.mxu0
      %v4454 = vadd.f32 0.0, %v4453
      %v4455 = vpop.f32.mrf.mxu0
      %v4456 = vadd.f32 0.0, %v4455
      %4457 = vdwg.mxu0
      %v4459 = vsel %vm2092, %v4395, 0
      %v4462 = vsel %vm2092, %v4396, 0
      %v4465 = vsel %vm2092, %v4397, 0
      %v4468 = vsel %vm2092, %v4398, 0
      %v4471 = vsel %vm2140, %v4399, 0
      %4473 = vmatpush.bf16.msra.mxu0 0
      %4474 = vmatpush.bf16.msra.mxu0 0
      %4475 = vmatpush.bf16.msra.mxu0 0
      %4476 = vmatpush.bf16.msra.mxu0 0
      %4477 = vmatpush.bf16.msra.mxu0 0
      %4478 = vmatpush.bf16.msra.mxu0 0
      %4479 = vmatpush.bf16.msra.mxu0 0
      %4480 = vmatpush.bf16.msra.mxu0 %v4471
      %4481 = vmatmul.bf16.gmra.mxu0 %v4459
      %v4482 = vpop.f32.mrf.mxu0
      %v4483 = vadd.f32 %v4439, %v4482
      %v4484 = vpop.f32.mrf.mxu0
      %v4485 = vadd.f32 %v4441, %v4484
      %4486 = vmatmul.bf16.gmra.mxu0 %v4462
      %v4487 = vpop.f32.mrf.mxu0
      %v4488 = vadd.f32 %v4444, %v4487
      %v4489 = vpop.f32.mrf.mxu0
      %v4490 = vadd.f32 %v4446, %v4489
      %4491 = vmatmul.bf16.gmra.mxu0 %v4465
      %v4492 = vpop.f32.mrf.mxu0
      %v4493 = vadd.f32 %v4449, %v4492
      %v4494 = vpop.f32.mrf.mxu0
      %v4495 = vadd.f32 %v4451, %v4494
      %4496 = vmatmul.bf16.gmra.mxu0 %v4468
      %v4497 = vpop.f32.mrf.mxu0
      %v4498 = vadd.f32 %v4454, %v4497
      %v4499 = vpop.f32.mrf.mxu0
      %v4500 = vadd.f32 %v4456, %v4499
      %4501 = vdwg.mxu0
      %v4502 = vld [vmem:[#allocation2 + $0x2] sm:$0xff]
      %v4503 = vld [vmem:[#allocation2 + $0x12] sm:$0xff]
      %v4504 = vld [vmem:[#allocation2 + $0x22] sm:$0xff]
      %v4505 = vld [vmem:[#allocation2 + $0x32] sm:$0xff]
      %v4506 = vld [vmem:[#allocation2 + $0x42] sm:$0xff]
      %v4507 = vld [vmem:[#allocation2 + $0x52] sm:$0xff]
      %v4508 = vld [vmem:[#allocation2 + $0x62] sm:$0xff]
      %v4509 = vld [vmem:[#allocation2 + $0x72] sm:$0xff]
      %v4510 = vpack.c.bf16 %v4503, %v4502
      %v4511 = vpack.c.bf16 %v4505, %v4504
      %v4512 = vpack.c.bf16 %v4507, %v4506
      %v4513 = vpack.c.bf16 %v4509, %v4508
      %v4514 = vpack.c.bf16 %v4374, %v4374
      %v4516 = vsel %vm2092, %v4510, 0
      %v4519 = vsel %vm2092, %v4511, 0
      %v4522 = vsel %vm2092, %v4512, 0
      %v4525 = vsel %vm2092, %v4513, 0
      %v4528 = vsel %vm2140, %v4514, 0
      %4530 = vmatpush.bf16.msra.mxu0 0
      %4531 = vmatpush.bf16.msra.mxu0 0
      %4532 = vmatpush.bf16.msra.mxu0 0
      %4533 = vmatpush.bf16.msra.mxu0 0
      %4534 = vmatpush.bf16.msra.mxu0 0
      %4535 = vmatpush.bf16.msra.mxu0 0
      %4536 = vmatpush.bf16.msra.mxu0 0
      %4537 = vmatpush.bf16.msra.mxu0 %v4528
      %4538 = vmatmul.bf16.gmra.mxu0 %v4516
      %v4539 = vpop.f32.mrf.mxu0
      %v4540 = vadd.f32 0.0, %v4539
      %v4541 = vpop.f32.mrf.mxu0
      %v4542 = vadd.f32 0.0, %v4541
      %4543 = vmatmul.bf16.gmra.mxu0 %v4519
      %v4544 = vpop.f32.mrf.mxu0
      %v4545 = vadd.f32 0.0, %v4544
      %v4546 = vpop.f32.mrf.mxu0
      %v4547 = vadd.f32 0.0, %v4546
      %4548 = vmatmul.bf16.gmra.mxu0 %v4522
      %v4549 = vpop.f32.mrf.mxu0
      %v4550 = vadd.f32 0.0, %v4549
      %v4551 = vpop.f32.mrf.mxu0
      %v4552 = vadd.f32 0.0, %v4551
      %4553 = vmatmul.bf16.gmra.mxu0 %v4525
      %v4554 = vpop.f32.mrf.mxu0
      %v4555 = vadd.f32 0.0, %v4554
      %v4556 = vpop.f32.mrf.mxu0
      %v4557 = vadd.f32 0.0, %v4556
      %4558 = vdwg.mxu0
      %v4559 = vadd.f32 %v4483, %v4540
      %v4560 = vadd.f32 %v4485, %v4542
      %v4561 = vadd.f32 %v4488, %v4545
      %v4562 = vadd.f32 %v4490, %v4547
      %v4563 = vadd.f32 %v4493, %v4550
      %v4564 = vadd.f32 %v4495, %v4552
      %v4565 = vadd.f32 %v4498, %v4555
      %v4566 = vadd.f32 %v4500, %v4557
      %v4567 = vld [vmem:[%s718] sm:$0xff]
      %v4568 = vld [vmem:[%s718 + $0x10] sm:$0xff]
      %v4569 = vld [vmem:[%s718 + $0x20] sm:$0xff]
      %v4570 = vld [vmem:[%s718 + $0x30] sm:$0xff]
      %v4571 = vld [vmem:[%s718 + $0x40] sm:$0xff]
      %v4572 = vld [vmem:[%s718 + $0x50] sm:$0xff]
      %v4573 = vld [vmem:[%s718 + $0x60] sm:$0xff]
      %v4574 = vld [vmem:[%s718 + $0x70] sm:$0xff]
      %v4575 = vpack.c.bf16 %v4568, %v4567
      %v4576 = vpack.c.bf16 %v4570, %v4569
      %v4577 = vpack.c.bf16 %v4572, %v4571
      %v4578 = vpack.c.bf16 %v4574, %v4573
      %v4580 = vrot.slane %v4514, 2
      %v4582 = vsel %vm2092, %v4575, 0
      %v4585 = vsel %vm2092, %v4576, 0
      %v4588 = vsel %vm2092, %v4577, 0
      %v4591 = vsel %vm2092, %v4578, 0
      %v4594 = vsel %vm2140, %v4580, 0
      %4596 = vmatpush.bf16.msra.mxu0 0
      %4597 = vmatpush.bf16.msra.mxu0 0
      %4598 = vmatpush.bf16.msra.mxu0 0
      %4599 = vmatpush.bf16.msra.mxu0 0
      %4600 = vmatpush.bf16.msra.mxu0 0
      %4601 = vmatpush.bf16.msra.mxu0 0
      %4602 = vmatpush.bf16.msra.mxu0 0
      %4603 = vmatpush.bf16.msra.mxu0 %v4594
      %4604 = vmatmul.bf16.gmra.mxu0 %v4582
      %v4605 = vpop.f32.mrf.mxu0
      %v4606 = vadd.f32 0.0, %v4605
      %v4607 = vpop.f32.mrf.mxu0
      %v4608 = vadd.f32 0.0, %v4607
      %4609 = vmatmul.bf16.gmra.mxu0 %v4585
      %v4610 = vpop.f32.mrf.mxu0
      %v4611 = vadd.f32 0.0, %v4610
      %v4612 = vpop.f32.mrf.mxu0
      %v4613 = vadd.f32 0.0, %v4612
      %4614 = vmatmul.bf16.gmra.mxu0 %v4588
      %v4615 = vpop.f32.mrf.mxu0
      %v4616 = vadd.f32 0.0, %v4615
      %v4617 = vpop.f32.mrf.mxu0
      %v4618 = vadd.f32 0.0, %v4617
      %4619 = vmatmul.bf16.gmra.mxu0 %v4591
      %v4620 = vpop.f32.mrf.mxu0
      %v4621 = vadd.f32 0.0, %v4620
      %v4622 = vpop.f32.mrf.mxu0
      %v4623 = vadd.f32 0.0, %v4622
      %4624 = vdwg.mxu0
      %v4625 = vadd.f32 %v4559, %v4606
      %v4626 = vadd.f32 %v4560, %v4608
      %v4627 = vadd.f32 %v4561, %v4611
      %v4628 = vadd.f32 %v4562, %v4613
      %v4629 = vadd.f32 %v4563, %v4616
      %v4630 = vadd.f32 %v4564, %v4618
      %v4631 = vadd.f32 %v4565, %v4621
      %v4632 = vadd.f32 %v4566, %v4623
      %v4633 = vld [vmem:[%s718 + $0x1] sm:$0xff]
      %v4634 = vld [vmem:[%s718 + $0x11] sm:$0xff]
      %v4635 = vld [vmem:[%s718 + $0x21] sm:$0xff]
      %v4636 = vld [vmem:[%s718 + $0x31] sm:$0xff]
      %v4637 = vld [vmem:[%s718 + $0x41] sm:$0xff]
      %v4638 = vld [vmem:[%s718 + $0x51] sm:$0xff]
      %v4639 = vld [vmem:[%s718 + $0x61] sm:$0xff]
      %v4640 = vld [vmem:[%s718 + $0x71] sm:$0xff]
      %v4641 = vpack.c.bf16 %v4634, %v4633
      %v4642 = vpack.c.bf16 %v4636, %v4635
      %v4643 = vpack.c.bf16 %v4638, %v4637
      %v4644 = vpack.c.bf16 %v4640, %v4639
      %v4645 = vpack.c.bf16 %v4375, %v4375
      %v4647 = vsel %vm2092, %v4641, 0
      %v4650 = vsel %vm2092, %v4642, 0
      %v4653 = vsel %vm2092, %v4643, 0
      %v4656 = vsel %vm2092, %v4644, 0
      %v4659 = vsel %vm2140, %v4645, 0
      %4661 = vmatpush.bf16.msra.mxu0 0
      %4662 = vmatpush.bf16.msra.mxu0 0
      %4663 = vmatpush.bf16.msra.mxu0 0
      %4664 = vmatpush.bf16.msra.mxu0 0
      %4665 = vmatpush.bf16.msra.mxu0 0
      %4666 = vmatpush.bf16.msra.mxu0 0
      %4667 = vmatpush.bf16.msra.mxu0 0
      %4668 = vmatpush.bf16.msra.mxu0 %v4659
      %4669 = vmatmul.bf16.gmra.mxu0 %v4647
      %v4670 = vpop.f32.mrf.mxu0
      %v4671 = vadd.f32 0.0, %v4670
      %v4672 = vpop.f32.mrf.mxu0
      %v4673 = vadd.f32 0.0, %v4672
      %4674 = vmatmul.bf16.gmra.mxu0 %v4650
      %v4675 = vpop.f32.mrf.mxu0
      %v4676 = vadd.f32 0.0, %v4675
      %v4677 = vpop.f32.mrf.mxu0
      %v4678 = vadd.f32 0.0, %v4677
      %4679 = vmatmul.bf16.gmra.mxu0 %v4653
      %v4680 = vpop.f32.mrf.mxu0
      %v4681 = vadd.f32 0.0, %v4680
      %v4682 = vpop.f32.mrf.mxu0
      %v4683 = vadd.f32 0.0, %v4682
      %4684 = vmatmul.bf16.gmra.mxu0 %v4656
      %v4685 = vpop.f32.mrf.mxu0
      %v4686 = vadd.f32 0.0, %v4685
      %v4687 = vpop.f32.mrf.mxu0
      %v4688 = vadd.f32 0.0, %v4687
      %4689 = vdwg.mxu0
      %v4690 = vadd.f32 %v4625, %v4671
      %v4691 = vadd.f32 %v4626, %v4673
      %v4692 = vadd.f32 %v4627, %v4676
      %v4693 = vadd.f32 %v4628, %v4678
      %v4694 = vadd.f32 %v4629, %v4681
      %v4695 = vadd.f32 %v4630, %v4683
      %v4696 = vadd.f32 %v4631, %v4686
      %v4697 = vadd.f32 %v4632, %v4688
      %v4698 = vld [vmem:[%s718 + $0x2] sm:$0xff]
      %v4699 = vld [vmem:[%s718 + $0x12] sm:$0xff]
      %v4700 = vld [vmem:[%s718 + $0x22] sm:$0xff]
      %v4701 = vld [vmem:[%s718 + $0x32] sm:$0xff]
      %v4702 = vld [vmem:[%s718 + $0x42] sm:$0xff]
      %v4703 = vld [vmem:[%s718 + $0x52] sm:$0xff]
      %v4704 = vld [vmem:[%s718 + $0x62] sm:$0xff]
      %v4705 = vld [vmem:[%s718 + $0x72] sm:$0xff]
      %v4706 = vpack.c.bf16 %v4699, %v4698
      %v4707 = vpack.c.bf16 %v4701, %v4700
      %v4708 = vpack.c.bf16 %v4703, %v4702
      %v4709 = vpack.c.bf16 %v4705, %v4704
      %v4711 = vrot.slane %v4645, 2
      %v4713 = vsel %vm2092, %v4706, 0
      %v4716 = vsel %vm2092, %v4707, 0
      %v4719 = vsel %vm2092, %v4708, 0
      %v4722 = vsel %vm2092, %v4709, 0
      %v4725 = vsel %vm2140, %v4711, 0
      %4727 = vmatpush.bf16.msra.mxu0 0
      %4728 = vmatpush.bf16.msra.mxu0 0
      %4729 = vmatpush.bf16.msra.mxu0 0
      %4730 = vmatpush.bf16.msra.mxu0 0
      %4731 = vmatpush.bf16.msra.mxu0 0
      %4732 = vmatpush.bf16.msra.mxu0 0
      %4733 = vmatpush.bf16.msra.mxu0 0
      %4734 = vmatpush.bf16.msra.mxu0 %v4725
      %4735 = vmatmul.bf16.gmra.mxu0 %v4713
      %v4736 = vpop.f32.mrf.mxu0
      %v4737 = vadd.f32 0.0, %v4736
      %v4738 = vpop.f32.mrf.mxu0
      %v4739 = vadd.f32 0.0, %v4738
      %4740 = vmatmul.bf16.gmra.mxu0 %v4716
      %v4741 = vpop.f32.mrf.mxu0
      %v4742 = vadd.f32 0.0, %v4741
      %v4743 = vpop.f32.mrf.mxu0
      %v4744 = vadd.f32 0.0, %v4743
      %4745 = vmatmul.bf16.gmra.mxu0 %v4719
      %v4746 = vpop.f32.mrf.mxu0
      %v4747 = vadd.f32 0.0, %v4746
      %v4748 = vpop.f32.mrf.mxu0
      %v4749 = vadd.f32 0.0, %v4748
      %4750 = vmatmul.bf16.gmra.mxu0 %v4722
      %v4751 = vpop.f32.mrf.mxu0
      %v4752 = vadd.f32 0.0, %v4751
      %v4753 = vpop.f32.mrf.mxu0
      %v4754 = vadd.f32 0.0, %v4753
      %4755 = vdwg.mxu0
      %v4756 = vadd.f32 %v4690, %v4737
      %v4757 = vadd.f32 %v4691, %v4739
      %v4758 = vadd.f32 %v4692, %v4742
      %v4759 = vadd.f32 %v4693, %v4744
      %v4760 = vadd.f32 %v4694, %v4747
      %v4761 = vadd.f32 %v4695, %v4749
      %v4762 = vadd.f32 %v4696, %v4752
      %v4763 = vadd.f32 %v4697, %v4754
      %v4764 = vld [vmem:[%s1083] sm:$0xff]
      %v4765 = vld [vmem:[%s1083 + $0x10] sm:$0xff]
      %v4766 = vld [vmem:[%s1083 + $0x20] sm:$0xff]
      %v4767 = vld [vmem:[%s1083 + $0x30] sm:$0xff]
      %v4768 = vld [vmem:[%s1083 + $0x40] sm:$0xff]
      %v4769 = vld [vmem:[%s1083 + $0x50] sm:$0xff]
      %v4770 = vld [vmem:[%s1083 + $0x60] sm:$0xff]
      %v4771 = vld [vmem:[%s1083 + $0x70] sm:$0xff]
      %v4772 = vpack.c.bf16 %v4765, %v4764
      %v4773 = vpack.c.bf16 %v4767, %v4766
      %v4774 = vpack.c.bf16 %v4769, %v4768
      %v4775 = vpack.c.bf16 %v4771, %v4770
      %v4776 = vpack.c.bf16 %v4376, %v4376
      %v4778 = vsel %vm2092, %v4772, 0
      %v4781 = vsel %vm2092, %v4773, 0
      %v4784 = vsel %vm2092, %v4774, 0
      %v4787 = vsel %vm2092, %v4775, 0
      %v4790 = vsel %vm2140, %v4776, 0
      %4792 = vmatpush.bf16.msra.mxu0 0
      %4793 = vmatpush.bf16.msra.mxu0 0
      %4794 = vmatpush.bf16.msra.mxu0 0
      %4795 = vmatpush.bf16.msra.mxu0 0
      %4796 = vmatpush.bf16.msra.mxu0 0
      %4797 = vmatpush.bf16.msra.mxu0 0
      %4798 = vmatpush.bf16.msra.mxu0 0
      %4799 = vmatpush.bf16.msra.mxu0 %v4790
      %4800 = vmatmul.bf16.gmra.mxu0 %v4778
      %v4801 = vpop.f32.mrf.mxu0
      %v4802 = vadd.f32 0.0, %v4801
      %v4803 = vpop.f32.mrf.mxu0
      %v4804 = vadd.f32 0.0, %v4803
      %4805 = vmatmul.bf16.gmra.mxu0 %v4781
      %v4806 = vpop.f32.mrf.mxu0
      %v4807 = vadd.f32 0.0, %v4806
      %v4808 = vpop.f32.mrf.mxu0
      %v4809 = vadd.f32 0.0, %v4808
      %4810 = vmatmul.bf16.gmra.mxu0 %v4784
      %v4811 = vpop.f32.mrf.mxu0
      %v4812 = vadd.f32 0.0, %v4811
      %v4813 = vpop.f32.mrf.mxu0
      %v4814 = vadd.f32 0.0, %v4813
      %4815 = vmatmul.bf16.gmra.mxu0 %v4787
      %v4816 = vpop.f32.mrf.mxu0
      %v4817 = vadd.f32 0.0, %v4816
      %v4818 = vpop.f32.mrf.mxu0
      %v4819 = vadd.f32 0.0, %v4818
      %4820 = vdwg.mxu0
      %v4821 = vadd.f32 %v4756, %v4802
      %v4822 = vadd.f32 %v4757, %v4804
      %v4823 = vadd.f32 %v4758, %v4807
      %v4824 = vadd.f32 %v4759, %v4809
      %v4825 = vadd.f32 %v4760, %v4812
      %v4826 = vadd.f32 %v4761, %v4814
      %v4827 = vadd.f32 %v4762, %v4817
      %v4828 = vadd.f32 %v4763, %v4819
      %v4829 = vld [vmem:[%s1083 + $0x1] sm:$0xff]
      %v4830 = vld [vmem:[%s1083 + $0x11] sm:$0xff]
      %v4831 = vld [vmem:[%s1083 + $0x21] sm:$0xff]
      %v4832 = vld [vmem:[%s1083 + $0x31] sm:$0xff]
      %v4833 = vld [vmem:[%s1083 + $0x41] sm:$0xff]
      %v4834 = vld [vmem:[%s1083 + $0x51] sm:$0xff]
      %v4835 = vld [vmem:[%s1083 + $0x61] sm:$0xff]
      %v4836 = vld [vmem:[%s1083 + $0x71] sm:$0xff]
      %v4837 = vpack.c.bf16 %v4830, %v4829
      %v4838 = vpack.c.bf16 %v4832, %v4831
      %v4839 = vpack.c.bf16 %v4834, %v4833
      %v4840 = vpack.c.bf16 %v4836, %v4835
      %v4842 = vrot.slane %v4776, 2
      %v4844 = vsel %vm2092, %v4837, 0
      %v4847 = vsel %vm2092, %v4838, 0
      %v4850 = vsel %vm2092, %v4839, 0
      %v4853 = vsel %vm2092, %v4840, 0
      %v4856 = vsel %vm2140, %v4842, 0
      %4858 = vmatpush.bf16.msra.mxu0 0
      %4859 = vmatpush.bf16.msra.mxu0 0
      %4860 = vmatpush.bf16.msra.mxu0 0
      %4861 = vmatpush.bf16.msra.mxu0 0
      %4862 = vmatpush.bf16.msra.mxu0 0
      %4863 = vmatpush.bf16.msra.mxu0 0
      %4864 = vmatpush.bf16.msra.mxu0 0
      %4865 = vmatpush.bf16.msra.mxu0 %v4856
      %4866 = vmatmul.bf16.gmra.mxu0 %v4844
      %v4867 = vpop.f32.mrf.mxu0
      %v4868 = vadd.f32 0.0, %v4867
      %v4869 = vpop.f32.mrf.mxu0
      %v4870 = vadd.f32 0.0, %v4869
      %4871 = vmatmul.bf16.gmra.mxu0 %v4847
      %v4872 = vpop.f32.mrf.mxu0
      %v4873 = vadd.f32 0.0, %v4872
      %v4874 = vpop.f32.mrf.mxu0
      %v4875 = vadd.f32 0.0, %v4874
      %4876 = vmatmul.bf16.gmra.mxu0 %v4850
      %v4877 = vpop.f32.mrf.mxu0
      %v4878 = vadd.f32 0.0, %v4877
      %v4879 = vpop.f32.mrf.mxu0
      %v4880 = vadd.f32 0.0, %v4879
      %4881 = vmatmul.bf16.gmra.mxu0 %v4853
      %v4882 = vpop.f32.mrf.mxu0
      %v4883 = vadd.f32 0.0, %v4882
      %v4884 = vpop.f32.mrf.mxu0
      %v4885 = vadd.f32 0.0, %v4884
      %4886 = vdwg.mxu0
      %v4887 = vadd.f32 %v4821, %v4868
      %v4888 = vadd.f32 %v4822, %v4870
      %v4889 = vadd.f32 %v4823, %v4873
      %v4890 = vadd.f32 %v4824, %v4875
      %v4891 = vadd.f32 %v4825, %v4878
      %v4892 = vadd.f32 %v4826, %v4880
      %v4893 = vadd.f32 %v4827, %v4883
      %v4894 = vadd.f32 %v4828, %v4885
      %v4895 = vld [vmem:[%s1083 + $0x2] sm:$0xff]
      %v4896 = vld [vmem:[%s1083 + $0x12] sm:$0xff]
      %v4897 = vld [vmem:[%s1083 + $0x22] sm:$0xff]
      %v4898 = vld [vmem:[%s1083 + $0x32] sm:$0xff]
      %v4899 = vld [vmem:[%s1083 + $0x42] sm:$0xff]
      %v4900 = vld [vmem:[%s1083 + $0x52] sm:$0xff]
      %v4901 = vld [vmem:[%s1083 + $0x62] sm:$0xff]
      %v4902 = vld [vmem:[%s1083 + $0x72] sm:$0xff]
      %v4903 = vpack.c.bf16 %v4896, %v4895
      %v4904 = vpack.c.bf16 %v4898, %v4897
      %v4905 = vpack.c.bf16 %v4900, %v4899
      %v4906 = vpack.c.bf16 %v4902, %v4901
      %v4907 = vpack.c.bf16 %v4377, %v4377
      %v4909 = vsel %vm2092, %v4903, 0
      %v4912 = vsel %vm2092, %v4904, 0
      %v4915 = vsel %vm2092, %v4905, 0
      %v4918 = vsel %vm2092, %v4906, 0
      %v4921 = vsel %vm2140, %v4907, 0
      %4923 = vmatpush.bf16.msra.mxu0 0
      %4924 = vmatpush.bf16.msra.mxu0 0
      %4925 = vmatpush.bf16.msra.mxu0 0
      %4926 = vmatpush.bf16.msra.mxu0 0
      %4927 = vmatpush.bf16.msra.mxu0 0
      %4928 = vmatpush.bf16.msra.mxu0 0
      %4929 = vmatpush.bf16.msra.mxu0 0
      %4930 = vmatpush.bf16.msra.mxu0 %v4921
      %4931 = vmatmul.bf16.gmra.mxu0 %v4909
      %v4932 = vpop.f32.mrf.mxu0
      %v4933 = vadd.f32 0.0, %v4932
      %v4934 = vpop.f32.mrf.mxu0
      %v4935 = vadd.f32 0.0, %v4934
      %4936 = vmatmul.bf16.gmra.mxu0 %v4912
      %v4937 = vpop.f32.mrf.mxu0
      %v4938 = vadd.f32 0.0, %v4937
      %v4939 = vpop.f32.mrf.mxu0
      %v4940 = vadd.f32 0.0, %v4939
      %4941 = vmatmul.bf16.gmra.mxu0 %v4915
      %v4942 = vpop.f32.mrf.mxu0
      %v4943 = vadd.f32 0.0, %v4942
      %v4944 = vpop.f32.mrf.mxu0
      %v4945 = vadd.f32 0.0, %v4944
      %4946 = vmatmul.bf16.gmra.mxu0 %v4918
      %v4947 = vpop.f32.mrf.mxu0
      %v4948 = vadd.f32 0.0, %v4947
      %v4949 = vpop.f32.mrf.mxu0
      %v4950 = vadd.f32 0.0, %v4949
      %4951 = vdwg.mxu0
      %v4952 = vadd.f32 %v4887, %v4933
      %v4953 = vadd.f32 %v4888, %v4935
      %v4954 = vadd.f32 %v4889, %v4938
      %v4955 = vadd.f32 %v4890, %v4940
      %v4956 = vadd.f32 %v4891, %v4943
      %v4957 = vadd.f32 %v4892, %v4945
      %v4958 = vadd.f32 %v4893, %v4948
      %v4959 = vadd.f32 %v4894, %v4950
      %v4960 = vperm.slane %v4378, 0
      %v4961 = vadd.f32 %v4952, %v4960
      %v4962 = vadd.f32 %v4953, %v4960
      %v4963 = vadd.f32 %v4954, %v4960
      %v4964 = vadd.f32 %v4955, %v4960
      %v4965 = vadd.f32 %v4956, %v4960
      %v4966 = vadd.f32 %v4957, %v4960
      %v4967 = vadd.f32 %v4958, %v4960
      %v4968 = vadd.f32 %v4959, %v4960
      %v4969 = vadd.f32 %v3449, %v4205
      %v4970 = vadd.f32 %v3450, %v4206
      %v4971 = vadd.f32 %v3451, %v4207
      %v4972 = vadd.f32 %v3452, %v4208
      %v4973 = vadd.f32 %v3453, %v4209
      %v4974 = vadd.f32 %v3454, %v4210
      %v4975 = vadd.f32 %v3455, %v4211
      %v4976 = vadd.f32 %v3456, %v4212
      %v4977 = vadd.f32 %v4969, %v4961
      %v4978 = vadd.f32 %v4970, %v4962
      %v4979 = vadd.f32 %v4971, %v4963
      %v4980 = vadd.f32 %v4972, %v4964
      %v4981 = vadd.f32 %v4973, %v4965
      %v4982 = vadd.f32 %v4974, %v4966
      %v4983 = vadd.f32 %v4975, %v4967
      %v4984 = vadd.f32 %v4976, %v4968
      %v4985 = vld [vmem:[%s7 + $0x170] sm:$0xff]
      %v4986 = vld [vmem:[%s7 + $0x178] sm:$0xff]
      %v4987 = vld [vmem:[%s7 + $0x180] sm:$0xff]
      %v4988 = vld [vmem:[%s7 + $0x188] sm:$0xff]
      %v4989 = vld [vmem:[%s7 + $0x190] sm:$0xf]
      %v4990 = vld [vmem:[%s8 + $0x7] sm:$0x1]
      %4991 = vst.msk [vmem:[%s718 + $0x1] sm:$0xff] %vm2092, %v1450
      %4992 = vst.msk [vmem:[%s718 + $0x11] sm:$0xff] %vm2092, %v1451
      %4993 = vst.msk [vmem:[%s718 + $0x21] sm:$0xff] %vm2092, %v1452
      %4994 = vst.msk [vmem:[%s718 + $0x31] sm:$0xff] %vm2092, %v1453
      %4995 = vst.msk [vmem:[%s718 + $0x41] sm:$0xff] %vm2092, %v1454
      %4996 = vst.msk [vmem:[%s718 + $0x51] sm:$0xff] %vm2092, %v1455
      %4997 = vst.msk [vmem:[%s718 + $0x61] sm:$0xff] %vm2092, %v1456
      %4998 = vst.msk [vmem:[%s718 + $0x71] sm:$0xff] %vm2092, %v1457
      %v4999 = vld [vmem:[#allocation2] sm:$0xff]
      %v5000 = vld [vmem:[#allocation2 + $0x10] sm:$0xff]
      %v5001 = vld [vmem:[#allocation2 + $0x20] sm:$0xff]
      %v5002 = vld [vmem:[#allocation2 + $0x30] sm:$0xff]
      %v5003 = vld [vmem:[#allocation2 + $0x40] sm:$0xff]
      %v5004 = vld [vmem:[#allocation2 + $0x50] sm:$0xff]
      %v5005 = vld [vmem:[#allocation2 + $0x60] sm:$0xff]
      %v5006 = vld [vmem:[#allocation2 + $0x70] sm:$0xff]
      %v5007 = vpack.c.bf16 %v5000, %v4999
      %v5008 = vpack.c.bf16 %v5002, %v5001
      %v5009 = vpack.c.bf16 %v5004, %v5003
      %v5010 = vpack.c.bf16 %v5006, %v5005
      %v5011 = vpack.c.bf16 %v4985, %v4985
      %v5012 = vld [vmem:[#allocation2 + $0x1] sm:$0xff]
      %v5013 = vld [vmem:[#allocation2 + $0x11] sm:$0xff]
      %v5014 = vld [vmem:[#allocation2 + $0x21] sm:$0xff]
      %v5015 = vld [vmem:[#allocation2 + $0x31] sm:$0xff]
      %v5016 = vld [vmem:[#allocation2 + $0x41] sm:$0xff]
      %v5017 = vld [vmem:[#allocation2 + $0x51] sm:$0xff]
      %v5018 = vld [vmem:[#allocation2 + $0x61] sm:$0xff]
      %v5019 = vld [vmem:[#allocation2 + $0x71] sm:$0xff]
      %v5020 = vpack.c.bf16 %v5013, %v5012
      %v5021 = vpack.c.bf16 %v5015, %v5014
      %v5022 = vpack.c.bf16 %v5017, %v5016
      %v5023 = vpack.c.bf16 %v5019, %v5018
      %v5025 = vrot.slane %v5011, 2
      %v5027 = vsel %vm2092, %v5020, 0
      %v5030 = vsel %vm2092, %v5021, 0
      %v5033 = vsel %vm2092, %v5022, 0
      %v5036 = vsel %vm2092, %v5023, 0
      %v5039 = vsel %vm2140, %v5025, 0
      %5041 = vmatpush.bf16.msra.mxu0 0
      %5042 = vmatpush.bf16.msra.mxu0 0
      %5043 = vmatpush.bf16.msra.mxu0 0
      %5044 = vmatpush.bf16.msra.mxu0 0
      %5045 = vmatpush.bf16.msra.mxu0 0
      %5046 = vmatpush.bf16.msra.mxu0 0
      %5047 = vmatpush.bf16.msra.mxu0 0
      %5048 = vmatpush.bf16.msra.mxu0 %v5039
      %5049 = vmatmul.bf16.gmra.mxu0 %v5027
      %v5050 = vpop.f32.mrf.mxu0
      %v5051 = vadd.f32 0.0, %v5050
      %v5052 = vpop.f32.mrf.mxu0
      %v5053 = vadd.f32 0.0, %v5052
      %5054 = vmatmul.bf16.gmra.mxu0 %v5030
      %v5055 = vpop.f32.mrf.mxu0
      %v5056 = vadd.f32 0.0, %v5055
      %v5057 = vpop.f32.mrf.mxu0
      %v5058 = vadd.f32 0.0, %v5057
      %5059 = vmatmul.bf16.gmra.mxu0 %v5033
      %v5060 = vpop.f32.mrf.mxu0
      %v5061 = vadd.f32 0.0, %v5060
      %v5062 = vpop.f32.mrf.mxu0
      %v5063 = vadd.f32 0.0, %v5062
      %5064 = vmatmul.bf16.gmra.mxu0 %v5036
      %v5065 = vpop.f32.mrf.mxu0
      %v5066 = vadd.f32 0.0, %v5065
      %v5067 = vpop.f32.mrf.mxu0
      %v5068 = vadd.f32 0.0, %v5067
      %5069 = vdwg.mxu0
      %v5071 = vsel %vm2092, %v5007, 0
      %v5074 = vsel %vm2092, %v5008, 0
      %v5077 = vsel %vm2092, %v5009, 0
      %v5080 = vsel %vm2092, %v5010, 0
      %v5083 = vsel %vm2140, %v5011, 0
      %5085 = vmatpush.bf16.msra.mxu0 0
      %5086 = vmatpush.bf16.msra.mxu0 0
      %5087 = vmatpush.bf16.msra.mxu0 0
      %5088 = vmatpush.bf16.msra.mxu0 0
      %5089 = vmatpush.bf16.msra.mxu0 0
      %5090 = vmatpush.bf16.msra.mxu0 0
      %5091 = vmatpush.bf16.msra.mxu0 0
      %5092 = vmatpush.bf16.msra.mxu0 %v5083
      %5093 = vmatmul.bf16.gmra.mxu0 %v5071
      %v5094 = vpop.f32.mrf.mxu0
      %v5095 = vadd.f32 %v5051, %v5094
      %v5096 = vpop.f32.mrf.mxu0
      %v5097 = vadd.f32 %v5053, %v5096
      %5098 = vmatmul.bf16.gmra.mxu0 %v5074
      %v5099 = vpop.f32.mrf.mxu0
      %v5100 = vadd.f32 %v5056, %v5099
      %v5101 = vpop.f32.mrf.mxu0
      %v5102 = vadd.f32 %v5058, %v5101
      %5103 = vmatmul.bf16.gmra.mxu0 %v5077
      %v5104 = vpop.f32.mrf.mxu0
      %v5105 = vadd.f32 %v5061, %v5104
      %v5106 = vpop.f32.mrf.mxu0
      %v5107 = vadd.f32 %v5063, %v5106
      %5108 = vmatmul.bf16.gmra.mxu0 %v5080
      %v5109 = vpop.f32.mrf.mxu0
      %v5110 = vadd.f32 %v5066, %v5109
      %v5111 = vpop.f32.mrf.mxu0
      %v5112 = vadd.f32 %v5068, %v5111
      %5113 = vdwg.mxu0
      %v5114 = vld [vmem:[#allocation2 + $0x2] sm:$0xff]
      %v5115 = vld [vmem:[#allocation2 + $0x12] sm:$0xff]
      %v5116 = vld [vmem:[#allocation2 + $0x22] sm:$0xff]
      %v5117 = vld [vmem:[#allocation2 + $0x32] sm:$0xff]
      %v5118 = vld [vmem:[#allocation2 + $0x42] sm:$0xff]
      %v5119 = vld [vmem:[#allocation2 + $0x52] sm:$0xff]
      %v5120 = vld [vmem:[#allocation2 + $0x62] sm:$0xff]
      %v5121 = vld [vmem:[#allocation2 + $0x72] sm:$0xff]
      %v5122 = vpack.c.bf16 %v5115, %v5114
      %v5123 = vpack.c.bf16 %v5117, %v5116
      %v5124 = vpack.c.bf16 %v5119, %v5118
      %v5125 = vpack.c.bf16 %v5121, %v5120
      %v5126 = vpack.c.bf16 %v4986, %v4986
      %v5128 = vsel %vm2092, %v5122, 0
      %v5131 = vsel %vm2092, %v5123, 0
      %v5134 = vsel %vm2092, %v5124, 0
      %v5137 = vsel %vm2092, %v5125, 0
      %v5140 = vsel %vm2140, %v5126, 0
      %5142 = vmatpush.bf16.msra.mxu0 0
      %5143 = vmatpush.bf16.msra.mxu0 0
      %5144 = vmatpush.bf16.msra.mxu0 0
      %5145 = vmatpush.bf16.msra.mxu0 0
      %5146 = vmatpush.bf16.msra.mxu0 0
      %5147 = vmatpush.bf16.msra.mxu0 0
      %5148 = vmatpush.bf16.msra.mxu0 0
      %5149 = vmatpush.bf16.msra.mxu0 %v5140
      %5150 = vmatmul.bf16.gmra.mxu0 %v5128
      %v5151 = vpop.f32.mrf.mxu0
      %v5152 = vadd.f32 0.0, %v5151
      %v5153 = vpop.f32.mrf.mxu0
      %v5154 = vadd.f32 0.0, %v5153
      %5155 = vmatmul.bf16.gmra.mxu0 %v5131
      %v5156 = vpop.f32.mrf.mxu0
      %v5157 = vadd.f32 0.0, %v5156
      %v5158 = vpop.f32.mrf.mxu0
      %v5159 = vadd.f32 0.0, %v5158
      %5160 = vmatmul.bf16.gmra.mxu0 %v5134
      %v5161 = vpop.f32.mrf.mxu0
      %v5162 = vadd.f32 0.0, %v5161
      %v5163 = vpop.f32.mrf.mxu0
      %v5164 = vadd.f32 0.0, %v5163
      %5165 = vmatmul.bf16.gmra.mxu0 %v5137
      %v5166 = vpop.f32.mrf.mxu0
      %v5167 = vadd.f32 0.0, %v5166
      %v5168 = vpop.f32.mrf.mxu0
      %v5169 = vadd.f32 0.0, %v5168
      %5170 = vdwg.mxu0
      %v5171 = vadd.f32 %v5095, %v5152
      %v5172 = vadd.f32 %v5097, %v5154
      %v5173 = vadd.f32 %v5100, %v5157
      %v5174 = vadd.f32 %v5102, %v5159
      %v5175 = vadd.f32 %v5105, %v5162
      %v5176 = vadd.f32 %v5107, %v5164
      %v5177 = vadd.f32 %v5110, %v5167
      %v5178 = vadd.f32 %v5112, %v5169
      %v5179 = vld [vmem:[%s718] sm:$0xff]
      %v5180 = vld [vmem:[%s718 + $0x10] sm:$0xff]
      %v5181 = vld [vmem:[%s718 + $0x20] sm:$0xff]
      %v5182 = vld [vmem:[%s718 + $0x30] sm:$0xff]
      %v5183 = vld [vmem:[%s718 + $0x40] sm:$0xff]
      %v5184 = vld [vmem:[%s718 + $0x50] sm:$0xff]
      %v5185 = vld [vmem:[%s718 + $0x60] sm:$0xff]
      %v5186 = vld [vmem:[%s718 + $0x70] sm:$0xff]
      %v5187 = vpack.c.bf16 %v5180, %v5179
      %v5188 = vpack.c.bf16 %v5182, %v5181
      %v5189 = vpack.c.bf16 %v5184, %v5183
      %v5190 = vpack.c.bf16 %v5186, %v5185
      %v5192 = vrot.slane %v5126, 2
      %v5194 = vsel %vm2092, %v5187, 0
      %v5197 = vsel %vm2092, %v5188, 0
      %v5200 = vsel %vm2092, %v5189, 0
      %v5203 = vsel %vm2092, %v5190, 0
      %v5206 = vsel %vm2140, %v5192, 0
      %5208 = vmatpush.bf16.msra.mxu0 0
      %5209 = vmatpush.bf16.msra.mxu0 0
      %5210 = vmatpush.bf16.msra.mxu0 0
      %5211 = vmatpush.bf16.msra.mxu0 0
      %5212 = vmatpush.bf16.msra.mxu0 0
      %5213 = vmatpush.bf16.msra.mxu0 0
      %5214 = vmatpush.bf16.msra.mxu0 0
      %5215 = vmatpush.bf16.msra.mxu0 %v5206
      %5216 = vmatmul.bf16.gmra.mxu0 %v5194
      %v5217 = vpop.f32.mrf.mxu0
      %v5218 = vadd.f32 0.0, %v5217
      %v5219 = vpop.f32.mrf.mxu0
      %v5220 = vadd.f32 0.0, %v5219
      %5221 = vmatmul.bf16.gmra.mxu0 %v5197
      %v5222 = vpop.f32.mrf.mxu0
      %v5223 = vadd.f32 0.0, %v5222
      %v5224 = vpop.f32.mrf.mxu0
      %v5225 = vadd.f32 0.0, %v5224
      %5226 = vmatmul.bf16.gmra.mxu0 %v5200
      %v5227 = vpop.f32.mrf.mxu0
      %v5228 = vadd.f32 0.0, %v5227
      %v5229 = vpop.f32.mrf.mxu0
      %v5230 = vadd.f32 0.0, %v5229
      %5231 = vmatmul.bf16.gmra.mxu0 %v5203
      %v5232 = vpop.f32.mrf.mxu0
      %v5233 = vadd.f32 0.0, %v5232
      %v5234 = vpop.f32.mrf.mxu0
      %v5235 = vadd.f32 0.0, %v5234
      %5236 = vdwg.mxu0
      %v5237 = vadd.f32 %v5171, %v5218
      %v5238 = vadd.f32 %v5172, %v5220
      %v5239 = vadd.f32 %v5173, %v5223
      %v5240 = vadd.f32 %v5174, %v5225
      %v5241 = vadd.f32 %v5175, %v5228
      %v5242 = vadd.f32 %v5176, %v5230
      %v5243 = vadd.f32 %v5177, %v5233
      %v5244 = vadd.f32 %v5178, %v5235
      %v5245 = vld [vmem:[%s718 + $0x1] sm:$0xff]
      %v5246 = vld [vmem:[%s718 + $0x11] sm:$0xff]
      %v5247 = vld [vmem:[%s718 + $0x21] sm:$0xff]
      %v5248 = vld [vmem:[%s718 + $0x31] sm:$0xff]
      %v5249 = vld [vmem:[%s718 + $0x41] sm:$0xff]
      %v5250 = vld [vmem:[%s718 + $0x51] sm:$0xff]
      %v5251 = vld [vmem:[%s718 + $0x61] sm:$0xff]
      %v5252 = vld [vmem:[%s718 + $0x71] sm:$0xff]
      %v5253 = vpack.c.bf16 %v5246, %v5245
      %v5254 = vpack.c.bf16 %v5248, %v5247
      %v5255 = vpack.c.bf16 %v5250, %v5249
      %v5256 = vpack.c.bf16 %v5252, %v5251
      %v5257 = vpack.c.bf16 %v4987, %v4987
      %v5259 = vsel %vm2092, %v5253, 0
      %v5262 = vsel %vm2092, %v5254, 0
      %v5265 = vsel %vm2092, %v5255, 0
      %v5268 = vsel %vm2092, %v5256, 0
      %v5271 = vsel %vm2140, %v5257, 0
      %5273 = vmatpush.bf16.msra.mxu0 0
      %5274 = vmatpush.bf16.msra.mxu0 0
      %5275 = vmatpush.bf16.msra.mxu0 0
      %5276 = vmatpush.bf16.msra.mxu0 0
      %5277 = vmatpush.bf16.msra.mxu0 0
      %5278 = vmatpush.bf16.msra.mxu0 0
      %5279 = vmatpush.bf16.msra.mxu0 0
      %5280 = vmatpush.bf16.msra.mxu0 %v5271
      %5281 = vmatmul.bf16.gmra.mxu0 %v5259
      %v5282 = vpop.f32.mrf.mxu0
      %v5283 = vadd.f32 0.0, %v5282
      %v5284 = vpop.f32.mrf.mxu0
      %v5285 = vadd.f32 0.0, %v5284
      %5286 = vmatmul.bf16.gmra.mxu0 %v5262
      %v5287 = vpop.f32.mrf.mxu0
      %v5288 = vadd.f32 0.0, %v5287
      %v5289 = vpop.f32.mrf.mxu0
      %v5290 = vadd.f32 0.0, %v5289
      %5291 = vmatmul.bf16.gmra.mxu0 %v5265
      %v5292 = vpop.f32.mrf.mxu0
      %v5293 = vadd.f32 0.0, %v5292
      %v5294 = vpop.f32.mrf.mxu0
      %v5295 = vadd.f32 0.0, %v5294
      %5296 = vmatmul.bf16.gmra.mxu0 %v5268
      %v5297 = vpop.f32.mrf.mxu0
      %v5298 = vadd.f32 0.0, %v5297
      %v5299 = vpop.f32.mrf.mxu0
      %v5300 = vadd.f32 0.0, %v5299
      %5301 = vdwg.mxu0
      %v5302 = vadd.f32 %v5237, %v5283
      %v5303 = vadd.f32 %v5238, %v5285
      %v5304 = vadd.f32 %v5239, %v5288
      %v5305 = vadd.f32 %v5240, %v5290
      %v5306 = vadd.f32 %v5241, %v5293
      %v5307 = vadd.f32 %v5242, %v5295
      %v5308 = vadd.f32 %v5243, %v5298
      %v5309 = vadd.f32 %v5244, %v5300
      %v5310 = vld [vmem:[%s718 + $0x2] sm:$0xff]
      %v5311 = vld [vmem:[%s718 + $0x12] sm:$0xff]
      %v5312 = vld [vmem:[%s718 + $0x22] sm:$0xff]
      %v5313 = vld [vmem:[%s718 + $0x32] sm:$0xff]
      %v5314 = vld [vmem:[%s718 + $0x42] sm:$0xff]
      %v5315 = vld [vmem:[%s718 + $0x52] sm:$0xff]
      %v5316 = vld [vmem:[%s718 + $0x62] sm:$0xff]
      %v5317 = vld [vmem:[%s718 + $0x72] sm:$0xff]
      %v5318 = vpack.c.bf16 %v5311, %v5310
      %v5319 = vpack.c.bf16 %v5313, %v5312
      %v5320 = vpack.c.bf16 %v5315, %v5314
      %v5321 = vpack.c.bf16 %v5317, %v5316
      %v5323 = vrot.slane %v5257, 2
      %v5325 = vsel %vm2092, %v5318, 0
      %v5328 = vsel %vm2092, %v5319, 0
      %v5331 = vsel %vm2092, %v5320, 0
      %v5334 = vsel %vm2092, %v5321, 0
      %v5337 = vsel %vm2140, %v5323, 0
      %5339 = vmatpush.bf16.msra.mxu0 0
      %5340 = vmatpush.bf16.msra.mxu0 0
      %5341 = vmatpush.bf16.msra.mxu0 0
      %5342 = vmatpush.bf16.msra.mxu0 0
      %5343 = vmatpush.bf16.msra.mxu0 0
      %5344 = vmatpush.bf16.msra.mxu0 0
      %5345 = vmatpush.bf16.msra.mxu0 0
      %5346 = vmatpush.bf16.msra.mxu0 %v5337
      %5347 = vmatmul.bf16.gmra.mxu0 %v5325
      %v5348 = vpop.f32.mrf.mxu0
      %v5349 = vadd.f32 0.0, %v5348
      %v5350 = vpop.f32.mrf.mxu0
      %v5351 = vadd.f32 0.0, %v5350
      %5352 = vmatmul.bf16.gmra.mxu0 %v5328
      %v5353 = vpop.f32.mrf.mxu0
      %v5354 = vadd.f32 0.0, %v5353
      %v5355 = vpop.f32.mrf.mxu0
      %v5356 = vadd.f32 0.0, %v5355
      %5357 = vmatmul.bf16.gmra.mxu0 %v5331
      %v5358 = vpop.f32.mrf.mxu0
      %v5359 = vadd.f32 0.0, %v5358
      %v5360 = vpop.f32.mrf.mxu0
      %v5361 = vadd.f32 0.0, %v5360
      %5362 = vmatmul.bf16.gmra.mxu0 %v5334
      %v5363 = vpop.f32.mrf.mxu0
      %v5364 = vadd.f32 0.0, %v5363
      %v5365 = vpop.f32.mrf.mxu0
      %v5366 = vadd.f32 0.0, %v5365
      %5367 = vdwg.mxu0
      %v5368 = vadd.f32 %v5302, %v5349
      %v5369 = vadd.f32 %v5303, %v5351
      %v5370 = vadd.f32 %v5304, %v5354
      %v5371 = vadd.f32 %v5305, %v5356
      %v5372 = vadd.f32 %v5306, %v5359
      %v5373 = vadd.f32 %v5307, %v5361
      %v5374 = vadd.f32 %v5308, %v5364
      %v5375 = vadd.f32 %v5309, %v5366
      %v5376 = vld [vmem:[%s1083] sm:$0xff]
      %v5377 = vld [vmem:[%s1083 + $0x10] sm:$0xff]
      %v5378 = vld [vmem:[%s1083 + $0x20] sm:$0xff]
      %v5379 = vld [vmem:[%s1083 + $0x30] sm:$0xff]
      %v5380 = vld [vmem:[%s1083 + $0x40] sm:$0xff]
      %v5381 = vld [vmem:[%s1083 + $0x50] sm:$0xff]
      %v5382 = vld [vmem:[%s1083 + $0x60] sm:$0xff]
      %v5383 = vld [vmem:[%s1083 + $0x70] sm:$0xff]
      %v5384 = vpack.c.bf16 %v5377, %v5376
      %v5385 = vpack.c.bf16 %v5379, %v5378
      %v5386 = vpack.c.bf16 %v5381, %v5380
      %v5387 = vpack.c.bf16 %v5383, %v5382
      %v5388 = vpack.c.bf16 %v4988, %v4988
      %v5390 = vsel %vm2092, %v5384, 0
      %v5393 = vsel %vm2092, %v5385, 0
      %v5396 = vsel %vm2092, %v5386, 0
      %v5399 = vsel %vm2092, %v5387, 0
      %v5402 = vsel %vm2140, %v5388, 0
      %5404 = vmatpush.bf16.msra.mxu0 0
      %5405 = vmatpush.bf16.msra.mxu0 0
      %5406 = vmatpush.bf16.msra.mxu0 0
      %5407 = vmatpush.bf16.msra.mxu0 0
      %5408 = vmatpush.bf16.msra.mxu0 0
      %5409 = vmatpush.bf16.msra.mxu0 0
      %5410 = vmatpush.bf16.msra.mxu0 0
      %5411 = vmatpush.bf16.msra.mxu0 %v5402
      %5412 = vmatmul.bf16.gmra.mxu0 %v5390
      %v5413 = vpop.f32.mrf.mxu0
      %v5414 = vadd.f32 0.0, %v5413
      %v5415 = vpop.f32.mrf.mxu0
      %v5416 = vadd.f32 0.0, %v5415
      %5417 = vmatmul.bf16.gmra.mxu0 %v5393
      %v5418 = vpop.f32.mrf.mxu0
      %v5419 = vadd.f32 0.0, %v5418
      %v5420 = vpop.f32.mrf.mxu0
      %v5421 = vadd.f32 0.0, %v5420
      %5422 = vmatmul.bf16.gmra.mxu0 %v5396
      %v5423 = vpop.f32.mrf.mxu0
      %v5424 = vadd.f32 0.0, %v5423
      %v5425 = vpop.f32.mrf.mxu0
      %v5426 = vadd.f32 0.0, %v5425
      %5427 = vmatmul.bf16.gmra.mxu0 %v5399
      %v5428 = vpop.f32.mrf.mxu0
      %v5429 = vadd.f32 0.0, %v5428
      %v5430 = vpop.f32.mrf.mxu0
      %v5431 = vadd.f32 0.0, %v5430
      %5432 = vdwg.mxu0
      %v5433 = vadd.f32 %v5368, %v5414
      %v5434 = vadd.f32 %v5369, %v5416
      %v5435 = vadd.f32 %v5370, %v5419
      %v5436 = vadd.f32 %v5371, %v5421
      %v5437 = vadd.f32 %v5372, %v5424
      %v5438 = vadd.f32 %v5373, %v5426
      %v5439 = vadd.f32 %v5374, %v5429
      %v5440 = vadd.f32 %v5375, %v5431
      %v5441 = vld [vmem:[%s1083 + $0x1] sm:$0xff]
      %v5442 = vld [vmem:[%s1083 + $0x11] sm:$0xff]
      %v5443 = vld [vmem:[%s1083 + $0x21] sm:$0xff]
      %v5444 = vld [vmem:[%s1083 + $0x31] sm:$0xff]
      %v5445 = vld [vmem:[%s1083 + $0x41] sm:$0xff]
      %v5446 = vld [vmem:[%s1083 + $0x51] sm:$0xff]
      %v5447 = vld [vmem:[%s1083 + $0x61] sm:$0xff]
      %v5448 = vld [vmem:[%s1083 + $0x71] sm:$0xff]
      %v5449 = vpack.c.bf16 %v5442, %v5441
      %v5450 = vpack.c.bf16 %v5444, %v5443
      %v5451 = vpack.c.bf16 %v5446, %v5445
      %v5452 = vpack.c.bf16 %v5448, %v5447
      %v5454 = vrot.slane %v5388, 2
      %v5456 = vsel %vm2092, %v5449, 0
      %v5459 = vsel %vm2092, %v5450, 0
      %v5462 = vsel %vm2092, %v5451, 0
      %v5465 = vsel %vm2092, %v5452, 0
      %v5468 = vsel %vm2140, %v5454, 0
      %5470 = vmatpush.bf16.msra.mxu0 0
      %5471 = vmatpush.bf16.msra.mxu0 0
      %5472 = vmatpush.bf16.msra.mxu0 0
      %5473 = vmatpush.bf16.msra.mxu0 0
      %5474 = vmatpush.bf16.msra.mxu0 0
      %5475 = vmatpush.bf16.msra.mxu0 0
      %5476 = vmatpush.bf16.msra.mxu0 0
      %5477 = vmatpush.bf16.msra.mxu0 %v5468
      %5478 = vmatmul.bf16.gmra.mxu0 %v5456
      %v5479 = vpop.f32.mrf.mxu0
      %v5480 = vadd.f32 0.0, %v5479
      %v5481 = vpop.f32.mrf.mxu0
      %v5482 = vadd.f32 0.0, %v5481
      %5483 = vmatmul.bf16.gmra.mxu0 %v5459
      %v5484 = vpop.f32.mrf.mxu0
      %v5485 = vadd.f32 0.0, %v5484
      %v5486 = vpop.f32.mrf.mxu0
      %v5487 = vadd.f32 0.0, %v5486
      %5488 = vmatmul.bf16.gmra.mxu0 %v5462
      %v5489 = vpop.f32.mrf.mxu0
      %v5490 = vadd.f32 0.0, %v5489
      %v5491 = vpop.f32.mrf.mxu0
      %v5492 = vadd.f32 0.0, %v5491
      %5493 = vmatmul.bf16.gmra.mxu0 %v5465
      %v5494 = vpop.f32.mrf.mxu0
      %v5495 = vadd.f32 0.0, %v5494
      %v5496 = vpop.f32.mrf.mxu0
      %v5497 = vadd.f32 0.0, %v5496
      %5498 = vdwg.mxu0
      %v5499 = vadd.f32 %v5433, %v5480
      %v5500 = vadd.f32 %v5434, %v5482
      %v5501 = vadd.f32 %v5435, %v5485
      %v5502 = vadd.f32 %v5436, %v5487
      %v5503 = vadd.f32 %v5437, %v5490
      %v5504 = vadd.f32 %v5438, %v5492
      %v5505 = vadd.f32 %v5439, %v5495
      %v5506 = vadd.f32 %v5440, %v5497
      %v5507 = vld [vmem:[%s1083 + $0x2] sm:$0xff]
      %v5508 = vld [vmem:[%s1083 + $0x12] sm:$0xff]
      %v5509 = vld [vmem:[%s1083 + $0x22] sm:$0xff]
      %v5510 = vld [vmem:[%s1083 + $0x32] sm:$0xff]
      %v5511 = vld [vmem:[%s1083 + $0x42] sm:$0xff]
      %v5512 = vld [vmem:[%s1083 + $0x52] sm:$0xff]
      %v5513 = vld [vmem:[%s1083 + $0x62] sm:$0xff]
      %v5514 = vld [vmem:[%s1083 + $0x72] sm:$0xff]
      %v5515 = vpack.c.bf16 %v5508, %v5507
      %v5516 = vpack.c.bf16 %v5510, %v5509
      %v5517 = vpack.c.bf16 %v5512, %v5511
      %v5518 = vpack.c.bf16 %v5514, %v5513
      %v5519 = vpack.c.bf16 %v4989, %v4989
      %v5521 = vsel %vm2092, %v5515, 0
      %v5524 = vsel %vm2092, %v5516, 0
      %v5527 = vsel %vm2092, %v5517, 0
      %v5530 = vsel %vm2092, %v5518, 0
      %v5533 = vsel %vm2140, %v5519, 0
      %5535 = vmatpush.bf16.msra.mxu0 0
      %5536 = vmatpush.bf16.msra.mxu0 0
      %5537 = vmatpush.bf16.msra.mxu0 0
      %5538 = vmatpush.bf16.msra.mxu0 0
      %5539 = vmatpush.bf16.msra.mxu0 0
      %5540 = vmatpush.bf16.msra.mxu0 0
      %5541 = vmatpush.bf16.msra.mxu0 0
      %5542 = vmatpush.bf16.msra.mxu0 %v5533
      %5543 = vmatmul.bf16.gmra.mxu0 %v5521
      %v5544 = vpop.f32.mrf.mxu0
      %v5545 = vadd.f32 0.0, %v5544
      %v5546 = vpop.f32.mrf.mxu0
      %v5547 = vadd.f32 0.0, %v5546
      %5548 = vmatmul.bf16.gmra.mxu0 %v5524
      %v5549 = vpop.f32.mrf.mxu0
      %v5550 = vadd.f32 0.0, %v5549
      %v5551 = vpop.f32.mrf.mxu0
      %v5552 = vadd.f32 0.0, %v5551
      %5553 = vmatmul.bf16.gmra.mxu0 %v5527
      %v5554 = vpop.f32.mrf.mxu0
      %v5555 = vadd.f32 0.0, %v5554
      %v5556 = vpop.f32.mrf.mxu0
      %v5557 = vadd.f32 0.0, %v5556
      %5558 = vmatmul.bf16.gmra.mxu0 %v5530
      %v5559 = vpop.f32.mrf.mxu0
      %v5560 = vadd.f32 0.0, %v5559
      %v5561 = vpop.f32.mrf.mxu0
      %v5562 = vadd.f32 0.0, %v5561
      %5563 = vdwg.mxu0
      %v5564 = vadd.f32 %v5499, %v5545
      %v5565 = vadd.f32 %v5500, %v5547
      %v5566 = vadd.f32 %v5501, %v5550
      %v5567 = vadd.f32 %v5502, %v5552
      %v5568 = vadd.f32 %v5503, %v5555
      %v5569 = vadd.f32 %v5504, %v5557
      %v5570 = vadd.f32 %v5505, %v5560
      %v5571 = vadd.f32 %v5506, %v5562
      %v5572 = vperm.slane %v4990, 0
      %v5573 = vadd.f32 %v5564, %v5572
      %v5574 = vadd.f32 %v5565, %v5572
      %v5575 = vadd.f32 %v5566, %v5572
      %v5576 = vadd.f32 %v5567, %v5572
      %v5577 = vadd.f32 %v5568, %v5572
      %v5578 = vadd.f32 %v5569, %v5572
      %v5579 = vadd.f32 %v5570, %v5572
      %v5580 = vadd.f32 %v5571, %v5572
      %5582 = vrot.lane.b32.xlu0 %v2692, 124
      %v5583 = vpop.permute.xlu0 %5582
      %v5585 = vadd.f32 %v5573, %v5583
      %v5586 = vadd.f32 %v5574, %v5583
      %v5587 = vadd.f32 %v5575, %v5583
      %v5588 = vadd.f32 %v5576, %v5583
      %v5589 = vadd.f32 %v5577, %v5583
      %v5590 = vadd.f32 %v5578, %v5583
      %v5591 = vadd.f32 %v5579, %v5583
      %v5592 = vadd.f32 %v5580, %v5583
      %v5593 = vld [vmem:[%s7 + $0x240] sm:$0xf]
      %v5594 = vpack.c.bf16 %v5586, %v5585
      %v5595 = vpack.c.bf16 %v5588, %v5587
      %v5596 = vpack.c.bf16 %v5590, %v5589
      %v5597 = vpack.c.bf16 %v5592, %v5591
      %v5598 = vpack.c.bf16 %v5593, %v5593
      %v5599 = vld [vmem:[%s8 + $0xd] sm:$0x1]
      %v5600 = vperm.slane %v5599, 0
      %v5602 = vsel %vm2092, %v5594, 0
      %v5605 = vsel %vm2092, %v5595, 0
      %v5608 = vsel %vm2092, %v5596, 0
      %v5611 = vsel %vm2092, %v5597, 0
      %v5614 = vsel %vm2140, %v5598, 0
      %5616 = vmatpush.bf16.msra.mxu0 0
      %5617 = vmatpush.bf16.msra.mxu0 0
      %5618 = vmatpush.bf16.msra.mxu0 0
      %5619 = vmatpush.bf16.msra.mxu0 0
      %5620 = vmatpush.bf16.msra.mxu0 0
      %5621 = vmatpush.bf16.msra.mxu0 0
      %5622 = vmatpush.bf16.msra.mxu0 0
      %5623 = vmatpush.bf16.msra.mxu0 %v5614
      %5624 = vmatmul.bf16.gmra.mxu0 %v5602
      %v5625 = vpop.f32.mrf.mxu0
      %v5626 = vadd.f32 %v5600, %v5625
      %v5627 = vpop.f32.mrf.mxu0
      %v5628 = vadd.f32 %v5600, %v5627
      %5629 = vmatmul.bf16.gmra.mxu0 %v5605
      %v5630 = vpop.f32.mrf.mxu0
      %v5631 = vadd.f32 %v5600, %v5630
      %v5632 = vpop.f32.mrf.mxu0
      %v5633 = vadd.f32 %v5600, %v5632
      %5634 = vmatmul.bf16.gmra.mxu0 %v5608
      %v5635 = vpop.f32.mrf.mxu0
      %v5636 = vadd.f32 %v5600, %v5635
      %v5637 = vpop.f32.mrf.mxu0
      %v5638 = vadd.f32 %v5600, %v5637
      %5639 = vmatmul.bf16.gmra.mxu0 %v5611
      %v5640 = vpop.f32.mrf.mxu0
      %v5641 = vadd.f32 %v5600, %v5640
      %v5642 = vpop.f32.mrf.mxu0
      %v5643 = vadd.f32 %v5600, %v5642
      %5644 = vdwg.mxu0
      %v5645 = vld [vmem:[%s7 + $0x248] sm:$0xff]
      %v5646 = vld [vmem:[%s7 + $0x250] sm:$0xff]
      %v5647 = vld [vmem:[%s7 + $0x258] sm:$0xff]
      %v5648 = vld [vmem:[%s7 + $0x260] sm:$0xff]
      %v5649 = vpack.c.bf16 %v1840, %v1838
      %v5650 = vpack.c.bf16 %v1845, %v1843
      %v5651 = vpack.c.bf16 %v1850, %v1848
      %v5652 = vpack.c.bf16 %v1855, %v1853
      %v5653 = vpack.c.bf16 %v1860, %v1858
      %v5654 = vpack.c.bf16 %v5646, %v5645
      %v5655 = vpack.c.bf16 %v5648, %v5647
      %v5656 = vld [vmem:[%s8 + $0xe] sm:$0x1]
      %v5657 = vperm.slane %v5656, 0
      %v5659 = vsel %vm1467, %v5649, 0
      %v5662 = vsel %vm1467, %v5650, 0
      %v5665 = vsel %vm1467, %v5651, 0
      %v5668 = vsel %vm1467, %v5652, 0
      %v5671 = vsel %vm1467, %v5653, 0
      %5673 = vmatpush.bf16.msra.mxu0 0
      %5674 = vmatpush.bf16.msra.mxu0 0
      %5675 = vmatpush.bf16.msra.mxu0 0
      %5676 = vmatpush.bf16.msra.mxu0 0
      %5677 = vmatpush.bf16.msra.mxu0 0
      %5678 = vmatpush.bf16.msra.mxu0 0
      %5679 = vmatpush.bf16.msra.mxu0 %v5655
      %5680 = vmatpush.bf16.msra.mxu0 %v5654
      %5681 = vmatmul.bf16.gmra.mxu0 %v5659
      %v5682 = vpop.f32.mrf.mxu0
      %v5683 = vadd.f32 %v5657, %v5682
      %v5684 = vpop.f32.mrf.mxu0
      %v5685 = vadd.f32 %v5657, %v5684
      %5686 = vmatmul.bf16.gmra.mxu0 %v5662
      %v5687 = vpop.f32.mrf.mxu0
      %v5688 = vadd.f32 %v5657, %v5687
      %v5689 = vpop.f32.mrf.mxu0
      %v5690 = vadd.f32 %v5657, %v5689
      %5691 = vmatmul.bf16.gmra.mxu0 %v5665
      %v5692 = vpop.f32.mrf.mxu0
      %v5693 = vadd.f32 %v5657, %v5692
      %v5694 = vpop.f32.mrf.mxu0
      %v5695 = vadd.f32 %v5657, %v5694
      %5696 = vmatmul.bf16.gmra.mxu0 %v5668
      %v5697 = vpop.f32.mrf.mxu0
      %v5698 = vadd.f32 %v5657, %v5697
      %v5699 = vpop.f32.mrf.mxu0
      %v5700 = vadd.f32 %v5657, %v5699
      %5701 = vmatmul.bf16.gmra.mxu0 %v5671
      %v5702 = vpop.f32.mrf.mxu0
      %v5703 = vadd.f32 %v5657, %v5702
      %v5704 = vpop.f32.mrf.mxu0
      %v5705 = vadd.f32 %v5657, %v5704
      %5706 = vdwg.mxu0
      %v5707 = vpack.c.bf16 %v5628, %v5626
      %v5708 = vpack.c.bf16 %v5633, %v5631
      %v5709 = vpack.c.bf16 %v5638, %v5636
      %v5710 = vpack.c.bf16 %v5643, %v5641
      %v5711 = vpack.c.bf16 %v5685, %v5683
      %v5712 = vpack.c.bf16 %v5690, %v5688
      %v5713 = vpack.c.bf16 %v5695, %v5693
      %v5714 = vpack.c.bf16 %v5700, %v5698
      %v5715 = vpack.c.bf16 %v5705, %v5703
      %v5717 = vsel %vm1467, %v5707, 0
      %v5720 = vsel %vm1467, %v5708, 0
      %v5723 = vsel %vm1467, %v5709, 0
      %v5726 = vsel %vm1467, %v5710, 0
      %v5729 = vsel %vm1467, %v5711, 0
      %v5732 = vsel %vm1467, %v5712, 0
      %v5735 = vsel %vm1467, %v5713, 0
      %v5738 = vsel %vm1467, %v5714, 0
      %v5741 = vsel %vm1467, %v5715, 0
      %5743 = vmatpush.bf16.xpose.msra.mxu0 0
      %5744 = vmatpush.bf16.xpose.msra.mxu0 0
      %5745 = vmatpush.bf16.xpose.msra.mxu0 0
      %5746 = vmatpush.bf16.xpose.msra.mxu0 %v5741
      %5747 = vmatpush.bf16.xpose.msra.mxu0 %v5738
      %5748 = vmatpush.bf16.xpose.msra.mxu0 %v5735
      %5749 = vmatpush.bf16.xpose.msra.mxu0 %v5732
      %5750 = vmatpush.bf16.xpose.msra.mxu0 %v5729
      %5751 = vmatmul.bf16.gmra.mxu0 %v5717
      %v5752 = vpop.f32.mrf.mxu0
      %v5753 = vadd.f32 0.0, %v5752
      %v5754 = vpop.f32.mrf.mxu0
      %v5755 = vadd.f32 0.0, %v5754
      %5756 = vmatmul.bf16.gmra.mxu0 %v5720
      %v5757 = vpop.f32.mrf.mxu0
      %v5758 = vadd.f32 0.0, %v5757
      %v5759 = vpop.f32.mrf.mxu0
      %v5760 = vadd.f32 0.0, %v5759
      %5761 = vmatmul.bf16.gmra.mxu0 %v5723
      %v5762 = vpop.f32.mrf.mxu0
      %v5763 = vadd.f32 0.0, %v5762
      %v5764 = vpop.f32.mrf.mxu0
      %v5765 = vadd.f32 0.0, %v5764
      %5766 = vmatmul.bf16.gmra.mxu0 %v5726
      %v5767 = vpop.f32.mrf.mxu0
      %v5768 = vadd.f32 0.0, %v5767
      %v5769 = vpop.f32.mrf.mxu0
      %v5770 = vadd.f32 0.0, %v5769
      %5771 = vdwg.mxu0
      %v5772 = vmul.f32 %v5753, 0.17677669
      %v5773 = vmul.f32 %v5755, 0.17677669
      %v5774 = vmul.f32 %v5758, 0.17677669
      %v5775 = vmul.f32 %v5760, 0.17677669
      %v5776 = vmul.f32 %v5763, 0.17677669
      %v5777 = vmul.f32 %v5765, 0.17677669
      %v5778 = vmul.f32 %v5768, 0.17677669
      %v5779 = vmul.f32 %v5770, 0.17677669
      %v5780 = vlaneseq
      %v5781 = vand.u32 %v5780, 127
      %vm5782 = vcmp.lt.s32.totalorder %v5781, 77
      %v5783 = vsel %vm5782, %v5772, -1e+30
      %v5784 = vsel %vm5782, %v5773, -1e+30
      %v5785 = vsel %vm5782, %v5774, -1e+30
      %v5786 = vsel %vm5782, %v5775, -1e+30
      %v5787 = vsel %vm5782, %v5776, -1e+30
      %v5788 = vsel %vm5782, %v5777, -1e+30
      %v5789 = vsel %vm5782, %v5778, -1e+30
      %v5790 = vsel %vm5782, %v5779, -1e+30
      %vm5791 = vcmask 654336
      %v5792 = vsel %vm5791, %v5783, -inf
      %5793 = vmax.xlane.f32.xlu0 %v5792
      %v5794 = vpop.xlane.xlu0 %5793
      %v5795 = vsel %vm5791, %v5784, -inf
      %5796 = vmax.xlane.f32.xlu0 %v5795
      %v5797 = vpop.xlane.xlu0 %5796
      %v5798 = vsel %vm5791, %v5785, -inf
      %5799 = vmax.xlane.f32.xlu0 %v5798
      %v5800 = vpop.xlane.xlu0 %5799
      %v5801 = vsel %vm5791, %v5786, -inf
      %5802 = vmax.xlane.f32.xlu0 %v5801
      %v5803 = vpop.xlane.xlu0 %5802
      %v5804 = vsel %vm5791, %v5787, -inf
      %5805 = vmax.xlane.f32.xlu0 %v5804
      %v5806 = vpop.xlane.xlu0 %5805
      %v5807 = vsel %vm5791, %v5788, -inf
      %5808 = vmax.xlane.f32.xlu0 %v5807
      %v5809 = vpop.xlane.xlu0 %5808
      %v5810 = vsel %vm5791, %v5789, -inf
      %5811 = vmax.xlane.f32.xlu0 %v5810
      %v5812 = vpop.xlane.xlu0 %5811
      %v5813 = vsel %vm5791, %v5790, -inf
      %5814 = vmax.xlane.f32.xlu0 %v5813
      %v5815 = vpop.xlane.xlu0 %5814
      %v5816 = vsub.f32 %v5783, %v5794
      %v5817 = vsub.f32 %v5784, %v5797
      %v5818 = vsub.f32 %v5785, %v5800
      %v5819 = vsub.f32 %v5786, %v5803
      %v5820 = vsub.f32 %v5787, %v5806
      %v5821 = vsub.f32 %v5788, %v5809
      %v5822 = vsub.f32 %v5789, %v5812
      %v5823 = vsub.f32 %v5790, %v5815
      %v5824 = vmul.f32 %v5816, 1.442695
      %v5825 = vpow.pop %v5824
      %v5826 = vmul.f32 %v5817, 1.442695
      %v5827 = vpow.pop %v5826
      %v5828 = vmul.f32 %v5818, 1.442695
      %v5829 = vpow.pop %v5828
      %v5830 = vmul.f32 %v5819, 1.442695
      %v5831 = vpow.pop %v5830
      %v5832 = vmul.f32 %v5820, 1.442695
      %v5833 = vpow.pop %v5832
      %v5834 = vmul.f32 %v5821, 1.442695
      %v5835 = vpow.pop %v5834
      %v5836 = vmul.f32 %v5822, 1.442695
      %v5837 = vpow.pop %v5836
      %v5838 = vmul.f32 %v5823, 1.442695
      %v5839 = vpow.pop %v5838
      %v5840 = vsel %vm5791, %v5825, 0.0
      %5841 = vadd.xlane.f32.xlu0 %v5840
      %v5842 = vpop.xlane.xlu0 %5841
      %v5843 = vsel %vm5791, %v5827, 0.0
      %5844 = vadd.xlane.f32.xlu0 %v5843
      %v5845 = vpop.xlane.xlu0 %5844
      %v5846 = vsel %vm5791, %v5829, 0.0
      %5847 = vadd.xlane.f32.xlu0 %v5846
      %v5848 = vpop.xlane.xlu0 %5847
      %v5849 = vsel %vm5791, %v5831, 0.0
      %5850 = vadd.xlane.f32.xlu0 %v5849
      %v5851 = vpop.xlane.xlu0 %5850
      %v5852 = vsel %vm5791, %v5833, 0.0
      %5853 = vadd.xlane.f32.xlu0 %v5852
      %v5854 = vpop.xlane.xlu0 %5853
      %v5855 = vsel %vm5791, %v5835, 0.0
      %5856 = vadd.xlane.f32.xlu0 %v5855
      %v5857 = vpop.xlane.xlu0 %5856
      %v5858 = vsel %vm5791, %v5837, 0.0
      %5859 = vadd.xlane.f32.xlu0 %v5858
      %v5860 = vpop.xlane.xlu0 %5859
      %v5861 = vsel %vm5791, %v5839, 0.0
      %5862 = vadd.xlane.f32.xlu0 %v5861
      %v5863 = vpop.xlane.xlu0 %5862
      %v5864 = vrcp.pop %v5842
      %v5865 = vrcp.pop %v5845
      %v5866 = vrcp.pop %v5848
      %v5867 = vrcp.pop %v5851
      %v5868 = vrcp.pop %v5854
      %v5869 = vrcp.pop %v5857
      %v5870 = vrcp.pop %v5860
      %v5871 = vrcp.pop %v5863
      %v5872 = vmul.f32 %v5825, %v5864
      %v5873 = vmul.f32 %v5827, %v5865
      %v5874 = vmul.f32 %v5829, %v5866
      %v5875 = vmul.f32 %v5831, %v5867
      %v5876 = vmul.f32 %v5833, %v5868
      %v5877 = vmul.f32 %v5835, %v5869
      %v5878 = vmul.f32 %v5837, %v5870
      %v5879 = vmul.f32 %v5839, %v5871
      %v5880 = vpack.c.bf16 %v5873, %v5872
      %v5881 = vpack.c.bf16 %v5875, %v5874
      %v5882 = vpack.c.bf16 %v5877, %v5876
      %v5883 = vpack.c.bf16 %v5879, %v5878
      %5889 = vrot.lane.b32.xlu0 %v5711, 96
      %v5890 = vpop.permute.xlu0 %5889
      %5891 = vrot.lane.b32.xlu0 %v5712, 96
      %v5892 = vpop.permute.xlu0 %5891
      %5893 = vrot.lane.b32.xlu0 %v5713, 96
      %v5894 = vpop.permute.xlu0 %5893
      %5895 = vrot.lane.b32.xlu0 %v5714, 96
      %v5896 = vpop.permute.xlu0 %5895
      %5897 = vrot.lane.b32.xlu0 %v5715, 96
      %v5898 = vpop.permute.xlu0 %5897
      %v5905 = vsel %vm5791, %v5880, 0
      %v5908 = vsel %vm5791, %v5881, 0
      %v5911 = vsel %vm5791, %v5882, 0
      %v5914 = vsel %vm5791, %v5883, 0
      %5916 = vmatpush.bf16.msra.mxu0 0
      %5917 = vmatpush.bf16.msra.mxu0 0
      %5918 = vmatpush.bf16.msra.mxu0 0
      %5919 = vmatpush.bf16.msra.mxu0 %v5898
      %5920 = vmatpush.bf16.msra.mxu0 %v5896
      %5921 = vmatpush.bf16.msra.mxu0 %v5894
      %5922 = vmatpush.bf16.msra.mxu0 %v5892
      %5923 = vmatpush.bf16.msra.mxu0 %v5890
      %5924 = vmatmul.bf16.gmra.mxu0 %v5905
      %v5925 = vpop.f32.mrf.mxu0
      %v5926 = vadd.f32 0.0, %v5925
      %v5927 = vpop.f32.mrf.mxu0
      %v5928 = vadd.f32 0.0, %v5927
      %5929 = vmatmul.bf16.gmra.mxu0 %v5908
      %v5930 = vpop.f32.mrf.mxu0
      %v5931 = vadd.f32 0.0, %v5930
      %v5932 = vpop.f32.mrf.mxu0
      %v5933 = vadd.f32 0.0, %v5932
      %5934 = vmatmul.bf16.gmra.mxu0 %v5911
      %v5935 = vpop.f32.mrf.mxu0
      %v5936 = vadd.f32 0.0, %v5935
      %v5937 = vpop.f32.mrf.mxu0
      %v5938 = vadd.f32 0.0, %v5937
      %5939 = vmatmul.bf16.gmra.mxu0 %v5914
      %v5940 = vpop.f32.mrf.mxu0
      %v5941 = vadd.f32 0.0, %v5940
      %v5942 = vpop.f32.mrf.mxu0
      %v5943 = vadd.f32 0.0, %v5942
      %5944 = vdwg.mxu0
      %v5945 = vld [vmem:[%s7 + $0x268] sm:$0xff]
      %v5946 = vld [vmem:[%s7 + $0x270] sm:$0xff]
      %v5947 = vld [vmem:[%s7 + $0x278] sm:$0xff]
      %v5948 = vld [vmem:[%s7 + $0x280] sm:$0xff]
      %v5949 = vpack.c.bf16 %v5928, %v5926
      %v5950 = vpack.c.bf16 %v5933, %v5931
      %v5951 = vpack.c.bf16 %v5938, %v5936
      %v5952 = vpack.c.bf16 %v5943, %v5941
      %v5953 = vpack.c.bf16 %v5946, %v5945
      %v5954 = vpack.c.bf16 %v5948, %v5947
      %v5956 = vsel %vm1467, %v5949, 0
      %v5959 = vsel %vm1467, %v5950, 0
      %v5962 = vsel %vm1467, %v5951, 0
      %v5965 = vsel %vm1467, %v5952, 0
      %5967 = vmatpush.bf16.msra.mxu0 0
      %5968 = vmatpush.bf16.msra.mxu0 0
      %5969 = vmatpush.bf16.msra.mxu0 0
      %5970 = vmatpush.bf16.msra.mxu0 0
      %5971 = vmatpush.bf16.msra.mxu0 0
      %5972 = vmatpush.bf16.msra.mxu0 0
      %5973 = vmatpush.bf16.msra.mxu0 %v5954
      %5974 = vmatpush.bf16.msra.mxu0 %v5953
      %5975 = vmatmul.bf16.gmra.mxu0 %v5956
      %v5976 = vpop.f32.mrf.mxu0
      %v5977 = vadd.f32 0.0, %v5976
      %v5978 = vpop.f32.mrf.mxu0
      %v5979 = vadd.f32 0.0, %v5978
      %5980 = vmatmul.bf16.gmra.mxu0 %v5959
      %v5981 = vpop.f32.mrf.mxu0
      %v5982 = vadd.f32 0.0, %v5981
      %v5983 = vpop.f32.mrf.mxu0
      %v5984 = vadd.f32 0.0, %v5983
      %5985 = vmatmul.bf16.gmra.mxu0 %v5962
      %v5986 = vpop.f32.mrf.mxu0
      %v5987 = vadd.f32 0.0, %v5986
      %v5988 = vpop.f32.mrf.mxu0
      %v5989 = vadd.f32 0.0, %v5988
      %5990 = vmatmul.bf16.gmra.mxu0 %v5965
      %v5991 = vpop.f32.mrf.mxu0
      %v5992 = vadd.f32 0.0, %v5991
      %v5993 = vpop.f32.mrf.mxu0
      %v5994 = vadd.f32 0.0, %v5993
      %5995 = vdwg.mxu0
      %v5996 = vadd.f32 %v5585, %v5977
      %v5997 = vadd.f32 %v5586, %v5979
      %v5998 = vadd.f32 %v5587, %v5982
      %v5999 = vadd.f32 %v5588, %v5984
      %v6000 = vadd.f32 %v5589, %v5987
      %v6001 = vadd.f32 %v5590, %v5989
      %v6002 = vadd.f32 %v5591, %v5992
      %v6003 = vadd.f32 %v5592, %v5994
      %v6004 = vld [vmem:[%s8 + $0xf] sm:$0x1]
      %v6005 = vperm.slane %v6004, 0
      %v6006 = vadd.f32 %v5996, %v6005
      %v6007 = vadd.f32 %v5997, %v6005
      %v6008 = vadd.f32 %v5998, %v6005
      %v6009 = vadd.f32 %v5999, %v6005
      %v6010 = vadd.f32 %v6000, %v6005
      %v6011 = vadd.f32 %v6001, %v6005
      %v6012 = vadd.f32 %v6002, %v6005
      %v6013 = vadd.f32 %v6003, %v6005
      %v6014 = vadd.f32 %v6006, %v4977
      %v6015 = vadd.f32 %v6007, %v4978
      %v6016 = vadd.f32 %v6008, %v4979
      %v6017 = vadd.f32 %v6009, %v4980
      %v6018 = vadd.f32 %v6010, %v4981
      %v6019 = vadd.f32 %v6011, %v4982
      %v6020 = vadd.f32 %v6012, %v4983
      %v6021 = vadd.f32 %v6013, %v4984
      %v6022 = vxor.u32 %v6014, 2147483648
      %v6023 = vxor.u32 %v6015, 2147483648
      %v6024 = vxor.u32 %v6016, 2147483648
      %v6025 = vxor.u32 %v6017, 2147483648
      %v6026 = vxor.u32 %v6018, 2147483648
      %v6027 = vxor.u32 %v6019, 2147483648
      %v6028 = vxor.u32 %v6020, 2147483648
      %v6029 = vxor.u32 %v6021, 2147483648
      %v6030 = vmul.f32 %v6022, 1.442695
      %v6031 = vpow.pop %v6030
      %v6032 = vmul.f32 %v6023, 1.442695
      %v6033 = vpow.pop %v6032
      %v6034 = vmul.f32 %v6024, 1.442695
      %v6035 = vpow.pop %v6034
      %v6036 = vmul.f32 %v6025, 1.442695
      %v6037 = vpow.pop %v6036
      %v6038 = vmul.f32 %v6026, 1.442695
      %v6039 = vpow.pop %v6038
      %v6040 = vmul.f32 %v6027, 1.442695
      %v6041 = vpow.pop %v6040
      %v6042 = vmul.f32 %v6028, 1.442695
      %v6043 = vpow.pop %v6042
      %v6044 = vmul.f32 %v6029, 1.442695
      %v6045 = vpow.pop %v6044
      %v6046 = vadd.f32 %v6031, 1.0
      %v6047 = vadd.f32 %v6033, 1.0
      %v6048 = vadd.f32 %v6035, 1.0
      %v6049 = vadd.f32 %v6037, 1.0
      %v6050 = vadd.f32 %v6039, 1.0
      %v6051 = vadd.f32 %v6041, 1.0
      %v6052 = vadd.f32 %v6043, 1.0
      %v6053 = vadd.f32 %v6045, 1.0
      %v6054 = vrcp.pop %v6046
      %v6055 = vmul.f32 %v6046, %v6054
      %v6056 = vsub.f32 1.0, %v6055
      %v6057 = vmul.f32 %v6054, %v6056
      %v6058 = vadd.f32 %v6054, %v6057
      %vm6059 = vweird.f32 %v6046
      %vm6060 = vweird.f32 %v6054
      %vm6061 = vmor %vm6059, %vm6060
      %v6062 = vsel %vm6061, %v6054, %v6058
      %v6063 = vand.u32 2147483647, %v6046
      %vm6064 = vcmp.eq.f32.partialorder %v6063, 8.507059e+37
      %v6065 = vand.u32 %v6046, 2147483648
      %v6066 = vor.u32 1.1754944e-38, %v6065
      %v6067 = vsel %vm6064, %v6066, %v6062
      %v6068 = vmul.f32 1.0, %v6067
      %v6069 = vrcp.pop %v6047
      %v6070 = vmul.f32 %v6047, %v6069
      %v6071 = vsub.f32 1.0, %v6070
      %v6072 = vmul.f32 %v6069, %v6071
      %v6073 = vadd.f32 %v6069, %v6072
      %vm6074 = vweird.f32 %v6047
      %vm6075 = vweird.f32 %v6069
      %vm6076 = vmor %vm6074, %vm6075
      %v6077 = vsel %vm6076, %v6069, %v6073
      %v6078 = vand.u32 2147483647, %v6047
      %vm6079 = vcmp.eq.f32.partialorder %v6078, 8.507059e+37
      %v6080 = vand.u32 %v6047, 2147483648
      %v6081 = vor.u32 1.1754944e-38, %v6080
      %v6082 = vsel %vm6079, %v6081, %v6077
      %v6083 = vmul.f32 1.0, %v6082
      %v6084 = vrcp.pop %v6048
      %v6085 = vmul.f32 %v6048, %v6084
      %v6086 = vsub.f32 1.0, %v6085
      %v6087 = vmul.f32 %v6084, %v6086
      %v6088 = vadd.f32 %v6084, %v6087
      %vm6089 = vweird.f32 %v6048
      %vm6090 = vweird.f32 %v6084
      %vm6091 = vmor %vm6089, %vm6090
      %v6092 = vsel %vm6091, %v6084, %v6088
      %v6093 = vand.u32 2147483647, %v6048
      %vm6094 = vcmp.eq.f32.partialorder %v6093, 8.507059e+37
      %v6095 = vand.u32 %v6048, 2147483648
      %v6096 = vor.u32 1.1754944e-38, %v6095
      %v6097 = vsel %vm6094, %v6096, %v6092
      %v6098 = vmul.f32 1.0, %v6097
      %v6099 = vrcp.pop %v6049
      %v6100 = vmul.f32 %v6049, %v6099
      %v6101 = vsub.f32 1.0, %v6100
      %v6102 = vmul.f32 %v6099, %v6101
      %v6103 = vadd.f32 %v6099, %v6102
      %vm6104 = vweird.f32 %v6049
      %vm6105 = vweird.f32 %v6099
      %vm6106 = vmor %vm6104, %vm6105
      %v6107 = vsel %vm6106, %v6099, %v6103
      %v6108 = vand.u32 2147483647, %v6049
      %vm6109 = vcmp.eq.f32.partialorder %v6108, 8.507059e+37
      %v6110 = vand.u32 %v6049, 2147483648
      %v6111 = vor.u32 1.1754944e-38, %v6110
      %v6112 = vsel %vm6109, %v6111, %v6107
      %v6113 = vmul.f32 1.0, %v6112
      %v6114 = vrcp.pop %v6050
      %v6115 = vmul.f32 %v6050, %v6114
      %v6116 = vsub.f32 1.0, %v6115
      %v6117 = vmul.f32 %v6114, %v6116
      %v6118 = vadd.f32 %v6114, %v6117
      %vm6119 = vweird.f32 %v6050
      %vm6120 = vweird.f32 %v6114
      %vm6121 = vmor %vm6119, %vm6120
      %v6122 = vsel %vm6121, %v6114, %v6118
      %v6123 = vand.u32 2147483647, %v6050
      %vm6124 = vcmp.eq.f32.partialorder %v6123, 8.507059e+37
      %v6125 = vand.u32 %v6050, 2147483648
      %v6126 = vor.u32 1.1754944e-38, %v6125
      %v6127 = vsel %vm6124, %v6126, %v6122
      %v6128 = vmul.f32 1.0, %v6127
      %v6129 = vrcp.pop %v6051
      %v6130 = vmul.f32 %v6051, %v6129
      %v6131 = vsub.f32 1.0, %v6130
      %v6132 = vmul.f32 %v6129, %v6131
      %v6133 = vadd.f32 %v6129, %v6132
      %vm6134 = vweird.f32 %v6051
      %vm6135 = vweird.f32 %v6129
      %vm6136 = vmor %vm6134, %vm6135
      %v6137 = vsel %vm6136, %v6129, %v6133
      %v6138 = vand.u32 2147483647, %v6051
      %vm6139 = vcmp.eq.f32.partialorder %v6138, 8.507059e+37
      %v6140 = vand.u32 %v6051, 2147483648
      %v6141 = vor.u32 1.1754944e-38, %v6140
      %v6142 = vsel %vm6139, %v6141, %v6137
      %v6143 = vmul.f32 1.0, %v6142
      %v6144 = vrcp.pop %v6052
      %v6145 = vmul.f32 %v6052, %v6144
      %v6146 = vsub.f32 1.0, %v6145
      %v6147 = vmul.f32 %v6144, %v6146
      %v6148 = vadd.f32 %v6144, %v6147
      %vm6149 = vweird.f32 %v6052
      %vm6150 = vweird.f32 %v6144
      %vm6151 = vmor %vm6149, %vm6150
      %v6152 = vsel %vm6151, %v6144, %v6148
      %v6153 = vand.u32 2147483647, %v6052
      %vm6154 = vcmp.eq.f32.partialorder %v6153, 8.507059e+37
      %v6155 = vand.u32 %v6052, 2147483648
      %v6156 = vor.u32 1.1754944e-38, %v6155
      %v6157 = vsel %vm6154, %v6156, %v6152
      %v6158 = vmul.f32 1.0, %v6157
      %v6159 = vrcp.pop %v6053
      %v6160 = vmul.f32 %v6053, %v6159
      %v6161 = vsub.f32 1.0, %v6160
      %v6162 = vmul.f32 %v6159, %v6161
      %v6163 = vadd.f32 %v6159, %v6162
      %vm6164 = vweird.f32 %v6053
      %vm6165 = vweird.f32 %v6159
      %vm6166 = vmor %vm6164, %vm6165
      %v6167 = vsel %vm6166, %v6159, %v6163
      %v6168 = vand.u32 2147483647, %v6053
      %vm6169 = vcmp.eq.f32.partialorder %v6168, 8.507059e+37
      %v6170 = vand.u32 %v6053, 2147483648
      %v6171 = vor.u32 1.1754944e-38, %v6170
      %v6172 = vsel %vm6169, %v6171, %v6167
      %v6173 = vmul.f32 1.0, %v6172
      %v6174 = vmul.f32 %v6014, %v6068
      %v6175 = vmul.f32 %v6015, %v6083
      %v6176 = vmul.f32 %v6016, %v6098
      %v6177 = vmul.f32 %v6017, %v6113
      %v6178 = vmul.f32 %v6018, %v6128
      %v6179 = vmul.f32 %v6019, %v6143
      %v6180 = vmul.f32 %v6020, %v6158
      %v6181 = vmul.f32 %v6021, %v6173
      %v6182 = vld [vmem:[%s7 + $0x198] sm:$0xff]
      %v6183 = vld [vmem:[%s7 + $0x1a0] sm:$0xff]
      %v6184 = vld [vmem:[%s7 + $0x1a8] sm:$0xff]
      %v6185 = vld [vmem:[%s7 + $0x1b0] sm:$0xff]
      %v6186 = vld [vmem:[%s7 + $0x1b8] sm:$0xf]
      %v6187 = vld [vmem:[%s8 + $0x8] sm:$0x1]
      %6188 = vst.msk [vmem:[%s718 + $0x1] sm:$0xff] %vm2092, %v6174
      %6189 = vst.msk [vmem:[%s718 + $0x11] sm:$0xff] %vm2092, %v6175
      %6190 = vst.msk [vmem:[%s718 + $0x21] sm:$0xff] %vm2092, %v6176
      %6191 = vst.msk [vmem:[%s718 + $0x31] sm:$0xff] %vm2092, %v6177
      %6192 = vst.msk [vmem:[%s718 + $0x41] sm:$0xff] %vm2092, %v6178
      %6193 = vst.msk [vmem:[%s718 + $0x51] sm:$0xff] %vm2092, %v6179
      %6194 = vst.msk [vmem:[%s718 + $0x61] sm:$0xff] %vm2092, %v6180
      %6195 = vst.msk [vmem:[%s718 + $0x71] sm:$0xff] %vm2092, %v6181
      %v6196 = vld [vmem:[#allocation2] sm:$0xff]
      %v6197 = vld [vmem:[#allocation2 + $0x10] sm:$0xff]
      %v6198 = vld [vmem:[#allocation2 + $0x20] sm:$0xff]
      %v6199 = vld [vmem:[#allocation2 + $0x30] sm:$0xff]
      %v6200 = vld [vmem:[#allocation2 + $0x40] sm:$0xff]
      %v6201 = vld [vmem:[#allocation2 + $0x50] sm:$0xff]
      %v6202 = vld [vmem:[#allocation2 + $0x60] sm:$0xff]
      %v6203 = vld [vmem:[#allocation2 + $0x70] sm:$0xff]
      %v6204 = vpack.c.bf16 %v6197, %v6196
      %v6205 = vpack.c.bf16 %v6199, %v6198
      %v6206 = vpack.c.bf16 %v6201, %v6200
      %v6207 = vpack.c.bf16 %v6203, %v6202
      %v6208 = vpack.c.bf16 %v6182, %v6182
      %v6209 = vld [vmem:[#allocation2 + $0x1] sm:$0xff]
      %v6210 = vld [vmem:[#allocation2 + $0x11] sm:$0xff]
      %v6211 = vld [vmem:[#allocation2 + $0x21] sm:$0xff]
      %v6212 = vld [vmem:[#allocation2 + $0x31] sm:$0xff]
      %v6213 = vld [vmem:[#allocation2 + $0x41] sm:$0xff]
      %v6214 = vld [vmem:[#allocation2 + $0x51] sm:$0xff]
      %v6215 = vld [vmem:[#allocation2 + $0x61] sm:$0xff]
      %v6216 = vld [vmem:[#allocation2 + $0x71] sm:$0xff]
      %v6217 = vpack.c.bf16 %v6210, %v6209
      %v6218 = vpack.c.bf16 %v6212, %v6211
      %v6219 = vpack.c.bf16 %v6214, %v6213
      %v6220 = vpack.c.bf16 %v6216, %v6215
      %v6222 = vrot.slane %v6208, 2
      %v6224 = vsel %vm2092, %v6217, 0
      %v6227 = vsel %vm2092, %v6218, 0
      %v6230 = vsel %vm2092, %v6219, 0
      %v6233 = vsel %vm2092, %v6220, 0
      %v6236 = vsel %vm2140, %v6222, 0
      %6238 = vmatpush.bf16.msra.mxu0 0
      %6239 = vmatpush.bf16.msra.mxu0 0
      %6240 = vmatpush.bf16.msra.mxu0 0
      %6241 = vmatpush.bf16.msra.mxu0 0
      %6242 = vmatpush.bf16.msra.mxu0 0
      %6243 = vmatpush.bf16.msra.mxu0 0
      %6244 = vmatpush.bf16.msra.mxu0 0
      %6245 = vmatpush.bf16.msra.mxu0 %v6236
      %6246 = vmatmul.bf16.gmra.mxu0 %v6224
      %v6247 = vpop.f32.mrf.mxu0
      %v6248 = vadd.f32 0.0, %v6247
      %v6249 = vpop.f32.mrf.mxu0
      %v6250 = vadd.f32 0.0, %v6249
      %6251 = vmatmul.bf16.gmra.mxu0 %v6227
      %v6252 = vpop.f32.mrf.mxu0
      %v6253 = vadd.f32 0.0, %v6252
      %v6254 = vpop.f32.mrf.mxu0
      %v6255 = vadd.f32 0.0, %v6254
      %6256 = vmatmul.bf16.gmra.mxu0 %v6230
      %v6257 = vpop.f32.mrf.mxu0
      %v6258 = vadd.f32 0.0, %v6257
      %v6259 = vpop.f32.mrf.mxu0
      %v6260 = vadd.f32 0.0, %v6259
      %6261 = vmatmul.bf16.gmra.mxu0 %v6233
      %v6262 = vpop.f32.mrf.mxu0
      %v6263 = vadd.f32 0.0, %v6262
      %v6264 = vpop.f32.mrf.mxu0
      %v6265 = vadd.f32 0.0, %v6264
      %6266 = vdwg.mxu0
      %v6268 = vsel %vm2092, %v6204, 0
      %v6271 = vsel %vm2092, %v6205, 0
      %v6274 = vsel %vm2092, %v6206, 0
      %v6277 = vsel %vm2092, %v6207, 0
      %v6280 = vsel %vm2140, %v6208, 0
      %6282 = vmatpush.bf16.msra.mxu0 0
      %6283 = vmatpush.bf16.msra.mxu0 0
      %6284 = vmatpush.bf16.msra.mxu0 0
      %6285 = vmatpush.bf16.msra.mxu0 0
      %6286 = vmatpush.bf16.msra.mxu0 0
      %6287 = vmatpush.bf16.msra.mxu0 0
      %6288 = vmatpush.bf16.msra.mxu0 0
      %6289 = vmatpush.bf16.msra.mxu0 %v6280
      %6290 = vmatmul.bf16.gmra.mxu0 %v6268
      %v6291 = vpop.f32.mrf.mxu0
      %v6292 = vadd.f32 %v6248, %v6291
      %v6293 = vpop.f32.mrf.mxu0
      %v6294 = vadd.f32 %v6250, %v6293
      %6295 = vmatmul.bf16.gmra.mxu0 %v6271
      %v6296 = vpop.f32.mrf.mxu0
      %v6297 = vadd.f32 %v6253, %v6296
      %v6298 = vpop.f32.mrf.mxu0
      %v6299 = vadd.f32 %v6255, %v6298
      %6300 = vmatmul.bf16.gmra.mxu0 %v6274
      %v6301 = vpop.f32.mrf.mxu0
      %v6302 = vadd.f32 %v6258, %v6301
      %v6303 = vpop.f32.mrf.mxu0
      %v6304 = vadd.f32 %v6260, %v6303
      %6305 = vmatmul.bf16.gmra.mxu0 %v6277
      %v6306 = vpop.f32.mrf.mxu0
      %v6307 = vadd.f32 %v6263, %v6306
      %v6308 = vpop.f32.mrf.mxu0
      %v6309 = vadd.f32 %v6265, %v6308
      %6310 = vdwg.mxu0
      %v6311 = vld [vmem:[#allocation2 + $0x2] sm:$0xff]
      %v6312 = vld [vmem:[#allocation2 + $0x12] sm:$0xff]
      %v6313 = vld [vmem:[#allocation2 + $0x22] sm:$0xff]
      %v6314 = vld [vmem:[#allocation2 + $0x32] sm:$0xff]
      %v6315 = vld [vmem:[#allocation2 + $0x42] sm:$0xff]
      %v6316 = vld [vmem:[#allocation2 + $0x52] sm:$0xff]
      %v6317 = vld [vmem:[#allocation2 + $0x62] sm:$0xff]
      %v6318 = vld [vmem:[#allocation2 + $0x72] sm:$0xff]
      %v6319 = vpack.c.bf16 %v6312, %v6311
      %v6320 = vpack.c.bf16 %v6314, %v6313
      %v6321 = vpack.c.bf16 %v6316, %v6315
      %v6322 = vpack.c.bf16 %v6318, %v6317
      %v6323 = vpack.c.bf16 %v6183, %v6183
      %v6325 = vsel %vm2092, %v6319, 0
      %v6328 = vsel %vm2092, %v6320, 0
      %v6331 = vsel %vm2092, %v6321, 0
      %v6334 = vsel %vm2092, %v6322, 0
      %v6337 = vsel %vm2140, %v6323, 0
      %6339 = vmatpush.bf16.msra.mxu0 0
      %6340 = vmatpush.bf16.msra.mxu0 0
      %6341 = vmatpush.bf16.msra.mxu0 0
      %6342 = vmatpush.bf16.msra.mxu0 0
      %6343 = vmatpush.bf16.msra.mxu0 0
      %6344 = vmatpush.bf16.msra.mxu0 0
      %6345 = vmatpush.bf16.msra.mxu0 0
      %6346 = vmatpush.bf16.msra.mxu0 %v6337
      %6347 = vmatmul.bf16.gmra.mxu0 %v6325
      %v6348 = vpop.f32.mrf.mxu0
      %v6349 = vadd.f32 0.0, %v6348
      %v6350 = vpop.f32.mrf.mxu0
      %v6351 = vadd.f32 0.0, %v6350
      %6352 = vmatmul.bf16.gmra.mxu0 %v6328
      %v6353 = vpop.f32.mrf.mxu0
      %v6354 = vadd.f32 0.0, %v6353
      %v6355 = vpop.f32.mrf.mxu0
      %v6356 = vadd.f32 0.0, %v6355
      %6357 = vmatmul.bf16.gmra.mxu0 %v6331
      %v6358 = vpop.f32.mrf.mxu0
      %v6359 = vadd.f32 0.0, %v6358
      %v6360 = vpop.f32.mrf.mxu0
      %v6361 = vadd.f32 0.0, %v6360
      %6362 = vmatmul.bf16.gmra.mxu0 %v6334
      %v6363 = vpop.f32.mrf.mxu0
      %v6364 = vadd.f32 0.0, %v6363
      %v6365 = vpop.f32.mrf.mxu0
      %v6366 = vadd.f32 0.0, %v6365
      %6367 = vdwg.mxu0
      %v6368 = vadd.f32 %v6292, %v6349
      %v6369 = vadd.f32 %v6294, %v6351
      %v6370 = vadd.f32 %v6297, %v6354
      %v6371 = vadd.f32 %v6299, %v6356
      %v6372 = vadd.f32 %v6302, %v6359
      %v6373 = vadd.f32 %v6304, %v6361
      %v6374 = vadd.f32 %v6307, %v6364
      %v6375 = vadd.f32 %v6309, %v6366
      %v6376 = vld [vmem:[%s718] sm:$0xff]
      %v6377 = vld [vmem:[%s718 + $0x10] sm:$0xff]
      %v6378 = vld [vmem:[%s718 + $0x20] sm:$0xff]
      %v6379 = vld [vmem:[%s718 + $0x30] sm:$0xff]
      %v6380 = vld [vmem:[%s718 + $0x40] sm:$0xff]
      %v6381 = vld [vmem:[%s718 + $0x50] sm:$0xff]
      %v6382 = vld [vmem:[%s718 + $0x60] sm:$0xff]
      %v6383 = vld [vmem:[%s718 + $0x70] sm:$0xff]
      %v6384 = vpack.c.bf16 %v6377, %v6376
      %v6385 = vpack.c.bf16 %v6379, %v6378
      %v6386 = vpack.c.bf16 %v6381, %v6380
      %v6387 = vpack.c.bf16 %v6383, %v6382
      %v6389 = vrot.slane %v6323, 2
      %v6391 = vsel %vm2092, %v6384, 0
      %v6394 = vsel %vm2092, %v6385, 0
      %v6397 = vsel %vm2092, %v6386, 0
      %v6400 = vsel %vm2092, %v6387, 0
      %v6403 = vsel %vm2140, %v6389, 0
      %6405 = vmatpush.bf16.msra.mxu0 0
      %6406 = vmatpush.bf16.msra.mxu0 0
      %6407 = vmatpush.bf16.msra.mxu0 0
      %6408 = vmatpush.bf16.msra.mxu0 0
      %6409 = vmatpush.bf16.msra.mxu0 0
      %6410 = vmatpush.bf16.msra.mxu0 0
      %6411 = vmatpush.bf16.msra.mxu0 0
      %6412 = vmatpush.bf16.msra.mxu0 %v6403
      %6413 = vmatmul.bf16.gmra.mxu0 %v6391
      %v6414 = vpop.f32.mrf.mxu0
      %v6415 = vadd.f32 0.0, %v6414
      %v6416 = vpop.f32.mrf.mxu0
      %v6417 = vadd.f32 0.0, %v6416
      %6418 = vmatmul.bf16.gmra.mxu0 %v6394
      %v6419 = vpop.f32.mrf.mxu0
      %v6420 = vadd.f32 0.0, %v6419
      %v6421 = vpop.f32.mrf.mxu0
      %v6422 = vadd.f32 0.0, %v6421
      %6423 = vmatmul.bf16.gmra.mxu0 %v6397
      %v6424 = vpop.f32.mrf.mxu0
      %v6425 = vadd.f32 0.0, %v6424
      %v6426 = vpop.f32.mrf.mxu0
      %v6427 = vadd.f32 0.0, %v6426
      %6428 = vmatmul.bf16.gmra.mxu0 %v6400
      %v6429 = vpop.f32.mrf.mxu0
      %v6430 = vadd.f32 0.0, %v6429
      %v6431 = vpop.f32.mrf.mxu0
      %v6432 = vadd.f32 0.0, %v6431
      %6433 = vdwg.mxu0
      %v6434 = vadd.f32 %v6368, %v6415
      %v6435 = vadd.f32 %v6369, %v6417
      %v6436 = vadd.f32 %v6370, %v6420
      %v6437 = vadd.f32 %v6371, %v6422
      %v6438 = vadd.f32 %v6372, %v6425
      %v6439 = vadd.f32 %v6373, %v6427
      %v6440 = vadd.f32 %v6374, %v6430
      %v6441 = vadd.f32 %v6375, %v6432
      %v6442 = vld [vmem:[%s718 + $0x1] sm:$0xff]
      %v6443 = vld [vmem:[%s718 + $0x11] sm:$0xff]
      %v6444 = vld [vmem:[%s718 + $0x21] sm:$0xff]
      %v6445 = vld [vmem:[%s718 + $0x31] sm:$0xff]
      %v6446 = vld [vmem:[%s718 + $0x41] sm:$0xff]
      %v6447 = vld [vmem:[%s718 + $0x51] sm:$0xff]
      %v6448 = vld [vmem:[%s718 + $0x61] sm:$0xff]
      %v6449 = vld [vmem:[%s718 + $0x71] sm:$0xff]
      %v6450 = vpack.c.bf16 %v6443, %v6442
      %v6451 = vpack.c.bf16 %v6445, %v6444
      %v6452 = vpack.c.bf16 %v6447, %v6446
      %v6453 = vpack.c.bf16 %v6449, %v6448
      %v6454 = vpack.c.bf16 %v6184, %v6184
      %v6456 = vsel %vm2092, %v6450, 0
      %v6459 = vsel %vm2092, %v6451, 0
      %v6462 = vsel %vm2092, %v6452, 0
      %v6465 = vsel %vm2092, %v6453, 0
      %v6468 = vsel %vm2140, %v6454, 0
      %6470 = vmatpush.bf16.msra.mxu0 0
      %6471 = vmatpush.bf16.msra.mxu0 0
      %6472 = vmatpush.bf16.msra.mxu0 0
      %6473 = vmatpush.bf16.msra.mxu0 0
      %6474 = vmatpush.bf16.msra.mxu0 0
      %6475 = vmatpush.bf16.msra.mxu0 0
      %6476 = vmatpush.bf16.msra.mxu0 0
      %6477 = vmatpush.bf16.msra.mxu0 %v6468
      %6478 = vmatmul.bf16.gmra.mxu0 %v6456
      %v6479 = vpop.f32.mrf.mxu0
      %v6480 = vadd.f32 0.0, %v6479
      %v6481 = vpop.f32.mrf.mxu0
      %v6482 = vadd.f32 0.0, %v6481
      %6483 = vmatmul.bf16.gmra.mxu0 %v6459
      %v6484 = vpop.f32.mrf.mxu0
      %v6485 = vadd.f32 0.0, %v6484
      %v6486 = vpop.f32.mrf.mxu0
      %v6487 = vadd.f32 0.0, %v6486
      %6488 = vmatmul.bf16.gmra.mxu0 %v6462
      %v6489 = vpop.f32.mrf.mxu0
      %v6490 = vadd.f32 0.0, %v6489
      %v6491 = vpop.f32.mrf.mxu0
      %v6492 = vadd.f32 0.0, %v6491
      %6493 = vmatmul.bf16.gmra.mxu0 %v6465
      %v6494 = vpop.f32.mrf.mxu0
      %v6495 = vadd.f32 0.0, %v6494
      %v6496 = vpop.f32.mrf.mxu0
      %v6497 = vadd.f32 0.0, %v6496
      %6498 = vdwg.mxu0
      %v6499 = vadd.f32 %v6434, %v6480
      %v6500 = vadd.f32 %v6435, %v6482
      %v6501 = vadd.f32 %v6436, %v6485
      %v6502 = vadd.f32 %v6437, %v6487
      %v6503 = vadd.f32 %v6438, %v6490
      %v6504 = vadd.f32 %v6439, %v6492
      %v6505 = vadd.f32 %v6440, %v6495
      %v6506 = vadd.f32 %v6441, %v6497
      %v6507 = vld [vmem:[%s718 + $0x2] sm:$0xff]
      %v6508 = vld [vmem:[%s718 + $0x12] sm:$0xff]
      %v6509 = vld [vmem:[%s718 + $0x22] sm:$0xff]
      %v6510 = vld [vmem:[%s718 + $0x32] sm:$0xff]
      %v6511 = vld [vmem:[%s718 + $0x42] sm:$0xff]
      %v6512 = vld [vmem:[%s718 + $0x52] sm:$0xff]
      %v6513 = vld [vmem:[%s718 + $0x62] sm:$0xff]
      %v6514 = vld [vmem:[%s718 + $0x72] sm:$0xff]
      %v6515 = vpack.c.bf16 %v6508, %v6507
      %v6516 = vpack.c.bf16 %v6510, %v6509
      %v6517 = vpack.c.bf16 %v6512, %v6511
      %v6518 = vpack.c.bf16 %v6514, %v6513
      %v6520 = vrot.slane %v6454, 2
      %v6522 = vsel %vm2092, %v6515, 0
      %v6525 = vsel %vm2092, %v6516, 0
      %v6528 = vsel %vm2092, %v6517, 0
      %v6531 = vsel %vm2092, %v6518, 0
      %v6534 = vsel %vm2140, %v6520, 0
      %6536 = vmatpush.bf16.msra.mxu0 0
      %6537 = vmatpush.bf16.msra.mxu0 0
      %6538 = vmatpush.bf16.msra.mxu0 0
      %6539 = vmatpush.bf16.msra.mxu0 0
      %6540 = vmatpush.bf16.msra.mxu0 0
      %6541 = vmatpush.bf16.msra.mxu0 0
      %6542 = vmatpush.bf16.msra.mxu0 0
      %6543 = vmatpush.bf16.msra.mxu0 %v6534
      %6544 = vmatmul.bf16.gmra.mxu0 %v6522
      %v6545 = vpop.f32.mrf.mxu0
      %v6546 = vadd.f32 0.0, %v6545
      %v6547 = vpop.f32.mrf.mxu0
      %v6548 = vadd.f32 0.0, %v6547
      %6549 = vmatmul.bf16.gmra.mxu0 %v6525
      %v6550 = vpop.f32.mrf.mxu0
      %v6551 = vadd.f32 0.0, %v6550
      %v6552 = vpop.f32.mrf.mxu0
      %v6553 = vadd.f32 0.0, %v6552
      %6554 = vmatmul.bf16.gmra.mxu0 %v6528
      %v6555 = vpop.f32.mrf.mxu0
      %v6556 = vadd.f32 0.0, %v6555
      %v6557 = vpop.f32.mrf.mxu0
      %v6558 = vadd.f32 0.0, %v6557
      %6559 = vmatmul.bf16.gmra.mxu0 %v6531
      %v6560 = vpop.f32.mrf.mxu0
      %v6561 = vadd.f32 0.0, %v6560
      %v6562 = vpop.f32.mrf.mxu0
      %v6563 = vadd.f32 0.0, %v6562
      %6564 = vdwg.mxu0
      %v6565 = vadd.f32 %v6499, %v6546
      %v6566 = vadd.f32 %v6500, %v6548
      %v6567 = vadd.f32 %v6501, %v6551
      %v6568 = vadd.f32 %v6502, %v6553
      %v6569 = vadd.f32 %v6503, %v6556
      %v6570 = vadd.f32 %v6504, %v6558
      %v6571 = vadd.f32 %v6505, %v6561
      %v6572 = vadd.f32 %v6506, %v6563
      %v6573 = vld [vmem:[%s1083] sm:$0xff]
      %v6574 = vld [vmem:[%s1083 + $0x10] sm:$0xff]
      %v6575 = vld [vmem:[%s1083 + $0x20] sm:$0xff]
      %v6576 = vld [vmem:[%s1083 + $0x30] sm:$0xff]
      %v6577 = vld [vmem:[%s1083 + $0x40] sm:$0xff]
      %v6578 = vld [vmem:[%s1083 + $0x50] sm:$0xff]
      %v6579 = vld [vmem:[%s1083 + $0x60] sm:$0xff]
      %v6580 = vld [vmem:[%s1083 + $0x70] sm:$0xff]
      %v6581 = vpack.c.bf16 %v6574, %v6573
      %v6582 = vpack.c.bf16 %v6576, %v6575
      %v6583 = vpack.c.bf16 %v6578, %v6577
      %v6584 = vpack.c.bf16 %v6580, %v6579
      %v6585 = vpack.c.bf16 %v6185, %v6185
      %v6587 = vsel %vm2092, %v6581, 0
      %v6590 = vsel %vm2092, %v6582, 0
      %v6593 = vsel %vm2092, %v6583, 0
      %v6596 = vsel %vm2092, %v6584, 0
      %v6599 = vsel %vm2140, %v6585, 0
      %6601 = vmatpush.bf16.msra.mxu0 0
      %6602 = vmatpush.bf16.msra.mxu0 0
      %6603 = vmatpush.bf16.msra.mxu0 0
      %6604 = vmatpush.bf16.msra.mxu0 0
      %6605 = vmatpush.bf16.msra.mxu0 0
      %6606 = vmatpush.bf16.msra.mxu0 0
      %6607 = vmatpush.bf16.msra.mxu0 0
      %6608 = vmatpush.bf16.msra.mxu0 %v6599
      %6609 = vmatmul.bf16.gmra.mxu0 %v6587
      %v6610 = vpop.f32.mrf.mxu0
      %v6611 = vadd.f32 0.0, %v6610
      %v6612 = vpop.f32.mrf.mxu0
      %v6613 = vadd.f32 0.0, %v6612
      %6614 = vmatmul.bf16.gmra.mxu0 %v6590
      %v6615 = vpop.f32.mrf.mxu0
      %v6616 = vadd.f32 0.0, %v6615
      %v6617 = vpop.f32.mrf.mxu0
      %v6618 = vadd.f32 0.0, %v6617
      %6619 = vmatmul.bf16.gmra.mxu0 %v6593
      %v6620 = vpop.f32.mrf.mxu0
      %v6621 = vadd.f32 0.0, %v6620
      %v6622 = vpop.f32.mrf.mxu0
      %v6623 = vadd.f32 0.0, %v6622
      %6624 = vmatmul.bf16.gmra.mxu0 %v6596
      %v6625 = vpop.f32.mrf.mxu0
      %v6626 = vadd.f32 0.0, %v6625
      %v6627 = vpop.f32.mrf.mxu0
      %v6628 = vadd.f32 0.0, %v6627
      %6629 = vdwg.mxu0
      %v6630 = vadd.f32 %v6565, %v6611
      %v6631 = vadd.f32 %v6566, %v6613
      %v6632 = vadd.f32 %v6567, %v6616
      %v6633 = vadd.f32 %v6568, %v6618
      %v6634 = vadd.f32 %v6569, %v6621
      %v6635 = vadd.f32 %v6570, %v6623
      %v6636 = vadd.f32 %v6571, %v6626
      %v6637 = vadd.f32 %v6572, %v6628
      %v6638 = vld [vmem:[%s1083 + $0x1] sm:$0xff]
      %v6639 = vld [vmem:[%s1083 + $0x11] sm:$0xff]
      %v6640 = vld [vmem:[%s1083 + $0x21] sm:$0xff]
      %v6641 = vld [vmem:[%s1083 + $0x31] sm:$0xff]
      %v6642 = vld [vmem:[%s1083 + $0x41] sm:$0xff]
      %v6643 = vld [vmem:[%s1083 + $0x51] sm:$0xff]
      %v6644 = vld [vmem:[%s1083 + $0x61] sm:$0xff]
      %v6645 = vld [vmem:[%s1083 + $0x71] sm:$0xff]
      %v6646 = vpack.c.bf16 %v6639, %v6638
      %v6647 = vpack.c.bf16 %v6641, %v6640
      %v6648 = vpack.c.bf16 %v6643, %v6642
      %v6649 = vpack.c.bf16 %v6645, %v6644
      %v6651 = vrot.slane %v6585, 2
      %v6653 = vsel %vm2092, %v6646, 0
      %v6656 = vsel %vm2092, %v6647, 0
      %v6659 = vsel %vm2092, %v6648, 0
      %v6662 = vsel %vm2092, %v6649, 0
      %v6665 = vsel %vm2140, %v6651, 0
      %6667 = vmatpush.bf16.msra.mxu0 0
      %6668 = vmatpush.bf16.msra.mxu0 0
      %6669 = vmatpush.bf16.msra.mxu0 0
      %6670 = vmatpush.bf16.msra.mxu0 0
      %6671 = vmatpush.bf16.msra.mxu0 0
      %6672 = vmatpush.bf16.msra.mxu0 0
      %6673 = vmatpush.bf16.msra.mxu0 0
      %6674 = vmatpush.bf16.msra.mxu0 %v6665
      %6675 = vmatmul.bf16.gmra.mxu0 %v6653
      %v6676 = vpop.f32.mrf.mxu0
      %v6677 = vadd.f32 0.0, %v6676
      %v6678 = vpop.f32.mrf.mxu0
      %v6679 = vadd.f32 0.0, %v6678
      %6680 = vmatmul.bf16.gmra.mxu0 %v6656
      %v6681 = vpop.f32.mrf.mxu0
      %v6682 = vadd.f32 0.0, %v6681
      %v6683 = vpop.f32.mrf.mxu0
      %v6684 = vadd.f32 0.0, %v6683
      %6685 = vmatmul.bf16.gmra.mxu0 %v6659
      %v6686 = vpop.f32.mrf.mxu0
      %v6687 = vadd.f32 0.0, %v6686
      %v6688 = vpop.f32.mrf.mxu0
      %v6689 = vadd.f32 0.0, %v6688
      %6690 = vmatmul.bf16.gmra.mxu0 %v6662
      %v6691 = vpop.f32.mrf.mxu0
      %v6692 = vadd.f32 0.0, %v6691
      %v6693 = vpop.f32.mrf.mxu0
      %v6694 = vadd.f32 0.0, %v6693
      %6695 = vdwg.mxu0
      %v6696 = vadd.f32 %v6630, %v6677
      %v6697 = vadd.f32 %v6631, %v6679
      %v6698 = vadd.f32 %v6632, %v6682
      %v6699 = vadd.f32 %v6633, %v6684
      %v6700 = vadd.f32 %v6634, %v6687
      %v6701 = vadd.f32 %v6635, %v6689
      %v6702 = vadd.f32 %v6636, %v6692
      %v6703 = vadd.f32 %v6637, %v6694
      %v6704 = vld [vmem:[%s1083 + $0x2] sm:$0xff]
      %v6705 = vld [vmem:[%s1083 + $0x12] sm:$0xff]
      %v6706 = vld [vmem:[%s1083 + $0x22] sm:$0xff]
      %v6707 = vld [vmem:[%s1083 + $0x32] sm:$0xff]
      %v6708 = vld [vmem:[%s1083 + $0x42] sm:$0xff]
      %v6709 = vld [vmem:[%s1083 + $0x52] sm:$0xff]
      %v6710 = vld [vmem:[%s1083 + $0x62] sm:$0xff]
      %v6711 = vld [vmem:[%s1083 + $0x72] sm:$0xff]
      %v6712 = vpack.c.bf16 %v6705, %v6704
      %v6713 = vpack.c.bf16 %v6707, %v6706
      %v6714 = vpack.c.bf16 %v6709, %v6708
      %v6715 = vpack.c.bf16 %v6711, %v6710
      %v6716 = vpack.c.bf16 %v6186, %v6186
      %v6718 = vsel %vm2092, %v6712, 0
      %v6721 = vsel %vm2092, %v6713, 0
      %v6724 = vsel %vm2092, %v6714, 0
      %v6727 = vsel %vm2092, %v6715, 0
      %v6730 = vsel %vm2140, %v6716, 0
      %6732 = vmatpush.bf16.msra.mxu0 0
      %6733 = vmatpush.bf16.msra.mxu0 0
      %6734 = vmatpush.bf16.msra.mxu0 0
      %6735 = vmatpush.bf16.msra.mxu0 0
      %6736 = vmatpush.bf16.msra.mxu0 0
      %6737 = vmatpush.bf16.msra.mxu0 0
      %6738 = vmatpush.bf16.msra.mxu0 0
      %6739 = vmatpush.bf16.msra.mxu0 %v6730
      %6740 = vmatmul.bf16.gmra.mxu0 %v6718
      %v6741 = vpop.f32.mrf.mxu0
      %v6742 = vadd.f32 0.0, %v6741
      %v6743 = vpop.f32.mrf.mxu0
      %v6744 = vadd.f32 0.0, %v6743
      %6745 = vmatmul.bf16.gmra.mxu0 %v6721
      %v6746 = vpop.f32.mrf.mxu0
      %v6747 = vadd.f32 0.0, %v6746
      %v6748 = vpop.f32.mrf.mxu0
      %v6749 = vadd.f32 0.0, %v6748
      %6750 = vmatmul.bf16.gmra.mxu0 %v6724
      %v6751 = vpop.f32.mrf.mxu0
      %v6752 = vadd.f32 0.0, %v6751
      %v6753 = vpop.f32.mrf.mxu0
      %v6754 = vadd.f32 0.0, %v6753
      %6755 = vmatmul.bf16.gmra.mxu0 %v6727
      %v6756 = vpop.f32.mrf.mxu0
      %v6757 = vadd.f32 0.0, %v6756
      %v6758 = vpop.f32.mrf.mxu0
      %v6759 = vadd.f32 0.0, %v6758
      %6760 = vdwg.mxu0
      %v6761 = vadd.f32 %v6696, %v6742
      %v6762 = vadd.f32 %v6697, %v6744
      %v6763 = vadd.f32 %v6698, %v6747
      %v6764 = vadd.f32 %v6699, %v6749
      %v6765 = vadd.f32 %v6700, %v6752
      %v6766 = vadd.f32 %v6701, %v6754
      %v6767 = vadd.f32 %v6702, %v6757
      %v6768 = vadd.f32 %v6703, %v6759
      %v6769 = vperm.slane %v6187, 0
      %v6770 = vadd.f32 %v6761, %v6769
      %v6771 = vadd.f32 %v6762, %v6769
      %v6772 = vadd.f32 %v6763, %v6769
      %v6773 = vadd.f32 %v6764, %v6769
      %v6774 = vadd.f32 %v6765, %v6769
      %v6775 = vadd.f32 %v6766, %v6769
      %v6776 = vadd.f32 %v6767, %v6769
      %v6777 = vadd.f32 %v6768, %v6769
      %6778 = vst.msk [vmem:[%s440] sm:$0xff] %vm2092, %v6770
      %6779 = vst.msk [vmem:[%s440 + $0x8] sm:$0xff] %vm2092, %v6771
      %6780 = vst.msk [vmem:[%s440 + $0x10] sm:$0xff] %vm2092, %v6772
      %6781 = vst.msk [vmem:[%s440 + $0x18] sm:$0xff] %vm2092, %v6773
      %6782 = vst.msk [vmem:[%s440 + $0x20] sm:$0xff] %vm2092, %v6774
      %6783 = vst.msk [vmem:[%s440 + $0x28] sm:$0xff] %vm2092, %v6775
      %6784 = vst.msk [vmem:[%s440 + $0x30] sm:$0xff] %vm2092, %v6776
      %6785 = vst.msk [vmem:[%s440 + $0x38] sm:$0xff] %vm2092, %v6777
      %p6786 = scmp.lt.s32.totalorder %s20, 1
      %s6787 = scalar_select %p6786, %s20, 1
      %s6788 = smul.addr %s6787, 8
      %s6789 = smul.addr %s6788, 8
      %s6790 = scalar_lea.vmem %s9, %s6789
      // Predicated region
      $region57: #{controlnet_forward.3} parent=55 // pred_check
        %p6791 = pneg %p262
      $region58: #{controlnet_forward.3} parent=55 // pred_check_branch
        %6793 = sbr.rel (%p6791) target = $region60
      $region59: #{controlnet_forward.3} parent=55 // pred_region
        _
      $region60: #{controlnet_forward.3} parent=55 // pred_fallthru
        _
    $region56: #{controlnet_forward.3} parent=5 // pred_fallthru
      _
    %p6794 = scmp.le.s32.totalorder 2, %s15
    // Predicated region
    $region61: #{controlnet_forward.3} parent=5 // pred_check
      %p6795 = pneg %p6794
    $region62: #{controlnet_forward.3} parent=5 // pred_check_branch
      %6797 = sbr.rel (%p6795) target = $region64
    $region63: #{controlnet_forward.3} parent=5 // pred_region
      %s6798 = ssub.s32 %s15, 2
      // Predicated region
      $region65: #{controlnet_forward.3} parent=63 // pred_check
        %p6799 = pneg %p268
      $region66: #{controlnet_forward.3} parent=63 // pred_check_branch
        %6801 = sbr.rel (%p6799) target = $region68
      $region67: #{controlnet_forward.3} parent=63 // pred_region
        %p6802 = scmp.lt.s32.totalorder %s21, 1
        %s6803 = scalar_select %p6802, %s21, 1
        %s6804 = smul.addr %s6803, 8
        %s6805 = smul.addr %s6804, 8
        %s6806 = scalar_lea.vmem %s9, %s6805
      $region68: #{controlnet_forward.3} parent=63 // pred_fallthru
        _
    $region64: #{controlnet_forward.3} parent=5 // pred_fallthru
      _
  $region6: #{controlnet_forward.3} parent=0 // loop_footer
    %s19 = sadd.s32 1, %s15
  $region7: #{controlnet_forward.3} parent=0 // loop_footer_branch
    %14 = sbr.rel target = $region3
  $region8: #{controlnet_forward.3} parent=0 // loop_exit
    _

</llo_original>
